<compile_context>
chip_gen: v6e
topology: v6e:2x2x1
jax: 0.10.0
libtpu: 0.0.40
codegen_flags: <defaults>
</compile_context>

<pallas_src>
import functools

import jax
import jax.numpy as jnp
from jax.experimental import pallas as pl
from jax.experimental.pallas import tpu as pltpu

NUM_HEADS = 8
NUM_GROUPS = 8   # GroupNorm(8, channels)
EPS = 1e-5       # PyTorch GroupNorm default eps


def cross_attention_kernel(x_ref, wqkv_ref, bqkv_ref, wo_ref, consts_ref, out_ref,
                           *, num_heads, num_groups):
    bt, C, S = x_ref.shape          # x block: (bt, C, S), native channel-major layout
    H = num_heads
    d = C // H
    G = num_groups
    cg = C // G

    # Constant slab: row 0 = bo, row 1 = gamma, row 2 = beta, rows 3:3+G = M^T
    # (one-hot group membership, (G, C)), precomputed host-side.
    bo = consts_ref[0:1, :]
    gamma = consts_ref[1:2, :]
    beta = consts_ref[2:3, :]
    mt = consts_ref[3:3 + G, :]                                       # (G, C)

    # ---- x: (bt, C, S) -> (bt*S, C) via small in-VMEM 2-D transposes --------
    x_cs = [x_ref[bi].astype(jnp.float32) for bi in range(bt)]        # (C, S) each
    x_sc = [jnp.transpose(xb) for xb in x_cs]                         # (S, C) each
    x2d = x_sc[0] if bt == 1 else jnp.concatenate(x_sc, axis=0)       # (bt*S, C)

    # ---- Fused Q/K/V projection: one lane-dense MXU dispatch ----------------
    qkv = jnp.dot(x2d, wqkv_ref[...],
                  preferred_element_type=jnp.float32) + bqkv_ref[...]  # (bt*S, 3C)

    def to_heads(t2d):   # (S, C) -> (H, S, d); head h = channels [h*d, (h+1)*d)
        return jnp.transpose(t2d.T.reshape(H, d, S), (0, 2, 1))

    # ---- Head-batched attention (bt is a small static Python int) -----------
    o_sc = []
    for bi in range(bt):
        rows = slice(bi * S, (bi + 1) * S)
        q_h = to_heads(qkv[rows, 0:C])            # scale pre-folded into wq/bq
        k_h = to_heads(qkv[rows, C:2 * C])
        v_h = to_heads(qkv[rows, 2 * C:3 * C])

        s = jnp.einsum('hqd,hkd->hqk', q_h, k_h,
                       preferred_element_type=jnp.float32)             # (H, S, S)
        s = s - jnp.max(s, axis=-1, keepdims=True)
        p = jnp.exp(s)
        l = jnp.sum(p, axis=-1, keepdims=True)                         # (H, S, 1)
        o_h = jnp.einsum('hqk,hkd->hqd', p, v_h,
                         preferred_element_type=jnp.float32)           # (H, S, d)
        o_h = o_h / l                              # exact; l is tiny (H*S values)
        # (H, S, d) -> (C, S) -> (S, C): heads back to contiguous channels.
        o_sc.append(jnp.transpose(o_h, (0, 2, 1)).reshape(C, S).T)
    o2d = o_sc[0] if bt == 1 else jnp.concatenate(o_sc, axis=0)        # (bt*S, C)

    # ---- Output projection: one dense (bt*S, C) @ (C, C) matmul -------------
    o = jnp.dot(o2d, wo_ref[...], preferred_element_type=jnp.float32) + bo

    # ---- GroupNorm (per batch element) + residual; stores are lane-dense ----
    n_elem = float(S * cg)
    for bi in range(bt):
        ob = o[bi * S:(bi + 1) * S, :]                                  # (S, C)
        col_sum = jnp.sum(ob, axis=0, keepdims=True)                    # (1, C)
        mean_g = jax.lax.dot_general(col_sum, mt, (((1,), (1,)), ((), ())),
                                     preferred_element_type=jnp.float32) / n_elem
        mean_c = jnp.dot(mean_g, mt, preferred_element_type=jnp.float32)  # (1, C)
        cen = ob - mean_c
        ss = jnp.sum(cen * cen, axis=0, keepdims=True)                  # (1, C)
        var_g = jax.lax.dot_general(ss, mt, (((1,), (1,)), ((), ())),
                                    preferred_element_type=jnp.float32) / n_elem
        inv_c = jnp.dot(jax.lax.rsqrt(var_g + EPS), mt,
                        preferred_element_type=jnp.float32)             # (1, C)
        gn = cen * (inv_c * gamma) + beta                               # (S, C)
        out_ref[bi] = (jnp.transpose(gn) + x_cs[bi]).astype(out_ref.dtype)


def cross_attention(x, params, num_heads=NUM_HEADS, num_groups=NUM_GROUPS):
    """x: (B, C, H, W) float32.  params: PyTorch-style (out, in) Linear weights."""
    B, C, Hs, Ws = x.shape
    S = Hs * Ws
    d = C // num_heads
    G = num_groups
    cg = C // G
    scale = float(d) ** (-0.5)
    wq, bq, wk, bk, wv, bv, wo, bo, gamma, beta = params

    # ---- Host-side one-time packing into dense, lane-friendly slabs ---------
    # Fold the attention scale into the q projection (exact: linear op).
    wqkv = jnp.concatenate([wq.T * scale, wk.T, wv.T], axis=1)          # (C, 3C)
    bqkv = jnp.concatenate([bq * scale, bk, bv]).reshape(1, 3 * C)      # (1, 3C)
    wo_packed = wo.T                                                    # (C, C)
    mt = (jnp.arange(C)[None, :] // cg ==
          jnp.arange(G)[:, None]).astype(jnp.float32)                   # (G, C)
    consts = jnp.concatenate([bo.reshape(1, C), gamma.reshape(1, C),
                              beta.reshape(1, C), mt], axis=0)          # (3+G, C)

    # Native (B, C, S) layout end to end — no HBM transposes around the call.
    x_cs = x.reshape(B, C, S)

    # Batch-block the grid: fill the MXU M dimension when S is small, but keep
    # >= 2 grid steps when B allows so both v7x TensorCores have work.
    bt = max(1, min(B, -(-256 // S)))
    while bt > 1 and B // bt < 2 and B >= 2:
        bt -= 1
    while B % bt:
        bt -= 1

    # VMEM budget from the actual footprint (blocks double-buffered, weights,
    # QKV + score intermediates), with 2x headroom; clamped to [4, 64] MiB.
    vmem_bytes = 4 * (4 * bt * C * S
                      + 2 * (3 * C * C + 3 * C + C * C + (3 + G) * C)
                      + bt * S * 3 * C
                      + 3 * bt * num_heads * S * S
                      + 8 * bt * S * C)
    vmem_limit = int(min(max(2 * vmem_bytes, 4 * 1024 * 1024), 64 * 1024 * 1024))

    kernel = functools.partial(cross_attention_kernel,
                               num_heads=num_heads, num_groups=num_groups)

    out_cs = pl.pallas_call(
        kernel,
        out_shape=jax.ShapeDtypeStruct((B, C, S), x.dtype),
        grid_spec=pltpu.PrefetchScalarGridSpec(
            num_scalar_prefetch=0,
            grid=(B // bt,),
            in_specs=[
                pl.BlockSpec((bt, C, S), lambda b: (b, 0, 0)),      # x (B, C, S)
                pl.BlockSpec((C, 3 * C), lambda b: (0, 0)),         # fused W_qkv
                pl.BlockSpec((1, 3 * C), lambda b: (0, 0)),         # fused b_qkv
                pl.BlockSpec((C, C), lambda b: (0, 0)),             # W_out (dense)
                pl.BlockSpec((3 + G, C), lambda b: (0, 0)),         # bo/gamma/beta/M^T
            ],
            out_specs=pl.BlockSpec((bt, C, S), lambda b: (b, 0, 0)),
        ),
        compiler_params=pltpu.CompilerParams(
            dimension_semantics=("parallel",),
            vmem_limit_bytes=vmem_limit),
    )(x_cs, wqkv, bqkv, wo_packed, consts)

    return out_cs.reshape(B, C, Hs, Ws)


def cross_attention_reference(x, params, num_heads=NUM_HEADS, num_groups=NUM_GROUPS):
    """Pure-JAX replica of the PyTorch forward (validation only)."""
    B, C, Hs, Ws = x.shape
    wq, bq, wk, bk, wv, bv, wo, bo, gamma, beta = params
    x_seq = jnp.transpose(x.reshape(B, C, -1), (0, 2, 1))             # (B, S, C)
    q = x_seq @ wq.T + bq
    k = x_seq @ wk.T + bk
    v = x_seq @ wv.T + bv
    d = C // num_heads
    split = lambda t: jnp.transpose(t.reshape(B, -1, num_heads, d), (0, 2, 1, 3))
    q, k, v = split(q), split(k), split(v)
    attn = jnp.einsum('bhqd,bhkd->bhqk', q, k) * (d ** -0.5)
    attn = jax.nn.softmax(attn, axis=-1)
    out = jnp.einsum('bhqk,bhkd->bhqd', attn, v)
    out = jnp.transpose(out, (0, 2, 1, 3)).reshape(B, -1, C)
    out = out @ wo.T + bo
    out = jnp.transpose(out, (0, 2, 1)).reshape(B, C, Hs, Ws)
    g = out.reshape(B, num_groups, C // num_groups, Hs, Ws)
    mean = jnp.mean(g, axis=(2, 3, 4), keepdims=True)
    var = jnp.mean((g - mean) ** 2, axis=(2, 3, 4), keepdims=True)
    gn = (g - mean) / jnp.sqrt(var + EPS)
    gn = gn.reshape(B, C, Hs, Ws) * gamma.reshape(1, C, 1, 1) + beta.reshape(1, C, 1, 1)
    return gn + x


def make_params(key, channels):
    """Deterministic synthetic parameters, PyTorch layout: W (out, in), b (C,)."""
    ks = jax.random.split(key, 10)
    def lin(kw, kb):
        w = 0.05 * jax.random.normal(kw, (channels, channels), jnp.float32)
        b = 0.05 * jax.random.normal(kb, (channels,), jnp.float32)
        return w, b
    wq, bq = lin(ks[0], ks[1])
    wk, bk = lin(ks[2], ks[3])
    wv, bv = lin(ks[4], ks[5])
    wo, bo = lin(ks[6], ks[7])
    gamma = 1.0 + 0.1 * jax.random.normal(ks[8], (channels,), jnp.float32)
    beta = 0.1 * jax.random.normal(ks[9], (channels,), jnp.float32)
    return wq, bq, wk, bk, wv, bv, wo, bo, gamma, beta


if __name__ == "__main__":
    # channels divisible by num_heads=8 and num_groups=8; 16x16 spatial -> S=256
    # (lane-dense output stores, MXU M dimension filled with a single batch element).
    B, C, H, W = 2, 32, 16, 16
    key = jax.random.PRNGKey(0)
    kx, kp = jax.random.split(key)
    x = jax.random.normal(kx, (B, C, H, W), jnp.float32)
    params = make_params(kp, C)

    out = jax.block_until_ready(cross_attention(x, params))
    ref = jax.block_until_ready(cross_attention_reference(x, params))

    assert out.shape == (B, C, H, W)
    # All matmul/softmax/GroupNorm math stays in f32 with an exact softmax
    # divide, so the kernel tracks the reference to ~1e-5.
    assert jnp.allclose(out, ref, atol=1e-3, rtol=1e-3), \
        f"max abs err = {jnp.max(jnp.abs(out - ref))}"

    print("KERNEL_OK")
</pallas_src>

<mosaic_0001>
module attributes {stable_mosaic.version = 11 : i64} {
  func.func @cross_attention_kernel(%arg0: i32, %arg1: memref<1x32x256xf32, #tpu.memory_space<vmem>>, %arg2: memref<32x96xf32, #tpu.memory_space<vmem>>, %arg3: memref<1x96xf32, #tpu.memory_space<vmem>>, %arg4: memref<32x32xf32, #tpu.memory_space<vmem>>, %arg5: memref<11x32xf32, #tpu.memory_space<vmem>>, %arg6: memref<1x32x256xf32, #tpu.memory_space<vmem>>) attributes {dimension_semantics = [#tpu.dimension_semantics<parallel>], iteration_bounds = array<i64: 2>, scalar_prefetch = 0 : i64, scratch_operands = 0 : i64, tpu.core_type = #tpu.core_type<tc>, window_params = [{transform_indices = @transform_0, window_bounds = array<i64: 1, 32, 256>}, {pipeline_mode = #tpu.pipeline_mode<synchronous>, transform_indices = @transform_1, window_bounds = array<i64: 32, 96>}, {pipeline_mode = #tpu.pipeline_mode<synchronous>, transform_indices = @transform_2, window_bounds = array<i64: 1, 96>}, {pipeline_mode = #tpu.pipeline_mode<synchronous>, transform_indices = @transform_3, window_bounds = array<i64: 32, 32>}, {pipeline_mode = #tpu.pipeline_mode<synchronous>, transform_indices = @transform_4, window_bounds = array<i64: 11, 32>}, {transform_indices = @transform_5, window_bounds = array<i64: 1, 32, 256>}]} {
    %c0 = arith.constant 0 : index
    %c0_0 = arith.constant 0 : index
    %0 = vector.load %arg5[%c0, %c0_0] : memref<11x32xf32, #tpu.memory_space<vmem>>, vector<1x32xf32>
    %c1 = arith.constant 1 : index
    %c0_1 = arith.constant 0 : index
    %1 = vector.load %arg5[%c1, %c0_1] : memref<11x32xf32, #tpu.memory_space<vmem>>, vector<1x32xf32>
    %c2 = arith.constant 2 : index
    %c0_2 = arith.constant 0 : index
    %2 = vector.load %arg5[%c2, %c0_2] : memref<11x32xf32, #tpu.memory_space<vmem>>, vector<1x32xf32>
    %c3 = arith.constant 3 : index
    %c0_3 = arith.constant 0 : index
    %3 = vector.load %arg5[%c3, %c0_3] : memref<11x32xf32, #tpu.memory_space<vmem>>, vector<8x32xf32>
    %c0_4 = arith.constant 0 : index
    %c0_5 = arith.constant 0 : index
    %c0_6 = arith.constant 0 : index
    %4 = vector.load %arg1[%c0_4, %c0_5, %c0_6] : memref<1x32x256xf32, #tpu.memory_space<vmem>>, vector<1x32x256xf32>
    %5 = vector.shape_cast %4 : vector<1x32x256xf32> to vector<32x256xf32>
    %6 = tpu.transpose %5, [1, 0] : vector<32x256xf32> -> vector<256x32xf32>
    %c0_7 = arith.constant 0 : index
    %c0_8 = arith.constant 0 : index
    %7 = vector.load %arg2[%c0_7, %c0_8] : memref<32x96xf32, #tpu.memory_space<vmem>>, vector<32x96xf32>
    %cst = arith.constant dense<0.000000e+00> : vector<256x96xf32>
    %8 = tpu.matmul %6, %7, %cst {dimension_numbers = #tpu.dot_dimension_numbers<[1], [0], [0], [1], [0, 0, 1, 1], [], []>} : vector<256x32xf32>, vector<32x96xf32>, vector<256x96xf32> -> vector<256x96xf32>
    %c0_9 = arith.constant 0 : index
    %c0_10 = arith.constant 0 : index
    %9 = vector.load %arg3[%c0_9, %c0_10] : memref<1x96xf32, #tpu.memory_space<vmem>>, vector<1x96xf32>
    %10 = vector.broadcast %9 : vector<1x96xf32> to vector<256x96xf32>
    %11 = arith.addf %8, %10 : vector<256x96xf32>
    %12 = vector.extract_strided_slice %11 {offsets = [0, 0], sizes = [256, 32], strides = [1, 1]} : vector<256x96xf32> to vector<256x32xf32>
    %13 = tpu.transpose %12, [1, 0] : vector<256x32xf32> -> vector<32x256xf32>
    %14 = vector.shape_cast %13 : vector<32x256xf32> to vector<8x4x256xf32>
    %15 = tpu.transpose %14, [0, 2, 1] : vector<8x4x256xf32> -> vector<8x256x4xf32>
    %16 = vector.extract_strided_slice %11 {offsets = [0, 32], sizes = [256, 32], strides = [1, 1]} : vector<256x96xf32> to vector<256x32xf32>
    %17 = tpu.transpose %16, [1, 0] : vector<256x32xf32> -> vector<32x256xf32>
    %18 = vector.shape_cast %17 : vector<32x256xf32> to vector<8x4x256xf32>
    %19 = tpu.transpose %18, [0, 2, 1] : vector<8x4x256xf32> -> vector<8x256x4xf32>
    %20 = vector.extract_strided_slice %11 {offsets = [0, 64], sizes = [256, 32], strides = [1, 1]} : vector<256x96xf32> to vector<256x32xf32>
    %21 = tpu.transpose %20, [1, 0] : vector<256x32xf32> -> vector<32x256xf32>
    %22 = vector.shape_cast %21 : vector<32x256xf32> to vector<8x4x256xf32>
    %23 = tpu.transpose %22, [0, 2, 1] : vector<8x4x256xf32> -> vector<8x256x4xf32>
    "tpu.trace_start"() <{level = 10 : i32, message = "hqd,hkd->hqk"}> : () -> ()
    %cst_11 = arith.constant dense<0.000000e+00> : vector<8x256x256xf32>
    %24 = tpu.matmul %15, %19, %cst_11 {dimension_numbers = #tpu.dot_dimension_numbers<[2], [2], [1], [1], [0, 0, 0, 1, 1, 1], [0], [0]>} : vector<8x256x4xf32>, vector<8x256x4xf32>, vector<8x256x256xf32> -> vector<8x256x256xf32>
    "tpu.trace_stop"() : () -> ()
    %cst_12 = arith.constant dense<0xFF800000> : vector<8x256xf32>
    %25 = vector.multi_reduction <maximumf>, %24, %cst_12 [2] : vector<8x256x256xf32> to vector<8x256xf32>
    %26 = vector.shape_cast %25 : vector<8x256xf32> to vector<8x256x1xf32>
    %27 = vector.broadcast %26 : vector<8x256x1xf32> to vector<8x256x256xf32>
    %28 = arith.subf %24, %27 : vector<8x256x256xf32>
    %29 = math.exp %28 : vector<8x256x256xf32>
    %cst_13 = arith.constant dense<0.000000e+00> : vector<8x256xf32>
    %30 = vector.multi_reduction <add>, %29, %cst_13 [2] : vector<8x256x256xf32> to vector<8x256xf32>
    %31 = vector.shape_cast %30 : vector<8x256xf32> to vector<8x256x1xf32>
    "tpu.trace_start"() <{level = 10 : i32, message = "hqk,hkd->hqd"}> : () -> ()
    %cst_14 = arith.constant dense<0.000000e+00> : vector<8x256x4xf32>
    %32 = tpu.matmul %29, %23, %cst_14 {dimension_numbers = #tpu.dot_dimension_numbers<[2], [1], [1], [2], [0, 0, 0, 1, 1, 2], [0], [0]>} : vector<8x256x256xf32>, vector<8x256x4xf32>, vector<8x256x4xf32> -> vector<8x256x4xf32>
    "tpu.trace_stop"() : () -> ()
    %33 = vector.broadcast %31 : vector<8x256x1xf32> to vector<8x256x4xf32>
    %34 = arith.divf %32, %33 : vector<8x256x4xf32>
    %35 = tpu.transpose %34, [0, 2, 1] : vector<8x256x4xf32> -> vector<8x4x256xf32>
    %36 = vector.shape_cast %35 : vector<8x4x256xf32> to vector<32x256xf32>
    %37 = tpu.transpose %36, [1, 0] : vector<32x256xf32> -> vector<256x32xf32>
    %c0_15 = arith.constant 0 : index
    %c0_16 = arith.constant 0 : index
    %38 = vector.load %arg4[%c0_15, %c0_16] : memref<32x32xf32, #tpu.memory_space<vmem>>, vector<32x32xf32>
    %cst_17 = arith.constant dense<0.000000e+00> : vector<256x32xf32>
    %39 = tpu.matmul %37, %38, %cst_17 {dimension_numbers = #tpu.dot_dimension_numbers<[1], [0], [0], [1], [0, 0, 1, 1], [], []>} : vector<256x32xf32>, vector<32x32xf32>, vector<256x32xf32> -> vector<256x32xf32>
    %40 = vector.broadcast %0 : vector<1x32xf32> to vector<256x32xf32>
    %41 = arith.addf %39, %40 : vector<256x32xf32>
    %cst_18 = arith.constant dense<0.000000e+00> : vector<32xf32>
    %42 = vector.multi_reduction <add>, %41, %cst_18 [0] : vector<256x32xf32> to vector<32xf32>
    %43 = vector.shape_cast %42 : vector<32xf32> to vector<1x32xf32>
    %cst_19 = arith.constant dense<0.000000e+00> : vector<1x8xf32>
    %44 = tpu.matmul %43, %3, %cst_19 {dimension_numbers = #tpu.dot_dimension_numbers<[1], [1], [0], [0], [0, 0, 1, 0], [], []>} : vector<1x32xf32>, vector<8x32xf32>, vector<1x8xf32> -> vector<1x8xf32>
    %cst_20 = arith.constant 1.024000e+03 : f32
    %45 = vector.broadcast %cst_20 : f32 to vector<1x8xf32>
    %46 = arith.divf %44, %45 : vector<1x8xf32>
    %cst_21 = arith.constant dense<0.000000e+00> : vector<1x32xf32>
    %47 = tpu.matmul %46, %3, %cst_21 {dimension_numbers = #tpu.dot_dimension_numbers<[1], [0], [0], [1], [0, 0, 1, 1], [], []>} : vector<1x8xf32>, vector<8x32xf32>, vector<1x32xf32> -> vector<1x32xf32>
    %48 = vector.broadcast %47 : vector<1x32xf32> to vector<256x32xf32>
    %49 = arith.subf %41, %48 : vector<256x32xf32>
    %50 = arith.mulf %49, %49 : vector<256x32xf32>
    %cst_22 = arith.constant dense<0.000000e+00> : vector<32xf32>
    %51 = vector.multi_reduction <add>, %50, %cst_22 [0] : vector<256x32xf32> to vector<32xf32>
    %52 = vector.shape_cast %51 : vector<32xf32> to vector<1x32xf32>
    %cst_23 = arith.constant dense<0.000000e+00> : vector<1x8xf32>
    %53 = tpu.matmul %52, %3, %cst_23 {dimension_numbers = #tpu.dot_dimension_numbers<[1], [1], [0], [0], [0, 0, 1, 0], [], []>} : vector<1x32xf32>, vector<8x32xf32>, vector<1x8xf32> -> vector<1x8xf32>
    %cst_24 = arith.constant 1.024000e+03 : f32
    %54 = vector.broadcast %cst_24 : f32 to vector<1x8xf32>
    %55 = arith.divf %53, %54 : vector<1x8xf32>
    %cst_25 = arith.constant 9.99999974E-6 : f32
    %56 = vector.broadcast %cst_25 : f32 to vector<1x8xf32>
    %57 = arith.addf %55, %56 : vector<1x8xf32>
    %58 = math.rsqrt %57 : vector<1x8xf32>
    %cst_26 = arith.constant dense<0.000000e+00> : vector<1x32xf32>
    %59 = tpu.matmul %58, %3, %cst_26 {dimension_numbers = #tpu.dot_dimension_numbers<[1], [0], [0], [1], [0, 0, 1, 1], [], []>} : vector<1x8xf32>, vector<8x32xf32>, vector<1x32xf32> -> vector<1x32xf32>
    %60 = arith.mulf %59, %1 : vector<1x32xf32>
    %61 = vector.broadcast %60 : vector<1x32xf32> to vector<256x32xf32>
    %62 = arith.mulf %49, %61 : vector<256x32xf32>
    %63 = vector.broadcast %2 : vector<1x32xf32> to vector<256x32xf32>
    %64 = arith.addf %62, %63 : vector<256x32xf32>
    %65 = tpu.transpose %64, [1, 0] : vector<256x32xf32> -> vector<32x256xf32>
    %66 = arith.addf %65, %5 : vector<32x256xf32>
    %c0_27 = arith.constant 0 : index
    %c0_28 = arith.constant 0 : index
    %c0_29 = arith.constant 0 : index
    %67 = vector.load %arg6[%c0_27, %c0_28, %c0_29] : memref<1x32x256xf32, #tpu.memory_space<vmem>>, vector<1x32x256xf32>
    %68 = vector.shape_cast %67 : vector<1x32x256xf32> to vector<32x256xf32>
    %69 = vector.shape_cast %66 : vector<32x256xf32> to vector<1x32x256xf32>
    tpu.vector_store %arg6[%c0_27, %c0_28, %c0_29], %69 {strides = array<i32>} : memref<1x32x256xf32, #tpu.memory_space<vmem>>, vector<1x32x256xf32>,
    return
  }
  func.func @transform_0(%arg0: i32) -> (i32, i32, i32) {
    %c0_i32 = arith.constant 0 : i32
    %c0_i32_0 = arith.constant 0 : i32
    %c0_i32_1 = arith.constant 0 : i32
    return %arg0, %c0_i32, %c0_i32_0 : i32, i32, i32
  }
  func.func @transform_1(%arg0: i32) -> (i32, i32) {
    %c0_i32 = arith.constant 0 : i32
    %c0_i32_0 = arith.constant 0 : i32
    %c0_i32_1 = arith.constant 0 : i32
    return %c0_i32, %c0_i32_0 : i32, i32
  }
  func.func @transform_2(%arg0: i32) -> (i32, i32) {
    %c0_i32 = arith.constant 0 : i32
    %c0_i32_0 = arith.constant 0 : i32
    %c0_i32_1 = arith.constant 0 : i32
    return %c0_i32, %c0_i32_0 : i32, i32
  }
  func.func @transform_3(%arg0: i32) -> (i32, i32) {
    %c0_i32 = arith.constant 0 : i32
    %c0_i32_0 = arith.constant 0 : i32
    %c0_i32_1 = arith.constant 0 : i32
    return %c0_i32, %c0_i32_0 : i32, i32
  }
  func.func @transform_4(%arg0: i32) -> (i32, i32) {
    %c0_i32 = arith.constant 0 : i32
    %c0_i32_0 = arith.constant 0 : i32
    %c0_i32_1 = arith.constant 0 : i32
    return %c0_i32, %c0_i32_0 : i32, i32
  }
  func.func @transform_5(%arg0: i32) -> (i32, i32, i32) {
    %c0_i32 = arith.constant 0 : i32
    %c0_i32_0 = arith.constant 0 : i32
    %c0_i32_1 = arith.constant 0 : i32
    return %arg0, %c0_i32, %c0_i32_0 : i32, i32, i32
  }
}

</mosaic_0001>

<llo_original>
// kernel: tpu_custom_call.1
$region0: #{tpu_custom_call.1}
  #allocation0 [shape = 'u32[]', space=smem, size = 0x4, offset = 0x4, fixed_abs, tag = 'smem constant byte address 0x4 - core index']
  #allocation1 [shape = 'u32[144,128]{1,0:T(1,128)}', space=vmem, size = 0x12000, scoped, tag = 'internal scratch']
  %s0 = inlined_call_operand.hbm [shape: f32[2,32,256], index: 0, kind: input, shape index: {}]
  %s1 = inlined_call_operand.hbm [shape: f32[32,96], index: 1, kind: input, shape index: {}]
  %s2 = inlined_call_operand.vmem [shape: f32[1,96], index: 2, kind: input, shape index: {}]
  %s3 = inlined_call_operand.hbm [shape: f32[32,32], index: 3, kind: input, shape index: {}]
  %s4 = inlined_call_operand.hbm [shape: f32[11,32], index: 4, kind: input, shape index: {}]
  %s5 = inlined_call_operand.hbm [shape: f32[2,32,256], index: 5, kind: output, shape index: {}]
  %s6 = sld [smem:[#allocation0]]
  $region69: #{tpu_custom_call.1} parent=0
    _
  %s8 = ssub.s32 1, %s6
  %s9 = scalar_select 0, %s8, %s6
  $region1: #{tpu_custom_call.1} parent=0
    #allocation2 [shape = 'u8[65536]{0}', space=vmem, size = 0x10000, scoped, tag = 'input window, operand 0']
    #allocation3 [shape = 's32[2]{0}', space=sflag, size = 0x8, scoped, tag = 'scoped memory for tpu_custom_call.1']
    #allocation4 [shape = 's32[2]{0}', space=sflag, size = 0x8, scoped, tag = 'scoped memory for tpu_custom_call.1']
    #allocation5 [shape = 'u8[16384]{0}', space=vmem, size = 0x4000, scoped, tag = 'input window, operand 1, single buffered']
    #allocation6 [shape = 's32[1]{0}', space=sflag, size = 0x4, scoped, tag = 'scoped memory for tpu_custom_call.1']
    #allocation7 [shape = 'u8[16384]{0}', space=vmem, size = 0x4000, scoped, tag = 'input window, operand 3, single buffered']
    #allocation8 [shape = 'u8[8192]{0}', space=vmem, size = 0x2000, scoped, tag = 'input window, operand 4, single buffered']
    #allocation9 [shape = 's32[1]{0}', space=sflag, size = 0x4, scoped, tag = 'scoped memory for tpu_custom_call.1']
    #allocation10 [shape = 'u8[65536]{0}', space=vmem, size = 0x10000, scoped, tag = 'output window, operand 0']
    %10 = vsyncpa [#allocation3], 0
    %s11 = scalar_lea.sflag [#allocation3], 1
    %12 = vsyncpa %s11, 0
    %13 = vsyncpa [#allocation6], 0
    %14 = vsyncpa [#allocation9], 0
    %15 = vsyncpa [#allocation4], 0
    %s16 = scalar_lea.sflag [#allocation4], 1
    %17 = vsyncpa %s16, 0
    loop: start=0, step=1, limit=4
    $region2: #{tpu_custom_call.1} parent=1 // loop_pre_header
      _
    $region3: #{tpu_custom_call.1} parent=1 // loop_header
      %s19 = sphi 0, %s23
      %p20 = scmp.ge.s32.totalorder %s19, 4
      %s29 = sphi 0, %s31
      %s32 = sphi 0, %s29
      %s33 = sphi 0, %s32
      %s49 = sphi 0, %s33
      %s53 = sphi 0, %s53
      %s55 = sphi 0, %s53
      %s56 = sphi 0, %s55
      %s70 = sphi 0, %s56
      %s74 = sphi 0, %s74
      %s76 = sphi 0, %s74
      %s77 = sphi 0, %s76
      %s91 = sphi 0, %s77
      %s95 = sphi 0, %s95
      %s97 = sphi 0, %s95
      %s98 = sphi 0, %s97
      %s112 = sphi 0, %s98
      %s116 = sphi 0, %s116
      %s118 = sphi 0, %s116
      %s119 = sphi 0, %s118
      %s133 = sphi 0, %s119
      %s139 = sphi 0, %s141
      %s142 = sphi 0, %s139
      %s143 = sphi 0, %s142
      %s159 = sphi 0, %s143
    $region4: #{tpu_custom_call.1} parent=1 // loop_header_branch
      %22 = sbr.rel (%p20) target = $region8
    $region5: #{tpu_custom_call.1} parent=1 // loop_body
      %s24 = ssub.s32 %s19, 1
      %s25 = ssub.s32 %s19, 2
      %s26 = sadd.s32 %s19, 1
      %s27 = ssub.s32 %s19, %s26
      %p28 = scmp.eq.s32.totalorder %s27, 0
      %s30 = sadd.s32 %s29, 1
      %s31 = scalar_select %p28, %s29, %s30
      %p34 = pneg %p28
      %p35 = scmp.eq.s32.totalorder %s19, 1
      %p36 = por %p34, %p35
      %p37 = scmp.ne.s32.totalorder %s29, %s32
      %p38 = scmp.eq.s32.totalorder %s19, 0
      %p39 = por %p37, %p38
      %p40 = scmp.ne.s32.totalorder %s29, %s32
      %p41 = scmp.eq.s32.totalorder %s24, 1
      %p42 = por %p40, %p41
      %p43 = scmp.ne.s32.totalorder %s32, %s33
      %p44 = scmp.eq.s32.totalorder %s24, 0
      %p45 = por %p43, %p44
      %p46 = scmp.ne.s32.totalorder %s32, %s33
      %p47 = scmp.eq.s32.totalorder %s25, 1
      %p48 = por %p46, %p47
      %p50 = scmp.ne.s32.totalorder %s33, %s49
      %p51 = scmp.eq.s32.totalorder %s25, 0
      %p52 = por %p50, %p51
      %s54 = sadd.s32 %s53, 1
      %p57 = scmp.eq.s32.totalorder %s19, 1
      %p58 = scmp.ne.s32.totalorder %s53, %s55
      %p59 = scmp.eq.s32.totalorder %s19, 0
      %p60 = por %p58, %p59
      %p61 = scmp.ne.s32.totalorder %s53, %s55
      %p62 = scmp.eq.s32.totalorder %s24, 1
      %p63 = por %p61, %p62
      %p64 = scmp.ne.s32.totalorder %s55, %s56
      %p65 = scmp.eq.s32.totalorder %s24, 0
      %p66 = por %p64, %p65
      %p67 = scmp.ne.s32.totalorder %s55, %s56
      %p68 = scmp.eq.s32.totalorder %s25, 1
      %p69 = por %p67, %p68
      %p71 = scmp.ne.s32.totalorder %s56, %s70
      %p72 = scmp.eq.s32.totalorder %s25, 0
      %p73 = por %p71, %p72
      %s75 = sadd.s32 %s74, 1
      %p78 = scmp.eq.s32.totalorder %s19, 1
      %p79 = scmp.ne.s32.totalorder %s74, %s76
      %p80 = scmp.eq.s32.totalorder %s19, 0
      %p81 = por %p79, %p80
      %p82 = scmp.ne.s32.totalorder %s74, %s76
      %p83 = scmp.eq.s32.totalorder %s24, 1
      %p84 = por %p82, %p83
      %p85 = scmp.ne.s32.totalorder %s76, %s77
      %p86 = scmp.eq.s32.totalorder %s24, 0
      %p87 = por %p85, %p86
      %p88 = scmp.ne.s32.totalorder %s76, %s77
      %p89 = scmp.eq.s32.totalorder %s25, 1
      %p90 = por %p88, %p89
      %p92 = scmp.ne.s32.totalorder %s77, %s91
      %p93 = scmp.eq.s32.totalorder %s25, 0
      %p94 = por %p92, %p93
      %s96 = sadd.s32 %s95, 1
      %p99 = scmp.eq.s32.totalorder %s19, 1
      %p100 = scmp.ne.s32.totalorder %s95, %s97
      %p101 = scmp.eq.s32.totalorder %s19, 0
      %p102 = por %p100, %p101
      %p103 = scmp.ne.s32.totalorder %s95, %s97
      %p104 = scmp.eq.s32.totalorder %s24, 1
      %p105 = por %p103, %p104
      %p106 = scmp.ne.s32.totalorder %s97, %s98
      %p107 = scmp.eq.s32.totalorder %s24, 0
      %p108 = por %p106, %p107
      %p109 = scmp.ne.s32.totalorder %s97, %s98
      %p110 = scmp.eq.s32.totalorder %s25, 1
      %p111 = por %p109, %p110
      %p113 = scmp.ne.s32.totalorder %s98, %s112
      %p114 = scmp.eq.s32.totalorder %s25, 0
      %p115 = por %p113, %p114
      %s117 = sadd.s32 %s116, 1
      %p120 = scmp.eq.s32.totalorder %s19, 1
      %p121 = scmp.ne.s32.totalorder %s116, %s118
      %p122 = scmp.eq.s32.totalorder %s19, 0
      %p123 = por %p121, %p122
      %p124 = scmp.ne.s32.totalorder %s116, %s118
      %p125 = scmp.eq.s32.totalorder %s24, 1
      %p126 = por %p124, %p125
      %p127 = scmp.ne.s32.totalorder %s118, %s119
      %p128 = scmp.eq.s32.totalorder %s24, 0
      %p129 = por %p127, %p128
      %p130 = scmp.ne.s32.totalorder %s118, %s119
      %p131 = scmp.eq.s32.totalorder %s25, 1
      %p132 = por %p130, %p131
      %p134 = scmp.ne.s32.totalorder %s119, %s133
      %p135 = scmp.eq.s32.totalorder %s25, 0
      %p136 = por %p134, %p135
      %s137 = ssub.s32 %s19, %s26
      %p138 = scmp.eq.s32.totalorder %s137, 0
      %s140 = sadd.s32 %s139, 1
      %s141 = scalar_select %p138, %s139, %s140
      %p144 = pneg %p138
      %p145 = scmp.eq.s32.totalorder %s19, 1
      %p146 = por %p144, %p145
      %p147 = scmp.ne.s32.totalorder %s139, %s142
      %p148 = scmp.eq.s32.totalorder %s19, 0
      %p149 = por %p147, %p148
      %p150 = scmp.ne.s32.totalorder %s139, %s142
      %p151 = scmp.eq.s32.totalorder %s24, 1
      %p152 = por %p150, %p151
      %p153 = scmp.ne.s32.totalorder %s142, %s143
      %p154 = scmp.eq.s32.totalorder %s24, 0
      %p155 = por %p153, %p154
      %p156 = scmp.ne.s32.totalorder %s142, %s143
      %p157 = scmp.eq.s32.totalorder %s25, 1
      %p158 = por %p156, %p157
      %p160 = scmp.ne.s32.totalorder %s143, %s159
      %p161 = scmp.eq.s32.totalorder %s25, 0
      %p162 = por %p160, %p161
      %p163 = scmp.le.s32.totalorder 1, %s19
      %p164 = scmp.lt.s32.totalorder %s19, 3
      %p165 = pnand %p163, %p164
      %p166 = pneg %p165
      // Predicated region
      $region9: #{tpu_custom_call.1} parent=5 // pred_check
        _
      $region10: #{tpu_custom_call.1} parent=5 // pred_check_branch
        %168 = sbr.rel (%p165) target = $region12
      $region11: #{tpu_custom_call.1} parent=5 // pred_region
        %s169 = ssub.s32 %s19, 1
        // Predicated region
        $region13: #{tpu_custom_call.1} parent=11 // pred_check
          %p170 = pneg %p66
        $region14: #{tpu_custom_call.1} parent=11 // pred_check_branch
          %172 = sbr.rel (%p170) target = $region16
        $region15: #{tpu_custom_call.1} parent=11 // pred_region
          %s174 = ssub.s32 512, 512
          %175 = vsyncadd [#allocation6], %s174
          %s176 = sshll.u32 [#allocation5], 4
          %s177 = int_to_ptr.vmem [resolvable:$true] %s176
          %182 = dma.hbm_to_vmem [thread:$0]  %s1, 512, %s177, [#allocation6], 128, 128, 8
        $region16: #{tpu_custom_call.1} parent=11 // pred_fallthru
          _
        // Predicated region
        $region17: #{tpu_custom_call.1} parent=11 // pred_check
          %p183 = pneg %p87
        $region18: #{tpu_custom_call.1} parent=11 // pred_check_branch
          %185 = sbr.rel (%p183) target = $region20
        $region19: #{tpu_custom_call.1} parent=11 // pred_region
          _
        $region20: #{tpu_custom_call.1} parent=11 // pred_fallthru
          _
        // Predicated region
        $region21: #{tpu_custom_call.1} parent=11 // pred_check
          %p186 = pneg %p108
        $region22: #{tpu_custom_call.1} parent=11 // pred_check_branch
          %188 = sbr.rel (%p186) target = $region24
        $region23: #{tpu_custom_call.1} parent=11 // pred_region
          %s190 = ssub.s32 512, 512
          %191 = vsyncadd [#allocation6], %s190
          %s192 = sshll.u32 [#allocation7], 4
          %s193 = int_to_ptr.vmem [resolvable:$true] %s192
          %198 = dma.hbm_to_vmem [thread:$0]  %s3, 512, %s193, [#allocation6], 128, 128, 8
        $region24: #{tpu_custom_call.1} parent=11 // pred_fallthru
          _
        // Predicated region
        $region25: #{tpu_custom_call.1} parent=11 // pred_check
          %p199 = pneg %p129
        $region26: #{tpu_custom_call.1} parent=11 // pred_check_branch
          %201 = sbr.rel (%p199) target = $region28
        $region27: #{tpu_custom_call.1} parent=11 // pred_region
          %s203 = ssub.s32 256, 256
          %204 = vsyncadd [#allocation9], %s203
          %s205 = sshll.u32 [#allocation8], 4
          %s206 = int_to_ptr.vmem [resolvable:$true] %s205
          %211 = dma.hbm_to_vmem [thread:$0]  %s4, 256, %s206, [#allocation9], 128, 128, 8
        $region28: #{tpu_custom_call.1} parent=11 // pred_fallthru
          _
      $region12: #{tpu_custom_call.1} parent=5 // pred_fallthru
        _
      %p212 = scmp.lt.s32.totalorder %s19, 2
      // Predicated region
      $region29: #{tpu_custom_call.1} parent=5 // pred_check
        %p213 = pneg %p212
      $region30: #{tpu_custom_call.1} parent=5 // pred_check_branch
        %215 = sbr.rel (%p213) target = $region32
      $region31: #{tpu_custom_call.1} parent=5 // pred_region
        // Predicated region
        $region33: #{tpu_custom_call.1} parent=31 // pred_check
          %p216 = pneg %p39
        $region34: #{tpu_custom_call.1} parent=31 // pred_check_branch
          %218 = sbr.rel (%p216) target = $region36
        $region35: #{tpu_custom_call.1} parent=31 // pred_region
          %s219 = sand.u32 %s29, 1
          %s220 = scalar_lea.sflag [#allocation3], %s219
          %s221 = sand.u32 %s29, 1
          %s222 = smul.addr %s221, 64
          %s223 = scalar_lea.vmem [#allocation2], %s222
          %s225 = ssub.s32 1024, 1024
          %226 = vsyncadd %s220, %s225
          %s227 = smul.addr %s19, 8
          %s228 = smul.addr %s227, 128
          %s229 = scalar_lea.hbm %s0, %s228
          %s230 = sshll.u32 %s223, 4
          %s231 = int_to_ptr.vmem [resolvable:$true] %s230
          %236 = dma.hbm_to_vmem [thread:$0]  %s229, 1024, %s231, %s220, 256, 256, 16
        $region36: #{tpu_custom_call.1} parent=31 // pred_fallthru
          _
      $region32: #{tpu_custom_call.1} parent=5 // pred_fallthru
        _
      %p237 = scmp.le.s32.totalorder 1, %s19
      %p238 = scmp.lt.s32.totalorder %s19, 3
      %p239 = pnand %p237, %p238
      %p240 = pneg %p239
      // Predicated region
      $region37: #{tpu_custom_call.1} parent=5 // pred_check
        _
      $region38: #{tpu_custom_call.1} parent=5 // pred_check_branch
        %242 = sbr.rel (%p239) target = $region40
      $region39: #{tpu_custom_call.1} parent=5 // pred_region
        %s243 = ssub.s32 %s19, 1
        %s244 = sand.u32 %s32, 1
        %s245 = scalar_lea.sflag [#allocation3], %s244
        %s246 = sand.u32 %s32, 1
        %s247 = smul.addr %s246, 64
        %s248 = scalar_lea.vmem [#allocation2], %s247
        // Predicated region
        $region41: #{tpu_custom_call.1} parent=39 // pred_check
          %p249 = pneg %p45
        $region42: #{tpu_custom_call.1} parent=39 // pred_check_branch
          %251 = sbr.rel (%p249) target = $region44
        $region43: #{tpu_custom_call.1} parent=39 // pred_region
          %252 = dma.done %s245, 1024
        $region44: #{tpu_custom_call.1} parent=39 // pred_fallthru
          _
        // Predicated region
        $region45: #{tpu_custom_call.1} parent=39 // pred_check
          %p253 = pneg %p66
        $region46: #{tpu_custom_call.1} parent=39 // pred_check_branch
          %255 = sbr.rel (%p253) target = $region48
        $region47: #{tpu_custom_call.1} parent=39 // pred_region
          %256 = dma.done [#allocation6], 512
        $region48: #{tpu_custom_call.1} parent=39 // pred_fallthru
          _
        // Predicated region
        $region49: #{tpu_custom_call.1} parent=39 // pred_check
          %p257 = pneg %p108
        $region50: #{tpu_custom_call.1} parent=39 // pred_check_branch
          %259 = sbr.rel (%p257) target = $region52
        $region51: #{tpu_custom_call.1} parent=39 // pred_region
          %260 = dma.done [#allocation6], 512
        $region52: #{tpu_custom_call.1} parent=39 // pred_fallthru
          _
        // Predicated region
        $region53: #{tpu_custom_call.1} parent=39 // pred_check
          %p261 = pneg %p129
        $region54: #{tpu_custom_call.1} parent=39 // pred_check_branch
          %263 = sbr.rel (%p261) target = $region56
        $region55: #{tpu_custom_call.1} parent=39 // pred_region
          %264 = dma.done [#allocation9], 256
        $region56: #{tpu_custom_call.1} parent=39 // pred_fallthru
          _
        %s265 = sand.u32 %s32, 1
        %s266 = scalar_lea.sflag [#allocation3], %s265
        %s267 = sand.u32 %s32, 1
        %s268 = smul.addr %s267, 64
        %s269 = scalar_lea.vmem [#allocation2], %s268
        %p270 = pneg %p45
        %p271 = pneg %p42
        %p272 = pneg %p66
        %p273 = pneg %p63
        %p274 = pneg %p87
        %p275 = pneg %p84
        %p276 = pneg %p108
        %p277 = pneg %p105
        %p278 = pneg %p129
        %p279 = pneg %p126
        %p280 = pneg %p155
        %p281 = pneg %p152
        %s282 = sand.u32 %s142, 1
        %s283 = scalar_lea.sflag [#allocation4], %s282
        %s284 = sand.u32 %s142, 1
        %s285 = smul.addr %s284, 64
        %s286 = scalar_lea.vmem [#allocation10], %s285
        %v287 = vld [vmem:[#allocation8] sm:$0x1]
        %v288 = vld [vmem:[#allocation8 + $0x1] sm:$0x1]
        %v289 = vld [vmem:[#allocation8 + $0x2] sm:$0x1]
        %v290 = vld [vmem:[#allocation8 + $0x3] sm:$0xff]
        %v291 = vld [vmem:[%s248] sm:$0xff]
        %v292 = vld [vmem:[%s248 + $0x8] sm:$0xff]
        %v293 = vld [vmem:[%s248 + $0x10] sm:$0xff]
        %v294 = vld [vmem:[%s248 + $0x18] sm:$0xff]
        %v295 = vld [vmem:[%s248 + $0x20] sm:$0xff]
        %v296 = vld [vmem:[%s248 + $0x28] sm:$0xff]
        %v297 = vld [vmem:[%s248 + $0x30] sm:$0xff]
        %v298 = vld [vmem:[%s248 + $0x38] sm:$0xff]
        %299 = vxpose.xlu0.b32.start [1/16] %v291, 128
        %300 = vxpose.xlu0.b32.cont [2/16] %v293, 128
        %301 = vxpose.xlu0.b32.cont [3/16] %v295, 128
        %302 = vxpose.xlu0.b32.cont [4/16] %v297, 128
        %303 = vxpose.xlu0.b32.cont [5/16] 0.0, 128
        %304 = vxpose.xlu0.b32.cont [6/16] 0.0, 128
        %305 = vxpose.xlu0.b32.cont [7/16] 0.0, 128
        %306 = vxpose.xlu0.b32.cont [8/16] 0.0, 128
        %307 = vxpose.xlu0.b32.cont [9/16] 0.0, 128
        %308 = vxpose.xlu0.b32.cont [10/16] 0.0, 128
        %309 = vxpose.xlu0.b32.cont [11/16] 0.0, 128
        %310 = vxpose.xlu0.b32.cont [12/16] 0.0, 128
        %311 = vxpose.xlu0.b32.cont [13/16] 0.0, 128
        %312 = vxpose.xlu0.b32.cont [14/16] 0.0, 128
        %313 = vxpose.xlu0.b32.cont [15/16] 0.0, 128
        %314 = vxpose.xlu0.b32.end [16/16] 0.0, 128
        %v315 = vpop.trf.xlu0
        %v316 = vpop.trf.xlu0
        %v317 = vpop.trf.xlu0
        %v318 = vpop.trf.xlu0
        %v319 = vpop.trf.xlu0
        %v320 = vpop.trf.xlu0
        %v321 = vpop.trf.xlu0
        %v322 = vpop.trf.xlu0
        %v323 = vpop.trf.xlu0
        %v324 = vpop.trf.xlu0
        %v325 = vpop.trf.xlu0
        %v326 = vpop.trf.xlu0
        %v327 = vpop.trf.xlu0
        %v328 = vpop.trf.xlu0
        %v329 = vpop.trf.xlu0
        %v330 = vpop.trf.xlu0
        %331 = vxpose.xlu0.b32.start [1/16] %v292, 128
        %332 = vxpose.xlu0.b32.cont [2/16] %v294, 128
        %333 = vxpose.xlu0.b32.cont [3/16] %v296, 128
        %334 = vxpose.xlu0.b32.cont [4/16] %v298, 128
        %335 = vxpose.xlu0.b32.cont [5/16] 0.0, 128
        %336 = vxpose.xlu0.b32.cont [6/16] 0.0, 128
        %337 = vxpose.xlu0.b32.cont [7/16] 0.0, 128
        %338 = vxpose.xlu0.b32.cont [8/16] 0.0, 128
        %339 = vxpose.xlu0.b32.cont [9/16] 0.0, 128
        %340 = vxpose.xlu0.b32.cont [10/16] 0.0, 128
        %341 = vxpose.xlu0.b32.cont [11/16] 0.0, 128
        %342 = vxpose.xlu0.b32.cont [12/16] 0.0, 128
        %343 = vxpose.xlu0.b32.cont [13/16] 0.0, 128
        %344 = vxpose.xlu0.b32.cont [14/16] 0.0, 128
        %345 = vxpose.xlu0.b32.cont [15/16] 0.0, 128
        %346 = vxpose.xlu0.b32.end [16/16] 0.0, 128
        %v347 = vpop.trf.xlu0
        %v348 = vpop.trf.xlu0
        %v349 = vpop.trf.xlu0
        %v350 = vpop.trf.xlu0
        %v351 = vpop.trf.xlu0
        %v352 = vpop.trf.xlu0
        %v353 = vpop.trf.xlu0
        %v354 = vpop.trf.xlu0
        %v355 = vpop.trf.xlu0
        %v356 = vpop.trf.xlu0
        %v357 = vpop.trf.xlu0
        %v358 = vpop.trf.xlu0
        %v359 = vpop.trf.xlu0
        %v360 = vpop.trf.xlu0
        %v361 = vpop.trf.xlu0
        %v362 = vpop.trf.xlu0
        %v363 = vld [vmem:[#allocation5] sm:$0xff]
        %v364 = vld [vmem:[#allocation5 + $0x8] sm:$0xff]
        %v365 = vld [vmem:[#allocation5 + $0x10] sm:$0xff]
        %v366 = vld [vmem:[#allocation5 + $0x18] sm:$0xff]
        %v367 = vld [vmem:[%s2] sm:$0x1]
        %v369 = vlaneseq
        %v370 = vshrl.u32 %v369, 7
        %v371 = vsub.s32 0, %v370
        %v372 = vrot.slane %v367, %v371
        %vm374 = vcmask 261120
        %v376 = vsel %vm374, %v315, 0
        %v379 = vsel %vm374, %v316, 0
        %v382 = vsel %vm374, %v317, 0
        %v385 = vsel %vm374, %v318, 0
        %v388 = vsel %vm374, %v319, 0
        %v391 = vsel %vm374, %v320, 0
        %v394 = vsel %vm374, %v321, 0
        %v397 = vsel %vm374, %v322, 0
        %v400 = vsel %vm374, %v323, 0
        %v403 = vsel %vm374, %v324, 0
        %v406 = vsel %vm374, %v325, 0
        %v409 = vsel %vm374, %v326, 0
        %v412 = vsel %vm374, %v327, 0
        %v415 = vsel %vm374, %v328, 0
        %v418 = vsel %vm374, %v329, 0
        %v421 = vsel %vm374, %v330, 0
        %v424 = vsel %vm374, %v347, 0
        %v427 = vsel %vm374, %v348, 0
        %v430 = vsel %vm374, %v349, 0
        %v433 = vsel %vm374, %v350, 0
        %v436 = vsel %vm374, %v351, 0
        %v439 = vsel %vm374, %v352, 0
        %v442 = vsel %vm374, %v353, 0
        %v445 = vsel %vm374, %v354, 0
        %v448 = vsel %vm374, %v355, 0
        %v451 = vsel %vm374, %v356, 0
        %v454 = vsel %vm374, %v357, 0
        %v457 = vsel %vm374, %v358, 0
        %v460 = vsel %vm374, %v359, 0
        %v463 = vsel %vm374, %v360, 0
        %v466 = vsel %vm374, %v361, 0
        %v469 = vsel %vm374, %v362, 0
        %471 = vmatprep.subr.mxu0 0.0
        %472 = vmatpush1.msra.mxu0 0.0
        %473 = vmatprep.subr.mxu0 0.0
        %474 = vmatpush1.msra.mxu0 0.0
        %475 = vmatprep.subr.mxu0 0.0
        %476 = vmatpush1.msra.mxu0 0.0
        %477 = vmatprep.subr.mxu0 0.0
        %478 = vmatpush1.msra.mxu0 0.0
        %479 = vmatprep.subr.mxu0 0.0
        %480 = vmatpush1.msra.mxu0 0.0
        %481 = vmatprep.subr.mxu0 0.0
        %482 = vmatpush1.msra.mxu0 0.0
        %483 = vmatprep.subr.mxu0 0.0
        %484 = vmatpush1.msra.mxu0 0.0
        %485 = vmatprep.subr.mxu0 0.0
        %486 = vmatpush1.msra.mxu0 0.0
        %487 = vmatprep.subr.mxu0 0.0
        %488 = vmatpush1.msra.mxu0 0.0
        %489 = vmatprep.subr.mxu0 0.0
        %490 = vmatpush1.msra.mxu0 0.0
        %491 = vmatprep.subr.mxu0 0.0
        %492 = vmatpush1.msra.mxu0 0.0
        %493 = vmatprep.subr.mxu0 0.0
        %494 = vmatpush1.msra.mxu0 0.0
        %495 = vmatprep.subr.mxu0 0.0
        %496 = vmatpush1.msra.mxu0 %v366
        %497 = vmatprep.subr.mxu0 0.0
        %498 = vmatpush1.msra.mxu0 %v365
        %499 = vmatprep.subr.mxu0 0.0
        %500 = vmatpush1.msra.mxu0 %v364
        %501 = vmatprep.subr.mxu0 0.0
        %502 = vmatpush1.msra.mxu0 %v363
        %503 = vmatprep.subr.mxu0 0.0
        %504 = vmatpush2.msra.mxu0 0.0
        %505 = vmatprep.subr.mxu0 0.0
        %506 = vmatpush2.msra.mxu0 0.0
        %507 = vmatprep.subr.mxu0 0.0
        %508 = vmatpush2.msra.mxu0 0.0
        %509 = vmatprep.subr.mxu0 0.0
        %510 = vmatpush2.msra.mxu0 0.0
        %511 = vmatprep.subr.mxu0 0.0
        %512 = vmatpush2.msra.mxu0 0.0
        %513 = vmatprep.subr.mxu0 0.0
        %514 = vmatpush2.msra.mxu0 0.0
        %515 = vmatprep.subr.mxu0 0.0
        %516 = vmatpush2.msra.mxu0 0.0
        %517 = vmatprep.subr.mxu0 0.0
        %518 = vmatpush2.msra.mxu0 0.0
        %519 = vmatprep.subr.mxu0 0.0
        %520 = vmatpush2.msra.mxu0 0.0
        %521 = vmatprep.subr.mxu0 0.0
        %522 = vmatpush2.msra.mxu0 0.0
        %523 = vmatprep.subr.mxu0 0.0
        %524 = vmatpush2.msra.mxu0 0.0
        %525 = vmatprep.subr.mxu0 0.0
        %526 = vmatpush2.msra.mxu0 0.0
        %527 = vmatprep.subr.mxu0 0.0
        %528 = vmatpush2.msra.mxu0 0.0
        %529 = vmatprep.subr.mxu0 0.0
        %530 = vmatpush2.msra.mxu0 0.0
        %531 = vmatprep.subr.mxu0 0.0
        %532 = vmatpush2.msra.mxu0 0.0
        %533 = vmatprep.subr.mxu0 0.0
        %534 = vmatpush2.msra.mxu0 0.0
        %535 = vmatprep.mubr.f32.mxu0 0.0
        %536 = vmatmul.mubr.f32.gmra.mxu0 %v376
        %v537 = vpop.f32.mrf.mxu0
        %v538 = vadd.f32 %v372, %v537
        %v539 = vpop.f32.mrf.mxu0
        %540 = vmatprep.mubr.f32.mxu0 0.0
        %541 = vmatmul.mubr.f32.gmra.mxu0 %v379
        %v542 = vpop.f32.mrf.mxu0
        %v543 = vadd.f32 %v372, %v542
        %v544 = vpop.f32.mrf.mxu0
        %545 = vmatprep.mubr.f32.mxu0 0.0
        %546 = vmatmul.mubr.f32.gmra.mxu0 %v382
        %v547 = vpop.f32.mrf.mxu0
        %v548 = vadd.f32 %v372, %v547
        %v549 = vpop.f32.mrf.mxu0
        %550 = vmatprep.mubr.f32.mxu0 0.0
        %551 = vmatmul.mubr.f32.gmra.mxu0 %v385
        %v552 = vpop.f32.mrf.mxu0
        %v553 = vadd.f32 %v372, %v552
        %v554 = vpop.f32.mrf.mxu0
        %555 = vmatprep.mubr.f32.mxu0 0.0
        %556 = vmatmul.mubr.f32.gmra.mxu0 %v388
        %v557 = vpop.f32.mrf.mxu0
        %v558 = vadd.f32 %v372, %v557
        %v559 = vpop.f32.mrf.mxu0
        %560 = vmatprep.mubr.f32.mxu0 0.0
        %561 = vmatmul.mubr.f32.gmra.mxu0 %v391
        %v562 = vpop.f32.mrf.mxu0
        %v563 = vadd.f32 %v372, %v562
        %v564 = vpop.f32.mrf.mxu0
        %565 = vmatprep.mubr.f32.mxu0 0.0
        %566 = vmatmul.mubr.f32.gmra.mxu0 %v394
        %v567 = vpop.f32.mrf.mxu0
        %v568 = vadd.f32 %v372, %v567
        %v569 = vpop.f32.mrf.mxu0
        %570 = vmatprep.mubr.f32.mxu0 0.0
        %571 = vmatmul.mubr.f32.gmra.mxu0 %v397
        %v572 = vpop.f32.mrf.mxu0
        %v573 = vadd.f32 %v372, %v572
        %v574 = vpop.f32.mrf.mxu0
        %575 = vmatprep.mubr.f32.mxu0 0.0
        %576 = vmatmul.mubr.f32.gmra.mxu0 %v400
        %v577 = vpop.f32.mrf.mxu0
        %v578 = vadd.f32 %v372, %v577
        %v579 = vpop.f32.mrf.mxu0
        %580 = vmatprep.mubr.f32.mxu0 0.0
        %581 = vmatmul.mubr.f32.gmra.mxu0 %v403
        %v582 = vpop.f32.mrf.mxu0
        %v583 = vadd.f32 %v372, %v582
        %v584 = vpop.f32.mrf.mxu0
        %585 = vmatprep.mubr.f32.mxu0 0.0
        %586 = vmatmul.mubr.f32.gmra.mxu0 %v406
        %v587 = vpop.f32.mrf.mxu0
        %v588 = vadd.f32 %v372, %v587
        %v589 = vpop.f32.mrf.mxu0
        %590 = vmatprep.mubr.f32.mxu0 0.0
        %591 = vmatmul.mubr.f32.gmra.mxu0 %v409
        %v592 = vpop.f32.mrf.mxu0
        %v593 = vadd.f32 %v372, %v592
        %v594 = vpop.f32.mrf.mxu0
        %595 = vmatprep.mubr.f32.mxu0 0.0
        %596 = vmatmul.mubr.f32.gmra.mxu0 %v412
        %v597 = vpop.f32.mrf.mxu0
        %v598 = vadd.f32 %v372, %v597
        %v599 = vpop.f32.mrf.mxu0
        %600 = vmatprep.mubr.f32.mxu0 0.0
        %601 = vmatmul.mubr.f32.gmra.mxu0 %v415
        %v602 = vpop.f32.mrf.mxu0
        %v603 = vadd.f32 %v372, %v602
        %v604 = vpop.f32.mrf.mxu0
        %605 = vmatprep.mubr.f32.mxu0 0.0
        %606 = vmatmul.mubr.f32.gmra.mxu0 %v418
        %v607 = vpop.f32.mrf.mxu0
        %v608 = vadd.f32 %v372, %v607
        %v609 = vpop.f32.mrf.mxu0
        %610 = vmatprep.mubr.f32.mxu0 0.0
        %611 = vmatmul.mubr.f32.gmra.mxu0 %v421
        %v612 = vpop.f32.mrf.mxu0
        %v613 = vadd.f32 %v372, %v612
        %v614 = vpop.f32.mrf.mxu0
        %615 = vmatprep.mubr.f32.mxu0 0.0
        %616 = vmatmul.mubr.f32.gmra.mxu0 %v424
        %v617 = vpop.f32.mrf.mxu0
        %v618 = vadd.f32 %v372, %v617
        %v619 = vpop.f32.mrf.mxu0
        %620 = vmatprep.mubr.f32.mxu0 0.0
        %621 = vmatmul.mubr.f32.gmra.mxu0 %v427
        %v622 = vpop.f32.mrf.mxu0
        %v623 = vadd.f32 %v372, %v622
        %v624 = vpop.f32.mrf.mxu0
        %625 = vmatprep.mubr.f32.mxu0 0.0
        %626 = vmatmul.mubr.f32.gmra.mxu0 %v430
        %v627 = vpop.f32.mrf.mxu0
        %v628 = vadd.f32 %v372, %v627
        %v629 = vpop.f32.mrf.mxu0
        %630 = vmatprep.mubr.f32.mxu0 0.0
        %631 = vmatmul.mubr.f32.gmra.mxu0 %v433
        %v632 = vpop.f32.mrf.mxu0
        %v633 = vadd.f32 %v372, %v632
        %v634 = vpop.f32.mrf.mxu0
        %635 = vmatprep.mubr.f32.mxu0 0.0
        %636 = vmatmul.mubr.f32.gmra.mxu0 %v436
        %v637 = vpop.f32.mrf.mxu0
        %v638 = vadd.f32 %v372, %v637
        %v639 = vpop.f32.mrf.mxu0
        %640 = vmatprep.mubr.f32.mxu0 0.0
        %641 = vmatmul.mubr.f32.gmra.mxu0 %v439
        %v642 = vpop.f32.mrf.mxu0
        %v643 = vadd.f32 %v372, %v642
        %v644 = vpop.f32.mrf.mxu0
        %645 = vmatprep.mubr.f32.mxu0 0.0
        %646 = vmatmul.mubr.f32.gmra.mxu0 %v442
        %v647 = vpop.f32.mrf.mxu0
        %v648 = vadd.f32 %v372, %v647
        %v649 = vpop.f32.mrf.mxu0
        %650 = vmatprep.mubr.f32.mxu0 0.0
        %651 = vmatmul.mubr.f32.gmra.mxu0 %v445
        %v652 = vpop.f32.mrf.mxu0
        %v653 = vadd.f32 %v372, %v652
        %v654 = vpop.f32.mrf.mxu0
        %655 = vmatprep.mubr.f32.mxu0 0.0
        %656 = vmatmul.mubr.f32.gmra.mxu0 %v448
        %v657 = vpop.f32.mrf.mxu0
        %v658 = vadd.f32 %v372, %v657
        %v659 = vpop.f32.mrf.mxu0
        %660 = vmatprep.mubr.f32.mxu0 0.0
        %661 = vmatmul.mubr.f32.gmra.mxu0 %v451
        %v662 = vpop.f32.mrf.mxu0
        %v663 = vadd.f32 %v372, %v662
        %v664 = vpop.f32.mrf.mxu0
        %665 = vmatprep.mubr.f32.mxu0 0.0
        %666 = vmatmul.mubr.f32.gmra.mxu0 %v454
        %v667 = vpop.f32.mrf.mxu0
        %v668 = vadd.f32 %v372, %v667
        %v669 = vpop.f32.mrf.mxu0
        %670 = vmatprep.mubr.f32.mxu0 0.0
        %671 = vmatmul.mubr.f32.gmra.mxu0 %v457
        %v672 = vpop.f32.mrf.mxu0
        %v673 = vadd.f32 %v372, %v672
        %v674 = vpop.f32.mrf.mxu0
        %675 = vmatprep.mubr.f32.mxu0 0.0
        %676 = vmatmul.mubr.f32.gmra.mxu0 %v460
        %v677 = vpop.f32.mrf.mxu0
        %v678 = vadd.f32 %v372, %v677
        %v679 = vpop.f32.mrf.mxu0
        %680 = vmatprep.mubr.f32.mxu0 0.0
        %681 = vmatmul.mubr.f32.gmra.mxu0 %v463
        %v682 = vpop.f32.mrf.mxu0
        %v683 = vadd.f32 %v372, %v682
        %v684 = vpop.f32.mrf.mxu0
        %685 = vmatprep.mubr.f32.mxu0 0.0
        %686 = vmatmul.mubr.f32.gmra.mxu0 %v466
        %v687 = vpop.f32.mrf.mxu0
        %v688 = vadd.f32 %v372, %v687
        %v689 = vpop.f32.mrf.mxu0
        %690 = vmatprep.mubr.f32.mxu0 0.0
        %691 = vmatmul.mubr.f32.gmra.mxu0 %v469
        %v692 = vpop.f32.mrf.mxu0
        %v693 = vadd.f32 %v372, %v692
        %v694 = vpop.f32.mrf.mxu0
        %695 = vdwg.mxu0
        %696 = vxpose.xlu0.b32.start [1/16] %v538, 128
        %697 = vxpose.xlu0.b32.cont [2/16] %v543, 128
        %698 = vxpose.xlu0.b32.cont [3/16] %v548, 128
        %699 = vxpose.xlu0.b32.cont [4/16] %v553, 128
        %700 = vxpose.xlu0.b32.cont [5/16] %v558, 128
        %701 = vxpose.xlu0.b32.cont [6/16] %v563, 128
        %702 = vxpose.xlu0.b32.cont [7/16] %v568, 128
        %703 = vxpose.xlu0.b32.cont [8/16] %v573, 128
        %704 = vxpose.xlu0.b32.cont [9/16] %v578, 128
        %705 = vxpose.xlu0.b32.cont [10/16] %v583, 128
        %706 = vxpose.xlu0.b32.cont [11/16] %v588, 128
        %707 = vxpose.xlu0.b32.cont [12/16] %v593, 128
        %708 = vxpose.xlu0.b32.cont [13/16] %v598, 128
        %709 = vxpose.xlu0.b32.cont [14/16] %v603, 128
        %710 = vxpose.xlu0.b32.cont [15/16] %v608, 128
        %711 = vxpose.xlu0.b32.end [16/16] %v613, 128
        %v712 = vpop.trf.xlu0
        %v713 = vpop.trf.xlu0
        %v714 = vpop.trf.xlu0
        %v715 = vpop.trf.xlu0
        %v716 = vpop.trf.xlu0
        %v717 = vpop.trf.xlu0
        %v718 = vpop.trf.xlu0
        %v719 = vpop.trf.xlu0
        %v720 = vpop.trf.xlu0
        %v721 = vpop.trf.xlu0
        %v722 = vpop.trf.xlu0
        %v723 = vpop.trf.xlu0
        %v724 = vpop.trf.xlu0
        %v725 = vpop.trf.xlu0
        %v726 = vpop.trf.xlu0
        %v727 = vpop.trf.xlu0
        %728 = vxpose.xlu0.b32.start [1/16] %v618, 128
        %729 = vxpose.xlu0.b32.cont [2/16] %v623, 128
        %730 = vxpose.xlu0.b32.cont [3/16] %v628, 128
        %731 = vxpose.xlu0.b32.cont [4/16] %v633, 128
        %732 = vxpose.xlu0.b32.cont [5/16] %v638, 128
        %733 = vxpose.xlu0.b32.cont [6/16] %v643, 128
        %734 = vxpose.xlu0.b32.cont [7/16] %v648, 128
        %735 = vxpose.xlu0.b32.cont [8/16] %v653, 128
        %736 = vxpose.xlu0.b32.cont [9/16] %v658, 128
        %737 = vxpose.xlu0.b32.cont [10/16] %v663, 128
        %738 = vxpose.xlu0.b32.cont [11/16] %v668, 128
        %739 = vxpose.xlu0.b32.cont [12/16] %v673, 128
        %740 = vxpose.xlu0.b32.cont [13/16] %v678, 128
        %741 = vxpose.xlu0.b32.cont [14/16] %v683, 128
        %742 = vxpose.xlu0.b32.cont [15/16] %v688, 128
        %743 = vxpose.xlu0.b32.end [16/16] %v693, 128
        %v744 = vpop.trf.xlu0
        %v745 = vpop.trf.xlu0
        %v746 = vpop.trf.xlu0
        %v747 = vpop.trf.xlu0
        %v748 = vpop.trf.xlu0
        %v749 = vpop.trf.xlu0
        %v750 = vpop.trf.xlu0
        %v751 = vpop.trf.xlu0
        %v752 = vpop.trf.xlu0
        %v753 = vpop.trf.xlu0
        %v754 = vpop.trf.xlu0
        %v755 = vpop.trf.xlu0
        %v756 = vpop.trf.xlu0
        %v757 = vpop.trf.xlu0
        %v758 = vpop.trf.xlu0
        %v759 = vpop.trf.xlu0
        %v768 = vcombine.low %v712, %v744
        %v769 = vcombine.high %v712, %v744
        %v770 = vcombine.low %v713, %v745
        %v771 = vcombine.high %v713, %v745
        %v772 = vcombine.low %v714, %v746
        %v773 = vcombine.high %v714, %v746
        %v774 = vcombine.low %v715, %v747
        %v775 = vcombine.high %v715, %v747
        %v784 = vcombine.high %v768, %v768
        %v785 = vcombine.high %v769, %v769
        %v786 = vcombine.high %v770, %v770
        %v787 = vcombine.high %v771, %v771
        %v788 = vcombine.high %v772, %v772
        %v789 = vcombine.high %v773, %v773
        %v790 = vcombine.high %v774, %v774
        %v791 = vcombine.high %v775, %v775
        %800 = vxpose.xlu0.b32.start [1/16] %v768, 128
        %801 = vxpose.xlu0.b32.cont [2/16] 0.0, 128
        %802 = vxpose.xlu0.b32.cont [3/16] 0.0, 128
        %803 = vxpose.xlu0.b32.cont [4/16] 0.0, 128
        %804 = vxpose.xlu0.b32.cont [5/16] 0.0, 128
        %805 = vxpose.xlu0.b32.cont [6/16] 0.0, 128
        %806 = vxpose.xlu0.b32.cont [7/16] 0.0, 128
        %807 = vxpose.xlu0.b32.cont [8/16] 0.0, 128
        %808 = vxpose.xlu0.b32.cont [9/16] 0.0, 128
        %809 = vxpose.xlu0.b32.cont [10/16] 0.0, 128
        %810 = vxpose.xlu0.b32.cont [11/16] 0.0, 128
        %811 = vxpose.xlu0.b32.cont [12/16] 0.0, 128
        %812 = vxpose.xlu0.b32.cont [13/16] 0.0, 128
        %813 = vxpose.xlu0.b32.cont [14/16] 0.0, 128
        %814 = vxpose.xlu0.b32.cont [15/16] 0.0, 128
        %815 = vxpose.xlu0.b32.end [16/16] 0.0, 128
        %v816 = vpop.trf.xlu0
        %v817 = vpop.trf.xlu0
        %v818 = vpop.trf.xlu0
        %v819 = vpop.trf.xlu0
        %v820 = vpop.trf.xlu0
        %v821 = vpop.trf.xlu0
        %v822 = vpop.trf.xlu0
        %v823 = vpop.trf.xlu0
        %v824 = vpop.trf.xlu0
        %v825 = vpop.trf.xlu0
        %v826 = vpop.trf.xlu0
        %v827 = vpop.trf.xlu0
        %v828 = vpop.trf.xlu0
        %v829 = vpop.trf.xlu0
        %v830 = vpop.trf.xlu0
        %v831 = vpop.trf.xlu0
        %832 = vxpose.xlu0.b32.start [1/16] %v784, 128
        %833 = vxpose.xlu0.b32.cont [2/16] 0.0, 128
        %834 = vxpose.xlu0.b32.cont [3/16] 0.0, 128
        %835 = vxpose.xlu0.b32.cont [4/16] 0.0, 128
        %836 = vxpose.xlu0.b32.cont [5/16] 0.0, 128
        %837 = vxpose.xlu0.b32.cont [6/16] 0.0, 128
        %838 = vxpose.xlu0.b32.cont [7/16] 0.0, 128
        %839 = vxpose.xlu0.b32.cont [8/16] 0.0, 128
        %840 = vxpose.xlu0.b32.cont [9/16] 0.0, 128
        %841 = vxpose.xlu0.b32.cont [10/16] 0.0, 128
        %842 = vxpose.xlu0.b32.cont [11/16] 0.0, 128
        %843 = vxpose.xlu0.b32.cont [12/16] 0.0, 128
        %844 = vxpose.xlu0.b32.cont [13/16] 0.0, 128
        %845 = vxpose.xlu0.b32.cont [14/16] 0.0, 128
        %846 = vxpose.xlu0.b32.cont [15/16] 0.0, 128
        %847 = vxpose.xlu0.b32.end [16/16] 0.0, 128
        %v848 = vpop.trf.xlu0
        %v849 = vpop.trf.xlu0
        %v850 = vpop.trf.xlu0
        %v851 = vpop.trf.xlu0
        %v852 = vpop.trf.xlu0
        %v853 = vpop.trf.xlu0
        %v854 = vpop.trf.xlu0
        %v855 = vpop.trf.xlu0
        %v856 = vpop.trf.xlu0
        %v857 = vpop.trf.xlu0
        %v858 = vpop.trf.xlu0
        %v859 = vpop.trf.xlu0
        %v860 = vpop.trf.xlu0
        %v861 = vpop.trf.xlu0
        %v862 = vpop.trf.xlu0
        %v863 = vpop.trf.xlu0
        %864 = vxpose.xlu0.b32.start [1/16] %v769, 128
        %865 = vxpose.xlu0.b32.cont [2/16] 0.0, 128
        %866 = vxpose.xlu0.b32.cont [3/16] 0.0, 128
        %867 = vxpose.xlu0.b32.cont [4/16] 0.0, 128
        %868 = vxpose.xlu0.b32.cont [5/16] 0.0, 128
        %869 = vxpose.xlu0.b32.cont [6/16] 0.0, 128
        %870 = vxpose.xlu0.b32.cont [7/16] 0.0, 128
        %871 = vxpose.xlu0.b32.cont [8/16] 0.0, 128
        %872 = vxpose.xlu0.b32.cont [9/16] 0.0, 128
        %873 = vxpose.xlu0.b32.cont [10/16] 0.0, 128
        %874 = vxpose.xlu0.b32.cont [11/16] 0.0, 128
        %875 = vxpose.xlu0.b32.cont [12/16] 0.0, 128
        %876 = vxpose.xlu0.b32.cont [13/16] 0.0, 128
        %877 = vxpose.xlu0.b32.cont [14/16] 0.0, 128
        %878 = vxpose.xlu0.b32.cont [15/16] 0.0, 128
        %879 = vxpose.xlu0.b32.end [16/16] 0.0, 128
        %v880 = vpop.trf.xlu0
        %v881 = vpop.trf.xlu0
        %v882 = vpop.trf.xlu0
        %v883 = vpop.trf.xlu0
        %v884 = vpop.trf.xlu0
        %v885 = vpop.trf.xlu0
        %v886 = vpop.trf.xlu0
        %v887 = vpop.trf.xlu0
        %v888 = vpop.trf.xlu0
        %v889 = vpop.trf.xlu0
        %v890 = vpop.trf.xlu0
        %v891 = vpop.trf.xlu0
        %v892 = vpop.trf.xlu0
        %v893 = vpop.trf.xlu0
        %v894 = vpop.trf.xlu0
        %v895 = vpop.trf.xlu0
        %896 = vxpose.xlu0.b32.start [1/16] %v785, 128
        %897 = vxpose.xlu0.b32.cont [2/16] 0.0, 128
        %898 = vxpose.xlu0.b32.cont [3/16] 0.0, 128
        %899 = vxpose.xlu0.b32.cont [4/16] 0.0, 128
        %900 = vxpose.xlu0.b32.cont [5/16] 0.0, 128
        %901 = vxpose.xlu0.b32.cont [6/16] 0.0, 128
        %902 = vxpose.xlu0.b32.cont [7/16] 0.0, 128
        %903 = vxpose.xlu0.b32.cont [8/16] 0.0, 128
        %904 = vxpose.xlu0.b32.cont [9/16] 0.0, 128
        %905 = vxpose.xlu0.b32.cont [10/16] 0.0, 128
        %906 = vxpose.xlu0.b32.cont [11/16] 0.0, 128
        %907 = vxpose.xlu0.b32.cont [12/16] 0.0, 128
        %908 = vxpose.xlu0.b32.cont [13/16] 0.0, 128
        %909 = vxpose.xlu0.b32.cont [14/16] 0.0, 128
        %910 = vxpose.xlu0.b32.cont [15/16] 0.0, 128
        %911 = vxpose.xlu0.b32.end [16/16] 0.0, 128
        %v912 = vpop.trf.xlu0
        %v913 = vpop.trf.xlu0
        %v914 = vpop.trf.xlu0
        %v915 = vpop.trf.xlu0
        %v916 = vpop.trf.xlu0
        %v917 = vpop.trf.xlu0
        %v918 = vpop.trf.xlu0
        %v919 = vpop.trf.xlu0
        %v920 = vpop.trf.xlu0
        %v921 = vpop.trf.xlu0
        %v922 = vpop.trf.xlu0
        %v923 = vpop.trf.xlu0
        %v924 = vpop.trf.xlu0
        %v925 = vpop.trf.xlu0
        %v926 = vpop.trf.xlu0
        %v927 = vpop.trf.xlu0
        %928 = vxpose.xlu0.b32.start [1/16] %v770, 128
        %929 = vxpose.xlu0.b32.cont [2/16] 0.0, 128
        %930 = vxpose.xlu0.b32.cont [3/16] 0.0, 128
        %931 = vxpose.xlu0.b32.cont [4/16] 0.0, 128
        %932 = vxpose.xlu0.b32.cont [5/16] 0.0, 128
        %933 = vxpose.xlu0.b32.cont [6/16] 0.0, 128
        %934 = vxpose.xlu0.b32.cont [7/16] 0.0, 128
        %935 = vxpose.xlu0.b32.cont [8/16] 0.0, 128
        %936 = vxpose.xlu0.b32.cont [9/16] 0.0, 128
        %937 = vxpose.xlu0.b32.cont [10/16] 0.0, 128
        %938 = vxpose.xlu0.b32.cont [11/16] 0.0, 128
        %939 = vxpose.xlu0.b32.cont [12/16] 0.0, 128
        %940 = vxpose.xlu0.b32.cont [13/16] 0.0, 128
        %941 = vxpose.xlu0.b32.cont [14/16] 0.0, 128
        %942 = vxpose.xlu0.b32.cont [15/16] 0.0, 128
        %943 = vxpose.xlu0.b32.end [16/16] 0.0, 128
        %v944 = vpop.trf.xlu0
        %v945 = vpop.trf.xlu0
        %v946 = vpop.trf.xlu0
        %v947 = vpop.trf.xlu0
        %v948 = vpop.trf.xlu0
        %v949 = vpop.trf.xlu0
        %v950 = vpop.trf.xlu0
        %v951 = vpop.trf.xlu0
        %v952 = vpop.trf.xlu0
        %v953 = vpop.trf.xlu0
        %v954 = vpop.trf.xlu0
        %v955 = vpop.trf.xlu0
        %v956 = vpop.trf.xlu0
        %v957 = vpop.trf.xlu0
        %v958 = vpop.trf.xlu0
        %v959 = vpop.trf.xlu0
        %960 = vxpose.xlu0.b32.start [1/16] %v786, 128
        %961 = vxpose.xlu0.b32.cont [2/16] 0.0, 128
        %962 = vxpose.xlu0.b32.cont [3/16] 0.0, 128
        %963 = vxpose.xlu0.b32.cont [4/16] 0.0, 128
        %964 = vxpose.xlu0.b32.cont [5/16] 0.0, 128
        %965 = vxpose.xlu0.b32.cont [6/16] 0.0, 128
        %966 = vxpose.xlu0.b32.cont [7/16] 0.0, 128
        %967 = vxpose.xlu0.b32.cont [8/16] 0.0, 128
        %968 = vxpose.xlu0.b32.cont [9/16] 0.0, 128
        %969 = vxpose.xlu0.b32.cont [10/16] 0.0, 128
        %970 = vxpose.xlu0.b32.cont [11/16] 0.0, 128
        %971 = vxpose.xlu0.b32.cont [12/16] 0.0, 128
        %972 = vxpose.xlu0.b32.cont [13/16] 0.0, 128
        %973 = vxpose.xlu0.b32.cont [14/16] 0.0, 128
        %974 = vxpose.xlu0.b32.cont [15/16] 0.0, 128
        %975 = vxpose.xlu0.b32.end [16/16] 0.0, 128
        %v976 = vpop.trf.xlu0
        %v977 = vpop.trf.xlu0
        %v978 = vpop.trf.xlu0
        %v979 = vpop.trf.xlu0
        %v980 = vpop.trf.xlu0
        %v981 = vpop.trf.xlu0
        %v982 = vpop.trf.xlu0
        %v983 = vpop.trf.xlu0
        %v984 = vpop.trf.xlu0
        %v985 = vpop.trf.xlu0
        %v986 = vpop.trf.xlu0
        %v987 = vpop.trf.xlu0
        %v988 = vpop.trf.xlu0
        %v989 = vpop.trf.xlu0
        %v990 = vpop.trf.xlu0
        %v991 = vpop.trf.xlu0
        %992 = vxpose.xlu0.b32.start [1/16] %v771, 128
        %993 = vxpose.xlu0.b32.cont [2/16] 0.0, 128
        %994 = vxpose.xlu0.b32.cont [3/16] 0.0, 128
        %995 = vxpose.xlu0.b32.cont [4/16] 0.0, 128
        %996 = vxpose.xlu0.b32.cont [5/16] 0.0, 128
        %997 = vxpose.xlu0.b32.cont [6/16] 0.0, 128
        %998 = vxpose.xlu0.b32.cont [7/16] 0.0, 128
        %999 = vxpose.xlu0.b32.cont [8/16] 0.0, 128
        %1000 = vxpose.xlu0.b32.cont [9/16] 0.0, 128
        %1001 = vxpose.xlu0.b32.cont [10/16] 0.0, 128
        %1002 = vxpose.xlu0.b32.cont [11/16] 0.0, 128
        %1003 = vxpose.xlu0.b32.cont [12/16] 0.0, 128
        %1004 = vxpose.xlu0.b32.cont [13/16] 0.0, 128
        %1005 = vxpose.xlu0.b32.cont [14/16] 0.0, 128
        %1006 = vxpose.xlu0.b32.cont [15/16] 0.0, 128
        %1007 = vxpose.xlu0.b32.end [16/16] 0.0, 128
        %v1008 = vpop.trf.xlu0
        %v1009 = vpop.trf.xlu0
        %v1010 = vpop.trf.xlu0
        %v1011 = vpop.trf.xlu0
        %v1012 = vpop.trf.xlu0
        %v1013 = vpop.trf.xlu0
        %v1014 = vpop.trf.xlu0
        %v1015 = vpop.trf.xlu0
        %v1016 = vpop.trf.xlu0
        %v1017 = vpop.trf.xlu0
        %v1018 = vpop.trf.xlu0
        %v1019 = vpop.trf.xlu0
        %v1020 = vpop.trf.xlu0
        %v1021 = vpop.trf.xlu0
        %v1022 = vpop.trf.xlu0
        %v1023 = vpop.trf.xlu0
        %1024 = vxpose.xlu0.b32.start [1/16] %v787, 128
        %1025 = vxpose.xlu0.b32.cont [2/16] 0.0, 128
        %1026 = vxpose.xlu0.b32.cont [3/16] 0.0, 128
        %1027 = vxpose.xlu0.b32.cont [4/16] 0.0, 128
        %1028 = vxpose.xlu0.b32.cont [5/16] 0.0, 128
        %1029 = vxpose.xlu0.b32.cont [6/16] 0.0, 128
        %1030 = vxpose.xlu0.b32.cont [7/16] 0.0, 128
        %1031 = vxpose.xlu0.b32.cont [8/16] 0.0, 128
        %1032 = vxpose.xlu0.b32.cont [9/16] 0.0, 128
        %1033 = vxpose.xlu0.b32.cont [10/16] 0.0, 128
        %1034 = vxpose.xlu0.b32.cont [11/16] 0.0, 128
        %1035 = vxpose.xlu0.b32.cont [12/16] 0.0, 128
        %1036 = vxpose.xlu0.b32.cont [13/16] 0.0, 128
        %1037 = vxpose.xlu0.b32.cont [14/16] 0.0, 128
        %1038 = vxpose.xlu0.b32.cont [15/16] 0.0, 128
        %1039 = vxpose.xlu0.b32.end [16/16] 0.0, 128
        %v1040 = vpop.trf.xlu0
        %v1041 = vpop.trf.xlu0
        %v1042 = vpop.trf.xlu0
        %v1043 = vpop.trf.xlu0
        %v1044 = vpop.trf.xlu0
        %v1045 = vpop.trf.xlu0
        %v1046 = vpop.trf.xlu0
        %v1047 = vpop.trf.xlu0
        %v1048 = vpop.trf.xlu0
        %v1049 = vpop.trf.xlu0
        %v1050 = vpop.trf.xlu0
        %v1051 = vpop.trf.xlu0
        %v1052 = vpop.trf.xlu0
        %v1053 = vpop.trf.xlu0
        %v1054 = vpop.trf.xlu0
        %v1055 = vpop.trf.xlu0
        %1056 = vxpose.xlu0.b32.start [1/16] %v772, 128
        %1057 = vxpose.xlu0.b32.cont [2/16] 0.0, 128
        %1058 = vxpose.xlu0.b32.cont [3/16] 0.0, 128
        %1059 = vxpose.xlu0.b32.cont [4/16] 0.0, 128
        %1060 = vxpose.xlu0.b32.cont [5/16] 0.0, 128
        %1061 = vxpose.xlu0.b32.cont [6/16] 0.0, 128
        %1062 = vxpose.xlu0.b32.cont [7/16] 0.0, 128
        %1063 = vxpose.xlu0.b32.cont [8/16] 0.0, 128
        %1064 = vxpose.xlu0.b32.cont [9/16] 0.0, 128
        %1065 = vxpose.xlu0.b32.cont [10/16] 0.0, 128
        %1066 = vxpose.xlu0.b32.cont [11/16] 0.0, 128
        %1067 = vxpose.xlu0.b32.cont [12/16] 0.0, 128
        %1068 = vxpose.xlu0.b32.cont [13/16] 0.0, 128
        %1069 = vxpose.xlu0.b32.cont [14/16] 0.0, 128
        %1070 = vxpose.xlu0.b32.cont [15/16] 0.0, 128
        %1071 = vxpose.xlu0.b32.end [16/16] 0.0, 128
        %v1072 = vpop.trf.xlu0
        %v1073 = vpop.trf.xlu0
        %v1074 = vpop.trf.xlu0
        %v1075 = vpop.trf.xlu0
        %v1076 = vpop.trf.xlu0
        %v1077 = vpop.trf.xlu0
        %v1078 = vpop.trf.xlu0
        %v1079 = vpop.trf.xlu0
        %v1080 = vpop.trf.xlu0
        %v1081 = vpop.trf.xlu0
        %v1082 = vpop.trf.xlu0
        %v1083 = vpop.trf.xlu0
        %v1084 = vpop.trf.xlu0
        %v1085 = vpop.trf.xlu0
        %v1086 = vpop.trf.xlu0
        %v1087 = vpop.trf.xlu0
        %1088 = vxpose.xlu0.b32.start [1/16] %v788, 128
        %1089 = vxpose.xlu0.b32.cont [2/16] 0.0, 128
        %1090 = vxpose.xlu0.b32.cont [3/16] 0.0, 128
        %1091 = vxpose.xlu0.b32.cont [4/16] 0.0, 128
        %1092 = vxpose.xlu0.b32.cont [5/16] 0.0, 128
        %1093 = vxpose.xlu0.b32.cont [6/16] 0.0, 128
        %1094 = vxpose.xlu0.b32.cont [7/16] 0.0, 128
        %1095 = vxpose.xlu0.b32.cont [8/16] 0.0, 128
        %1096 = vxpose.xlu0.b32.cont [9/16] 0.0, 128
        %1097 = vxpose.xlu0.b32.cont [10/16] 0.0, 128
        %1098 = vxpose.xlu0.b32.cont [11/16] 0.0, 128
        %1099 = vxpose.xlu0.b32.cont [12/16] 0.0, 128
        %1100 = vxpose.xlu0.b32.cont [13/16] 0.0, 128
        %1101 = vxpose.xlu0.b32.cont [14/16] 0.0, 128
        %1102 = vxpose.xlu0.b32.cont [15/16] 0.0, 128
        %1103 = vxpose.xlu0.b32.end [16/16] 0.0, 128
        %v1104 = vpop.trf.xlu0
        %v1105 = vpop.trf.xlu0
        %v1106 = vpop.trf.xlu0
        %v1107 = vpop.trf.xlu0
        %v1108 = vpop.trf.xlu0
        %v1109 = vpop.trf.xlu0
        %v1110 = vpop.trf.xlu0
        %v1111 = vpop.trf.xlu0
        %v1112 = vpop.trf.xlu0
        %v1113 = vpop.trf.xlu0
        %v1114 = vpop.trf.xlu0
        %v1115 = vpop.trf.xlu0
        %v1116 = vpop.trf.xlu0
        %v1117 = vpop.trf.xlu0
        %v1118 = vpop.trf.xlu0
        %v1119 = vpop.trf.xlu0
        %1120 = vxpose.xlu0.b32.start [1/16] %v773, 128
        %1121 = vxpose.xlu0.b32.cont [2/16] 0.0, 128
        %1122 = vxpose.xlu0.b32.cont [3/16] 0.0, 128
        %1123 = vxpose.xlu0.b32.cont [4/16] 0.0, 128
        %1124 = vxpose.xlu0.b32.cont [5/16] 0.0, 128
        %1125 = vxpose.xlu0.b32.cont [6/16] 0.0, 128
        %1126 = vxpose.xlu0.b32.cont [7/16] 0.0, 128
        %1127 = vxpose.xlu0.b32.cont [8/16] 0.0, 128
        %1128 = vxpose.xlu0.b32.cont [9/16] 0.0, 128
        %1129 = vxpose.xlu0.b32.cont [10/16] 0.0, 128
        %1130 = vxpose.xlu0.b32.cont [11/16] 0.0, 128
        %1131 = vxpose.xlu0.b32.cont [12/16] 0.0, 128
        %1132 = vxpose.xlu0.b32.cont [13/16] 0.0, 128
        %1133 = vxpose.xlu0.b32.cont [14/16] 0.0, 128
        %1134 = vxpose.xlu0.b32.cont [15/16] 0.0, 128
        %1135 = vxpose.xlu0.b32.end [16/16] 0.0, 128
        %v1136 = vpop.trf.xlu0
        %v1137 = vpop.trf.xlu0
        %v1138 = vpop.trf.xlu0
        %v1139 = vpop.trf.xlu0
        %v1140 = vpop.trf.xlu0
        %v1141 = vpop.trf.xlu0
        %v1142 = vpop.trf.xlu0
        %v1143 = vpop.trf.xlu0
        %v1144 = vpop.trf.xlu0
        %v1145 = vpop.trf.xlu0
        %v1146 = vpop.trf.xlu0
        %v1147 = vpop.trf.xlu0
        %v1148 = vpop.trf.xlu0
        %v1149 = vpop.trf.xlu0
        %v1150 = vpop.trf.xlu0
        %v1151 = vpop.trf.xlu0
        %1152 = vxpose.xlu0.b32.start [1/16] %v789, 128
        %1153 = vxpose.xlu0.b32.cont [2/16] 0.0, 128
        %1154 = vxpose.xlu0.b32.cont [3/16] 0.0, 128
        %1155 = vxpose.xlu0.b32.cont [4/16] 0.0, 128
        %1156 = vxpose.xlu0.b32.cont [5/16] 0.0, 128
        %1157 = vxpose.xlu0.b32.cont [6/16] 0.0, 128
        %1158 = vxpose.xlu0.b32.cont [7/16] 0.0, 128
        %1159 = vxpose.xlu0.b32.cont [8/16] 0.0, 128
        %1160 = vxpose.xlu0.b32.cont [9/16] 0.0, 128
        %1161 = vxpose.xlu0.b32.cont [10/16] 0.0, 128
        %1162 = vxpose.xlu0.b32.cont [11/16] 0.0, 128
        %1163 = vxpose.xlu0.b32.cont [12/16] 0.0, 128
        %1164 = vxpose.xlu0.b32.cont [13/16] 0.0, 128
        %1165 = vxpose.xlu0.b32.cont [14/16] 0.0, 128
        %1166 = vxpose.xlu0.b32.cont [15/16] 0.0, 128
        %1167 = vxpose.xlu0.b32.end [16/16] 0.0, 128
        %v1168 = vpop.trf.xlu0
        %v1169 = vpop.trf.xlu0
        %v1170 = vpop.trf.xlu0
        %v1171 = vpop.trf.xlu0
        %v1172 = vpop.trf.xlu0
        %v1173 = vpop.trf.xlu0
        %v1174 = vpop.trf.xlu0
        %v1175 = vpop.trf.xlu0
        %v1176 = vpop.trf.xlu0
        %v1177 = vpop.trf.xlu0
        %v1178 = vpop.trf.xlu0
        %v1179 = vpop.trf.xlu0
        %v1180 = vpop.trf.xlu0
        %v1181 = vpop.trf.xlu0
        %v1182 = vpop.trf.xlu0
        %v1183 = vpop.trf.xlu0
        %1184 = vxpose.xlu0.b32.start [1/16] %v774, 128
        %1185 = vxpose.xlu0.b32.cont [2/16] 0.0, 128
        %1186 = vxpose.xlu0.b32.cont [3/16] 0.0, 128
        %1187 = vxpose.xlu0.b32.cont [4/16] 0.0, 128
        %1188 = vxpose.xlu0.b32.cont [5/16] 0.0, 128
        %1189 = vxpose.xlu0.b32.cont [6/16] 0.0, 128
        %1190 = vxpose.xlu0.b32.cont [7/16] 0.0, 128
        %1191 = vxpose.xlu0.b32.cont [8/16] 0.0, 128
        %1192 = vxpose.xlu0.b32.cont [9/16] 0.0, 128
        %1193 = vxpose.xlu0.b32.cont [10/16] 0.0, 128
        %1194 = vxpose.xlu0.b32.cont [11/16] 0.0, 128
        %1195 = vxpose.xlu0.b32.cont [12/16] 0.0, 128
        %1196 = vxpose.xlu0.b32.cont [13/16] 0.0, 128
        %1197 = vxpose.xlu0.b32.cont [14/16] 0.0, 128
        %1198 = vxpose.xlu0.b32.cont [15/16] 0.0, 128
        %1199 = vxpose.xlu0.b32.end [16/16] 0.0, 128
        %v1200 = vpop.trf.xlu0
        %v1201 = vpop.trf.xlu0
        %v1202 = vpop.trf.xlu0
        %v1203 = vpop.trf.xlu0
        %v1204 = vpop.trf.xlu0
        %v1205 = vpop.trf.xlu0
        %v1206 = vpop.trf.xlu0
        %v1207 = vpop.trf.xlu0
        %v1208 = vpop.trf.xlu0
        %v1209 = vpop.trf.xlu0
        %v1210 = vpop.trf.xlu0
        %v1211 = vpop.trf.xlu0
        %v1212 = vpop.trf.xlu0
        %v1213 = vpop.trf.xlu0
        %v1214 = vpop.trf.xlu0
        %v1215 = vpop.trf.xlu0
        %1216 = vxpose.xlu0.b32.start [1/16] %v790, 128
        %1217 = vxpose.xlu0.b32.cont [2/16] 0.0, 128
        %1218 = vxpose.xlu0.b32.cont [3/16] 0.0, 128
        %1219 = vxpose.xlu0.b32.cont [4/16] 0.0, 128
        %1220 = vxpose.xlu0.b32.cont [5/16] 0.0, 128
        %1221 = vxpose.xlu0.b32.cont [6/16] 0.0, 128
        %1222 = vxpose.xlu0.b32.cont [7/16] 0.0, 128
        %1223 = vxpose.xlu0.b32.cont [8/16] 0.0, 128
        %1224 = vxpose.xlu0.b32.cont [9/16] 0.0, 128
        %1225 = vxpose.xlu0.b32.cont [10/16] 0.0, 128
        %1226 = vxpose.xlu0.b32.cont [11/16] 0.0, 128
        %1227 = vxpose.xlu0.b32.cont [12/16] 0.0, 128
        %1228 = vxpose.xlu0.b32.cont [13/16] 0.0, 128
        %1229 = vxpose.xlu0.b32.cont [14/16] 0.0, 128
        %1230 = vxpose.xlu0.b32.cont [15/16] 0.0, 128
        %1231 = vxpose.xlu0.b32.end [16/16] 0.0, 128
        %v1232 = vpop.trf.xlu0
        %v1233 = vpop.trf.xlu0
        %v1234 = vpop.trf.xlu0
        %v1235 = vpop.trf.xlu0
        %v1236 = vpop.trf.xlu0
        %v1237 = vpop.trf.xlu0
        %v1238 = vpop.trf.xlu0
        %v1239 = vpop.trf.xlu0
        %v1240 = vpop.trf.xlu0
        %v1241 = vpop.trf.xlu0
        %v1242 = vpop.trf.xlu0
        %v1243 = vpop.trf.xlu0
        %v1244 = vpop.trf.xlu0
        %v1245 = vpop.trf.xlu0
        %v1246 = vpop.trf.xlu0
        %v1247 = vpop.trf.xlu0
        %1248 = vxpose.xlu0.b32.start [1/16] %v775, 128
        %1249 = vxpose.xlu0.b32.cont [2/16] 0.0, 128
        %1250 = vxpose.xlu0.b32.cont [3/16] 0.0, 128
        %1251 = vxpose.xlu0.b32.cont [4/16] 0.0, 128
        %1252 = vxpose.xlu0.b32.cont [5/16] 0.0, 128
        %1253 = vxpose.xlu0.b32.cont [6/16] 0.0, 128
        %1254 = vxpose.xlu0.b32.cont [7/16] 0.0, 128
        %1255 = vxpose.xlu0.b32.cont [8/16] 0.0, 128
        %1256 = vxpose.xlu0.b32.cont [9/16] 0.0, 128
        %1257 = vxpose.xlu0.b32.cont [10/16] 0.0, 128
        %1258 = vxpose.xlu0.b32.cont [11/16] 0.0, 128
        %1259 = vxpose.xlu0.b32.cont [12/16] 0.0, 128
        %1260 = vxpose.xlu0.b32.cont [13/16] 0.0, 128
        %1261 = vxpose.xlu0.b32.cont [14/16] 0.0, 128
        %1262 = vxpose.xlu0.b32.cont [15/16] 0.0, 128
        %1263 = vxpose.xlu0.b32.end [16/16] 0.0, 128
        %v1264 = vpop.trf.xlu0
        %v1265 = vpop.trf.xlu0
        %v1266 = vpop.trf.xlu0
        %v1267 = vpop.trf.xlu0
        %v1268 = vpop.trf.xlu0
        %v1269 = vpop.trf.xlu0
        %v1270 = vpop.trf.xlu0
        %v1271 = vpop.trf.xlu0
        %v1272 = vpop.trf.xlu0
        %v1273 = vpop.trf.xlu0
        %v1274 = vpop.trf.xlu0
        %v1275 = vpop.trf.xlu0
        %v1276 = vpop.trf.xlu0
        %v1277 = vpop.trf.xlu0
        %v1278 = vpop.trf.xlu0
        %v1279 = vpop.trf.xlu0
        %1280 = vxpose.xlu0.b32.start [1/16] %v791, 128
        %1281 = vxpose.xlu0.b32.cont [2/16] 0.0, 128
        %1282 = vxpose.xlu0.b32.cont [3/16] 0.0, 128
        %1283 = vxpose.xlu0.b32.cont [4/16] 0.0, 128
        %1284 = vxpose.xlu0.b32.cont [5/16] 0.0, 128
        %1285 = vxpose.xlu0.b32.cont [6/16] 0.0, 128
        %1286 = vxpose.xlu0.b32.cont [7/16] 0.0, 128
        %1287 = vxpose.xlu0.b32.cont [8/16] 0.0, 128
        %1288 = vxpose.xlu0.b32.cont [9/16] 0.0, 128
        %1289 = vxpose.xlu0.b32.cont [10/16] 0.0, 128
        %1290 = vxpose.xlu0.b32.cont [11/16] 0.0, 128
        %1291 = vxpose.xlu0.b32.cont [12/16] 0.0, 128
        %1292 = vxpose.xlu0.b32.cont [13/16] 0.0, 128
        %1293 = vxpose.xlu0.b32.cont [14/16] 0.0, 128
        %1294 = vxpose.xlu0.b32.cont [15/16] 0.0, 128
        %1295 = vxpose.xlu0.b32.end [16/16] 0.0, 128
        %v1296 = vpop.trf.xlu0
        %v1297 = vpop.trf.xlu0
        %v1298 = vpop.trf.xlu0
        %v1299 = vpop.trf.xlu0
        %v1300 = vpop.trf.xlu0
        %v1301 = vpop.trf.xlu0
        %v1302 = vpop.trf.xlu0
        %v1303 = vpop.trf.xlu0
        %v1304 = vpop.trf.xlu0
        %v1305 = vpop.trf.xlu0
        %v1306 = vpop.trf.xlu0
        %v1307 = vpop.trf.xlu0
        %v1308 = vpop.trf.xlu0
        %v1309 = vpop.trf.xlu0
        %v1310 = vpop.trf.xlu0
        %v1311 = vpop.trf.xlu0
        %1344 = vrot.lane.b32.xlu0 %v538, 96
        %v1345 = vpop.permute.xlu0 %1344
        %1346 = vrot.lane.b32.xlu0 %v543, 96
        %v1347 = vpop.permute.xlu0 %1346
        %1348 = vrot.lane.b32.xlu0 %v548, 96
        %v1349 = vpop.permute.xlu0 %1348
        %1350 = vrot.lane.b32.xlu0 %v553, 96
        %v1351 = vpop.permute.xlu0 %1350
        %1352 = vrot.lane.b32.xlu0 %v558, 96
        %v1353 = vpop.permute.xlu0 %1352
        %1354 = vrot.lane.b32.xlu0 %v563, 96
        %v1355 = vpop.permute.xlu0 %1354
        %1356 = vrot.lane.b32.xlu0 %v568, 96
        %v1357 = vpop.permute.xlu0 %1356
        %1358 = vrot.lane.b32.xlu0 %v573, 96
        %v1359 = vpop.permute.xlu0 %1358
        %1360 = vrot.lane.b32.xlu0 %v578, 96
        %v1361 = vpop.permute.xlu0 %1360
        %1362 = vrot.lane.b32.xlu0 %v583, 96
        %v1363 = vpop.permute.xlu0 %1362
        %1364 = vrot.lane.b32.xlu0 %v588, 96
        %v1365 = vpop.permute.xlu0 %1364
        %1366 = vrot.lane.b32.xlu0 %v593, 96
        %v1367 = vpop.permute.xlu0 %1366
        %1368 = vrot.lane.b32.xlu0 %v598, 96
        %v1369 = vpop.permute.xlu0 %1368
        %1370 = vrot.lane.b32.xlu0 %v603, 96
        %v1371 = vpop.permute.xlu0 %1370
        %1372 = vrot.lane.b32.xlu0 %v608, 96
        %v1373 = vpop.permute.xlu0 %1372
        %1374 = vrot.lane.b32.xlu0 %v613, 96
        %v1375 = vpop.permute.xlu0 %1374
        %1376 = vrot.lane.b32.xlu0 %v618, 96
        %v1377 = vpop.permute.xlu0 %1376
        %1378 = vrot.lane.b32.xlu0 %v623, 96
        %v1379 = vpop.permute.xlu0 %1378
        %1380 = vrot.lane.b32.xlu0 %v628, 96
        %v1381 = vpop.permute.xlu0 %1380
        %1382 = vrot.lane.b32.xlu0 %v633, 96
        %v1383 = vpop.permute.xlu0 %1382
        %1384 = vrot.lane.b32.xlu0 %v638, 96
        %v1385 = vpop.permute.xlu0 %1384
        %1386 = vrot.lane.b32.xlu0 %v643, 96
        %v1387 = vpop.permute.xlu0 %1386
        %1388 = vrot.lane.b32.xlu0 %v648, 96
        %v1389 = vpop.permute.xlu0 %1388
        %1390 = vrot.lane.b32.xlu0 %v653, 96
        %v1391 = vpop.permute.xlu0 %1390
        %1392 = vrot.lane.b32.xlu0 %v658, 96
        %v1393 = vpop.permute.xlu0 %1392
        %1394 = vrot.lane.b32.xlu0 %v663, 96
        %v1395 = vpop.permute.xlu0 %1394
        %1396 = vrot.lane.b32.xlu0 %v668, 96
        %v1397 = vpop.permute.xlu0 %1396
        %1398 = vrot.lane.b32.xlu0 %v673, 96
        %v1399 = vpop.permute.xlu0 %1398
        %1400 = vrot.lane.b32.xlu0 %v678, 96
        %v1401 = vpop.permute.xlu0 %1400
        %1402 = vrot.lane.b32.xlu0 %v683, 96
        %v1403 = vpop.permute.xlu0 %1402
        %1404 = vrot.lane.b32.xlu0 %v688, 96
        %v1405 = vpop.permute.xlu0 %1404
        %1406 = vrot.lane.b32.xlu0 %v693, 96
        %v1407 = vpop.permute.xlu0 %1406
        %1440 = vxpose.xlu0.b32.start [1/16] %v1345, 128
        %1441 = vxpose.xlu0.b32.cont [2/16] %v1347, 128
        %1442 = vxpose.xlu0.b32.cont [3/16] %v1349, 128
        %1443 = vxpose.xlu0.b32.cont [4/16] %v1351, 128
        %1444 = vxpose.xlu0.b32.cont [5/16] %v1353, 128
        %1445 = vxpose.xlu0.b32.cont [6/16] %v1355, 128
        %1446 = vxpose.xlu0.b32.cont [7/16] %v1357, 128
        %1447 = vxpose.xlu0.b32.cont [8/16] %v1359, 128
        %1448 = vxpose.xlu0.b32.cont [9/16] %v1361, 128
        %1449 = vxpose.xlu0.b32.cont [10/16] %v1363, 128
        %1450 = vxpose.xlu0.b32.cont [11/16] %v1365, 128
        %1451 = vxpose.xlu0.b32.cont [12/16] %v1367, 128
        %1452 = vxpose.xlu0.b32.cont [13/16] %v1369, 128
        %1453 = vxpose.xlu0.b32.cont [14/16] %v1371, 128
        %1454 = vxpose.xlu0.b32.cont [15/16] %v1373, 128
        %1455 = vxpose.xlu0.b32.end [16/16] %v1375, 128
        %v1456 = vpop.trf.xlu0
        %v1457 = vpop.trf.xlu0
        %v1458 = vpop.trf.xlu0
        %v1459 = vpop.trf.xlu0
        %v1460 = vpop.trf.xlu0
        %v1461 = vpop.trf.xlu0
        %v1462 = vpop.trf.xlu0
        %v1463 = vpop.trf.xlu0
        %v1464 = vpop.trf.xlu0
        %v1465 = vpop.trf.xlu0
        %v1466 = vpop.trf.xlu0
        %v1467 = vpop.trf.xlu0
        %v1468 = vpop.trf.xlu0
        %v1469 = vpop.trf.xlu0
        %v1470 = vpop.trf.xlu0
        %v1471 = vpop.trf.xlu0
        %1472 = vxpose.xlu0.b32.start [1/16] %v1377, 128
        %1473 = vxpose.xlu0.b32.cont [2/16] %v1379, 128
        %1474 = vxpose.xlu0.b32.cont [3/16] %v1381, 128
        %1475 = vxpose.xlu0.b32.cont [4/16] %v1383, 128
        %1476 = vxpose.xlu0.b32.cont [5/16] %v1385, 128
        %1477 = vxpose.xlu0.b32.cont [6/16] %v1387, 128
        %1478 = vxpose.xlu0.b32.cont [7/16] %v1389, 128
        %1479 = vxpose.xlu0.b32.cont [8/16] %v1391, 128
        %1480 = vxpose.xlu0.b32.cont [9/16] %v1393, 128
        %1481 = vxpose.xlu0.b32.cont [10/16] %v1395, 128
        %1482 = vxpose.xlu0.b32.cont [11/16] %v1397, 128
        %1483 = vxpose.xlu0.b32.cont [12/16] %v1399, 128
        %1484 = vxpose.xlu0.b32.cont [13/16] %v1401, 128
        %1485 = vxpose.xlu0.b32.cont [14/16] %v1403, 128
        %1486 = vxpose.xlu0.b32.cont [15/16] %v1405, 128
        %1487 = vxpose.xlu0.b32.end [16/16] %v1407, 128
        %v1488 = vpop.trf.xlu0
        %v1489 = vpop.trf.xlu0
        %v1490 = vpop.trf.xlu0
        %v1491 = vpop.trf.xlu0
        %v1492 = vpop.trf.xlu0
        %v1493 = vpop.trf.xlu0
        %v1494 = vpop.trf.xlu0
        %v1495 = vpop.trf.xlu0
        %v1496 = vpop.trf.xlu0
        %v1497 = vpop.trf.xlu0
        %v1498 = vpop.trf.xlu0
        %v1499 = vpop.trf.xlu0
        %v1500 = vpop.trf.xlu0
        %v1501 = vpop.trf.xlu0
        %v1502 = vpop.trf.xlu0
        %v1503 = vpop.trf.xlu0
        %v1512 = vcombine.low %v1456, %v1488
        %v1513 = vcombine.high %v1456, %v1488
        %v1514 = vcombine.low %v1457, %v1489
        %v1515 = vcombine.high %v1457, %v1489
        %v1516 = vcombine.low %v1458, %v1490
        %v1517 = vcombine.high %v1458, %v1490
        %v1518 = vcombine.low %v1459, %v1491
        %v1519 = vcombine.high %v1459, %v1491
        %1520 = vrot.lane.b32.xlu0 %v538, 64
        %v1521 = vpop.permute.xlu0 %1520
        %1522 = vrot.lane.b32.xlu0 %v543, 64
        %v1523 = vpop.permute.xlu0 %1522
        %1524 = vrot.lane.b32.xlu0 %v548, 64
        %v1525 = vpop.permute.xlu0 %1524
        %1526 = vrot.lane.b32.xlu0 %v553, 64
        %v1527 = vpop.permute.xlu0 %1526
        %1528 = vrot.lane.b32.xlu0 %v558, 64
        %v1529 = vpop.permute.xlu0 %1528
        %1530 = vrot.lane.b32.xlu0 %v563, 64
        %v1531 = vpop.permute.xlu0 %1530
        %1532 = vrot.lane.b32.xlu0 %v568, 64
        %v1533 = vpop.permute.xlu0 %1532
        %1534 = vrot.lane.b32.xlu0 %v573, 64
        %v1535 = vpop.permute.xlu0 %1534
        %1536 = vrot.lane.b32.xlu0 %v578, 64
        %v1537 = vpop.permute.xlu0 %1536
        %1538 = vrot.lane.b32.xlu0 %v583, 64
        %v1539 = vpop.permute.xlu0 %1538
        %1540 = vrot.lane.b32.xlu0 %v588, 64
        %v1541 = vpop.permute.xlu0 %1540
        %1542 = vrot.lane.b32.xlu0 %v593, 64
        %v1543 = vpop.permute.xlu0 %1542
        %1544 = vrot.lane.b32.xlu0 %v598, 64
        %v1545 = vpop.permute.xlu0 %1544
        %1546 = vrot.lane.b32.xlu0 %v603, 64
        %v1547 = vpop.permute.xlu0 %1546
        %1548 = vrot.lane.b32.xlu0 %v608, 64
        %v1549 = vpop.permute.xlu0 %1548
        %1550 = vrot.lane.b32.xlu0 %v613, 64
        %v1551 = vpop.permute.xlu0 %1550
        %1552 = vrot.lane.b32.xlu0 %v618, 64
        %v1553 = vpop.permute.xlu0 %1552
        %1554 = vrot.lane.b32.xlu0 %v623, 64
        %v1555 = vpop.permute.xlu0 %1554
        %1556 = vrot.lane.b32.xlu0 %v628, 64
        %v1557 = vpop.permute.xlu0 %1556
        %1558 = vrot.lane.b32.xlu0 %v633, 64
        %v1559 = vpop.permute.xlu0 %1558
        %1560 = vrot.lane.b32.xlu0 %v638, 64
        %v1561 = vpop.permute.xlu0 %1560
        %1562 = vrot.lane.b32.xlu0 %v643, 64
        %v1563 = vpop.permute.xlu0 %1562
        %1564 = vrot.lane.b32.xlu0 %v648, 64
        %v1565 = vpop.permute.xlu0 %1564
        %1566 = vrot.lane.b32.xlu0 %v653, 64
        %v1567 = vpop.permute.xlu0 %1566
        %1568 = vrot.lane.b32.xlu0 %v658, 64
        %v1569 = vpop.permute.xlu0 %1568
        %1570 = vrot.lane.b32.xlu0 %v663, 64
        %v1571 = vpop.permute.xlu0 %1570
        %1572 = vrot.lane.b32.xlu0 %v668, 64
        %v1573 = vpop.permute.xlu0 %1572
        %1574 = vrot.lane.b32.xlu0 %v673, 64
        %v1575 = vpop.permute.xlu0 %1574
        %1576 = vrot.lane.b32.xlu0 %v678, 64
        %v1577 = vpop.permute.xlu0 %1576
        %1578 = vrot.lane.b32.xlu0 %v683, 64
        %v1579 = vpop.permute.xlu0 %1578
        %1580 = vrot.lane.b32.xlu0 %v688, 64
        %v1581 = vpop.permute.xlu0 %1580
        %1582 = vrot.lane.b32.xlu0 %v693, 64
        %v1583 = vpop.permute.xlu0 %1582
        %1616 = vxpose.xlu0.b32.start [1/16] %v1521, 128
        %1617 = vxpose.xlu0.b32.cont [2/16] %v1523, 128
        %1618 = vxpose.xlu0.b32.cont [3/16] %v1525, 128
        %1619 = vxpose.xlu0.b32.cont [4/16] %v1527, 128
        %1620 = vxpose.xlu0.b32.cont [5/16] %v1529, 128
        %1621 = vxpose.xlu0.b32.cont [6/16] %v1531, 128
        %1622 = vxpose.xlu0.b32.cont [7/16] %v1533, 128
        %1623 = vxpose.xlu0.b32.cont [8/16] %v1535, 128
        %1624 = vxpose.xlu0.b32.cont [9/16] %v1537, 128
        %1625 = vxpose.xlu0.b32.cont [10/16] %v1539, 128
        %1626 = vxpose.xlu0.b32.cont [11/16] %v1541, 128
        %1627 = vxpose.xlu0.b32.cont [12/16] %v1543, 128
        %1628 = vxpose.xlu0.b32.cont [13/16] %v1545, 128
        %1629 = vxpose.xlu0.b32.cont [14/16] %v1547, 128
        %1630 = vxpose.xlu0.b32.cont [15/16] %v1549, 128
        %1631 = vxpose.xlu0.b32.end [16/16] %v1551, 128
        %v1632 = vpop.trf.xlu0
        %v1633 = vpop.trf.xlu0
        %v1634 = vpop.trf.xlu0
        %v1635 = vpop.trf.xlu0
        %v1636 = vpop.trf.xlu0
        %v1637 = vpop.trf.xlu0
        %v1638 = vpop.trf.xlu0
        %v1639 = vpop.trf.xlu0
        %v1640 = vpop.trf.xlu0
        %v1641 = vpop.trf.xlu0
        %v1642 = vpop.trf.xlu0
        %v1643 = vpop.trf.xlu0
        %v1644 = vpop.trf.xlu0
        %v1645 = vpop.trf.xlu0
        %v1646 = vpop.trf.xlu0
        %v1647 = vpop.trf.xlu0
        %1648 = vxpose.xlu0.b32.start [1/16] %v1553, 128
        %1649 = vxpose.xlu0.b32.cont [2/16] %v1555, 128
        %1650 = vxpose.xlu0.b32.cont [3/16] %v1557, 128
        %1651 = vxpose.xlu0.b32.cont [4/16] %v1559, 128
        %1652 = vxpose.xlu0.b32.cont [5/16] %v1561, 128
        %1653 = vxpose.xlu0.b32.cont [6/16] %v1563, 128
        %1654 = vxpose.xlu0.b32.cont [7/16] %v1565, 128
        %1655 = vxpose.xlu0.b32.cont [8/16] %v1567, 128
        %1656 = vxpose.xlu0.b32.cont [9/16] %v1569, 128
        %1657 = vxpose.xlu0.b32.cont [10/16] %v1571, 128
        %1658 = vxpose.xlu0.b32.cont [11/16] %v1573, 128
        %1659 = vxpose.xlu0.b32.cont [12/16] %v1575, 128
        %1660 = vxpose.xlu0.b32.cont [13/16] %v1577, 128
        %1661 = vxpose.xlu0.b32.cont [14/16] %v1579, 128
        %1662 = vxpose.xlu0.b32.cont [15/16] %v1581, 128
        %1663 = vxpose.xlu0.b32.end [16/16] %v1583, 128
        %v1664 = vpop.trf.xlu0
        %v1665 = vpop.trf.xlu0
        %v1666 = vpop.trf.xlu0
        %v1667 = vpop.trf.xlu0
        %v1668 = vpop.trf.xlu0
        %v1669 = vpop.trf.xlu0
        %v1670 = vpop.trf.xlu0
        %v1671 = vpop.trf.xlu0
        %v1672 = vpop.trf.xlu0
        %v1673 = vpop.trf.xlu0
        %v1674 = vpop.trf.xlu0
        %v1675 = vpop.trf.xlu0
        %v1676 = vpop.trf.xlu0
        %v1677 = vpop.trf.xlu0
        %v1678 = vpop.trf.xlu0
        %v1679 = vpop.trf.xlu0
        %v1688 = vcombine.low %v1632, %v1664
        %v1689 = vcombine.high %v1632, %v1664
        %v1690 = vcombine.low %v1633, %v1665
        %v1691 = vcombine.high %v1633, %v1665
        %v1692 = vcombine.low %v1634, %v1666
        %v1693 = vcombine.high %v1634, %v1666
        %v1694 = vcombine.low %v1635, %v1667
        %v1695 = vcombine.high %v1635, %v1667
        %v1704 = vcombine.high %v1512, %v1512
        %vm1705 = vcmask 31744
        %v1707 = vsel %vm1705, %v816, 0
        %v1710 = vsel %vm1705, %v817, 0
        %v1713 = vsel %vm1705, %v818, 0
        %v1716 = vsel %vm1705, %v819, 0
        %v1719 = vsel %vm1705, %v820, 0
        %v1722 = vsel %vm1705, %v821, 0
        %v1725 = vsel %vm1705, %v822, 0
        %v1728 = vsel %vm1705, %v823, 0
        %v1731 = vsel %vm1705, %v824, 0
        %v1734 = vsel %vm1705, %v825, 0
        %v1737 = vsel %vm1705, %v826, 0
        %v1740 = vsel %vm1705, %v827, 0
        %v1743 = vsel %vm1705, %v828, 0
        %v1746 = vsel %vm1705, %v829, 0
        %v1749 = vsel %vm1705, %v830, 0
        %v1752 = vsel %vm1705, %v831, 0
        %v1755 = vsel %vm1705, %v848, 0
        %v1758 = vsel %vm1705, %v849, 0
        %v1761 = vsel %vm1705, %v850, 0
        %v1764 = vsel %vm1705, %v851, 0
        %v1767 = vsel %vm1705, %v852, 0
        %v1770 = vsel %vm1705, %v853, 0
        %v1773 = vsel %vm1705, %v854, 0
        %v1776 = vsel %vm1705, %v855, 0
        %v1779 = vsel %vm1705, %v856, 0
        %v1782 = vsel %vm1705, %v857, 0
        %v1785 = vsel %vm1705, %v858, 0
        %v1788 = vsel %vm1705, %v859, 0
        %v1791 = vsel %vm1705, %v860, 0
        %v1794 = vsel %vm1705, %v861, 0
        %v1797 = vsel %vm1705, %v862, 0
        %v1800 = vsel %vm1705, %v863, 0
        %vm1802 = vcmask 1043456
        %v1803 = vsel %vm1802, %v1512, 0
        %v1805 = vsel %vm1802, %v1704, 0
        %1807 = vmatprep.subr.mxu0 0.0
        %1808 = vmatpush1.msra.mxu0 0.0
        %1809 = vmatprep.subr.mxu0 0.0
        %1810 = vmatpush1.msra.mxu0 0.0
        %1811 = vmatprep.subr.mxu0 0.0
        %1812 = vmatpush1.msra.mxu0 0.0
        %1813 = vmatprep.subr.mxu0 0.0
        %1814 = vmatpush1.msra.mxu0 0.0
        %1815 = vmatprep.subr.mxu0 0.0
        %1816 = vmatpush1.msra.mxu0 0.0
        %1817 = vmatprep.subr.mxu0 0.0
        %1818 = vmatpush1.msra.mxu0 0.0
        %1819 = vmatprep.subr.mxu0 0.0
        %1820 = vmatpush1.msra.mxu0 0.0
        %1821 = vmatprep.subr.mxu0 0.0
        %1822 = vmatpush1.msra.mxu0 0.0
        %1823 = vmatprep.subr.mxu0 0.0
        %1824 = vmatpush1.msra.mxu0 0.0
        %1825 = vmatprep.subr.mxu0 0.0
        %1826 = vmatpush1.msra.mxu0 0.0
        %1827 = vmatprep.subr.mxu0 0.0
        %1828 = vmatpush1.msra.mxu0 0.0
        %1829 = vmatprep.subr.mxu0 0.0
        %1830 = vmatpush1.msra.mxu0 0.0
        %1831 = vmatprep.subr.mxu0 0.0
        %1832 = vmatpush1.msra.mxu0 0.0
        %1833 = vmatprep.subr.mxu0 0.0
        %1834 = vmatpush1.msra.mxu0 0.0
        %1835 = vmatprep.subr.mxu0 0.0
        %1836 = vmatpush1.msra.mxu0 0.0
        %1837 = vmatprep.subr.mxu0 %v1805
        %1838 = vmatpush1.msra.mxu0 %v1803
        %1839 = vmatprep.subr.mxu0 0.0
        %1840 = vmatpush2.msra.mxu0 0.0
        %1841 = vmatprep.subr.mxu0 0.0
        %1842 = vmatpush2.msra.mxu0 0.0
        %1843 = vmatprep.subr.mxu0 0.0
        %1844 = vmatpush2.msra.mxu0 0.0
        %1845 = vmatprep.subr.mxu0 0.0
        %1846 = vmatpush2.msra.mxu0 0.0
        %1847 = vmatprep.subr.mxu0 0.0
        %1848 = vmatpush2.msra.mxu0 0.0
        %1849 = vmatprep.subr.mxu0 0.0
        %1850 = vmatpush2.msra.mxu0 0.0
        %1851 = vmatprep.subr.mxu0 0.0
        %1852 = vmatpush2.msra.mxu0 0.0
        %1853 = vmatprep.subr.mxu0 0.0
        %1854 = vmatpush2.msra.mxu0 0.0
        %1855 = vmatprep.subr.mxu0 0.0
        %1856 = vmatpush2.msra.mxu0 0.0
        %1857 = vmatprep.subr.mxu0 0.0
        %1858 = vmatpush2.msra.mxu0 0.0
        %1859 = vmatprep.subr.mxu0 0.0
        %1860 = vmatpush2.msra.mxu0 0.0
        %1861 = vmatprep.subr.mxu0 0.0
        %1862 = vmatpush2.msra.mxu0 0.0
        %1863 = vmatprep.subr.mxu0 0.0
        %1864 = vmatpush2.msra.mxu0 0.0
        %1865 = vmatprep.subr.mxu0 0.0
        %1866 = vmatpush2.msra.mxu0 0.0
        %1867 = vmatprep.subr.mxu0 0.0
        %1868 = vmatpush2.msra.mxu0 0.0
        %1869 = vmatprep.subr.mxu0 0.0
        %1870 = vmatpush2.msra.mxu0 0.0
        %1871 = vmatprep.mubr.f32.mxu0 0.0
        %1872 = vmatmul.mubr.f32.gmra.mxu0 %v1707
        %v1873 = vpop.f32.mrf.mxu0
        %v1874 = vadd.f32 0.0, %v1873
        %v1875 = vpop.f32.mrf.mxu0
        %v1876 = vadd.f32 0.0, %v1875
        %1877 = vmatprep.mubr.f32.mxu0 0.0
        %1878 = vmatmul.mubr.f32.gmra.mxu0 %v1710
        %v1879 = vpop.f32.mrf.mxu0
        %v1880 = vadd.f32 0.0, %v1879
        %v1881 = vpop.f32.mrf.mxu0
        %v1882 = vadd.f32 0.0, %v1881
        %1883 = vmatprep.mubr.f32.mxu0 0.0
        %1884 = vmatmul.mubr.f32.gmra.mxu0 %v1713
        %v1885 = vpop.f32.mrf.mxu0
        %v1886 = vadd.f32 0.0, %v1885
        %v1887 = vpop.f32.mrf.mxu0
        %v1888 = vadd.f32 0.0, %v1887
        %1889 = vmatprep.mubr.f32.mxu0 0.0
        %1890 = vmatmul.mubr.f32.gmra.mxu0 %v1716
        %v1891 = vpop.f32.mrf.mxu0
        %v1892 = vadd.f32 0.0, %v1891
        %v1893 = vpop.f32.mrf.mxu0
        %v1894 = vadd.f32 0.0, %v1893
        %1895 = vmatprep.mubr.f32.mxu0 0.0
        %1896 = vmatmul.mubr.f32.gmra.mxu0 %v1719
        %v1897 = vpop.f32.mrf.mxu0
        %v1898 = vadd.f32 0.0, %v1897
        %v1899 = vpop.f32.mrf.mxu0
        %v1900 = vadd.f32 0.0, %v1899
        %1901 = vmatprep.mubr.f32.mxu0 0.0
        %1902 = vmatmul.mubr.f32.gmra.mxu0 %v1722
        %v1903 = vpop.f32.mrf.mxu0
        %v1904 = vadd.f32 0.0, %v1903
        %v1905 = vpop.f32.mrf.mxu0
        %v1906 = vadd.f32 0.0, %v1905
        %1907 = vmatprep.mubr.f32.mxu0 0.0
        %1908 = vmatmul.mubr.f32.gmra.mxu0 %v1725
        %v1909 = vpop.f32.mrf.mxu0
        %v1910 = vadd.f32 0.0, %v1909
        %v1911 = vpop.f32.mrf.mxu0
        %v1912 = vadd.f32 0.0, %v1911
        %1913 = vmatprep.mubr.f32.mxu0 0.0
        %1914 = vmatmul.mubr.f32.gmra.mxu0 %v1728
        %v1915 = vpop.f32.mrf.mxu0
        %v1916 = vadd.f32 0.0, %v1915
        %v1917 = vpop.f32.mrf.mxu0
        %v1918 = vadd.f32 0.0, %v1917
        %1919 = vmatprep.mubr.f32.mxu0 0.0
        %1920 = vmatmul.mubr.f32.gmra.mxu0 %v1731
        %v1921 = vpop.f32.mrf.mxu0
        %v1922 = vadd.f32 0.0, %v1921
        %v1923 = vpop.f32.mrf.mxu0
        %v1924 = vadd.f32 0.0, %v1923
        %1925 = vmatprep.mubr.f32.mxu0 0.0
        %1926 = vmatmul.mubr.f32.gmra.mxu0 %v1734
        %v1927 = vpop.f32.mrf.mxu0
        %v1928 = vadd.f32 0.0, %v1927
        %v1929 = vpop.f32.mrf.mxu0
        %v1930 = vadd.f32 0.0, %v1929
        %1931 = vmatprep.mubr.f32.mxu0 0.0
        %1932 = vmatmul.mubr.f32.gmra.mxu0 %v1737
        %v1933 = vpop.f32.mrf.mxu0
        %v1934 = vadd.f32 0.0, %v1933
        %v1935 = vpop.f32.mrf.mxu0
        %v1936 = vadd.f32 0.0, %v1935
        %1937 = vmatprep.mubr.f32.mxu0 0.0
        %1938 = vmatmul.mubr.f32.gmra.mxu0 %v1740
        %v1939 = vpop.f32.mrf.mxu0
        %v1940 = vadd.f32 0.0, %v1939
        %v1941 = vpop.f32.mrf.mxu0
        %v1942 = vadd.f32 0.0, %v1941
        %1943 = vmatprep.mubr.f32.mxu0 0.0
        %1944 = vmatmul.mubr.f32.gmra.mxu0 %v1743
        %v1945 = vpop.f32.mrf.mxu0
        %v1946 = vadd.f32 0.0, %v1945
        %v1947 = vpop.f32.mrf.mxu0
        %v1948 = vadd.f32 0.0, %v1947
        %1949 = vmatprep.mubr.f32.mxu0 0.0
        %1950 = vmatmul.mubr.f32.gmra.mxu0 %v1746
        %v1951 = vpop.f32.mrf.mxu0
        %v1952 = vadd.f32 0.0, %v1951
        %v1953 = vpop.f32.mrf.mxu0
        %v1954 = vadd.f32 0.0, %v1953
        %1955 = vmatprep.mubr.f32.mxu0 0.0
        %1956 = vmatmul.mubr.f32.gmra.mxu0 %v1749
        %v1957 = vpop.f32.mrf.mxu0
        %v1958 = vadd.f32 0.0, %v1957
        %v1959 = vpop.f32.mrf.mxu0
        %v1960 = vadd.f32 0.0, %v1959
        %1961 = vmatprep.mubr.f32.mxu0 0.0
        %1962 = vmatmul.mubr.f32.gmra.mxu0 %v1752
        %v1963 = vpop.f32.mrf.mxu0
        %v1964 = vadd.f32 0.0, %v1963
        %v1965 = vpop.f32.mrf.mxu0
        %v1966 = vadd.f32 0.0, %v1965
        %1967 = vmatprep.mubr.f32.mxu0 0.0
        %1968 = vmatmul.mubr.f32.gmra.mxu0 %v1755
        %v1969 = vpop.f32.mrf.mxu0
        %v1970 = vadd.f32 0.0, %v1969
        %v1971 = vpop.f32.mrf.mxu0
        %v1972 = vadd.f32 0.0, %v1971
        %1973 = vmatprep.mubr.f32.mxu0 0.0
        %1974 = vmatmul.mubr.f32.gmra.mxu0 %v1758
        %v1975 = vpop.f32.mrf.mxu0
        %v1976 = vadd.f32 0.0, %v1975
        %v1977 = vpop.f32.mrf.mxu0
        %v1978 = vadd.f32 0.0, %v1977
        %1979 = vmatprep.mubr.f32.mxu0 0.0
        %1980 = vmatmul.mubr.f32.gmra.mxu0 %v1761
        %v1981 = vpop.f32.mrf.mxu0
        %v1982 = vadd.f32 0.0, %v1981
        %v1983 = vpop.f32.mrf.mxu0
        %v1984 = vadd.f32 0.0, %v1983
        %1985 = vmatprep.mubr.f32.mxu0 0.0
        %1986 = vmatmul.mubr.f32.gmra.mxu0 %v1764
        %v1987 = vpop.f32.mrf.mxu0
        %v1988 = vadd.f32 0.0, %v1987
        %v1989 = vpop.f32.mrf.mxu0
        %v1990 = vadd.f32 0.0, %v1989
        %1991 = vmatprep.mubr.f32.mxu0 0.0
        %1992 = vmatmul.mubr.f32.gmra.mxu0 %v1767
        %v1993 = vpop.f32.mrf.mxu0
        %v1994 = vadd.f32 0.0, %v1993
        %v1995 = vpop.f32.mrf.mxu0
        %v1996 = vadd.f32 0.0, %v1995
        %1997 = vmatprep.mubr.f32.mxu0 0.0
        %1998 = vmatmul.mubr.f32.gmra.mxu0 %v1770
        %v1999 = vpop.f32.mrf.mxu0
        %v2000 = vadd.f32 0.0, %v1999
        %v2001 = vpop.f32.mrf.mxu0
        %v2002 = vadd.f32 0.0, %v2001
        %2003 = vmatprep.mubr.f32.mxu0 0.0
        %2004 = vmatmul.mubr.f32.gmra.mxu0 %v1773
        %v2005 = vpop.f32.mrf.mxu0
        %v2006 = vadd.f32 0.0, %v2005
        %v2007 = vpop.f32.mrf.mxu0
        %v2008 = vadd.f32 0.0, %v2007
        %2009 = vmatprep.mubr.f32.mxu0 0.0
        %2010 = vmatmul.mubr.f32.gmra.mxu0 %v1776
        %v2011 = vpop.f32.mrf.mxu0
        %v2012 = vadd.f32 0.0, %v2011
        %v2013 = vpop.f32.mrf.mxu0
        %v2014 = vadd.f32 0.0, %v2013
        %2015 = vmatprep.mubr.f32.mxu0 0.0
        %2016 = vmatmul.mubr.f32.gmra.mxu0 %v1779
        %v2017 = vpop.f32.mrf.mxu0
        %v2018 = vadd.f32 0.0, %v2017
        %v2019 = vpop.f32.mrf.mxu0
        %v2020 = vadd.f32 0.0, %v2019
        %2021 = vmatprep.mubr.f32.mxu0 0.0
        %2022 = vmatmul.mubr.f32.gmra.mxu0 %v1782
        %v2023 = vpop.f32.mrf.mxu0
        %v2024 = vadd.f32 0.0, %v2023
        %v2025 = vpop.f32.mrf.mxu0
        %v2026 = vadd.f32 0.0, %v2025
        %2027 = vmatprep.mubr.f32.mxu0 0.0
        %2028 = vmatmul.mubr.f32.gmra.mxu0 %v1785
        %v2029 = vpop.f32.mrf.mxu0
        %v2030 = vadd.f32 0.0, %v2029
        %v2031 = vpop.f32.mrf.mxu0
        %v2032 = vadd.f32 0.0, %v2031
        %2033 = vmatprep.mubr.f32.mxu0 0.0
        %2034 = vmatmul.mubr.f32.gmra.mxu0 %v1788
        %v2035 = vpop.f32.mrf.mxu0
        %v2036 = vadd.f32 0.0, %v2035
        %v2037 = vpop.f32.mrf.mxu0
        %v2038 = vadd.f32 0.0, %v2037
        %2039 = vmatprep.mubr.f32.mxu0 0.0
        %2040 = vmatmul.mubr.f32.gmra.mxu0 %v1791
        %v2041 = vpop.f32.mrf.mxu0
        %v2042 = vadd.f32 0.0, %v2041
        %v2043 = vpop.f32.mrf.mxu0
        %v2044 = vadd.f32 0.0, %v2043
        %2045 = vmatprep.mubr.f32.mxu0 0.0
        %2046 = vmatmul.mubr.f32.gmra.mxu0 %v1794
        %v2047 = vpop.f32.mrf.mxu0
        %v2048 = vadd.f32 0.0, %v2047
        %v2049 = vpop.f32.mrf.mxu0
        %v2050 = vadd.f32 0.0, %v2049
        %2051 = vmatprep.mubr.f32.mxu0 0.0
        %2052 = vmatmul.mubr.f32.gmra.mxu0 %v1797
        %v2053 = vpop.f32.mrf.mxu0
        %v2054 = vadd.f32 0.0, %v2053
        %v2055 = vpop.f32.mrf.mxu0
        %v2056 = vadd.f32 0.0, %v2055
        %2057 = vmatprep.mubr.f32.mxu0 0.0
        %2058 = vmatmul.mubr.f32.gmra.mxu0 %v1800
        %v2059 = vpop.f32.mrf.mxu0
        %v2060 = vadd.f32 0.0, %v2059
        %v2061 = vpop.f32.mrf.mxu0
        %v2062 = vadd.f32 0.0, %v2061
        %2063 = vdwg.mxu0
        %v2064 = vcombine.high %v1513, %v1513
        %v2066 = vsel %vm1705, %v880, 0
        %v2069 = vsel %vm1705, %v881, 0
        %v2072 = vsel %vm1705, %v882, 0
        %v2075 = vsel %vm1705, %v883, 0
        %v2078 = vsel %vm1705, %v884, 0
        %v2081 = vsel %vm1705, %v885, 0
        %v2084 = vsel %vm1705, %v886, 0
        %v2087 = vsel %vm1705, %v887, 0
        %v2090 = vsel %vm1705, %v888, 0
        %v2093 = vsel %vm1705, %v889, 0
        %v2096 = vsel %vm1705, %v890, 0
        %v2099 = vsel %vm1705, %v891, 0
        %v2102 = vsel %vm1705, %v892, 0
        %v2105 = vsel %vm1705, %v893, 0
        %v2108 = vsel %vm1705, %v894, 0
        %v2111 = vsel %vm1705, %v895, 0
        %v2114 = vsel %vm1705, %v912, 0
        %v2117 = vsel %vm1705, %v913, 0
        %v2120 = vsel %vm1705, %v914, 0
        %v2123 = vsel %vm1705, %v915, 0
        %v2126 = vsel %vm1705, %v916, 0
        %v2129 = vsel %vm1705, %v917, 0
        %v2132 = vsel %vm1705, %v918, 0
        %v2135 = vsel %vm1705, %v919, 0
        %v2138 = vsel %vm1705, %v920, 0
        %v2141 = vsel %vm1705, %v921, 0
        %v2144 = vsel %vm1705, %v922, 0
        %v2147 = vsel %vm1705, %v923, 0
        %v2150 = vsel %vm1705, %v924, 0
        %v2153 = vsel %vm1705, %v925, 0
        %v2156 = vsel %vm1705, %v926, 0
        %v2159 = vsel %vm1705, %v927, 0
        %v2161 = vsel %vm1802, %v1513, 0
        %v2163 = vsel %vm1802, %v2064, 0
        %2165 = vmatprep.subr.mxu0 0.0
        %2166 = vmatpush1.msra.mxu0 0.0
        %2167 = vmatprep.subr.mxu0 0.0
        %2168 = vmatpush1.msra.mxu0 0.0
        %2169 = vmatprep.subr.mxu0 0.0
        %2170 = vmatpush1.msra.mxu0 0.0
        %2171 = vmatprep.subr.mxu0 0.0
        %2172 = vmatpush1.msra.mxu0 0.0
        %2173 = vmatprep.subr.mxu0 0.0
        %2174 = vmatpush1.msra.mxu0 0.0
        %2175 = vmatprep.subr.mxu0 0.0
        %2176 = vmatpush1.msra.mxu0 0.0
        %2177 = vmatprep.subr.mxu0 0.0
        %2178 = vmatpush1.msra.mxu0 0.0
        %2179 = vmatprep.subr.mxu0 0.0
        %2180 = vmatpush1.msra.mxu0 0.0
        %2181 = vmatprep.subr.mxu0 0.0
        %2182 = vmatpush1.msra.mxu0 0.0
        %2183 = vmatprep.subr.mxu0 0.0
        %2184 = vmatpush1.msra.mxu0 0.0
        %2185 = vmatprep.subr.mxu0 0.0
        %2186 = vmatpush1.msra.mxu0 0.0
        %2187 = vmatprep.subr.mxu0 0.0
        %2188 = vmatpush1.msra.mxu0 0.0
        %2189 = vmatprep.subr.mxu0 0.0
        %2190 = vmatpush1.msra.mxu0 0.0
        %2191 = vmatprep.subr.mxu0 0.0
        %2192 = vmatpush1.msra.mxu0 0.0
        %2193 = vmatprep.subr.mxu0 0.0
        %2194 = vmatpush1.msra.mxu0 0.0
        %2195 = vmatprep.subr.mxu0 %v2163
        %2196 = vmatpush1.msra.mxu0 %v2161
        %2197 = vmatprep.subr.mxu0 0.0
        %2198 = vmatpush2.msra.mxu0 0.0
        %2199 = vmatprep.subr.mxu0 0.0
        %2200 = vmatpush2.msra.mxu0 0.0
        %2201 = vmatprep.subr.mxu0 0.0
        %2202 = vmatpush2.msra.mxu0 0.0
        %2203 = vmatprep.subr.mxu0 0.0
        %2204 = vmatpush2.msra.mxu0 0.0
        %2205 = vmatprep.subr.mxu0 0.0
        %2206 = vmatpush2.msra.mxu0 0.0
        %2207 = vmatprep.subr.mxu0 0.0
        %2208 = vmatpush2.msra.mxu0 0.0
        %2209 = vmatprep.subr.mxu0 0.0
        %2210 = vmatpush2.msra.mxu0 0.0
        %2211 = vmatprep.subr.mxu0 0.0
        %2212 = vmatpush2.msra.mxu0 0.0
        %2213 = vmatprep.subr.mxu0 0.0
        %2214 = vmatpush2.msra.mxu0 0.0
        %2215 = vmatprep.subr.mxu0 0.0
        %2216 = vmatpush2.msra.mxu0 0.0
        %2217 = vmatprep.subr.mxu0 0.0
        %2218 = vmatpush2.msra.mxu0 0.0
        %2219 = vmatprep.subr.mxu0 0.0
        %2220 = vmatpush2.msra.mxu0 0.0
        %2221 = vmatprep.subr.mxu0 0.0
        %2222 = vmatpush2.msra.mxu0 0.0
        %2223 = vmatprep.subr.mxu0 0.0
        %2224 = vmatpush2.msra.mxu0 0.0
        %2225 = vmatprep.subr.mxu0 0.0
        %2226 = vmatpush2.msra.mxu0 0.0
        %2227 = vmatprep.subr.mxu0 0.0
        %2228 = vmatpush2.msra.mxu0 0.0
        %2229 = vmatprep.mubr.f32.mxu0 0.0
        %2230 = vmatmul.mubr.f32.gmra.mxu0 %v2066
        %v2231 = vpop.f32.mrf.mxu0
        %v2232 = vadd.f32 0.0, %v2231
        %v2233 = vpop.f32.mrf.mxu0
        %v2234 = vadd.f32 0.0, %v2233
        %2235 = vmatprep.mubr.f32.mxu0 0.0
        %2236 = vmatmul.mubr.f32.gmra.mxu0 %v2069
        %v2237 = vpop.f32.mrf.mxu0
        %v2238 = vadd.f32 0.0, %v2237
        %v2239 = vpop.f32.mrf.mxu0
        %v2240 = vadd.f32 0.0, %v2239
        %2241 = vmatprep.mubr.f32.mxu0 0.0
        %2242 = vmatmul.mubr.f32.gmra.mxu0 %v2072
        %v2243 = vpop.f32.mrf.mxu0
        %v2244 = vadd.f32 0.0, %v2243
        %v2245 = vpop.f32.mrf.mxu0
        %v2246 = vadd.f32 0.0, %v2245
        %2247 = vmatprep.mubr.f32.mxu0 0.0
        %2248 = vmatmul.mubr.f32.gmra.mxu0 %v2075
        %v2249 = vpop.f32.mrf.mxu0
        %v2250 = vadd.f32 0.0, %v2249
        %v2251 = vpop.f32.mrf.mxu0
        %v2252 = vadd.f32 0.0, %v2251
        %2253 = vmatprep.mubr.f32.mxu0 0.0
        %2254 = vmatmul.mubr.f32.gmra.mxu0 %v2078
        %v2255 = vpop.f32.mrf.mxu0
        %v2256 = vadd.f32 0.0, %v2255
        %v2257 = vpop.f32.mrf.mxu0
        %v2258 = vadd.f32 0.0, %v2257
        %2259 = vmatprep.mubr.f32.mxu0 0.0
        %2260 = vmatmul.mubr.f32.gmra.mxu0 %v2081
        %v2261 = vpop.f32.mrf.mxu0
        %v2262 = vadd.f32 0.0, %v2261
        %v2263 = vpop.f32.mrf.mxu0
        %v2264 = vadd.f32 0.0, %v2263
        %2265 = vmatprep.mubr.f32.mxu0 0.0
        %2266 = vmatmul.mubr.f32.gmra.mxu0 %v2084
        %v2267 = vpop.f32.mrf.mxu0
        %v2268 = vadd.f32 0.0, %v2267
        %v2269 = vpop.f32.mrf.mxu0
        %v2270 = vadd.f32 0.0, %v2269
        %2271 = vmatprep.mubr.f32.mxu0 0.0
        %2272 = vmatmul.mubr.f32.gmra.mxu0 %v2087
        %v2273 = vpop.f32.mrf.mxu0
        %v2274 = vadd.f32 0.0, %v2273
        %v2275 = vpop.f32.mrf.mxu0
        %v2276 = vadd.f32 0.0, %v2275
        %2277 = vmatprep.mubr.f32.mxu0 0.0
        %2278 = vmatmul.mubr.f32.gmra.mxu0 %v2090
        %v2279 = vpop.f32.mrf.mxu0
        %v2280 = vadd.f32 0.0, %v2279
        %v2281 = vpop.f32.mrf.mxu0
        %v2282 = vadd.f32 0.0, %v2281
        %2283 = vmatprep.mubr.f32.mxu0 0.0
        %2284 = vmatmul.mubr.f32.gmra.mxu0 %v2093
        %v2285 = vpop.f32.mrf.mxu0
        %v2286 = vadd.f32 0.0, %v2285
        %v2287 = vpop.f32.mrf.mxu0
        %v2288 = vadd.f32 0.0, %v2287
        %2289 = vmatprep.mubr.f32.mxu0 0.0
        %2290 = vmatmul.mubr.f32.gmra.mxu0 %v2096
        %v2291 = vpop.f32.mrf.mxu0
        %v2292 = vadd.f32 0.0, %v2291
        %v2293 = vpop.f32.mrf.mxu0
        %v2294 = vadd.f32 0.0, %v2293
        %2295 = vmatprep.mubr.f32.mxu0 0.0
        %2296 = vmatmul.mubr.f32.gmra.mxu0 %v2099
        %v2297 = vpop.f32.mrf.mxu0
        %v2298 = vadd.f32 0.0, %v2297
        %v2299 = vpop.f32.mrf.mxu0
        %v2300 = vadd.f32 0.0, %v2299
        %2301 = vmatprep.mubr.f32.mxu0 0.0
        %2302 = vmatmul.mubr.f32.gmra.mxu0 %v2102
        %v2303 = vpop.f32.mrf.mxu0
        %v2304 = vadd.f32 0.0, %v2303
        %v2305 = vpop.f32.mrf.mxu0
        %v2306 = vadd.f32 0.0, %v2305
        %2307 = vmatprep.mubr.f32.mxu0 0.0
        %2308 = vmatmul.mubr.f32.gmra.mxu0 %v2105
        %v2309 = vpop.f32.mrf.mxu0
        %v2310 = vadd.f32 0.0, %v2309
        %v2311 = vpop.f32.mrf.mxu0
        %v2312 = vadd.f32 0.0, %v2311
        %2313 = vmatprep.mubr.f32.mxu0 0.0
        %2314 = vmatmul.mubr.f32.gmra.mxu0 %v2108
        %v2315 = vpop.f32.mrf.mxu0
        %v2316 = vadd.f32 0.0, %v2315
        %v2317 = vpop.f32.mrf.mxu0
        %v2318 = vadd.f32 0.0, %v2317
        %2319 = vmatprep.mubr.f32.mxu0 0.0
        %2320 = vmatmul.mubr.f32.gmra.mxu0 %v2111
        %v2321 = vpop.f32.mrf.mxu0
        %v2322 = vadd.f32 0.0, %v2321
        %v2323 = vpop.f32.mrf.mxu0
        %v2324 = vadd.f32 0.0, %v2323
        %2325 = vmatprep.mubr.f32.mxu0 0.0
        %2326 = vmatmul.mubr.f32.gmra.mxu0 %v2114
        %v2327 = vpop.f32.mrf.mxu0
        %v2328 = vadd.f32 0.0, %v2327
        %v2329 = vpop.f32.mrf.mxu0
        %v2330 = vadd.f32 0.0, %v2329
        %2331 = vmatprep.mubr.f32.mxu0 0.0
        %2332 = vmatmul.mubr.f32.gmra.mxu0 %v2117
        %v2333 = vpop.f32.mrf.mxu0
        %v2334 = vadd.f32 0.0, %v2333
        %v2335 = vpop.f32.mrf.mxu0
        %v2336 = vadd.f32 0.0, %v2335
        %2337 = vmatprep.mubr.f32.mxu0 0.0
        %2338 = vmatmul.mubr.f32.gmra.mxu0 %v2120
        %v2339 = vpop.f32.mrf.mxu0
        %v2340 = vadd.f32 0.0, %v2339
        %v2341 = vpop.f32.mrf.mxu0
        %v2342 = vadd.f32 0.0, %v2341
        %2343 = vmatprep.mubr.f32.mxu0 0.0
        %2344 = vmatmul.mubr.f32.gmra.mxu0 %v2123
        %v2345 = vpop.f32.mrf.mxu0
        %v2346 = vadd.f32 0.0, %v2345
        %v2347 = vpop.f32.mrf.mxu0
        %v2348 = vadd.f32 0.0, %v2347
        %2349 = vmatprep.mubr.f32.mxu0 0.0
        %2350 = vmatmul.mubr.f32.gmra.mxu0 %v2126
        %v2351 = vpop.f32.mrf.mxu0
        %v2352 = vadd.f32 0.0, %v2351
        %v2353 = vpop.f32.mrf.mxu0
        %v2354 = vadd.f32 0.0, %v2353
        %2355 = vmatprep.mubr.f32.mxu0 0.0
        %2356 = vmatmul.mubr.f32.gmra.mxu0 %v2129
        %v2357 = vpop.f32.mrf.mxu0
        %v2358 = vadd.f32 0.0, %v2357
        %v2359 = vpop.f32.mrf.mxu0
        %v2360 = vadd.f32 0.0, %v2359
        %2361 = vmatprep.mubr.f32.mxu0 0.0
        %2362 = vmatmul.mubr.f32.gmra.mxu0 %v2132
        %v2363 = vpop.f32.mrf.mxu0
        %v2364 = vadd.f32 0.0, %v2363
        %v2365 = vpop.f32.mrf.mxu0
        %v2366 = vadd.f32 0.0, %v2365
        %2367 = vmatprep.mubr.f32.mxu0 0.0
        %2368 = vmatmul.mubr.f32.gmra.mxu0 %v2135
        %v2369 = vpop.f32.mrf.mxu0
        %v2370 = vadd.f32 0.0, %v2369
        %v2371 = vpop.f32.mrf.mxu0
        %v2372 = vadd.f32 0.0, %v2371
        %2373 = vmatprep.mubr.f32.mxu0 0.0
        %2374 = vmatmul.mubr.f32.gmra.mxu0 %v2138
        %v2375 = vpop.f32.mrf.mxu0
        %v2376 = vadd.f32 0.0, %v2375
        %v2377 = vpop.f32.mrf.mxu0
        %v2378 = vadd.f32 0.0, %v2377
        %2379 = vmatprep.mubr.f32.mxu0 0.0
        %2380 = vmatmul.mubr.f32.gmra.mxu0 %v2141
        %v2381 = vpop.f32.mrf.mxu0
        %v2382 = vadd.f32 0.0, %v2381
        %v2383 = vpop.f32.mrf.mxu0
        %v2384 = vadd.f32 0.0, %v2383
        %2385 = vmatprep.mubr.f32.mxu0 0.0
        %2386 = vmatmul.mubr.f32.gmra.mxu0 %v2144
        %v2387 = vpop.f32.mrf.mxu0
        %v2388 = vadd.f32 0.0, %v2387
        %v2389 = vpop.f32.mrf.mxu0
        %v2390 = vadd.f32 0.0, %v2389
        %2391 = vmatprep.mubr.f32.mxu0 0.0
        %2392 = vmatmul.mubr.f32.gmra.mxu0 %v2147
        %v2393 = vpop.f32.mrf.mxu0
        %v2394 = vadd.f32 0.0, %v2393
        %v2395 = vpop.f32.mrf.mxu0
        %v2396 = vadd.f32 0.0, %v2395
        %2397 = vmatprep.mubr.f32.mxu0 0.0
        %2398 = vmatmul.mubr.f32.gmra.mxu0 %v2150
        %v2399 = vpop.f32.mrf.mxu0
        %v2400 = vadd.f32 0.0, %v2399
        %v2401 = vpop.f32.mrf.mxu0
        %v2402 = vadd.f32 0.0, %v2401
        %2403 = vmatprep.mubr.f32.mxu0 0.0
        %2404 = vmatmul.mubr.f32.gmra.mxu0 %v2153
        %v2405 = vpop.f32.mrf.mxu0
        %v2406 = vadd.f32 0.0, %v2405
        %v2407 = vpop.f32.mrf.mxu0
        %v2408 = vadd.f32 0.0, %v2407
        %2409 = vmatprep.mubr.f32.mxu0 0.0
        %2410 = vmatmul.mubr.f32.gmra.mxu0 %v2156
        %v2411 = vpop.f32.mrf.mxu0
        %v2412 = vadd.f32 0.0, %v2411
        %v2413 = vpop.f32.mrf.mxu0
        %v2414 = vadd.f32 0.0, %v2413
        %2415 = vmatprep.mubr.f32.mxu0 0.0
        %2416 = vmatmul.mubr.f32.gmra.mxu0 %v2159
        %v2417 = vpop.f32.mrf.mxu0
        %v2418 = vadd.f32 0.0, %v2417
        %v2419 = vpop.f32.mrf.mxu0
        %v2420 = vadd.f32 0.0, %v2419
        %2421 = vdwg.mxu0
        %v2422 = vcombine.high %v1514, %v1514
        %v2424 = vsel %vm1705, %v944, 0
        %v2427 = vsel %vm1705, %v945, 0
        %v2430 = vsel %vm1705, %v946, 0
        %v2433 = vsel %vm1705, %v947, 0
        %v2436 = vsel %vm1705, %v948, 0
        %v2439 = vsel %vm1705, %v949, 0
        %v2442 = vsel %vm1705, %v950, 0
        %v2445 = vsel %vm1705, %v951, 0
        %v2448 = vsel %vm1705, %v952, 0
        %v2451 = vsel %vm1705, %v953, 0
        %v2454 = vsel %vm1705, %v954, 0
        %v2457 = vsel %vm1705, %v955, 0
        %v2460 = vsel %vm1705, %v956, 0
        %v2463 = vsel %vm1705, %v957, 0
        %v2466 = vsel %vm1705, %v958, 0
        %v2469 = vsel %vm1705, %v959, 0
        %v2472 = vsel %vm1705, %v976, 0
        %v2475 = vsel %vm1705, %v977, 0
        %v2478 = vsel %vm1705, %v978, 0
        %v2481 = vsel %vm1705, %v979, 0
        %v2484 = vsel %vm1705, %v980, 0
        %v2487 = vsel %vm1705, %v981, 0
        %v2490 = vsel %vm1705, %v982, 0
        %v2493 = vsel %vm1705, %v983, 0
        %v2496 = vsel %vm1705, %v984, 0
        %v2499 = vsel %vm1705, %v985, 0
        %v2502 = vsel %vm1705, %v986, 0
        %v2505 = vsel %vm1705, %v987, 0
        %v2508 = vsel %vm1705, %v988, 0
        %v2511 = vsel %vm1705, %v989, 0
        %v2514 = vsel %vm1705, %v990, 0
        %v2517 = vsel %vm1705, %v991, 0
        %v2519 = vsel %vm1802, %v1514, 0
        %v2521 = vsel %vm1802, %v2422, 0
        %2523 = vmatprep.subr.mxu0 0.0
        %2524 = vmatpush1.msra.mxu0 0.0
        %2525 = vmatprep.subr.mxu0 0.0
        %2526 = vmatpush1.msra.mxu0 0.0
        %2527 = vmatprep.subr.mxu0 0.0
        %2528 = vmatpush1.msra.mxu0 0.0
        %2529 = vmatprep.subr.mxu0 0.0
        %2530 = vmatpush1.msra.mxu0 0.0
        %2531 = vmatprep.subr.mxu0 0.0
        %2532 = vmatpush1.msra.mxu0 0.0
        %2533 = vmatprep.subr.mxu0 0.0
        %2534 = vmatpush1.msra.mxu0 0.0
        %2535 = vmatprep.subr.mxu0 0.0
        %2536 = vmatpush1.msra.mxu0 0.0
        %2537 = vmatprep.subr.mxu0 0.0
        %2538 = vmatpush1.msra.mxu0 0.0
        %2539 = vmatprep.subr.mxu0 0.0
        %2540 = vmatpush1.msra.mxu0 0.0
        %2541 = vmatprep.subr.mxu0 0.0
        %2542 = vmatpush1.msra.mxu0 0.0
        %2543 = vmatprep.subr.mxu0 0.0
        %2544 = vmatpush1.msra.mxu0 0.0
        %2545 = vmatprep.subr.mxu0 0.0
        %2546 = vmatpush1.msra.mxu0 0.0
        %2547 = vmatprep.subr.mxu0 0.0
        %2548 = vmatpush1.msra.mxu0 0.0
        %2549 = vmatprep.subr.mxu0 0.0
        %2550 = vmatpush1.msra.mxu0 0.0
        %2551 = vmatprep.subr.mxu0 0.0
        %2552 = vmatpush1.msra.mxu0 0.0
        %2553 = vmatprep.subr.mxu0 %v2521
        %2554 = vmatpush1.msra.mxu0 %v2519
        %2555 = vmatprep.subr.mxu0 0.0
        %2556 = vmatpush2.msra.mxu0 0.0
        %2557 = vmatprep.subr.mxu0 0.0
        %2558 = vmatpush2.msra.mxu0 0.0
        %2559 = vmatprep.subr.mxu0 0.0
        %2560 = vmatpush2.msra.mxu0 0.0
        %2561 = vmatprep.subr.mxu0 0.0
        %2562 = vmatpush2.msra.mxu0 0.0
        %2563 = vmatprep.subr.mxu0 0.0
        %2564 = vmatpush2.msra.mxu0 0.0
        %2565 = vmatprep.subr.mxu0 0.0
        %2566 = vmatpush2.msra.mxu0 0.0
        %2567 = vmatprep.subr.mxu0 0.0
        %2568 = vmatpush2.msra.mxu0 0.0
        %2569 = vmatprep.subr.mxu0 0.0
        %2570 = vmatpush2.msra.mxu0 0.0
        %2571 = vmatprep.subr.mxu0 0.0
        %2572 = vmatpush2.msra.mxu0 0.0
        %2573 = vmatprep.subr.mxu0 0.0
        %2574 = vmatpush2.msra.mxu0 0.0
        %2575 = vmatprep.subr.mxu0 0.0
        %2576 = vmatpush2.msra.mxu0 0.0
        %2577 = vmatprep.subr.mxu0 0.0
        %2578 = vmatpush2.msra.mxu0 0.0
        %2579 = vmatprep.subr.mxu0 0.0
        %2580 = vmatpush2.msra.mxu0 0.0
        %2581 = vmatprep.subr.mxu0 0.0
        %2582 = vmatpush2.msra.mxu0 0.0
        %2583 = vmatprep.subr.mxu0 0.0
        %2584 = vmatpush2.msra.mxu0 0.0
        %2585 = vmatprep.subr.mxu0 0.0
        %2586 = vmatpush2.msra.mxu0 0.0
        %2587 = vmatprep.mubr.f32.mxu0 0.0
        %2588 = vmatmul.mubr.f32.gmra.mxu0 %v2424
        %v2589 = vpop.f32.mrf.mxu0
        %v2590 = vadd.f32 0.0, %v2589
        %v2591 = vpop.f32.mrf.mxu0
        %v2592 = vadd.f32 0.0, %v2591
        %2593 = vmatprep.mubr.f32.mxu0 0.0
        %2594 = vmatmul.mubr.f32.gmra.mxu0 %v2427
        %v2595 = vpop.f32.mrf.mxu0
        %v2596 = vadd.f32 0.0, %v2595
        %v2597 = vpop.f32.mrf.mxu0
        %v2598 = vadd.f32 0.0, %v2597
        %2599 = vmatprep.mubr.f32.mxu0 0.0
        %2600 = vmatmul.mubr.f32.gmra.mxu0 %v2430
        %v2601 = vpop.f32.mrf.mxu0
        %v2602 = vadd.f32 0.0, %v2601
        %v2603 = vpop.f32.mrf.mxu0
        %v2604 = vadd.f32 0.0, %v2603
        %2605 = vmatprep.mubr.f32.mxu0 0.0
        %2606 = vmatmul.mubr.f32.gmra.mxu0 %v2433
        %v2607 = vpop.f32.mrf.mxu0
        %v2608 = vadd.f32 0.0, %v2607
        %v2609 = vpop.f32.mrf.mxu0
        %v2610 = vadd.f32 0.0, %v2609
        %2611 = vmatprep.mubr.f32.mxu0 0.0
        %2612 = vmatmul.mubr.f32.gmra.mxu0 %v2436
        %v2613 = vpop.f32.mrf.mxu0
        %v2614 = vadd.f32 0.0, %v2613
        %v2615 = vpop.f32.mrf.mxu0
        %v2616 = vadd.f32 0.0, %v2615
        %2617 = vmatprep.mubr.f32.mxu0 0.0
        %2618 = vmatmul.mubr.f32.gmra.mxu0 %v2439
        %v2619 = vpop.f32.mrf.mxu0
        %v2620 = vadd.f32 0.0, %v2619
        %v2621 = vpop.f32.mrf.mxu0
        %v2622 = vadd.f32 0.0, %v2621
        %2623 = vmatprep.mubr.f32.mxu0 0.0
        %2624 = vmatmul.mubr.f32.gmra.mxu0 %v2442
        %v2625 = vpop.f32.mrf.mxu0
        %v2626 = vadd.f32 0.0, %v2625
        %v2627 = vpop.f32.mrf.mxu0
        %v2628 = vadd.f32 0.0, %v2627
        %2629 = vmatprep.mubr.f32.mxu0 0.0
        %2630 = vmatmul.mubr.f32.gmra.mxu0 %v2445
        %v2631 = vpop.f32.mrf.mxu0
        %v2632 = vadd.f32 0.0, %v2631
        %v2633 = vpop.f32.mrf.mxu0
        %v2634 = vadd.f32 0.0, %v2633
        %2635 = vmatprep.mubr.f32.mxu0 0.0
        %2636 = vmatmul.mubr.f32.gmra.mxu0 %v2448
        %v2637 = vpop.f32.mrf.mxu0
        %v2638 = vadd.f32 0.0, %v2637
        %v2639 = vpop.f32.mrf.mxu0
        %v2640 = vadd.f32 0.0, %v2639
        %2641 = vmatprep.mubr.f32.mxu0 0.0
        %2642 = vmatmul.mubr.f32.gmra.mxu0 %v2451
        %v2643 = vpop.f32.mrf.mxu0
        %v2644 = vadd.f32 0.0, %v2643
        %v2645 = vpop.f32.mrf.mxu0
        %v2646 = vadd.f32 0.0, %v2645
        %2647 = vmatprep.mubr.f32.mxu0 0.0
        %2648 = vmatmul.mubr.f32.gmra.mxu0 %v2454
        %v2649 = vpop.f32.mrf.mxu0
        %v2650 = vadd.f32 0.0, %v2649
        %v2651 = vpop.f32.mrf.mxu0
        %v2652 = vadd.f32 0.0, %v2651
        %2653 = vmatprep.mubr.f32.mxu0 0.0
        %2654 = vmatmul.mubr.f32.gmra.mxu0 %v2457
        %v2655 = vpop.f32.mrf.mxu0
        %v2656 = vadd.f32 0.0, %v2655
        %v2657 = vpop.f32.mrf.mxu0
        %v2658 = vadd.f32 0.0, %v2657
        %2659 = vmatprep.mubr.f32.mxu0 0.0
        %2660 = vmatmul.mubr.f32.gmra.mxu0 %v2460
        %v2661 = vpop.f32.mrf.mxu0
        %v2662 = vadd.f32 0.0, %v2661
        %v2663 = vpop.f32.mrf.mxu0
        %v2664 = vadd.f32 0.0, %v2663
        %2665 = vmatprep.mubr.f32.mxu0 0.0
        %2666 = vmatmul.mubr.f32.gmra.mxu0 %v2463
        %v2667 = vpop.f32.mrf.mxu0
        %v2668 = vadd.f32 0.0, %v2667
        %v2669 = vpop.f32.mrf.mxu0
        %v2670 = vadd.f32 0.0, %v2669
        %2671 = vmatprep.mubr.f32.mxu0 0.0
        %2672 = vmatmul.mubr.f32.gmra.mxu0 %v2466
        %v2673 = vpop.f32.mrf.mxu0
        %v2674 = vadd.f32 0.0, %v2673
        %v2675 = vpop.f32.mrf.mxu0
        %v2676 = vadd.f32 0.0, %v2675
        %2677 = vmatprep.mubr.f32.mxu0 0.0
        %2678 = vmatmul.mubr.f32.gmra.mxu0 %v2469
        %v2679 = vpop.f32.mrf.mxu0
        %v2680 = vadd.f32 0.0, %v2679
        %v2681 = vpop.f32.mrf.mxu0
        %v2682 = vadd.f32 0.0, %v2681
        %2683 = vmatprep.mubr.f32.mxu0 0.0
        %2684 = vmatmul.mubr.f32.gmra.mxu0 %v2472
        %v2685 = vpop.f32.mrf.mxu0
        %v2686 = vadd.f32 0.0, %v2685
        %v2687 = vpop.f32.mrf.mxu0
        %v2688 = vadd.f32 0.0, %v2687
        %2689 = vmatprep.mubr.f32.mxu0 0.0
        %2690 = vmatmul.mubr.f32.gmra.mxu0 %v2475
        %v2691 = vpop.f32.mrf.mxu0
        %v2692 = vadd.f32 0.0, %v2691
        %v2693 = vpop.f32.mrf.mxu0
        %v2694 = vadd.f32 0.0, %v2693
        %2695 = vmatprep.mubr.f32.mxu0 0.0
        %2696 = vmatmul.mubr.f32.gmra.mxu0 %v2478
        %v2697 = vpop.f32.mrf.mxu0
        %v2698 = vadd.f32 0.0, %v2697
        %v2699 = vpop.f32.mrf.mxu0
        %v2700 = vadd.f32 0.0, %v2699
        %2701 = vmatprep.mubr.f32.mxu0 0.0
        %2702 = vmatmul.mubr.f32.gmra.mxu0 %v2481
        %v2703 = vpop.f32.mrf.mxu0
        %v2704 = vadd.f32 0.0, %v2703
        %v2705 = vpop.f32.mrf.mxu0
        %v2706 = vadd.f32 0.0, %v2705
        %2707 = vmatprep.mubr.f32.mxu0 0.0
        %2708 = vmatmul.mubr.f32.gmra.mxu0 %v2484
        %v2709 = vpop.f32.mrf.mxu0
        %v2710 = vadd.f32 0.0, %v2709
        %v2711 = vpop.f32.mrf.mxu0
        %v2712 = vadd.f32 0.0, %v2711
        %2713 = vmatprep.mubr.f32.mxu0 0.0
        %2714 = vmatmul.mubr.f32.gmra.mxu0 %v2487
        %v2715 = vpop.f32.mrf.mxu0
        %v2716 = vadd.f32 0.0, %v2715
        %v2717 = vpop.f32.mrf.mxu0
        %v2718 = vadd.f32 0.0, %v2717
        %2719 = vmatprep.mubr.f32.mxu0 0.0
        %2720 = vmatmul.mubr.f32.gmra.mxu0 %v2490
        %v2721 = vpop.f32.mrf.mxu0
        %v2722 = vadd.f32 0.0, %v2721
        %v2723 = vpop.f32.mrf.mxu0
        %v2724 = vadd.f32 0.0, %v2723
        %2725 = vmatprep.mubr.f32.mxu0 0.0
        %2726 = vmatmul.mubr.f32.gmra.mxu0 %v2493
        %v2727 = vpop.f32.mrf.mxu0
        %v2728 = vadd.f32 0.0, %v2727
        %v2729 = vpop.f32.mrf.mxu0
        %v2730 = vadd.f32 0.0, %v2729
        %2731 = vmatprep.mubr.f32.mxu0 0.0
        %2732 = vmatmul.mubr.f32.gmra.mxu0 %v2496
        %v2733 = vpop.f32.mrf.mxu0
        %v2734 = vadd.f32 0.0, %v2733
        %v2735 = vpop.f32.mrf.mxu0
        %v2736 = vadd.f32 0.0, %v2735
        %2737 = vmatprep.mubr.f32.mxu0 0.0
        %2738 = vmatmul.mubr.f32.gmra.mxu0 %v2499
        %v2739 = vpop.f32.mrf.mxu0
        %v2740 = vadd.f32 0.0, %v2739
        %v2741 = vpop.f32.mrf.mxu0
        %v2742 = vadd.f32 0.0, %v2741
        %2743 = vmatprep.mubr.f32.mxu0 0.0
        %2744 = vmatmul.mubr.f32.gmra.mxu0 %v2502
        %v2745 = vpop.f32.mrf.mxu0
        %v2746 = vadd.f32 0.0, %v2745
        %v2747 = vpop.f32.mrf.mxu0
        %v2748 = vadd.f32 0.0, %v2747
        %2749 = vmatprep.mubr.f32.mxu0 0.0
        %2750 = vmatmul.mubr.f32.gmra.mxu0 %v2505
        %v2751 = vpop.f32.mrf.mxu0
        %v2752 = vadd.f32 0.0, %v2751
        %v2753 = vpop.f32.mrf.mxu0
        %v2754 = vadd.f32 0.0, %v2753
        %2755 = vmatprep.mubr.f32.mxu0 0.0
        %2756 = vmatmul.mubr.f32.gmra.mxu0 %v2508
        %v2757 = vpop.f32.mrf.mxu0
        %v2758 = vadd.f32 0.0, %v2757
        %v2759 = vpop.f32.mrf.mxu0
        %v2760 = vadd.f32 0.0, %v2759
        %2761 = vmatprep.mubr.f32.mxu0 0.0
        %2762 = vmatmul.mubr.f32.gmra.mxu0 %v2511
        %v2763 = vpop.f32.mrf.mxu0
        %v2764 = vadd.f32 0.0, %v2763
        %v2765 = vpop.f32.mrf.mxu0
        %v2766 = vadd.f32 0.0, %v2765
        %2767 = vmatprep.mubr.f32.mxu0 0.0
        %2768 = vmatmul.mubr.f32.gmra.mxu0 %v2514
        %v2769 = vpop.f32.mrf.mxu0
        %v2770 = vadd.f32 0.0, %v2769
        %v2771 = vpop.f32.mrf.mxu0
        %v2772 = vadd.f32 0.0, %v2771
        %2773 = vmatprep.mubr.f32.mxu0 0.0
        %2774 = vmatmul.mubr.f32.gmra.mxu0 %v2517
        %v2775 = vpop.f32.mrf.mxu0
        %v2776 = vadd.f32 0.0, %v2775
        %v2777 = vpop.f32.mrf.mxu0
        %v2778 = vadd.f32 0.0, %v2777
        %2779 = vdwg.mxu0
        %v2780 = vcombine.high %v1515, %v1515
        %v2782 = vsel %vm1705, %v1008, 0
        %v2785 = vsel %vm1705, %v1009, 0
        %v2788 = vsel %vm1705, %v1010, 0
        %v2791 = vsel %vm1705, %v1011, 0
        %v2794 = vsel %vm1705, %v1012, 0
        %v2797 = vsel %vm1705, %v1013, 0
        %v2800 = vsel %vm1705, %v1014, 0
        %v2803 = vsel %vm1705, %v1015, 0
        %v2806 = vsel %vm1705, %v1016, 0
        %v2809 = vsel %vm1705, %v1017, 0
        %v2812 = vsel %vm1705, %v1018, 0
        %v2815 = vsel %vm1705, %v1019, 0
        %v2818 = vsel %vm1705, %v1020, 0
        %v2821 = vsel %vm1705, %v1021, 0
        %v2824 = vsel %vm1705, %v1022, 0
        %v2827 = vsel %vm1705, %v1023, 0
        %v2830 = vsel %vm1705, %v1040, 0
        %v2833 = vsel %vm1705, %v1041, 0
        %v2836 = vsel %vm1705, %v1042, 0
        %v2839 = vsel %vm1705, %v1043, 0
        %v2842 = vsel %vm1705, %v1044, 0
        %v2845 = vsel %vm1705, %v1045, 0
        %v2848 = vsel %vm1705, %v1046, 0
        %v2851 = vsel %vm1705, %v1047, 0
        %v2854 = vsel %vm1705, %v1048, 0
        %v2857 = vsel %vm1705, %v1049, 0
        %v2860 = vsel %vm1705, %v1050, 0
        %v2863 = vsel %vm1705, %v1051, 0
        %v2866 = vsel %vm1705, %v1052, 0
        %v2869 = vsel %vm1705, %v1053, 0
        %v2872 = vsel %vm1705, %v1054, 0
        %v2875 = vsel %vm1705, %v1055, 0
        %v2877 = vsel %vm1802, %v1515, 0
        %v2879 = vsel %vm1802, %v2780, 0
        %2881 = vmatprep.subr.mxu0 0.0
        %2882 = vmatpush1.msra.mxu0 0.0
        %2883 = vmatprep.subr.mxu0 0.0
        %2884 = vmatpush1.msra.mxu0 0.0
        %2885 = vmatprep.subr.mxu0 0.0
        %2886 = vmatpush1.msra.mxu0 0.0
        %2887 = vmatprep.subr.mxu0 0.0
        %2888 = vmatpush1.msra.mxu0 0.0
        %2889 = vmatprep.subr.mxu0 0.0
        %2890 = vmatpush1.msra.mxu0 0.0
        %2891 = vmatprep.subr.mxu0 0.0
        %2892 = vmatpush1.msra.mxu0 0.0
        %2893 = vmatprep.subr.mxu0 0.0
        %2894 = vmatpush1.msra.mxu0 0.0
        %2895 = vmatprep.subr.mxu0 0.0
        %2896 = vmatpush1.msra.mxu0 0.0
        %2897 = vmatprep.subr.mxu0 0.0
        %2898 = vmatpush1.msra.mxu0 0.0
        %2899 = vmatprep.subr.mxu0 0.0
        %2900 = vmatpush1.msra.mxu0 0.0
        %2901 = vmatprep.subr.mxu0 0.0
        %2902 = vmatpush1.msra.mxu0 0.0
        %2903 = vmatprep.subr.mxu0 0.0
        %2904 = vmatpush1.msra.mxu0 0.0
        %2905 = vmatprep.subr.mxu0 0.0
        %2906 = vmatpush1.msra.mxu0 0.0
        %2907 = vmatprep.subr.mxu0 0.0
        %2908 = vmatpush1.msra.mxu0 0.0
        %2909 = vmatprep.subr.mxu0 0.0
        %2910 = vmatpush1.msra.mxu0 0.0
        %2911 = vmatprep.subr.mxu0 %v2879
        %2912 = vmatpush1.msra.mxu0 %v2877
        %2913 = vmatprep.subr.mxu0 0.0
        %2914 = vmatpush2.msra.mxu0 0.0
        %2915 = vmatprep.subr.mxu0 0.0
        %2916 = vmatpush2.msra.mxu0 0.0
        %2917 = vmatprep.subr.mxu0 0.0
        %2918 = vmatpush2.msra.mxu0 0.0
        %2919 = vmatprep.subr.mxu0 0.0
        %2920 = vmatpush2.msra.mxu0 0.0
        %2921 = vmatprep.subr.mxu0 0.0
        %2922 = vmatpush2.msra.mxu0 0.0
        %2923 = vmatprep.subr.mxu0 0.0
        %2924 = vmatpush2.msra.mxu0 0.0
        %2925 = vmatprep.subr.mxu0 0.0
        %2926 = vmatpush2.msra.mxu0 0.0
        %2927 = vmatprep.subr.mxu0 0.0
        %2928 = vmatpush2.msra.mxu0 0.0
        %2929 = vmatprep.subr.mxu0 0.0
        %2930 = vmatpush2.msra.mxu0 0.0
        %2931 = vmatprep.subr.mxu0 0.0
        %2932 = vmatpush2.msra.mxu0 0.0
        %2933 = vmatprep.subr.mxu0 0.0
        %2934 = vmatpush2.msra.mxu0 0.0
        %2935 = vmatprep.subr.mxu0 0.0
        %2936 = vmatpush2.msra.mxu0 0.0
        %2937 = vmatprep.subr.mxu0 0.0
        %2938 = vmatpush2.msra.mxu0 0.0
        %2939 = vmatprep.subr.mxu0 0.0
        %2940 = vmatpush2.msra.mxu0 0.0
        %2941 = vmatprep.subr.mxu0 0.0
        %2942 = vmatpush2.msra.mxu0 0.0
        %2943 = vmatprep.subr.mxu0 0.0
        %2944 = vmatpush2.msra.mxu0 0.0
        %2945 = vmatprep.mubr.f32.mxu0 0.0
        %2946 = vmatmul.mubr.f32.gmra.mxu0 %v2782
        %v2947 = vpop.f32.mrf.mxu0
        %v2948 = vadd.f32 0.0, %v2947
        %v2949 = vpop.f32.mrf.mxu0
        %v2950 = vadd.f32 0.0, %v2949
        %2951 = vmatprep.mubr.f32.mxu0 0.0
        %2952 = vmatmul.mubr.f32.gmra.mxu0 %v2785
        %v2953 = vpop.f32.mrf.mxu0
        %v2954 = vadd.f32 0.0, %v2953
        %v2955 = vpop.f32.mrf.mxu0
        %v2956 = vadd.f32 0.0, %v2955
        %2957 = vmatprep.mubr.f32.mxu0 0.0
        %2958 = vmatmul.mubr.f32.gmra.mxu0 %v2788
        %v2959 = vpop.f32.mrf.mxu0
        %v2960 = vadd.f32 0.0, %v2959
        %v2961 = vpop.f32.mrf.mxu0
        %v2962 = vadd.f32 0.0, %v2961
        %2963 = vmatprep.mubr.f32.mxu0 0.0
        %2964 = vmatmul.mubr.f32.gmra.mxu0 %v2791
        %v2965 = vpop.f32.mrf.mxu0
        %v2966 = vadd.f32 0.0, %v2965
        %v2967 = vpop.f32.mrf.mxu0
        %v2968 = vadd.f32 0.0, %v2967
        %2969 = vmatprep.mubr.f32.mxu0 0.0
        %2970 = vmatmul.mubr.f32.gmra.mxu0 %v2794
        %v2971 = vpop.f32.mrf.mxu0
        %v2972 = vadd.f32 0.0, %v2971
        %v2973 = vpop.f32.mrf.mxu0
        %v2974 = vadd.f32 0.0, %v2973
        %2975 = vmatprep.mubr.f32.mxu0 0.0
        %2976 = vmatmul.mubr.f32.gmra.mxu0 %v2797
        %v2977 = vpop.f32.mrf.mxu0
        %v2978 = vadd.f32 0.0, %v2977
        %v2979 = vpop.f32.mrf.mxu0
        %v2980 = vadd.f32 0.0, %v2979
        %2981 = vmatprep.mubr.f32.mxu0 0.0
        %2982 = vmatmul.mubr.f32.gmra.mxu0 %v2800
        %v2983 = vpop.f32.mrf.mxu0
        %v2984 = vadd.f32 0.0, %v2983
        %v2985 = vpop.f32.mrf.mxu0
        %v2986 = vadd.f32 0.0, %v2985
        %2987 = vmatprep.mubr.f32.mxu0 0.0
        %2988 = vmatmul.mubr.f32.gmra.mxu0 %v2803
        %v2989 = vpop.f32.mrf.mxu0
        %v2990 = vadd.f32 0.0, %v2989
        %v2991 = vpop.f32.mrf.mxu0
        %v2992 = vadd.f32 0.0, %v2991
        %2993 = vmatprep.mubr.f32.mxu0 0.0
        %2994 = vmatmul.mubr.f32.gmra.mxu0 %v2806
        %v2995 = vpop.f32.mrf.mxu0
        %v2996 = vadd.f32 0.0, %v2995
        %v2997 = vpop.f32.mrf.mxu0
        %v2998 = vadd.f32 0.0, %v2997
        %2999 = vmatprep.mubr.f32.mxu0 0.0
        %3000 = vmatmul.mubr.f32.gmra.mxu0 %v2809
        %v3001 = vpop.f32.mrf.mxu0
        %v3002 = vadd.f32 0.0, %v3001
        %v3003 = vpop.f32.mrf.mxu0
        %v3004 = vadd.f32 0.0, %v3003
        %3005 = vmatprep.mubr.f32.mxu0 0.0
        %3006 = vmatmul.mubr.f32.gmra.mxu0 %v2812
        %v3007 = vpop.f32.mrf.mxu0
        %v3008 = vadd.f32 0.0, %v3007
        %v3009 = vpop.f32.mrf.mxu0
        %v3010 = vadd.f32 0.0, %v3009
        %3011 = vmatprep.mubr.f32.mxu0 0.0
        %3012 = vmatmul.mubr.f32.gmra.mxu0 %v2815
        %v3013 = vpop.f32.mrf.mxu0
        %v3014 = vadd.f32 0.0, %v3013
        %v3015 = vpop.f32.mrf.mxu0
        %v3016 = vadd.f32 0.0, %v3015
        %3017 = vmatprep.mubr.f32.mxu0 0.0
        %3018 = vmatmul.mubr.f32.gmra.mxu0 %v2818
        %v3019 = vpop.f32.mrf.mxu0
        %v3020 = vadd.f32 0.0, %v3019
        %v3021 = vpop.f32.mrf.mxu0
        %v3022 = vadd.f32 0.0, %v3021
        %3023 = vmatprep.mubr.f32.mxu0 0.0
        %3024 = vmatmul.mubr.f32.gmra.mxu0 %v2821
        %v3025 = vpop.f32.mrf.mxu0
        %v3026 = vadd.f32 0.0, %v3025
        %v3027 = vpop.f32.mrf.mxu0
        %v3028 = vadd.f32 0.0, %v3027
        %3029 = vmatprep.mubr.f32.mxu0 0.0
        %3030 = vmatmul.mubr.f32.gmra.mxu0 %v2824
        %v3031 = vpop.f32.mrf.mxu0
        %v3032 = vadd.f32 0.0, %v3031
        %v3033 = vpop.f32.mrf.mxu0
        %v3034 = vadd.f32 0.0, %v3033
        %3035 = vmatprep.mubr.f32.mxu0 0.0
        %3036 = vmatmul.mubr.f32.gmra.mxu0 %v2827
        %v3037 = vpop.f32.mrf.mxu0
        %v3038 = vadd.f32 0.0, %v3037
        %v3039 = vpop.f32.mrf.mxu0
        %v3040 = vadd.f32 0.0, %v3039
        %3041 = vmatprep.mubr.f32.mxu0 0.0
        %3042 = vmatmul.mubr.f32.gmra.mxu0 %v2830
        %v3043 = vpop.f32.mrf.mxu0
        %v3044 = vadd.f32 0.0, %v3043
        %v3045 = vpop.f32.mrf.mxu0
        %v3046 = vadd.f32 0.0, %v3045
        %3047 = vmatprep.mubr.f32.mxu0 0.0
        %3048 = vmatmul.mubr.f32.gmra.mxu0 %v2833
        %v3049 = vpop.f32.mrf.mxu0
        %v3050 = vadd.f32 0.0, %v3049
        %v3051 = vpop.f32.mrf.mxu0
        %v3052 = vadd.f32 0.0, %v3051
        %3053 = vmatprep.mubr.f32.mxu0 0.0
        %3054 = vmatmul.mubr.f32.gmra.mxu0 %v2836
        %v3055 = vpop.f32.mrf.mxu0
        %v3056 = vadd.f32 0.0, %v3055
        %v3057 = vpop.f32.mrf.mxu0
        %v3058 = vadd.f32 0.0, %v3057
        %3059 = vmatprep.mubr.f32.mxu0 0.0
        %3060 = vmatmul.mubr.f32.gmra.mxu0 %v2839
        %v3061 = vpop.f32.mrf.mxu0
        %v3062 = vadd.f32 0.0, %v3061
        %v3063 = vpop.f32.mrf.mxu0
        %v3064 = vadd.f32 0.0, %v3063
        %3065 = vmatprep.mubr.f32.mxu0 0.0
        %3066 = vmatmul.mubr.f32.gmra.mxu0 %v2842
        %v3067 = vpop.f32.mrf.mxu0
        %v3068 = vadd.f32 0.0, %v3067
        %v3069 = vpop.f32.mrf.mxu0
        %v3070 = vadd.f32 0.0, %v3069
        %3071 = vmatprep.mubr.f32.mxu0 0.0
        %3072 = vmatmul.mubr.f32.gmra.mxu0 %v2845
        %v3073 = vpop.f32.mrf.mxu0
        %v3074 = vadd.f32 0.0, %v3073
        %v3075 = vpop.f32.mrf.mxu0
        %v3076 = vadd.f32 0.0, %v3075
        %3077 = vmatprep.mubr.f32.mxu0 0.0
        %3078 = vmatmul.mubr.f32.gmra.mxu0 %v2848
        %v3079 = vpop.f32.mrf.mxu0
        %v3080 = vadd.f32 0.0, %v3079
        %v3081 = vpop.f32.mrf.mxu0
        %v3082 = vadd.f32 0.0, %v3081
        %3083 = vmatprep.mubr.f32.mxu0 0.0
        %3084 = vmatmul.mubr.f32.gmra.mxu0 %v2851
        %v3085 = vpop.f32.mrf.mxu0
        %v3086 = vadd.f32 0.0, %v3085
        %v3087 = vpop.f32.mrf.mxu0
        %v3088 = vadd.f32 0.0, %v3087
        %3089 = vmatprep.mubr.f32.mxu0 0.0
        %3090 = vmatmul.mubr.f32.gmra.mxu0 %v2854
        %v3091 = vpop.f32.mrf.mxu0
        %v3092 = vadd.f32 0.0, %v3091
        %v3093 = vpop.f32.mrf.mxu0
        %v3094 = vadd.f32 0.0, %v3093
        %3095 = vmatprep.mubr.f32.mxu0 0.0
        %3096 = vmatmul.mubr.f32.gmra.mxu0 %v2857
        %v3097 = vpop.f32.mrf.mxu0
        %v3098 = vadd.f32 0.0, %v3097
        %v3099 = vpop.f32.mrf.mxu0
        %v3100 = vadd.f32 0.0, %v3099
        %3101 = vmatprep.mubr.f32.mxu0 0.0
        %3102 = vmatmul.mubr.f32.gmra.mxu0 %v2860
        %v3103 = vpop.f32.mrf.mxu0
        %v3104 = vadd.f32 0.0, %v3103
        %v3105 = vpop.f32.mrf.mxu0
        %v3106 = vadd.f32 0.0, %v3105
        %3107 = vmatprep.mubr.f32.mxu0 0.0
        %3108 = vmatmul.mubr.f32.gmra.mxu0 %v2863
        %v3109 = vpop.f32.mrf.mxu0
        %v3110 = vadd.f32 0.0, %v3109
        %v3111 = vpop.f32.mrf.mxu0
        %v3112 = vadd.f32 0.0, %v3111
        %3113 = vmatprep.mubr.f32.mxu0 0.0
        %3114 = vmatmul.mubr.f32.gmra.mxu0 %v2866
        %v3115 = vpop.f32.mrf.mxu0
        %v3116 = vadd.f32 0.0, %v3115
        %v3117 = vpop.f32.mrf.mxu0
        %v3118 = vadd.f32 0.0, %v3117
        %3119 = vmatprep.mubr.f32.mxu0 0.0
        %3120 = vmatmul.mubr.f32.gmra.mxu0 %v2869
        %v3121 = vpop.f32.mrf.mxu0
        %v3122 = vadd.f32 0.0, %v3121
        %v3123 = vpop.f32.mrf.mxu0
        %v3124 = vadd.f32 0.0, %v3123
        %3125 = vmatprep.mubr.f32.mxu0 0.0
        %3126 = vmatmul.mubr.f32.gmra.mxu0 %v2872
        %v3127 = vpop.f32.mrf.mxu0
        %v3128 = vadd.f32 0.0, %v3127
        %v3129 = vpop.f32.mrf.mxu0
        %v3130 = vadd.f32 0.0, %v3129
        %3131 = vmatprep.mubr.f32.mxu0 0.0
        %3132 = vmatmul.mubr.f32.gmra.mxu0 %v2875
        %v3133 = vpop.f32.mrf.mxu0
        %v3134 = vadd.f32 0.0, %v3133
        %v3135 = vpop.f32.mrf.mxu0
        %v3136 = vadd.f32 0.0, %v3135
        %3137 = vdwg.mxu0
        %v3138 = vcombine.high %v1516, %v1516
        %v3140 = vsel %vm1705, %v1072, 0
        %v3143 = vsel %vm1705, %v1073, 0
        %v3146 = vsel %vm1705, %v1074, 0
        %v3149 = vsel %vm1705, %v1075, 0
        %v3152 = vsel %vm1705, %v1076, 0
        %v3155 = vsel %vm1705, %v1077, 0
        %v3158 = vsel %vm1705, %v1078, 0
        %v3161 = vsel %vm1705, %v1079, 0
        %v3164 = vsel %vm1705, %v1080, 0
        %v3167 = vsel %vm1705, %v1081, 0
        %v3170 = vsel %vm1705, %v1082, 0
        %v3173 = vsel %vm1705, %v1083, 0
        %v3176 = vsel %vm1705, %v1084, 0
        %v3179 = vsel %vm1705, %v1085, 0
        %v3182 = vsel %vm1705, %v1086, 0
        %v3185 = vsel %vm1705, %v1087, 0
        %v3188 = vsel %vm1705, %v1104, 0
        %v3191 = vsel %vm1705, %v1105, 0
        %v3194 = vsel %vm1705, %v1106, 0
        %v3197 = vsel %vm1705, %v1107, 0
        %v3200 = vsel %vm1705, %v1108, 0
        %v3203 = vsel %vm1705, %v1109, 0
        %v3206 = vsel %vm1705, %v1110, 0
        %v3209 = vsel %vm1705, %v1111, 0
        %v3212 = vsel %vm1705, %v1112, 0
        %v3215 = vsel %vm1705, %v1113, 0
        %v3218 = vsel %vm1705, %v1114, 0
        %v3221 = vsel %vm1705, %v1115, 0
        %v3224 = vsel %vm1705, %v1116, 0
        %v3227 = vsel %vm1705, %v1117, 0
        %v3230 = vsel %vm1705, %v1118, 0
        %v3233 = vsel %vm1705, %v1119, 0
        %v3235 = vsel %vm1802, %v1516, 0
        %v3237 = vsel %vm1802, %v3138, 0
        %3239 = vmatprep.subr.mxu0 0.0
        %3240 = vmatpush1.msra.mxu0 0.0
        %3241 = vmatprep.subr.mxu0 0.0
        %3242 = vmatpush1.msra.mxu0 0.0
        %3243 = vmatprep.subr.mxu0 0.0
        %3244 = vmatpush1.msra.mxu0 0.0
        %3245 = vmatprep.subr.mxu0 0.0
        %3246 = vmatpush1.msra.mxu0 0.0
        %3247 = vmatprep.subr.mxu0 0.0
        %3248 = vmatpush1.msra.mxu0 0.0
        %3249 = vmatprep.subr.mxu0 0.0
        %3250 = vmatpush1.msra.mxu0 0.0
        %3251 = vmatprep.subr.mxu0 0.0
        %3252 = vmatpush1.msra.mxu0 0.0
        %3253 = vmatprep.subr.mxu0 0.0
        %3254 = vmatpush1.msra.mxu0 0.0
        %3255 = vmatprep.subr.mxu0 0.0
        %3256 = vmatpush1.msra.mxu0 0.0
        %3257 = vmatprep.subr.mxu0 0.0
        %3258 = vmatpush1.msra.mxu0 0.0
        %3259 = vmatprep.subr.mxu0 0.0
        %3260 = vmatpush1.msra.mxu0 0.0
        %3261 = vmatprep.subr.mxu0 0.0
        %3262 = vmatpush1.msra.mxu0 0.0
        %3263 = vmatprep.subr.mxu0 0.0
        %3264 = vmatpush1.msra.mxu0 0.0
        %3265 = vmatprep.subr.mxu0 0.0
        %3266 = vmatpush1.msra.mxu0 0.0
        %3267 = vmatprep.subr.mxu0 0.0
        %3268 = vmatpush1.msra.mxu0 0.0
        %3269 = vmatprep.subr.mxu0 %v3237
        %3270 = vmatpush1.msra.mxu0 %v3235
        %3271 = vmatprep.subr.mxu0 0.0
        %3272 = vmatpush2.msra.mxu0 0.0
        %3273 = vmatprep.subr.mxu0 0.0
        %3274 = vmatpush2.msra.mxu0 0.0
        %3275 = vmatprep.subr.mxu0 0.0
        %3276 = vmatpush2.msra.mxu0 0.0
        %3277 = vmatprep.subr.mxu0 0.0
        %3278 = vmatpush2.msra.mxu0 0.0
        %3279 = vmatprep.subr.mxu0 0.0
        %3280 = vmatpush2.msra.mxu0 0.0
        %3281 = vmatprep.subr.mxu0 0.0
        %3282 = vmatpush2.msra.mxu0 0.0
        %3283 = vmatprep.subr.mxu0 0.0
        %3284 = vmatpush2.msra.mxu0 0.0
        %3285 = vmatprep.subr.mxu0 0.0
        %3286 = vmatpush2.msra.mxu0 0.0
        %3287 = vmatprep.subr.mxu0 0.0
        %3288 = vmatpush2.msra.mxu0 0.0
        %3289 = vmatprep.subr.mxu0 0.0
        %3290 = vmatpush2.msra.mxu0 0.0
        %3291 = vmatprep.subr.mxu0 0.0
        %3292 = vmatpush2.msra.mxu0 0.0
        %3293 = vmatprep.subr.mxu0 0.0
        %3294 = vmatpush2.msra.mxu0 0.0
        %3295 = vmatprep.subr.mxu0 0.0
        %3296 = vmatpush2.msra.mxu0 0.0
        %3297 = vmatprep.subr.mxu0 0.0
        %3298 = vmatpush2.msra.mxu0 0.0
        %3299 = vmatprep.subr.mxu0 0.0
        %3300 = vmatpush2.msra.mxu0 0.0
        %3301 = vmatprep.subr.mxu0 0.0
        %3302 = vmatpush2.msra.mxu0 0.0
        %3303 = vmatprep.mubr.f32.mxu0 0.0
        %3304 = vmatmul.mubr.f32.gmra.mxu0 %v3140
        %v3305 = vpop.f32.mrf.mxu0
        %v3306 = vadd.f32 0.0, %v3305
        %v3307 = vpop.f32.mrf.mxu0
        %v3308 = vadd.f32 0.0, %v3307
        %3309 = vmatprep.mubr.f32.mxu0 0.0
        %3310 = vmatmul.mubr.f32.gmra.mxu0 %v3143
        %v3311 = vpop.f32.mrf.mxu0
        %v3312 = vadd.f32 0.0, %v3311
        %v3313 = vpop.f32.mrf.mxu0
        %v3314 = vadd.f32 0.0, %v3313
        %3315 = vmatprep.mubr.f32.mxu0 0.0
        %3316 = vmatmul.mubr.f32.gmra.mxu0 %v3146
        %v3317 = vpop.f32.mrf.mxu0
        %v3318 = vadd.f32 0.0, %v3317
        %v3319 = vpop.f32.mrf.mxu0
        %v3320 = vadd.f32 0.0, %v3319
        %3321 = vmatprep.mubr.f32.mxu0 0.0
        %3322 = vmatmul.mubr.f32.gmra.mxu0 %v3149
        %v3323 = vpop.f32.mrf.mxu0
        %v3324 = vadd.f32 0.0, %v3323
        %v3325 = vpop.f32.mrf.mxu0
        %v3326 = vadd.f32 0.0, %v3325
        %3327 = vmatprep.mubr.f32.mxu0 0.0
        %3328 = vmatmul.mubr.f32.gmra.mxu0 %v3152
        %v3329 = vpop.f32.mrf.mxu0
        %v3330 = vadd.f32 0.0, %v3329
        %v3331 = vpop.f32.mrf.mxu0
        %v3332 = vadd.f32 0.0, %v3331
        %3333 = vmatprep.mubr.f32.mxu0 0.0
        %3334 = vmatmul.mubr.f32.gmra.mxu0 %v3155
        %v3335 = vpop.f32.mrf.mxu0
        %v3336 = vadd.f32 0.0, %v3335
        %v3337 = vpop.f32.mrf.mxu0
        %v3338 = vadd.f32 0.0, %v3337
        %3339 = vmatprep.mubr.f32.mxu0 0.0
        %3340 = vmatmul.mubr.f32.gmra.mxu0 %v3158
        %v3341 = vpop.f32.mrf.mxu0
        %v3342 = vadd.f32 0.0, %v3341
        %v3343 = vpop.f32.mrf.mxu0
        %v3344 = vadd.f32 0.0, %v3343
        %3345 = vmatprep.mubr.f32.mxu0 0.0
        %3346 = vmatmul.mubr.f32.gmra.mxu0 %v3161
        %v3347 = vpop.f32.mrf.mxu0
        %v3348 = vadd.f32 0.0, %v3347
        %v3349 = vpop.f32.mrf.mxu0
        %v3350 = vadd.f32 0.0, %v3349
        %3351 = vmatprep.mubr.f32.mxu0 0.0
        %3352 = vmatmul.mubr.f32.gmra.mxu0 %v3164
        %v3353 = vpop.f32.mrf.mxu0
        %v3354 = vadd.f32 0.0, %v3353
        %v3355 = vpop.f32.mrf.mxu0
        %v3356 = vadd.f32 0.0, %v3355
        %3357 = vmatprep.mubr.f32.mxu0 0.0
        %3358 = vmatmul.mubr.f32.gmra.mxu0 %v3167
        %v3359 = vpop.f32.mrf.mxu0
        %v3360 = vadd.f32 0.0, %v3359
        %v3361 = vpop.f32.mrf.mxu0
        %v3362 = vadd.f32 0.0, %v3361
        %3363 = vmatprep.mubr.f32.mxu0 0.0
        %3364 = vmatmul.mubr.f32.gmra.mxu0 %v3170
        %v3365 = vpop.f32.mrf.mxu0
        %v3366 = vadd.f32 0.0, %v3365
        %v3367 = vpop.f32.mrf.mxu0
        %v3368 = vadd.f32 0.0, %v3367
        %3369 = vmatprep.mubr.f32.mxu0 0.0
        %3370 = vmatmul.mubr.f32.gmra.mxu0 %v3173
        %v3371 = vpop.f32.mrf.mxu0
        %v3372 = vadd.f32 0.0, %v3371
        %v3373 = vpop.f32.mrf.mxu0
        %v3374 = vadd.f32 0.0, %v3373
        %3375 = vmatprep.mubr.f32.mxu0 0.0
        %3376 = vmatmul.mubr.f32.gmra.mxu0 %v3176
        %v3377 = vpop.f32.mrf.mxu0
        %v3378 = vadd.f32 0.0, %v3377
        %v3379 = vpop.f32.mrf.mxu0
        %v3380 = vadd.f32 0.0, %v3379
        %3381 = vmatprep.mubr.f32.mxu0 0.0
        %3382 = vmatmul.mubr.f32.gmra.mxu0 %v3179
        %v3383 = vpop.f32.mrf.mxu0
        %v3384 = vadd.f32 0.0, %v3383
        %v3385 = vpop.f32.mrf.mxu0
        %v3386 = vadd.f32 0.0, %v3385
        %3387 = vmatprep.mubr.f32.mxu0 0.0
        %3388 = vmatmul.mubr.f32.gmra.mxu0 %v3182
        %v3389 = vpop.f32.mrf.mxu0
        %v3390 = vadd.f32 0.0, %v3389
        %v3391 = vpop.f32.mrf.mxu0
        %v3392 = vadd.f32 0.0, %v3391
        %3393 = vmatprep.mubr.f32.mxu0 0.0
        %3394 = vmatmul.mubr.f32.gmra.mxu0 %v3185
        %v3395 = vpop.f32.mrf.mxu0
        %v3396 = vadd.f32 0.0, %v3395
        %v3397 = vpop.f32.mrf.mxu0
        %v3398 = vadd.f32 0.0, %v3397
        %3399 = vmatprep.mubr.f32.mxu0 0.0
        %3400 = vmatmul.mubr.f32.gmra.mxu0 %v3188
        %v3401 = vpop.f32.mrf.mxu0
        %v3402 = vadd.f32 0.0, %v3401
        %v3403 = vpop.f32.mrf.mxu0
        %v3404 = vadd.f32 0.0, %v3403
        %3405 = vmatprep.mubr.f32.mxu0 0.0
        %3406 = vmatmul.mubr.f32.gmra.mxu0 %v3191
        %v3407 = vpop.f32.mrf.mxu0
        %v3408 = vadd.f32 0.0, %v3407
        %v3409 = vpop.f32.mrf.mxu0
        %v3410 = vadd.f32 0.0, %v3409
        %3411 = vmatprep.mubr.f32.mxu0 0.0
        %3412 = vmatmul.mubr.f32.gmra.mxu0 %v3194
        %v3413 = vpop.f32.mrf.mxu0
        %v3414 = vadd.f32 0.0, %v3413
        %v3415 = vpop.f32.mrf.mxu0
        %v3416 = vadd.f32 0.0, %v3415
        %3417 = vmatprep.mubr.f32.mxu0 0.0
        %3418 = vmatmul.mubr.f32.gmra.mxu0 %v3197
        %v3419 = vpop.f32.mrf.mxu0
        %v3420 = vadd.f32 0.0, %v3419
        %v3421 = vpop.f32.mrf.mxu0
        %v3422 = vadd.f32 0.0, %v3421
        %3423 = vmatprep.mubr.f32.mxu0 0.0
        %3424 = vmatmul.mubr.f32.gmra.mxu0 %v3200
        %v3425 = vpop.f32.mrf.mxu0
        %v3426 = vadd.f32 0.0, %v3425
        %v3427 = vpop.f32.mrf.mxu0
        %v3428 = vadd.f32 0.0, %v3427
        %3429 = vmatprep.mubr.f32.mxu0 0.0
        %3430 = vmatmul.mubr.f32.gmra.mxu0 %v3203
        %v3431 = vpop.f32.mrf.mxu0
        %v3432 = vadd.f32 0.0, %v3431
        %v3433 = vpop.f32.mrf.mxu0
        %v3434 = vadd.f32 0.0, %v3433
        %3435 = vmatprep.mubr.f32.mxu0 0.0
        %3436 = vmatmul.mubr.f32.gmra.mxu0 %v3206
        %v3437 = vpop.f32.mrf.mxu0
        %v3438 = vadd.f32 0.0, %v3437
        %v3439 = vpop.f32.mrf.mxu0
        %v3440 = vadd.f32 0.0, %v3439
        %3441 = vmatprep.mubr.f32.mxu0 0.0
        %3442 = vmatmul.mubr.f32.gmra.mxu0 %v3209
        %v3443 = vpop.f32.mrf.mxu0
        %v3444 = vadd.f32 0.0, %v3443
        %v3445 = vpop.f32.mrf.mxu0
        %v3446 = vadd.f32 0.0, %v3445
        %3447 = vmatprep.mubr.f32.mxu0 0.0
        %3448 = vmatmul.mubr.f32.gmra.mxu0 %v3212
        %v3449 = vpop.f32.mrf.mxu0
        %v3450 = vadd.f32 0.0, %v3449
        %v3451 = vpop.f32.mrf.mxu0
        %v3452 = vadd.f32 0.0, %v3451
        %3453 = vmatprep.mubr.f32.mxu0 0.0
        %3454 = vmatmul.mubr.f32.gmra.mxu0 %v3215
        %v3455 = vpop.f32.mrf.mxu0
        %v3456 = vadd.f32 0.0, %v3455
        %v3457 = vpop.f32.mrf.mxu0
        %v3458 = vadd.f32 0.0, %v3457
        %3459 = vmatprep.mubr.f32.mxu0 0.0
        %3460 = vmatmul.mubr.f32.gmra.mxu0 %v3218
        %v3461 = vpop.f32.mrf.mxu0
        %v3462 = vadd.f32 0.0, %v3461
        %v3463 = vpop.f32.mrf.mxu0
        %v3464 = vadd.f32 0.0, %v3463
        %3465 = vmatprep.mubr.f32.mxu0 0.0
        %3466 = vmatmul.mubr.f32.gmra.mxu0 %v3221
        %v3467 = vpop.f32.mrf.mxu0
        %v3468 = vadd.f32 0.0, %v3467
        %v3469 = vpop.f32.mrf.mxu0
        %v3470 = vadd.f32 0.0, %v3469
        %3471 = vmatprep.mubr.f32.mxu0 0.0
        %3472 = vmatmul.mubr.f32.gmra.mxu0 %v3224
        %v3473 = vpop.f32.mrf.mxu0
        %v3474 = vadd.f32 0.0, %v3473
        %v3475 = vpop.f32.mrf.mxu0
        %v3476 = vadd.f32 0.0, %v3475
        %3477 = vmatprep.mubr.f32.mxu0 0.0
        %3478 = vmatmul.mubr.f32.gmra.mxu0 %v3227
        %v3479 = vpop.f32.mrf.mxu0
        %v3480 = vadd.f32 0.0, %v3479
        %v3481 = vpop.f32.mrf.mxu0
        %v3482 = vadd.f32 0.0, %v3481
        %3483 = vmatprep.mubr.f32.mxu0 0.0
        %3484 = vmatmul.mubr.f32.gmra.mxu0 %v3230
        %v3485 = vpop.f32.mrf.mxu0
        %v3486 = vadd.f32 0.0, %v3485
        %v3487 = vpop.f32.mrf.mxu0
        %v3488 = vadd.f32 0.0, %v3487
        %3489 = vmatprep.mubr.f32.mxu0 0.0
        %3490 = vmatmul.mubr.f32.gmra.mxu0 %v3233
        %v3491 = vpop.f32.mrf.mxu0
        %v3492 = vadd.f32 0.0, %v3491
        %v3493 = vpop.f32.mrf.mxu0
        %v3494 = vadd.f32 0.0, %v3493
        %3495 = vdwg.mxu0
        %v3496 = vcombine.high %v1517, %v1517
        %v3498 = vsel %vm1705, %v1136, 0
        %v3501 = vsel %vm1705, %v1137, 0
        %v3504 = vsel %vm1705, %v1138, 0
        %v3507 = vsel %vm1705, %v1139, 0
        %v3510 = vsel %vm1705, %v1140, 0
        %v3513 = vsel %vm1705, %v1141, 0
        %v3516 = vsel %vm1705, %v1142, 0
        %v3519 = vsel %vm1705, %v1143, 0
        %v3522 = vsel %vm1705, %v1144, 0
        %v3525 = vsel %vm1705, %v1145, 0
        %v3528 = vsel %vm1705, %v1146, 0
        %v3531 = vsel %vm1705, %v1147, 0
        %v3534 = vsel %vm1705, %v1148, 0
        %v3537 = vsel %vm1705, %v1149, 0
        %v3540 = vsel %vm1705, %v1150, 0
        %v3543 = vsel %vm1705, %v1151, 0
        %v3546 = vsel %vm1705, %v1168, 0
        %v3549 = vsel %vm1705, %v1169, 0
        %v3552 = vsel %vm1705, %v1170, 0
        %v3555 = vsel %vm1705, %v1171, 0
        %v3558 = vsel %vm1705, %v1172, 0
        %v3561 = vsel %vm1705, %v1173, 0
        %v3564 = vsel %vm1705, %v1174, 0
        %v3567 = vsel %vm1705, %v1175, 0
        %v3570 = vsel %vm1705, %v1176, 0
        %v3573 = vsel %vm1705, %v1177, 0
        %v3576 = vsel %vm1705, %v1178, 0
        %v3579 = vsel %vm1705, %v1179, 0
        %v3582 = vsel %vm1705, %v1180, 0
        %v3585 = vsel %vm1705, %v1181, 0
        %v3588 = vsel %vm1705, %v1182, 0
        %v3591 = vsel %vm1705, %v1183, 0
        %v3593 = vsel %vm1802, %v1517, 0
        %v3595 = vsel %vm1802, %v3496, 0
        %3597 = vmatprep.subr.mxu0 0.0
        %3598 = vmatpush1.msra.mxu0 0.0
        %3599 = vmatprep.subr.mxu0 0.0
        %3600 = vmatpush1.msra.mxu0 0.0
        %3601 = vmatprep.subr.mxu0 0.0
        %3602 = vmatpush1.msra.mxu0 0.0
        %3603 = vmatprep.subr.mxu0 0.0
        %3604 = vmatpush1.msra.mxu0 0.0
        %3605 = vmatprep.subr.mxu0 0.0
        %3606 = vmatpush1.msra.mxu0 0.0
        %3607 = vmatprep.subr.mxu0 0.0
        %3608 = vmatpush1.msra.mxu0 0.0
        %3609 = vmatprep.subr.mxu0 0.0
        %3610 = vmatpush1.msra.mxu0 0.0
        %3611 = vmatprep.subr.mxu0 0.0
        %3612 = vmatpush1.msra.mxu0 0.0
        %3613 = vmatprep.subr.mxu0 0.0
        %3614 = vmatpush1.msra.mxu0 0.0
        %3615 = vmatprep.subr.mxu0 0.0
        %3616 = vmatpush1.msra.mxu0 0.0
        %3617 = vmatprep.subr.mxu0 0.0
        %3618 = vmatpush1.msra.mxu0 0.0
        %3619 = vmatprep.subr.mxu0 0.0
        %3620 = vmatpush1.msra.mxu0 0.0
        %3621 = vmatprep.subr.mxu0 0.0
        %3622 = vmatpush1.msra.mxu0 0.0
        %3623 = vmatprep.subr.mxu0 0.0
        %3624 = vmatpush1.msra.mxu0 0.0
        %3625 = vmatprep.subr.mxu0 0.0
        %3626 = vmatpush1.msra.mxu0 0.0
        %3627 = vmatprep.subr.mxu0 %v3595
        %3628 = vmatpush1.msra.mxu0 %v3593
        %3629 = vmatprep.subr.mxu0 0.0
        %3630 = vmatpush2.msra.mxu0 0.0
        %3631 = vmatprep.subr.mxu0 0.0
        %3632 = vmatpush2.msra.mxu0 0.0
        %3633 = vmatprep.subr.mxu0 0.0
        %3634 = vmatpush2.msra.mxu0 0.0
        %3635 = vmatprep.subr.mxu0 0.0
        %3636 = vmatpush2.msra.mxu0 0.0
        %3637 = vmatprep.subr.mxu0 0.0
        %3638 = vmatpush2.msra.mxu0 0.0
        %3639 = vmatprep.subr.mxu0 0.0
        %3640 = vmatpush2.msra.mxu0 0.0
        %3641 = vmatprep.subr.mxu0 0.0
        %3642 = vmatpush2.msra.mxu0 0.0
        %3643 = vmatprep.subr.mxu0 0.0
        %3644 = vmatpush2.msra.mxu0 0.0
        %3645 = vmatprep.subr.mxu0 0.0
        %3646 = vmatpush2.msra.mxu0 0.0
        %3647 = vmatprep.subr.mxu0 0.0
        %3648 = vmatpush2.msra.mxu0 0.0
        %3649 = vmatprep.subr.mxu0 0.0
        %3650 = vmatpush2.msra.mxu0 0.0
        %3651 = vmatprep.subr.mxu0 0.0
        %3652 = vmatpush2.msra.mxu0 0.0
        %3653 = vmatprep.subr.mxu0 0.0
        %3654 = vmatpush2.msra.mxu0 0.0
        %3655 = vmatprep.subr.mxu0 0.0
        %3656 = vmatpush2.msra.mxu0 0.0
        %3657 = vmatprep.subr.mxu0 0.0
        %3658 = vmatpush2.msra.mxu0 0.0
        %3659 = vmatprep.subr.mxu0 0.0
        %3660 = vmatpush2.msra.mxu0 0.0
        %3661 = vmatprep.mubr.f32.mxu0 0.0
        %3662 = vmatmul.mubr.f32.gmra.mxu0 %v3498
        %v3663 = vpop.f32.mrf.mxu0
        %v3664 = vadd.f32 0.0, %v3663
        %v3665 = vpop.f32.mrf.mxu0
        %v3666 = vadd.f32 0.0, %v3665
        %3667 = vmatprep.mubr.f32.mxu0 0.0
        %3668 = vmatmul.mubr.f32.gmra.mxu0 %v3501
        %v3669 = vpop.f32.mrf.mxu0
        %v3670 = vadd.f32 0.0, %v3669
        %v3671 = vpop.f32.mrf.mxu0
        %v3672 = vadd.f32 0.0, %v3671
        %3673 = vmatprep.mubr.f32.mxu0 0.0
        %3674 = vmatmul.mubr.f32.gmra.mxu0 %v3504
        %v3675 = vpop.f32.mrf.mxu0
        %v3676 = vadd.f32 0.0, %v3675
        %v3677 = vpop.f32.mrf.mxu0
        %v3678 = vadd.f32 0.0, %v3677
        %3679 = vmatprep.mubr.f32.mxu0 0.0
        %3680 = vmatmul.mubr.f32.gmra.mxu0 %v3507
        %v3681 = vpop.f32.mrf.mxu0
        %v3682 = vadd.f32 0.0, %v3681
        %v3683 = vpop.f32.mrf.mxu0
        %v3684 = vadd.f32 0.0, %v3683
        %3685 = vmatprep.mubr.f32.mxu0 0.0
        %3686 = vmatmul.mubr.f32.gmra.mxu0 %v3510
        %v3687 = vpop.f32.mrf.mxu0
        %v3688 = vadd.f32 0.0, %v3687
        %v3689 = vpop.f32.mrf.mxu0
        %v3690 = vadd.f32 0.0, %v3689
        %3691 = vmatprep.mubr.f32.mxu0 0.0
        %3692 = vmatmul.mubr.f32.gmra.mxu0 %v3513
        %v3693 = vpop.f32.mrf.mxu0
        %v3694 = vadd.f32 0.0, %v3693
        %v3695 = vpop.f32.mrf.mxu0
        %v3696 = vadd.f32 0.0, %v3695
        %3697 = vmatprep.mubr.f32.mxu0 0.0
        %3698 = vmatmul.mubr.f32.gmra.mxu0 %v3516
        %v3699 = vpop.f32.mrf.mxu0
        %v3700 = vadd.f32 0.0, %v3699
        %v3701 = vpop.f32.mrf.mxu0
        %v3702 = vadd.f32 0.0, %v3701
        %3703 = vmatprep.mubr.f32.mxu0 0.0
        %3704 = vmatmul.mubr.f32.gmra.mxu0 %v3519
        %v3705 = vpop.f32.mrf.mxu0
        %v3706 = vadd.f32 0.0, %v3705
        %v3707 = vpop.f32.mrf.mxu0
        %v3708 = vadd.f32 0.0, %v3707
        %3709 = vmatprep.mubr.f32.mxu0 0.0
        %3710 = vmatmul.mubr.f32.gmra.mxu0 %v3522
        %v3711 = vpop.f32.mrf.mxu0
        %v3712 = vadd.f32 0.0, %v3711
        %v3713 = vpop.f32.mrf.mxu0
        %v3714 = vadd.f32 0.0, %v3713
        %3715 = vmatprep.mubr.f32.mxu0 0.0
        %3716 = vmatmul.mubr.f32.gmra.mxu0 %v3525
        %v3717 = vpop.f32.mrf.mxu0
        %v3718 = vadd.f32 0.0, %v3717
        %v3719 = vpop.f32.mrf.mxu0
        %v3720 = vadd.f32 0.0, %v3719
        %3721 = vmatprep.mubr.f32.mxu0 0.0
        %3722 = vmatmul.mubr.f32.gmra.mxu0 %v3528
        %v3723 = vpop.f32.mrf.mxu0
        %v3724 = vadd.f32 0.0, %v3723
        %v3725 = vpop.f32.mrf.mxu0
        %v3726 = vadd.f32 0.0, %v3725
        %3727 = vmatprep.mubr.f32.mxu0 0.0
        %3728 = vmatmul.mubr.f32.gmra.mxu0 %v3531
        %v3729 = vpop.f32.mrf.mxu0
        %v3730 = vadd.f32 0.0, %v3729
        %v3731 = vpop.f32.mrf.mxu0
        %v3732 = vadd.f32 0.0, %v3731
        %3733 = vmatprep.mubr.f32.mxu0 0.0
        %3734 = vmatmul.mubr.f32.gmra.mxu0 %v3534
        %v3735 = vpop.f32.mrf.mxu0
        %v3736 = vadd.f32 0.0, %v3735
        %v3737 = vpop.f32.mrf.mxu0
        %v3738 = vadd.f32 0.0, %v3737
        %3739 = vmatprep.mubr.f32.mxu0 0.0
        %3740 = vmatmul.mubr.f32.gmra.mxu0 %v3537
        %v3741 = vpop.f32.mrf.mxu0
        %v3742 = vadd.f32 0.0, %v3741
        %v3743 = vpop.f32.mrf.mxu0
        %v3744 = vadd.f32 0.0, %v3743
        %3745 = vmatprep.mubr.f32.mxu0 0.0
        %3746 = vmatmul.mubr.f32.gmra.mxu0 %v3540
        %v3747 = vpop.f32.mrf.mxu0
        %v3748 = vadd.f32 0.0, %v3747
        %v3749 = vpop.f32.mrf.mxu0
        %v3750 = vadd.f32 0.0, %v3749
        %3751 = vmatprep.mubr.f32.mxu0 0.0
        %3752 = vmatmul.mubr.f32.gmra.mxu0 %v3543
        %v3753 = vpop.f32.mrf.mxu0
        %v3754 = vadd.f32 0.0, %v3753
        %v3755 = vpop.f32.mrf.mxu0
        %v3756 = vadd.f32 0.0, %v3755
        %3757 = vmatprep.mubr.f32.mxu0 0.0
        %3758 = vmatmul.mubr.f32.gmra.mxu0 %v3546
        %v3759 = vpop.f32.mrf.mxu0
        %v3760 = vadd.f32 0.0, %v3759
        %v3761 = vpop.f32.mrf.mxu0
        %v3762 = vadd.f32 0.0, %v3761
        %3763 = vmatprep.mubr.f32.mxu0 0.0
        %3764 = vmatmul.mubr.f32.gmra.mxu0 %v3549
        %v3765 = vpop.f32.mrf.mxu0
        %v3766 = vadd.f32 0.0, %v3765
        %v3767 = vpop.f32.mrf.mxu0
        %v3768 = vadd.f32 0.0, %v3767
        %3769 = vmatprep.mubr.f32.mxu0 0.0
        %3770 = vmatmul.mubr.f32.gmra.mxu0 %v3552
        %v3771 = vpop.f32.mrf.mxu0
        %v3772 = vadd.f32 0.0, %v3771
        %v3773 = vpop.f32.mrf.mxu0
        %v3774 = vadd.f32 0.0, %v3773
        %3775 = vmatprep.mubr.f32.mxu0 0.0
        %3776 = vmatmul.mubr.f32.gmra.mxu0 %v3555
        %v3777 = vpop.f32.mrf.mxu0
        %v3778 = vadd.f32 0.0, %v3777
        %v3779 = vpop.f32.mrf.mxu0
        %v3780 = vadd.f32 0.0, %v3779
        %3781 = vmatprep.mubr.f32.mxu0 0.0
        %3782 = vmatmul.mubr.f32.gmra.mxu0 %v3558
        %v3783 = vpop.f32.mrf.mxu0
        %v3784 = vadd.f32 0.0, %v3783
        %v3785 = vpop.f32.mrf.mxu0
        %v3786 = vadd.f32 0.0, %v3785
        %3787 = vmatprep.mubr.f32.mxu0 0.0
        %3788 = vmatmul.mubr.f32.gmra.mxu0 %v3561
        %v3789 = vpop.f32.mrf.mxu0
        %v3790 = vadd.f32 0.0, %v3789
        %v3791 = vpop.f32.mrf.mxu0
        %v3792 = vadd.f32 0.0, %v3791
        %3793 = vmatprep.mubr.f32.mxu0 0.0
        %3794 = vmatmul.mubr.f32.gmra.mxu0 %v3564
        %v3795 = vpop.f32.mrf.mxu0
        %v3796 = vadd.f32 0.0, %v3795
        %v3797 = vpop.f32.mrf.mxu0
        %v3798 = vadd.f32 0.0, %v3797
        %3799 = vmatprep.mubr.f32.mxu0 0.0
        %3800 = vmatmul.mubr.f32.gmra.mxu0 %v3567
        %v3801 = vpop.f32.mrf.mxu0
        %v3802 = vadd.f32 0.0, %v3801
        %v3803 = vpop.f32.mrf.mxu0
        %v3804 = vadd.f32 0.0, %v3803
        %3805 = vmatprep.mubr.f32.mxu0 0.0
        %3806 = vmatmul.mubr.f32.gmra.mxu0 %v3570
        %v3807 = vpop.f32.mrf.mxu0
        %v3808 = vadd.f32 0.0, %v3807
        %v3809 = vpop.f32.mrf.mxu0
        %v3810 = vadd.f32 0.0, %v3809
        %3811 = vmatprep.mubr.f32.mxu0 0.0
        %3812 = vmatmul.mubr.f32.gmra.mxu0 %v3573
        %v3813 = vpop.f32.mrf.mxu0
        %v3814 = vadd.f32 0.0, %v3813
        %v3815 = vpop.f32.mrf.mxu0
        %v3816 = vadd.f32 0.0, %v3815
        %3817 = vmatprep.mubr.f32.mxu0 0.0
        %3818 = vmatmul.mubr.f32.gmra.mxu0 %v3576
        %v3819 = vpop.f32.mrf.mxu0
        %v3820 = vadd.f32 0.0, %v3819
        %v3821 = vpop.f32.mrf.mxu0
        %v3822 = vadd.f32 0.0, %v3821
        %3823 = vmatprep.mubr.f32.mxu0 0.0
        %3824 = vmatmul.mubr.f32.gmra.mxu0 %v3579
        %v3825 = vpop.f32.mrf.mxu0
        %v3826 = vadd.f32 0.0, %v3825
        %v3827 = vpop.f32.mrf.mxu0
        %v3828 = vadd.f32 0.0, %v3827
        %3829 = vmatprep.mubr.f32.mxu0 0.0
        %3830 = vmatmul.mubr.f32.gmra.mxu0 %v3582
        %v3831 = vpop.f32.mrf.mxu0
        %v3832 = vadd.f32 0.0, %v3831
        %v3833 = vpop.f32.mrf.mxu0
        %v3834 = vadd.f32 0.0, %v3833
        %3835 = vmatprep.mubr.f32.mxu0 0.0
        %3836 = vmatmul.mubr.f32.gmra.mxu0 %v3585
        %v3837 = vpop.f32.mrf.mxu0
        %v3838 = vadd.f32 0.0, %v3837
        %v3839 = vpop.f32.mrf.mxu0
        %v3840 = vadd.f32 0.0, %v3839
        %3841 = vmatprep.mubr.f32.mxu0 0.0
        %3842 = vmatmul.mubr.f32.gmra.mxu0 %v3588
        %v3843 = vpop.f32.mrf.mxu0
        %v3844 = vadd.f32 0.0, %v3843
        %v3845 = vpop.f32.mrf.mxu0
        %v3846 = vadd.f32 0.0, %v3845
        %3847 = vmatprep.mubr.f32.mxu0 0.0
        %3848 = vmatmul.mubr.f32.gmra.mxu0 %v3591
        %v3849 = vpop.f32.mrf.mxu0
        %v3850 = vadd.f32 0.0, %v3849
        %v3851 = vpop.f32.mrf.mxu0
        %v3852 = vadd.f32 0.0, %v3851
        %3853 = vdwg.mxu0
        %v3854 = vcombine.high %v1518, %v1518
        %v3856 = vsel %vm1705, %v1200, 0
        %v3859 = vsel %vm1705, %v1201, 0
        %v3862 = vsel %vm1705, %v1202, 0
        %v3865 = vsel %vm1705, %v1203, 0
        %v3868 = vsel %vm1705, %v1204, 0
        %v3871 = vsel %vm1705, %v1205, 0
        %v3874 = vsel %vm1705, %v1206, 0
        %v3877 = vsel %vm1705, %v1207, 0
        %v3880 = vsel %vm1705, %v1208, 0
        %v3883 = vsel %vm1705, %v1209, 0
        %v3886 = vsel %vm1705, %v1210, 0
        %v3889 = vsel %vm1705, %v1211, 0
        %v3892 = vsel %vm1705, %v1212, 0
        %v3895 = vsel %vm1705, %v1213, 0
        %v3898 = vsel %vm1705, %v1214, 0
        %v3901 = vsel %vm1705, %v1215, 0
        %v3904 = vsel %vm1705, %v1232, 0
        %v3907 = vsel %vm1705, %v1233, 0
        %v3910 = vsel %vm1705, %v1234, 0
        %v3913 = vsel %vm1705, %v1235, 0
        %v3916 = vsel %vm1705, %v1236, 0
        %v3919 = vsel %vm1705, %v1237, 0
        %v3922 = vsel %vm1705, %v1238, 0
        %v3925 = vsel %vm1705, %v1239, 0
        %v3928 = vsel %vm1705, %v1240, 0
        %v3931 = vsel %vm1705, %v1241, 0
        %v3934 = vsel %vm1705, %v1242, 0
        %v3937 = vsel %vm1705, %v1243, 0
        %v3940 = vsel %vm1705, %v1244, 0
        %v3943 = vsel %vm1705, %v1245, 0
        %v3946 = vsel %vm1705, %v1246, 0
        %v3949 = vsel %vm1705, %v1247, 0
        %v3951 = vsel %vm1802, %v1518, 0
        %v3953 = vsel %vm1802, %v3854, 0
        %3955 = vmatprep.subr.mxu0 0.0
        %3956 = vmatpush1.msra.mxu0 0.0
        %3957 = vmatprep.subr.mxu0 0.0
        %3958 = vmatpush1.msra.mxu0 0.0
        %3959 = vmatprep.subr.mxu0 0.0
        %3960 = vmatpush1.msra.mxu0 0.0
        %3961 = vmatprep.subr.mxu0 0.0
        %3962 = vmatpush1.msra.mxu0 0.0
        %3963 = vmatprep.subr.mxu0 0.0
        %3964 = vmatpush1.msra.mxu0 0.0
        %3965 = vmatprep.subr.mxu0 0.0
        %3966 = vmatpush1.msra.mxu0 0.0
        %3967 = vmatprep.subr.mxu0 0.0
        %3968 = vmatpush1.msra.mxu0 0.0
        %3969 = vmatprep.subr.mxu0 0.0
        %3970 = vmatpush1.msra.mxu0 0.0
        %3971 = vmatprep.subr.mxu0 0.0
        %3972 = vmatpush1.msra.mxu0 0.0
        %3973 = vmatprep.subr.mxu0 0.0
        %3974 = vmatpush1.msra.mxu0 0.0
        %3975 = vmatprep.subr.mxu0 0.0
        %3976 = vmatpush1.msra.mxu0 0.0
        %3977 = vmatprep.subr.mxu0 0.0
        %3978 = vmatpush1.msra.mxu0 0.0
        %3979 = vmatprep.subr.mxu0 0.0
        %3980 = vmatpush1.msra.mxu0 0.0
        %3981 = vmatprep.subr.mxu0 0.0
        %3982 = vmatpush1.msra.mxu0 0.0
        %3983 = vmatprep.subr.mxu0 0.0
        %3984 = vmatpush1.msra.mxu0 0.0
        %3985 = vmatprep.subr.mxu0 %v3953
        %3986 = vmatpush1.msra.mxu0 %v3951
        %3987 = vmatprep.subr.mxu0 0.0
        %3988 = vmatpush2.msra.mxu0 0.0
        %3989 = vmatprep.subr.mxu0 0.0
        %3990 = vmatpush2.msra.mxu0 0.0
        %3991 = vmatprep.subr.mxu0 0.0
        %3992 = vmatpush2.msra.mxu0 0.0
        %3993 = vmatprep.subr.mxu0 0.0
        %3994 = vmatpush2.msra.mxu0 0.0
        %3995 = vmatprep.subr.mxu0 0.0
        %3996 = vmatpush2.msra.mxu0 0.0
        %3997 = vmatprep.subr.mxu0 0.0
        %3998 = vmatpush2.msra.mxu0 0.0
        %3999 = vmatprep.subr.mxu0 0.0
        %4000 = vmatpush2.msra.mxu0 0.0
        %4001 = vmatprep.subr.mxu0 0.0
        %4002 = vmatpush2.msra.mxu0 0.0
        %4003 = vmatprep.subr.mxu0 0.0
        %4004 = vmatpush2.msra.mxu0 0.0
        %4005 = vmatprep.subr.mxu0 0.0
        %4006 = vmatpush2.msra.mxu0 0.0
        %4007 = vmatprep.subr.mxu0 0.0
        %4008 = vmatpush2.msra.mxu0 0.0
        %4009 = vmatprep.subr.mxu0 0.0
        %4010 = vmatpush2.msra.mxu0 0.0
        %4011 = vmatprep.subr.mxu0 0.0
        %4012 = vmatpush2.msra.mxu0 0.0
        %4013 = vmatprep.subr.mxu0 0.0
        %4014 = vmatpush2.msra.mxu0 0.0
        %4015 = vmatprep.subr.mxu0 0.0
        %4016 = vmatpush2.msra.mxu0 0.0
        %4017 = vmatprep.subr.mxu0 0.0
        %4018 = vmatpush2.msra.mxu0 0.0
        %4019 = vmatprep.mubr.f32.mxu0 0.0
        %4020 = vmatmul.mubr.f32.gmra.mxu0 %v3856
        %v4021 = vpop.f32.mrf.mxu0
        %v4022 = vadd.f32 0.0, %v4021
        %v4023 = vpop.f32.mrf.mxu0
        %v4024 = vadd.f32 0.0, %v4023
        %4025 = vmatprep.mubr.f32.mxu0 0.0
        %4026 = vmatmul.mubr.f32.gmra.mxu0 %v3859
        %v4027 = vpop.f32.mrf.mxu0
        %v4028 = vadd.f32 0.0, %v4027
        %v4029 = vpop.f32.mrf.mxu0
        %v4030 = vadd.f32 0.0, %v4029
        %4031 = vmatprep.mubr.f32.mxu0 0.0
        %4032 = vmatmul.mubr.f32.gmra.mxu0 %v3862
        %v4033 = vpop.f32.mrf.mxu0
        %v4034 = vadd.f32 0.0, %v4033
        %v4035 = vpop.f32.mrf.mxu0
        %v4036 = vadd.f32 0.0, %v4035
        %4037 = vmatprep.mubr.f32.mxu0 0.0
        %4038 = vmatmul.mubr.f32.gmra.mxu0 %v3865
        %v4039 = vpop.f32.mrf.mxu0
        %v4040 = vadd.f32 0.0, %v4039
        %v4041 = vpop.f32.mrf.mxu0
        %v4042 = vadd.f32 0.0, %v4041
        %4043 = vmatprep.mubr.f32.mxu0 0.0
        %4044 = vmatmul.mubr.f32.gmra.mxu0 %v3868
        %v4045 = vpop.f32.mrf.mxu0
        %v4046 = vadd.f32 0.0, %v4045
        %v4047 = vpop.f32.mrf.mxu0
        %v4048 = vadd.f32 0.0, %v4047
        %4049 = vmatprep.mubr.f32.mxu0 0.0
        %4050 = vmatmul.mubr.f32.gmra.mxu0 %v3871
        %v4051 = vpop.f32.mrf.mxu0
        %v4052 = vadd.f32 0.0, %v4051
        %v4053 = vpop.f32.mrf.mxu0
        %v4054 = vadd.f32 0.0, %v4053
        %4055 = vmatprep.mubr.f32.mxu0 0.0
        %4056 = vmatmul.mubr.f32.gmra.mxu0 %v3874
        %v4057 = vpop.f32.mrf.mxu0
        %v4058 = vadd.f32 0.0, %v4057
        %v4059 = vpop.f32.mrf.mxu0
        %v4060 = vadd.f32 0.0, %v4059
        %4061 = vmatprep.mubr.f32.mxu0 0.0
        %4062 = vmatmul.mubr.f32.gmra.mxu0 %v3877
        %v4063 = vpop.f32.mrf.mxu0
        %v4064 = vadd.f32 0.0, %v4063
        %v4065 = vpop.f32.mrf.mxu0
        %v4066 = vadd.f32 0.0, %v4065
        %4067 = vmatprep.mubr.f32.mxu0 0.0
        %4068 = vmatmul.mubr.f32.gmra.mxu0 %v3880
        %v4069 = vpop.f32.mrf.mxu0
        %v4070 = vadd.f32 0.0, %v4069
        %v4071 = vpop.f32.mrf.mxu0
        %v4072 = vadd.f32 0.0, %v4071
        %4073 = vmatprep.mubr.f32.mxu0 0.0
        %4074 = vmatmul.mubr.f32.gmra.mxu0 %v3883
        %v4075 = vpop.f32.mrf.mxu0
        %v4076 = vadd.f32 0.0, %v4075
        %v4077 = vpop.f32.mrf.mxu0
        %v4078 = vadd.f32 0.0, %v4077
        %4079 = vmatprep.mubr.f32.mxu0 0.0
        %4080 = vmatmul.mubr.f32.gmra.mxu0 %v3886
        %v4081 = vpop.f32.mrf.mxu0
        %v4082 = vadd.f32 0.0, %v4081
        %v4083 = vpop.f32.mrf.mxu0
        %v4084 = vadd.f32 0.0, %v4083
        %4085 = vmatprep.mubr.f32.mxu0 0.0
        %4086 = vmatmul.mubr.f32.gmra.mxu0 %v3889
        %v4087 = vpop.f32.mrf.mxu0
        %v4088 = vadd.f32 0.0, %v4087
        %v4089 = vpop.f32.mrf.mxu0
        %v4090 = vadd.f32 0.0, %v4089
        %4091 = vmatprep.mubr.f32.mxu0 0.0
        %4092 = vmatmul.mubr.f32.gmra.mxu0 %v3892
        %v4093 = vpop.f32.mrf.mxu0
        %v4094 = vadd.f32 0.0, %v4093
        %v4095 = vpop.f32.mrf.mxu0
        %v4096 = vadd.f32 0.0, %v4095
        %4097 = vmatprep.mubr.f32.mxu0 0.0
        %4098 = vmatmul.mubr.f32.gmra.mxu0 %v3895
        %v4099 = vpop.f32.mrf.mxu0
        %v4100 = vadd.f32 0.0, %v4099
        %v4101 = vpop.f32.mrf.mxu0
        %v4102 = vadd.f32 0.0, %v4101
        %4103 = vmatprep.mubr.f32.mxu0 0.0
        %4104 = vmatmul.mubr.f32.gmra.mxu0 %v3898
        %v4105 = vpop.f32.mrf.mxu0
        %v4106 = vadd.f32 0.0, %v4105
        %v4107 = vpop.f32.mrf.mxu0
        %v4108 = vadd.f32 0.0, %v4107
        %4109 = vmatprep.mubr.f32.mxu0 0.0
        %4110 = vmatmul.mubr.f32.gmra.mxu0 %v3901
        %v4111 = vpop.f32.mrf.mxu0
        %v4112 = vadd.f32 0.0, %v4111
        %v4113 = vpop.f32.mrf.mxu0
        %v4114 = vadd.f32 0.0, %v4113
        %4115 = vmatprep.mubr.f32.mxu0 0.0
        %4116 = vmatmul.mubr.f32.gmra.mxu0 %v3904
        %v4117 = vpop.f32.mrf.mxu0
        %v4118 = vadd.f32 0.0, %v4117
        %v4119 = vpop.f32.mrf.mxu0
        %v4120 = vadd.f32 0.0, %v4119
        %4121 = vmatprep.mubr.f32.mxu0 0.0
        %4122 = vmatmul.mubr.f32.gmra.mxu0 %v3907
        %v4123 = vpop.f32.mrf.mxu0
        %v4124 = vadd.f32 0.0, %v4123
        %v4125 = vpop.f32.mrf.mxu0
        %v4126 = vadd.f32 0.0, %v4125
        %4127 = vmatprep.mubr.f32.mxu0 0.0
        %4128 = vmatmul.mubr.f32.gmra.mxu0 %v3910
        %v4129 = vpop.f32.mrf.mxu0
        %v4130 = vadd.f32 0.0, %v4129
        %v4131 = vpop.f32.mrf.mxu0
        %v4132 = vadd.f32 0.0, %v4131
        %4133 = vmatprep.mubr.f32.mxu0 0.0
        %4134 = vmatmul.mubr.f32.gmra.mxu0 %v3913
        %v4135 = vpop.f32.mrf.mxu0
        %v4136 = vadd.f32 0.0, %v4135
        %v4137 = vpop.f32.mrf.mxu0
        %v4138 = vadd.f32 0.0, %v4137
        %4139 = vmatprep.mubr.f32.mxu0 0.0
        %4140 = vmatmul.mubr.f32.gmra.mxu0 %v3916
        %v4141 = vpop.f32.mrf.mxu0
        %v4142 = vadd.f32 0.0, %v4141
        %v4143 = vpop.f32.mrf.mxu0
        %v4144 = vadd.f32 0.0, %v4143
        %4145 = vmatprep.mubr.f32.mxu0 0.0
        %4146 = vmatmul.mubr.f32.gmra.mxu0 %v3919
        %v4147 = vpop.f32.mrf.mxu0
        %v4148 = vadd.f32 0.0, %v4147
        %v4149 = vpop.f32.mrf.mxu0
        %v4150 = vadd.f32 0.0, %v4149
        %4151 = vmatprep.mubr.f32.mxu0 0.0
        %4152 = vmatmul.mubr.f32.gmra.mxu0 %v3922
        %v4153 = vpop.f32.mrf.mxu0
        %v4154 = vadd.f32 0.0, %v4153
        %v4155 = vpop.f32.mrf.mxu0
        %v4156 = vadd.f32 0.0, %v4155
        %4157 = vmatprep.mubr.f32.mxu0 0.0
        %4158 = vmatmul.mubr.f32.gmra.mxu0 %v3925
        %v4159 = vpop.f32.mrf.mxu0
        %v4160 = vadd.f32 0.0, %v4159
        %v4161 = vpop.f32.mrf.mxu0
        %v4162 = vadd.f32 0.0, %v4161
        %4163 = vmatprep.mubr.f32.mxu0 0.0
        %4164 = vmatmul.mubr.f32.gmra.mxu0 %v3928
        %v4165 = vpop.f32.mrf.mxu0
        %v4166 = vadd.f32 0.0, %v4165
        %v4167 = vpop.f32.mrf.mxu0
        %v4168 = vadd.f32 0.0, %v4167
        %4169 = vmatprep.mubr.f32.mxu0 0.0
        %4170 = vmatmul.mubr.f32.gmra.mxu0 %v3931
        %v4171 = vpop.f32.mrf.mxu0
        %v4172 = vadd.f32 0.0, %v4171
        %v4173 = vpop.f32.mrf.mxu0
        %v4174 = vadd.f32 0.0, %v4173
        %4175 = vmatprep.mubr.f32.mxu0 0.0
        %4176 = vmatmul.mubr.f32.gmra.mxu0 %v3934
        %v4177 = vpop.f32.mrf.mxu0
        %v4178 = vadd.f32 0.0, %v4177
        %v4179 = vpop.f32.mrf.mxu0
        %v4180 = vadd.f32 0.0, %v4179
        %4181 = vmatprep.mubr.f32.mxu0 0.0
        %4182 = vmatmul.mubr.f32.gmra.mxu0 %v3937
        %v4183 = vpop.f32.mrf.mxu0
        %v4184 = vadd.f32 0.0, %v4183
        %v4185 = vpop.f32.mrf.mxu0
        %v4186 = vadd.f32 0.0, %v4185
        %4187 = vmatprep.mubr.f32.mxu0 0.0
        %4188 = vmatmul.mubr.f32.gmra.mxu0 %v3940
        %v4189 = vpop.f32.mrf.mxu0
        %v4190 = vadd.f32 0.0, %v4189
        %v4191 = vpop.f32.mrf.mxu0
        %v4192 = vadd.f32 0.0, %v4191
        %4193 = vmatprep.mubr.f32.mxu0 0.0
        %4194 = vmatmul.mubr.f32.gmra.mxu0 %v3943
        %v4195 = vpop.f32.mrf.mxu0
        %v4196 = vadd.f32 0.0, %v4195
        %v4197 = vpop.f32.mrf.mxu0
        %v4198 = vadd.f32 0.0, %v4197
        %4199 = vmatprep.mubr.f32.mxu0 0.0
        %4200 = vmatmul.mubr.f32.gmra.mxu0 %v3946
        %v4201 = vpop.f32.mrf.mxu0
        %v4202 = vadd.f32 0.0, %v4201
        %v4203 = vpop.f32.mrf.mxu0
        %v4204 = vadd.f32 0.0, %v4203
        %4205 = vmatprep.mubr.f32.mxu0 0.0
        %4206 = vmatmul.mubr.f32.gmra.mxu0 %v3949
        %v4207 = vpop.f32.mrf.mxu0
        %v4208 = vadd.f32 0.0, %v4207
        %v4209 = vpop.f32.mrf.mxu0
        %v4210 = vadd.f32 0.0, %v4209
        %4211 = vdwg.mxu0
        %v4212 = vcombine.high %v1519, %v1519
        %v4214 = vsel %vm1705, %v1264, 0
        %v4217 = vsel %vm1705, %v1265, 0
        %v4220 = vsel %vm1705, %v1266, 0
        %v4223 = vsel %vm1705, %v1267, 0
        %v4226 = vsel %vm1705, %v1268, 0
        %v4229 = vsel %vm1705, %v1269, 0
        %v4232 = vsel %vm1705, %v1270, 0
        %v4235 = vsel %vm1705, %v1271, 0
        %v4238 = vsel %vm1705, %v1272, 0
        %v4241 = vsel %vm1705, %v1273, 0
        %v4244 = vsel %vm1705, %v1274, 0
        %v4247 = vsel %vm1705, %v1275, 0
        %v4250 = vsel %vm1705, %v1276, 0
        %v4253 = vsel %vm1705, %v1277, 0
        %v4256 = vsel %vm1705, %v1278, 0
        %v4259 = vsel %vm1705, %v1279, 0
        %v4262 = vsel %vm1705, %v1296, 0
        %v4265 = vsel %vm1705, %v1297, 0
        %v4268 = vsel %vm1705, %v1298, 0
        %v4271 = vsel %vm1705, %v1299, 0
        %v4274 = vsel %vm1705, %v1300, 0
        %v4277 = vsel %vm1705, %v1301, 0
        %v4280 = vsel %vm1705, %v1302, 0
        %v4283 = vsel %vm1705, %v1303, 0
        %v4286 = vsel %vm1705, %v1304, 0
        %v4289 = vsel %vm1705, %v1305, 0
        %v4292 = vsel %vm1705, %v1306, 0
        %v4295 = vsel %vm1705, %v1307, 0
        %v4298 = vsel %vm1705, %v1308, 0
        %v4301 = vsel %vm1705, %v1309, 0
        %v4304 = vsel %vm1705, %v1310, 0
        %v4307 = vsel %vm1705, %v1311, 0
        %v4309 = vsel %vm1802, %v1519, 0
        %v4311 = vsel %vm1802, %v4212, 0
        %4313 = vmatprep.subr.mxu0 0.0
        %4314 = vmatpush1.msra.mxu0 0.0
        %4315 = vmatprep.subr.mxu0 0.0
        %4316 = vmatpush1.msra.mxu0 0.0
        %4317 = vmatprep.subr.mxu0 0.0
        %4318 = vmatpush1.msra.mxu0 0.0
        %4319 = vmatprep.subr.mxu0 0.0
        %4320 = vmatpush1.msra.mxu0 0.0
        %4321 = vmatprep.subr.mxu0 0.0
        %4322 = vmatpush1.msra.mxu0 0.0
        %4323 = vmatprep.subr.mxu0 0.0
        %4324 = vmatpush1.msra.mxu0 0.0
        %4325 = vmatprep.subr.mxu0 0.0
        %4326 = vmatpush1.msra.mxu0 0.0
        %4327 = vmatprep.subr.mxu0 0.0
        %4328 = vmatpush1.msra.mxu0 0.0
        %4329 = vmatprep.subr.mxu0 0.0
        %4330 = vmatpush1.msra.mxu0 0.0
        %4331 = vmatprep.subr.mxu0 0.0
        %4332 = vmatpush1.msra.mxu0 0.0
        %4333 = vmatprep.subr.mxu0 0.0
        %4334 = vmatpush1.msra.mxu0 0.0
        %4335 = vmatprep.subr.mxu0 0.0
        %4336 = vmatpush1.msra.mxu0 0.0
        %4337 = vmatprep.subr.mxu0 0.0
        %4338 = vmatpush1.msra.mxu0 0.0
        %4339 = vmatprep.subr.mxu0 0.0
        %4340 = vmatpush1.msra.mxu0 0.0
        %4341 = vmatprep.subr.mxu0 0.0
        %4342 = vmatpush1.msra.mxu0 0.0
        %4343 = vmatprep.subr.mxu0 %v4311
        %4344 = vmatpush1.msra.mxu0 %v4309
        %4345 = vmatprep.subr.mxu0 0.0
        %4346 = vmatpush2.msra.mxu0 0.0
        %4347 = vmatprep.subr.mxu0 0.0
        %4348 = vmatpush2.msra.mxu0 0.0
        %4349 = vmatprep.subr.mxu0 0.0
        %4350 = vmatpush2.msra.mxu0 0.0
        %4351 = vmatprep.subr.mxu0 0.0
        %4352 = vmatpush2.msra.mxu0 0.0
        %4353 = vmatprep.subr.mxu0 0.0
        %4354 = vmatpush2.msra.mxu0 0.0
        %4355 = vmatprep.subr.mxu0 0.0
        %4356 = vmatpush2.msra.mxu0 0.0
        %4357 = vmatprep.subr.mxu0 0.0
        %4358 = vmatpush2.msra.mxu0 0.0
        %4359 = vmatprep.subr.mxu0 0.0
        %4360 = vmatpush2.msra.mxu0 0.0
        %4361 = vmatprep.subr.mxu0 0.0
        %4362 = vmatpush2.msra.mxu0 0.0
        %4363 = vmatprep.subr.mxu0 0.0
        %4364 = vmatpush2.msra.mxu0 0.0
        %4365 = vmatprep.subr.mxu0 0.0
        %4366 = vmatpush2.msra.mxu0 0.0
        %4367 = vmatprep.subr.mxu0 0.0
        %4368 = vmatpush2.msra.mxu0 0.0
        %4369 = vmatprep.subr.mxu0 0.0
        %4370 = vmatpush2.msra.mxu0 0.0
        %4371 = vmatprep.subr.mxu0 0.0
        %4372 = vmatpush2.msra.mxu0 0.0
        %4373 = vmatprep.subr.mxu0 0.0
        %4374 = vmatpush2.msra.mxu0 0.0
        %4375 = vmatprep.subr.mxu0 0.0
        %4376 = vmatpush2.msra.mxu0 0.0
        %4377 = vmatprep.mubr.f32.mxu0 0.0
        %4378 = vmatmul.mubr.f32.gmra.mxu0 %v4214
        %v4379 = vpop.f32.mrf.mxu0
        %v4380 = vadd.f32 0.0, %v4379
        %v4381 = vpop.f32.mrf.mxu0
        %v4382 = vadd.f32 0.0, %v4381
        %4383 = vmatprep.mubr.f32.mxu0 0.0
        %4384 = vmatmul.mubr.f32.gmra.mxu0 %v4217
        %v4385 = vpop.f32.mrf.mxu0
        %v4386 = vadd.f32 0.0, %v4385
        %v4387 = vpop.f32.mrf.mxu0
        %v4388 = vadd.f32 0.0, %v4387
        %4389 = vmatprep.mubr.f32.mxu0 0.0
        %4390 = vmatmul.mubr.f32.gmra.mxu0 %v4220
        %v4391 = vpop.f32.mrf.mxu0
        %v4392 = vadd.f32 0.0, %v4391
        %v4393 = vpop.f32.mrf.mxu0
        %v4394 = vadd.f32 0.0, %v4393
        %4395 = vmatprep.mubr.f32.mxu0 0.0
        %4396 = vmatmul.mubr.f32.gmra.mxu0 %v4223
        %v4397 = vpop.f32.mrf.mxu0
        %v4398 = vadd.f32 0.0, %v4397
        %v4399 = vpop.f32.mrf.mxu0
        %v4400 = vadd.f32 0.0, %v4399
        %4401 = vmatprep.mubr.f32.mxu0 0.0
        %4402 = vmatmul.mubr.f32.gmra.mxu0 %v4226
        %v4403 = vpop.f32.mrf.mxu0
        %v4404 = vadd.f32 0.0, %v4403
        %v4405 = vpop.f32.mrf.mxu0
        %v4406 = vadd.f32 0.0, %v4405
        %4407 = vmatprep.mubr.f32.mxu0 0.0
        %4408 = vmatmul.mubr.f32.gmra.mxu0 %v4229
        %v4409 = vpop.f32.mrf.mxu0
        %v4410 = vadd.f32 0.0, %v4409
        %v4411 = vpop.f32.mrf.mxu0
        %v4412 = vadd.f32 0.0, %v4411
        %4413 = vmatprep.mubr.f32.mxu0 0.0
        %4414 = vmatmul.mubr.f32.gmra.mxu0 %v4232
        %v4415 = vpop.f32.mrf.mxu0
        %v4416 = vadd.f32 0.0, %v4415
        %v4417 = vpop.f32.mrf.mxu0
        %v4418 = vadd.f32 0.0, %v4417
        %4419 = vmatprep.mubr.f32.mxu0 0.0
        %4420 = vmatmul.mubr.f32.gmra.mxu0 %v4235
        %v4421 = vpop.f32.mrf.mxu0
        %v4422 = vadd.f32 0.0, %v4421
        %v4423 = vpop.f32.mrf.mxu0
        %v4424 = vadd.f32 0.0, %v4423
        %4425 = vmatprep.mubr.f32.mxu0 0.0
        %4426 = vmatmul.mubr.f32.gmra.mxu0 %v4238
        %v4427 = vpop.f32.mrf.mxu0
        %v4428 = vadd.f32 0.0, %v4427
        %v4429 = vpop.f32.mrf.mxu0
        %v4430 = vadd.f32 0.0, %v4429
        %4431 = vmatprep.mubr.f32.mxu0 0.0
        %4432 = vmatmul.mubr.f32.gmra.mxu0 %v4241
        %v4433 = vpop.f32.mrf.mxu0
        %v4434 = vadd.f32 0.0, %v4433
        %v4435 = vpop.f32.mrf.mxu0
        %v4436 = vadd.f32 0.0, %v4435
        %4437 = vmatprep.mubr.f32.mxu0 0.0
        %4438 = vmatmul.mubr.f32.gmra.mxu0 %v4244
        %v4439 = vpop.f32.mrf.mxu0
        %v4440 = vadd.f32 0.0, %v4439
        %v4441 = vpop.f32.mrf.mxu0
        %v4442 = vadd.f32 0.0, %v4441
        %4443 = vmatprep.mubr.f32.mxu0 0.0
        %4444 = vmatmul.mubr.f32.gmra.mxu0 %v4247
        %v4445 = vpop.f32.mrf.mxu0
        %v4446 = vadd.f32 0.0, %v4445
        %v4447 = vpop.f32.mrf.mxu0
        %v4448 = vadd.f32 0.0, %v4447
        %4449 = vmatprep.mubr.f32.mxu0 0.0
        %4450 = vmatmul.mubr.f32.gmra.mxu0 %v4250
        %v4451 = vpop.f32.mrf.mxu0
        %v4452 = vadd.f32 0.0, %v4451
        %v4453 = vpop.f32.mrf.mxu0
        %v4454 = vadd.f32 0.0, %v4453
        %4455 = vmatprep.mubr.f32.mxu0 0.0
        %4456 = vmatmul.mubr.f32.gmra.mxu0 %v4253
        %v4457 = vpop.f32.mrf.mxu0
        %v4458 = vadd.f32 0.0, %v4457
        %v4459 = vpop.f32.mrf.mxu0
        %v4460 = vadd.f32 0.0, %v4459
        %4461 = vmatprep.mubr.f32.mxu0 0.0
        %4462 = vmatmul.mubr.f32.gmra.mxu0 %v4256
        %v4463 = vpop.f32.mrf.mxu0
        %v4464 = vadd.f32 0.0, %v4463
        %v4465 = vpop.f32.mrf.mxu0
        %v4466 = vadd.f32 0.0, %v4465
        %4467 = vmatprep.mubr.f32.mxu0 0.0
        %4468 = vmatmul.mubr.f32.gmra.mxu0 %v4259
        %v4469 = vpop.f32.mrf.mxu0
        %v4470 = vadd.f32 0.0, %v4469
        %v4471 = vpop.f32.mrf.mxu0
        %v4472 = vadd.f32 0.0, %v4471
        %4473 = vmatprep.mubr.f32.mxu0 0.0
        %4474 = vmatmul.mubr.f32.gmra.mxu0 %v4262
        %v4475 = vpop.f32.mrf.mxu0
        %v4476 = vadd.f32 0.0, %v4475
        %v4477 = vpop.f32.mrf.mxu0
        %v4478 = vadd.f32 0.0, %v4477
        %4479 = vmatprep.mubr.f32.mxu0 0.0
        %4480 = vmatmul.mubr.f32.gmra.mxu0 %v4265
        %v4481 = vpop.f32.mrf.mxu0
        %v4482 = vadd.f32 0.0, %v4481
        %v4483 = vpop.f32.mrf.mxu0
        %v4484 = vadd.f32 0.0, %v4483
        %4485 = vmatprep.mubr.f32.mxu0 0.0
        %4486 = vmatmul.mubr.f32.gmra.mxu0 %v4268
        %v4487 = vpop.f32.mrf.mxu0
        %v4488 = vadd.f32 0.0, %v4487
        %v4489 = vpop.f32.mrf.mxu0
        %v4490 = vadd.f32 0.0, %v4489
        %4491 = vmatprep.mubr.f32.mxu0 0.0
        %4492 = vmatmul.mubr.f32.gmra.mxu0 %v4271
        %v4493 = vpop.f32.mrf.mxu0
        %v4494 = vadd.f32 0.0, %v4493
        %v4495 = vpop.f32.mrf.mxu0
        %v4496 = vadd.f32 0.0, %v4495
        %4497 = vmatprep.mubr.f32.mxu0 0.0
        %4498 = vmatmul.mubr.f32.gmra.mxu0 %v4274
        %v4499 = vpop.f32.mrf.mxu0
        %v4500 = vadd.f32 0.0, %v4499
        %v4501 = vpop.f32.mrf.mxu0
        %v4502 = vadd.f32 0.0, %v4501
        %4503 = vmatprep.mubr.f32.mxu0 0.0
        %4504 = vmatmul.mubr.f32.gmra.mxu0 %v4277
        %v4505 = vpop.f32.mrf.mxu0
        %v4506 = vadd.f32 0.0, %v4505
        %v4507 = vpop.f32.mrf.mxu0
        %v4508 = vadd.f32 0.0, %v4507
        %4509 = vmatprep.mubr.f32.mxu0 0.0
        %4510 = vmatmul.mubr.f32.gmra.mxu0 %v4280
        %v4511 = vpop.f32.mrf.mxu0
        %v4512 = vadd.f32 0.0, %v4511
        %v4513 = vpop.f32.mrf.mxu0
        %v4514 = vadd.f32 0.0, %v4513
        %4515 = vmatprep.mubr.f32.mxu0 0.0
        %4516 = vmatmul.mubr.f32.gmra.mxu0 %v4283
        %v4517 = vpop.f32.mrf.mxu0
        %v4518 = vadd.f32 0.0, %v4517
        %v4519 = vpop.f32.mrf.mxu0
        %v4520 = vadd.f32 0.0, %v4519
        %4521 = vmatprep.mubr.f32.mxu0 0.0
        %4522 = vmatmul.mubr.f32.gmra.mxu0 %v4286
        %v4523 = vpop.f32.mrf.mxu0
        %v4524 = vadd.f32 0.0, %v4523
        %v4525 = vpop.f32.mrf.mxu0
        %v4526 = vadd.f32 0.0, %v4525
        %4527 = vmatprep.mubr.f32.mxu0 0.0
        %4528 = vmatmul.mubr.f32.gmra.mxu0 %v4289
        %v4529 = vpop.f32.mrf.mxu0
        %v4530 = vadd.f32 0.0, %v4529
        %v4531 = vpop.f32.mrf.mxu0
        %v4532 = vadd.f32 0.0, %v4531
        %4533 = vmatprep.mubr.f32.mxu0 0.0
        %4534 = vmatmul.mubr.f32.gmra.mxu0 %v4292
        %v4535 = vpop.f32.mrf.mxu0
        %v4536 = vadd.f32 0.0, %v4535
        %v4537 = vpop.f32.mrf.mxu0
        %v4538 = vadd.f32 0.0, %v4537
        %4539 = vmatprep.mubr.f32.mxu0 0.0
        %4540 = vmatmul.mubr.f32.gmra.mxu0 %v4295
        %v4541 = vpop.f32.mrf.mxu0
        %v4542 = vadd.f32 0.0, %v4541
        %v4543 = vpop.f32.mrf.mxu0
        %v4544 = vadd.f32 0.0, %v4543
        %4545 = vmatprep.mubr.f32.mxu0 0.0
        %4546 = vmatmul.mubr.f32.gmra.mxu0 %v4298
        %v4547 = vpop.f32.mrf.mxu0
        %v4548 = vadd.f32 0.0, %v4547
        %v4549 = vpop.f32.mrf.mxu0
        %v4550 = vadd.f32 0.0, %v4549
        %4551 = vmatprep.mubr.f32.mxu0 0.0
        %4552 = vmatmul.mubr.f32.gmra.mxu0 %v4301
        %v4553 = vpop.f32.mrf.mxu0
        %v4554 = vadd.f32 0.0, %v4553
        %v4555 = vpop.f32.mrf.mxu0
        %v4556 = vadd.f32 0.0, %v4555
        %4557 = vmatprep.mubr.f32.mxu0 0.0
        %4558 = vmatmul.mubr.f32.gmra.mxu0 %v4304
        %v4559 = vpop.f32.mrf.mxu0
        %v4560 = vadd.f32 0.0, %v4559
        %v4561 = vpop.f32.mrf.mxu0
        %v4562 = vadd.f32 0.0, %v4561
        %4563 = vmatprep.mubr.f32.mxu0 0.0
        %4564 = vmatmul.mubr.f32.gmra.mxu0 %v4307
        %v4565 = vpop.f32.mrf.mxu0
        %v4566 = vadd.f32 0.0, %v4565
        %v4567 = vpop.f32.mrf.mxu0
        %v4568 = vadd.f32 0.0, %v4567
        %4569 = vdwg.mxu0
        %v4570 = vmax.f32 %v1874, %v1876
        %4571 = vmax.xlane.f32.xlu0 %v4570
        %v4572 = vpop.xlane.xlu0 %4571
        %v4573 = vmax.f32 %v1880, %v1882
        %4574 = vmax.xlane.f32.xlu0 %v4573
        %v4575 = vpop.xlane.xlu0 %4574
        %v4576 = vmax.f32 %v1886, %v1888
        %4577 = vmax.xlane.f32.xlu0 %v4576
        %v4578 = vpop.xlane.xlu0 %4577
        %v4579 = vmax.f32 %v1892, %v1894
        %4580 = vmax.xlane.f32.xlu0 %v4579
        %v4581 = vpop.xlane.xlu0 %4580
        %v4582 = vmax.f32 %v1898, %v1900
        %4583 = vmax.xlane.f32.xlu0 %v4582
        %v4584 = vpop.xlane.xlu0 %4583
        %v4585 = vmax.f32 %v1904, %v1906
        %4586 = vmax.xlane.f32.xlu0 %v4585
        %v4587 = vpop.xlane.xlu0 %4586
        %v4588 = vmax.f32 %v1910, %v1912
        %4589 = vmax.xlane.f32.xlu0 %v4588
        %v4590 = vpop.xlane.xlu0 %4589
        %v4591 = vmax.f32 %v1916, %v1918
        %4592 = vmax.xlane.f32.xlu0 %v4591
        %v4593 = vpop.xlane.xlu0 %4592
        %v4594 = vmax.f32 %v1922, %v1924
        %4595 = vmax.xlane.f32.xlu0 %v4594
        %v4596 = vpop.xlane.xlu0 %4595
        %v4597 = vmax.f32 %v1928, %v1930
        %4598 = vmax.xlane.f32.xlu0 %v4597
        %v4599 = vpop.xlane.xlu0 %4598
        %v4600 = vmax.f32 %v1934, %v1936
        %4601 = vmax.xlane.f32.xlu0 %v4600
        %v4602 = vpop.xlane.xlu0 %4601
        %v4603 = vmax.f32 %v1940, %v1942
        %4604 = vmax.xlane.f32.xlu0 %v4603
        %v4605 = vpop.xlane.xlu0 %4604
        %v4606 = vmax.f32 %v1946, %v1948
        %4607 = vmax.xlane.f32.xlu0 %v4606
        %v4608 = vpop.xlane.xlu0 %4607
        %v4609 = vmax.f32 %v1952, %v1954
        %4610 = vmax.xlane.f32.xlu0 %v4609
        %v4611 = vpop.xlane.xlu0 %4610
        %v4612 = vmax.f32 %v1958, %v1960
        %4613 = vmax.xlane.f32.xlu0 %v4612
        %v4614 = vpop.xlane.xlu0 %4613
        %v4615 = vmax.f32 %v1964, %v1966
        %4616 = vmax.xlane.f32.xlu0 %v4615
        %v4617 = vpop.xlane.xlu0 %4616
        %v4618 = vmax.f32 %v1970, %v1972
        %4619 = vmax.xlane.f32.xlu0 %v4618
        %v4620 = vpop.xlane.xlu0 %4619
        %v4621 = vmax.f32 %v1976, %v1978
        %4622 = vmax.xlane.f32.xlu0 %v4621
        %v4623 = vpop.xlane.xlu0 %4622
        %v4624 = vmax.f32 %v1982, %v1984
        %4625 = vmax.xlane.f32.xlu0 %v4624
        %v4626 = vpop.xlane.xlu0 %4625
        %v4627 = vmax.f32 %v1988, %v1990
        %4628 = vmax.xlane.f32.xlu0 %v4627
        %v4629 = vpop.xlane.xlu0 %4628
        %v4630 = vmax.f32 %v1994, %v1996
        %4631 = vmax.xlane.f32.xlu0 %v4630
        %v4632 = vpop.xlane.xlu0 %4631
        %v4633 = vmax.f32 %v2000, %v2002
        %4634 = vmax.xlane.f32.xlu0 %v4633
        %v4635 = vpop.xlane.xlu0 %4634
        %v4636 = vmax.f32 %v2006, %v2008
        %4637 = vmax.xlane.f32.xlu0 %v4636
        %v4638 = vpop.xlane.xlu0 %4637
        %v4639 = vmax.f32 %v2012, %v2014
        %4640 = vmax.xlane.f32.xlu0 %v4639
        %v4641 = vpop.xlane.xlu0 %4640
        %v4642 = vmax.f32 %v2018, %v2020
        %4643 = vmax.xlane.f32.xlu0 %v4642
        %v4644 = vpop.xlane.xlu0 %4643
        %v4645 = vmax.f32 %v2024, %v2026
        %4646 = vmax.xlane.f32.xlu0 %v4645
        %v4647 = vpop.xlane.xlu0 %4646
        %v4648 = vmax.f32 %v2030, %v2032
        %4649 = vmax.xlane.f32.xlu0 %v4648
        %v4650 = vpop.xlane.xlu0 %4649
        %v4651 = vmax.f32 %v2036, %v2038
        %4652 = vmax.xlane.f32.xlu0 %v4651
        %v4653 = vpop.xlane.xlu0 %4652
        %v4654 = vmax.f32 %v2042, %v2044
        %4655 = vmax.xlane.f32.xlu0 %v4654
        %v4656 = vpop.xlane.xlu0 %4655
        %v4657 = vmax.f32 %v2048, %v2050
        %4658 = vmax.xlane.f32.xlu0 %v4657
        %v4659 = vpop.xlane.xlu0 %4658
        %v4660 = vmax.f32 %v2054, %v2056
        %4661 = vmax.xlane.f32.xlu0 %v4660
        %v4662 = vpop.xlane.xlu0 %4661
        %v4663 = vmax.f32 %v2060, %v2062
        %4664 = vmax.xlane.f32.xlu0 %v4663
        %v4665 = vpop.xlane.xlu0 %4664
        %v4666 = vmax.f32 %v2232, %v2234
        %4667 = vmax.xlane.f32.xlu0 %v4666
        %v4668 = vpop.xlane.xlu0 %4667
        %v4669 = vmax.f32 %v2238, %v2240
        %4670 = vmax.xlane.f32.xlu0 %v4669
        %v4671 = vpop.xlane.xlu0 %4670
        %v4672 = vmax.f32 %v2244, %v2246
        %4673 = vmax.xlane.f32.xlu0 %v4672
        %v4674 = vpop.xlane.xlu0 %4673
        %v4675 = vmax.f32 %v2250, %v2252
        %4676 = vmax.xlane.f32.xlu0 %v4675
        %v4677 = vpop.xlane.xlu0 %4676
        %v4678 = vmax.f32 %v2256, %v2258
        %4679 = vmax.xlane.f32.xlu0 %v4678
        %v4680 = vpop.xlane.xlu0 %4679
        %v4681 = vmax.f32 %v2262, %v2264
        %4682 = vmax.xlane.f32.xlu0 %v4681
        %v4683 = vpop.xlane.xlu0 %4682
        %v4684 = vmax.f32 %v2268, %v2270
        %4685 = vmax.xlane.f32.xlu0 %v4684
        %v4686 = vpop.xlane.xlu0 %4685
        %v4687 = vmax.f32 %v2274, %v2276
        %4688 = vmax.xlane.f32.xlu0 %v4687
        %v4689 = vpop.xlane.xlu0 %4688
        %v4690 = vmax.f32 %v2280, %v2282
        %4691 = vmax.xlane.f32.xlu0 %v4690
        %v4692 = vpop.xlane.xlu0 %4691
        %v4693 = vmax.f32 %v2286, %v2288
        %4694 = vmax.xlane.f32.xlu0 %v4693
        %v4695 = vpop.xlane.xlu0 %4694
        %v4696 = vmax.f32 %v2292, %v2294
        %4697 = vmax.xlane.f32.xlu0 %v4696
        %v4698 = vpop.xlane.xlu0 %4697
        %v4699 = vmax.f32 %v2298, %v2300
        %4700 = vmax.xlane.f32.xlu0 %v4699
        %v4701 = vpop.xlane.xlu0 %4700
        %v4702 = vmax.f32 %v2304, %v2306
        %4703 = vmax.xlane.f32.xlu0 %v4702
        %v4704 = vpop.xlane.xlu0 %4703
        %v4705 = vmax.f32 %v2310, %v2312
        %4706 = vmax.xlane.f32.xlu0 %v4705
        %v4707 = vpop.xlane.xlu0 %4706
        %v4708 = vmax.f32 %v2316, %v2318
        %4709 = vmax.xlane.f32.xlu0 %v4708
        %v4710 = vpop.xlane.xlu0 %4709
        %v4711 = vmax.f32 %v2322, %v2324
        %4712 = vmax.xlane.f32.xlu0 %v4711
        %v4713 = vpop.xlane.xlu0 %4712
        %v4714 = vmax.f32 %v2328, %v2330
        %4715 = vmax.xlane.f32.xlu0 %v4714
        %v4716 = vpop.xlane.xlu0 %4715
        %v4717 = vmax.f32 %v2334, %v2336
        %4718 = vmax.xlane.f32.xlu0 %v4717
        %v4719 = vpop.xlane.xlu0 %4718
        %v4720 = vmax.f32 %v2340, %v2342
        %4721 = vmax.xlane.f32.xlu0 %v4720
        %v4722 = vpop.xlane.xlu0 %4721
        %v4723 = vmax.f32 %v2346, %v2348
        %4724 = vmax.xlane.f32.xlu0 %v4723
        %v4725 = vpop.xlane.xlu0 %4724
        %v4726 = vmax.f32 %v2352, %v2354
        %4727 = vmax.xlane.f32.xlu0 %v4726
        %v4728 = vpop.xlane.xlu0 %4727
        %v4729 = vmax.f32 %v2358, %v2360
        %4730 = vmax.xlane.f32.xlu0 %v4729
        %v4731 = vpop.xlane.xlu0 %4730
        %v4732 = vmax.f32 %v2364, %v2366
        %4733 = vmax.xlane.f32.xlu0 %v4732
        %v4734 = vpop.xlane.xlu0 %4733
        %v4735 = vmax.f32 %v2370, %v2372
        %4736 = vmax.xlane.f32.xlu0 %v4735
        %v4737 = vpop.xlane.xlu0 %4736
        %v4738 = vmax.f32 %v2376, %v2378
        %4739 = vmax.xlane.f32.xlu0 %v4738
        %v4740 = vpop.xlane.xlu0 %4739
        %v4741 = vmax.f32 %v2382, %v2384
        %4742 = vmax.xlane.f32.xlu0 %v4741
        %v4743 = vpop.xlane.xlu0 %4742
        %v4744 = vmax.f32 %v2388, %v2390
        %4745 = vmax.xlane.f32.xlu0 %v4744
        %v4746 = vpop.xlane.xlu0 %4745
        %v4747 = vmax.f32 %v2394, %v2396
        %4748 = vmax.xlane.f32.xlu0 %v4747
        %v4749 = vpop.xlane.xlu0 %4748
        %v4750 = vmax.f32 %v2400, %v2402
        %4751 = vmax.xlane.f32.xlu0 %v4750
        %v4752 = vpop.xlane.xlu0 %4751
        %v4753 = vmax.f32 %v2406, %v2408
        %4754 = vmax.xlane.f32.xlu0 %v4753
        %v4755 = vpop.xlane.xlu0 %4754
        %v4756 = vmax.f32 %v2412, %v2414
        %4757 = vmax.xlane.f32.xlu0 %v4756
        %v4758 = vpop.xlane.xlu0 %4757
        %v4759 = vmax.f32 %v2418, %v2420
        %4760 = vmax.xlane.f32.xlu0 %v4759
        %v4761 = vpop.xlane.xlu0 %4760
        %v4762 = vmax.f32 %v2590, %v2592
        %4763 = vmax.xlane.f32.xlu0 %v4762
        %v4764 = vpop.xlane.xlu0 %4763
        %v4765 = vmax.f32 %v2596, %v2598
        %4766 = vmax.xlane.f32.xlu0 %v4765
        %v4767 = vpop.xlane.xlu0 %4766
        %v4768 = vmax.f32 %v2602, %v2604
        %4769 = vmax.xlane.f32.xlu0 %v4768
        %v4770 = vpop.xlane.xlu0 %4769
        %v4771 = vmax.f32 %v2608, %v2610
        %4772 = vmax.xlane.f32.xlu0 %v4771
        %v4773 = vpop.xlane.xlu0 %4772
        %v4774 = vmax.f32 %v2614, %v2616
        %4775 = vmax.xlane.f32.xlu0 %v4774
        %v4776 = vpop.xlane.xlu0 %4775
        %v4777 = vmax.f32 %v2620, %v2622
        %4778 = vmax.xlane.f32.xlu0 %v4777
        %v4779 = vpop.xlane.xlu0 %4778
        %v4780 = vmax.f32 %v2626, %v2628
        %4781 = vmax.xlane.f32.xlu0 %v4780
        %v4782 = vpop.xlane.xlu0 %4781
        %v4783 = vmax.f32 %v2632, %v2634
        %4784 = vmax.xlane.f32.xlu0 %v4783
        %v4785 = vpop.xlane.xlu0 %4784
        %v4786 = vmax.f32 %v2638, %v2640
        %4787 = vmax.xlane.f32.xlu0 %v4786
        %v4788 = vpop.xlane.xlu0 %4787
        %v4789 = vmax.f32 %v2644, %v2646
        %4790 = vmax.xlane.f32.xlu0 %v4789
        %v4791 = vpop.xlane.xlu0 %4790
        %v4792 = vmax.f32 %v2650, %v2652
        %4793 = vmax.xlane.f32.xlu0 %v4792
        %v4794 = vpop.xlane.xlu0 %4793
        %v4795 = vmax.f32 %v2656, %v2658
        %4796 = vmax.xlane.f32.xlu0 %v4795
        %v4797 = vpop.xlane.xlu0 %4796
        %v4798 = vmax.f32 %v2662, %v2664
        %4799 = vmax.xlane.f32.xlu0 %v4798
        %v4800 = vpop.xlane.xlu0 %4799
        %v4801 = vmax.f32 %v2668, %v2670
        %4802 = vmax.xlane.f32.xlu0 %v4801
        %v4803 = vpop.xlane.xlu0 %4802
        %v4804 = vmax.f32 %v2674, %v2676
        %4805 = vmax.xlane.f32.xlu0 %v4804
        %v4806 = vpop.xlane.xlu0 %4805
        %v4807 = vmax.f32 %v2680, %v2682
        %4808 = vmax.xlane.f32.xlu0 %v4807
        %v4809 = vpop.xlane.xlu0 %4808
        %v4810 = vmax.f32 %v2686, %v2688
        %4811 = vmax.xlane.f32.xlu0 %v4810
        %v4812 = vpop.xlane.xlu0 %4811
        %v4813 = vmax.f32 %v2692, %v2694
        %4814 = vmax.xlane.f32.xlu0 %v4813
        %v4815 = vpop.xlane.xlu0 %4814
        %v4816 = vmax.f32 %v2698, %v2700
        %4817 = vmax.xlane.f32.xlu0 %v4816
        %v4818 = vpop.xlane.xlu0 %4817
        %v4819 = vmax.f32 %v2704, %v2706
        %4820 = vmax.xlane.f32.xlu0 %v4819
        %v4821 = vpop.xlane.xlu0 %4820
        %v4822 = vmax.f32 %v2710, %v2712
        %4823 = vmax.xlane.f32.xlu0 %v4822
        %v4824 = vpop.xlane.xlu0 %4823
        %v4825 = vmax.f32 %v2716, %v2718
        %4826 = vmax.xlane.f32.xlu0 %v4825
        %v4827 = vpop.xlane.xlu0 %4826
        %v4828 = vmax.f32 %v2722, %v2724
        %4829 = vmax.xlane.f32.xlu0 %v4828
        %v4830 = vpop.xlane.xlu0 %4829
        %v4831 = vmax.f32 %v2728, %v2730
        %4832 = vmax.xlane.f32.xlu0 %v4831
        %v4833 = vpop.xlane.xlu0 %4832
        %v4834 = vmax.f32 %v2734, %v2736
        %4835 = vmax.xlane.f32.xlu0 %v4834
        %v4836 = vpop.xlane.xlu0 %4835
        %v4837 = vmax.f32 %v2740, %v2742
        %4838 = vmax.xlane.f32.xlu0 %v4837
        %v4839 = vpop.xlane.xlu0 %4838
        %v4840 = vmax.f32 %v2746, %v2748
        %4841 = vmax.xlane.f32.xlu0 %v4840
        %v4842 = vpop.xlane.xlu0 %4841
        %v4843 = vmax.f32 %v2752, %v2754
        %4844 = vmax.xlane.f32.xlu0 %v4843
        %v4845 = vpop.xlane.xlu0 %4844
        %v4846 = vmax.f32 %v2758, %v2760
        %4847 = vmax.xlane.f32.xlu0 %v4846
        %v4848 = vpop.xlane.xlu0 %4847
        %v4849 = vmax.f32 %v2764, %v2766
        %4850 = vmax.xlane.f32.xlu0 %v4849
        %v4851 = vpop.xlane.xlu0 %4850
        %v4852 = vmax.f32 %v2770, %v2772
        %4853 = vmax.xlane.f32.xlu0 %v4852
        %v4854 = vpop.xlane.xlu0 %4853
        %v4855 = vmax.f32 %v2776, %v2778
        %4856 = vmax.xlane.f32.xlu0 %v4855
        %v4857 = vpop.xlane.xlu0 %4856
        %v4858 = vmax.f32 %v2948, %v2950
        %4859 = vmax.xlane.f32.xlu0 %v4858
        %v4860 = vpop.xlane.xlu0 %4859
        %v4861 = vmax.f32 %v2954, %v2956
        %4862 = vmax.xlane.f32.xlu0 %v4861
        %v4863 = vpop.xlane.xlu0 %4862
        %v4864 = vmax.f32 %v2960, %v2962
        %4865 = vmax.xlane.f32.xlu0 %v4864
        %v4866 = vpop.xlane.xlu0 %4865
        %v4867 = vmax.f32 %v2966, %v2968
        %4868 = vmax.xlane.f32.xlu0 %v4867
        %v4869 = vpop.xlane.xlu0 %4868
        %v4870 = vmax.f32 %v2972, %v2974
        %4871 = vmax.xlane.f32.xlu0 %v4870
        %v4872 = vpop.xlane.xlu0 %4871
        %v4873 = vmax.f32 %v2978, %v2980
        %4874 = vmax.xlane.f32.xlu0 %v4873
        %v4875 = vpop.xlane.xlu0 %4874
        %v4876 = vmax.f32 %v2984, %v2986
        %4877 = vmax.xlane.f32.xlu0 %v4876
        %v4878 = vpop.xlane.xlu0 %4877
        %v4879 = vmax.f32 %v2990, %v2992
        %4880 = vmax.xlane.f32.xlu0 %v4879
        %v4881 = vpop.xlane.xlu0 %4880
        %v4882 = vmax.f32 %v2996, %v2998
        %4883 = vmax.xlane.f32.xlu0 %v4882
        %v4884 = vpop.xlane.xlu0 %4883
        %v4885 = vmax.f32 %v3002, %v3004
        %4886 = vmax.xlane.f32.xlu0 %v4885
        %v4887 = vpop.xlane.xlu0 %4886
        %v4888 = vmax.f32 %v3008, %v3010
        %4889 = vmax.xlane.f32.xlu0 %v4888
        %v4890 = vpop.xlane.xlu0 %4889
        %v4891 = vmax.f32 %v3014, %v3016
        %4892 = vmax.xlane.f32.xlu0 %v4891
        %v4893 = vpop.xlane.xlu0 %4892
        %v4894 = vmax.f32 %v3020, %v3022
        %4895 = vmax.xlane.f32.xlu0 %v4894
        %v4896 = vpop.xlane.xlu0 %4895
        %v4897 = vmax.f32 %v3026, %v3028
        %4898 = vmax.xlane.f32.xlu0 %v4897
        %v4899 = vpop.xlane.xlu0 %4898
        %v4900 = vmax.f32 %v3032, %v3034
        %4901 = vmax.xlane.f32.xlu0 %v4900
        %v4902 = vpop.xlane.xlu0 %4901
        %v4903 = vmax.f32 %v3038, %v3040
        %4904 = vmax.xlane.f32.xlu0 %v4903
        %v4905 = vpop.xlane.xlu0 %4904
        %v4906 = vmax.f32 %v3044, %v3046
        %4907 = vmax.xlane.f32.xlu0 %v4906
        %v4908 = vpop.xlane.xlu0 %4907
        %v4909 = vmax.f32 %v3050, %v3052
        %4910 = vmax.xlane.f32.xlu0 %v4909
        %v4911 = vpop.xlane.xlu0 %4910
        %v4912 = vmax.f32 %v3056, %v3058
        %4913 = vmax.xlane.f32.xlu0 %v4912
        %v4914 = vpop.xlane.xlu0 %4913
        %v4915 = vmax.f32 %v3062, %v3064
        %4916 = vmax.xlane.f32.xlu0 %v4915
        %v4917 = vpop.xlane.xlu0 %4916
        %v4918 = vmax.f32 %v3068, %v3070
        %4919 = vmax.xlane.f32.xlu0 %v4918
        %v4920 = vpop.xlane.xlu0 %4919
        %v4921 = vmax.f32 %v3074, %v3076
        %4922 = vmax.xlane.f32.xlu0 %v4921
        %v4923 = vpop.xlane.xlu0 %4922
        %v4924 = vmax.f32 %v3080, %v3082
        %4925 = vmax.xlane.f32.xlu0 %v4924
        %v4926 = vpop.xlane.xlu0 %4925
        %v4927 = vmax.f32 %v3086, %v3088
        %4928 = vmax.xlane.f32.xlu0 %v4927
        %v4929 = vpop.xlane.xlu0 %4928
        %v4930 = vmax.f32 %v3092, %v3094
        %4931 = vmax.xlane.f32.xlu0 %v4930
        %v4932 = vpop.xlane.xlu0 %4931
        %v4933 = vmax.f32 %v3098, %v3100
        %4934 = vmax.xlane.f32.xlu0 %v4933
        %v4935 = vpop.xlane.xlu0 %4934
        %v4936 = vmax.f32 %v3104, %v3106
        %4937 = vmax.xlane.f32.xlu0 %v4936
        %v4938 = vpop.xlane.xlu0 %4937
        %v4939 = vmax.f32 %v3110, %v3112
        %4940 = vmax.xlane.f32.xlu0 %v4939
        %v4941 = vpop.xlane.xlu0 %4940
        %v4942 = vmax.f32 %v3116, %v3118
        %4943 = vmax.xlane.f32.xlu0 %v4942
        %v4944 = vpop.xlane.xlu0 %4943
        %v4945 = vmax.f32 %v3122, %v3124
        %4946 = vmax.xlane.f32.xlu0 %v4945
        %v4947 = vpop.xlane.xlu0 %4946
        %v4948 = vmax.f32 %v3128, %v3130
        %4949 = vmax.xlane.f32.xlu0 %v4948
        %v4950 = vpop.xlane.xlu0 %4949
        %v4951 = vmax.f32 %v3134, %v3136
        %4952 = vmax.xlane.f32.xlu0 %v4951
        %v4953 = vpop.xlane.xlu0 %4952
        %v4954 = vmax.f32 %v3306, %v3308
        %4955 = vmax.xlane.f32.xlu0 %v4954
        %v4956 = vpop.xlane.xlu0 %4955
        %v4957 = vmax.f32 %v3312, %v3314
        %4958 = vmax.xlane.f32.xlu0 %v4957
        %v4959 = vpop.xlane.xlu0 %4958
        %v4960 = vmax.f32 %v3318, %v3320
        %4961 = vmax.xlane.f32.xlu0 %v4960
        %v4962 = vpop.xlane.xlu0 %4961
        %v4963 = vmax.f32 %v3324, %v3326
        %4964 = vmax.xlane.f32.xlu0 %v4963
        %v4965 = vpop.xlane.xlu0 %4964
        %v4966 = vmax.f32 %v3330, %v3332
        %4967 = vmax.xlane.f32.xlu0 %v4966
        %v4968 = vpop.xlane.xlu0 %4967
        %v4969 = vmax.f32 %v3336, %v3338
        %4970 = vmax.xlane.f32.xlu0 %v4969
        %v4971 = vpop.xlane.xlu0 %4970
        %v4972 = vmax.f32 %v3342, %v3344
        %4973 = vmax.xlane.f32.xlu0 %v4972
        %v4974 = vpop.xlane.xlu0 %4973
        %v4975 = vmax.f32 %v3348, %v3350
        %4976 = vmax.xlane.f32.xlu0 %v4975
        %v4977 = vpop.xlane.xlu0 %4976
        %v4978 = vmax.f32 %v3354, %v3356
        %4979 = vmax.xlane.f32.xlu0 %v4978
        %v4980 = vpop.xlane.xlu0 %4979
        %v4981 = vmax.f32 %v3360, %v3362
        %4982 = vmax.xlane.f32.xlu0 %v4981
        %v4983 = vpop.xlane.xlu0 %4982
        %v4984 = vmax.f32 %v3366, %v3368
        %4985 = vmax.xlane.f32.xlu0 %v4984
        %v4986 = vpop.xlane.xlu0 %4985
        %v4987 = vmax.f32 %v3372, %v3374
        %4988 = vmax.xlane.f32.xlu0 %v4987
        %v4989 = vpop.xlane.xlu0 %4988
        %v4990 = vmax.f32 %v3378, %v3380
        %4991 = vmax.xlane.f32.xlu0 %v4990
        %v4992 = vpop.xlane.xlu0 %4991
        %v4993 = vmax.f32 %v3384, %v3386
        %4994 = vmax.xlane.f32.xlu0 %v4993
        %v4995 = vpop.xlane.xlu0 %4994
        %v4996 = vmax.f32 %v3390, %v3392
        %4997 = vmax.xlane.f32.xlu0 %v4996
        %v4998 = vpop.xlane.xlu0 %4997
        %v4999 = vmax.f32 %v3396, %v3398
        %5000 = vmax.xlane.f32.xlu0 %v4999
        %v5001 = vpop.xlane.xlu0 %5000
        %v5002 = vmax.f32 %v3402, %v3404
        %5003 = vmax.xlane.f32.xlu0 %v5002
        %v5004 = vpop.xlane.xlu0 %5003
        %v5005 = vmax.f32 %v3408, %v3410
        %5006 = vmax.xlane.f32.xlu0 %v5005
        %v5007 = vpop.xlane.xlu0 %5006
        %v5008 = vmax.f32 %v3414, %v3416
        %5009 = vmax.xlane.f32.xlu0 %v5008
        %v5010 = vpop.xlane.xlu0 %5009
        %v5011 = vmax.f32 %v3420, %v3422
        %5012 = vmax.xlane.f32.xlu0 %v5011
        %v5013 = vpop.xlane.xlu0 %5012
        %v5014 = vmax.f32 %v3426, %v3428
        %5015 = vmax.xlane.f32.xlu0 %v5014
        %v5016 = vpop.xlane.xlu0 %5015
        %v5017 = vmax.f32 %v3432, %v3434
        %5018 = vmax.xlane.f32.xlu0 %v5017
        %v5019 = vpop.xlane.xlu0 %5018
        %v5020 = vmax.f32 %v3438, %v3440
        %5021 = vmax.xlane.f32.xlu0 %v5020
        %v5022 = vpop.xlane.xlu0 %5021
        %v5023 = vmax.f32 %v3444, %v3446
        %5024 = vmax.xlane.f32.xlu0 %v5023
        %v5025 = vpop.xlane.xlu0 %5024
        %v5026 = vmax.f32 %v3450, %v3452
        %5027 = vmax.xlane.f32.xlu0 %v5026
        %v5028 = vpop.xlane.xlu0 %5027
        %v5029 = vmax.f32 %v3456, %v3458
        %5030 = vmax.xlane.f32.xlu0 %v5029
        %v5031 = vpop.xlane.xlu0 %5030
        %v5032 = vmax.f32 %v3462, %v3464
        %5033 = vmax.xlane.f32.xlu0 %v5032
        %v5034 = vpop.xlane.xlu0 %5033
        %v5035 = vmax.f32 %v3468, %v3470
        %5036 = vmax.xlane.f32.xlu0 %v5035
        %v5037 = vpop.xlane.xlu0 %5036
        %v5038 = vmax.f32 %v3474, %v3476
        %5039 = vmax.xlane.f32.xlu0 %v5038
        %v5040 = vpop.xlane.xlu0 %5039
        %v5041 = vmax.f32 %v3480, %v3482
        %5042 = vmax.xlane.f32.xlu0 %v5041
        %v5043 = vpop.xlane.xlu0 %5042
        %v5044 = vmax.f32 %v3486, %v3488
        %5045 = vmax.xlane.f32.xlu0 %v5044
        %v5046 = vpop.xlane.xlu0 %5045
        %v5047 = vmax.f32 %v3492, %v3494
        %5048 = vmax.xlane.f32.xlu0 %v5047
        %v5049 = vpop.xlane.xlu0 %5048
        %v5050 = vmax.f32 %v3664, %v3666
        %5051 = vmax.xlane.f32.xlu0 %v5050
        %v5052 = vpop.xlane.xlu0 %5051
        %v5053 = vmax.f32 %v3670, %v3672
        %5054 = vmax.xlane.f32.xlu0 %v5053
        %v5055 = vpop.xlane.xlu0 %5054
        %v5056 = vmax.f32 %v3676, %v3678
        %5057 = vmax.xlane.f32.xlu0 %v5056
        %v5058 = vpop.xlane.xlu0 %5057
        %v5059 = vmax.f32 %v3682, %v3684
        %5060 = vmax.xlane.f32.xlu0 %v5059
        %v5061 = vpop.xlane.xlu0 %5060
        %v5062 = vmax.f32 %v3688, %v3690
        %5063 = vmax.xlane.f32.xlu0 %v5062
        %v5064 = vpop.xlane.xlu0 %5063
        %v5065 = vmax.f32 %v3694, %v3696
        %5066 = vmax.xlane.f32.xlu0 %v5065
        %v5067 = vpop.xlane.xlu0 %5066
        %v5068 = vmax.f32 %v3700, %v3702
        %5069 = vmax.xlane.f32.xlu0 %v5068
        %v5070 = vpop.xlane.xlu0 %5069
        %v5071 = vmax.f32 %v3706, %v3708
        %5072 = vmax.xlane.f32.xlu0 %v5071
        %v5073 = vpop.xlane.xlu0 %5072
        %v5074 = vmax.f32 %v3712, %v3714
        %5075 = vmax.xlane.f32.xlu0 %v5074
        %v5076 = vpop.xlane.xlu0 %5075
        %v5077 = vmax.f32 %v3718, %v3720
        %5078 = vmax.xlane.f32.xlu0 %v5077
        %v5079 = vpop.xlane.xlu0 %5078
        %v5080 = vmax.f32 %v3724, %v3726
        %5081 = vmax.xlane.f32.xlu0 %v5080
        %v5082 = vpop.xlane.xlu0 %5081
        %v5083 = vmax.f32 %v3730, %v3732
        %5084 = vmax.xlane.f32.xlu0 %v5083
        %v5085 = vpop.xlane.xlu0 %5084
        %v5086 = vmax.f32 %v3736, %v3738
        %5087 = vmax.xlane.f32.xlu0 %v5086
        %v5088 = vpop.xlane.xlu0 %5087
        %v5089 = vmax.f32 %v3742, %v3744
        %5090 = vmax.xlane.f32.xlu0 %v5089
        %v5091 = vpop.xlane.xlu0 %5090
        %v5092 = vmax.f32 %v3748, %v3750
        %5093 = vmax.xlane.f32.xlu0 %v5092
        %v5094 = vpop.xlane.xlu0 %5093
        %v5095 = vmax.f32 %v3754, %v3756
        %5096 = vmax.xlane.f32.xlu0 %v5095
        %v5097 = vpop.xlane.xlu0 %5096
        %v5098 = vmax.f32 %v3760, %v3762
        %5099 = vmax.xlane.f32.xlu0 %v5098
        %v5100 = vpop.xlane.xlu0 %5099
        %v5101 = vmax.f32 %v3766, %v3768
        %5102 = vmax.xlane.f32.xlu0 %v5101
        %v5103 = vpop.xlane.xlu0 %5102
        %v5104 = vmax.f32 %v3772, %v3774
        %5105 = vmax.xlane.f32.xlu0 %v5104
        %v5106 = vpop.xlane.xlu0 %5105
        %v5107 = vmax.f32 %v3778, %v3780
        %5108 = vmax.xlane.f32.xlu0 %v5107
        %v5109 = vpop.xlane.xlu0 %5108
        %v5110 = vmax.f32 %v3784, %v3786
        %5111 = vmax.xlane.f32.xlu0 %v5110
        %v5112 = vpop.xlane.xlu0 %5111
        %v5113 = vmax.f32 %v3790, %v3792
        %5114 = vmax.xlane.f32.xlu0 %v5113
        %v5115 = vpop.xlane.xlu0 %5114
        %v5116 = vmax.f32 %v3796, %v3798
        %5117 = vmax.xlane.f32.xlu0 %v5116
        %v5118 = vpop.xlane.xlu0 %5117
        %v5119 = vmax.f32 %v3802, %v3804
        %5120 = vmax.xlane.f32.xlu0 %v5119
        %v5121 = vpop.xlane.xlu0 %5120
        %v5122 = vmax.f32 %v3808, %v3810
        %5123 = vmax.xlane.f32.xlu0 %v5122
        %v5124 = vpop.xlane.xlu0 %5123
        %v5125 = vmax.f32 %v3814, %v3816
        %5126 = vmax.xlane.f32.xlu0 %v5125
        %v5127 = vpop.xlane.xlu0 %5126
        %v5128 = vmax.f32 %v3820, %v3822
        %5129 = vmax.xlane.f32.xlu0 %v5128
        %v5130 = vpop.xlane.xlu0 %5129
        %v5131 = vmax.f32 %v3826, %v3828
        %5132 = vmax.xlane.f32.xlu0 %v5131
        %v5133 = vpop.xlane.xlu0 %5132
        %v5134 = vmax.f32 %v3832, %v3834
        %5135 = vmax.xlane.f32.xlu0 %v5134
        %v5136 = vpop.xlane.xlu0 %5135
        %v5137 = vmax.f32 %v3838, %v3840
        %5138 = vmax.xlane.f32.xlu0 %v5137
        %v5139 = vpop.xlane.xlu0 %5138
        %v5140 = vmax.f32 %v3844, %v3846
        %5141 = vmax.xlane.f32.xlu0 %v5140
        %v5142 = vpop.xlane.xlu0 %5141
        %v5143 = vmax.f32 %v3850, %v3852
        %5144 = vmax.xlane.f32.xlu0 %v5143
        %v5145 = vpop.xlane.xlu0 %5144
        %v5146 = vmax.f32 %v4022, %v4024
        %5147 = vmax.xlane.f32.xlu0 %v5146
        %v5148 = vpop.xlane.xlu0 %5147
        %v5149 = vmax.f32 %v4028, %v4030
        %5150 = vmax.xlane.f32.xlu0 %v5149
        %v5151 = vpop.xlane.xlu0 %5150
        %v5152 = vmax.f32 %v4034, %v4036
        %5153 = vmax.xlane.f32.xlu0 %v5152
        %v5154 = vpop.xlane.xlu0 %5153
        %v5155 = vmax.f32 %v4040, %v4042
        %5156 = vmax.xlane.f32.xlu0 %v5155
        %v5157 = vpop.xlane.xlu0 %5156
        %v5158 = vmax.f32 %v4046, %v4048
        %5159 = vmax.xlane.f32.xlu0 %v5158
        %v5160 = vpop.xlane.xlu0 %5159
        %v5161 = vmax.f32 %v4052, %v4054
        %5162 = vmax.xlane.f32.xlu0 %v5161
        %v5163 = vpop.xlane.xlu0 %5162
        %v5164 = vmax.f32 %v4058, %v4060
        %5165 = vmax.xlane.f32.xlu0 %v5164
        %v5166 = vpop.xlane.xlu0 %5165
        %v5167 = vmax.f32 %v4064, %v4066
        %5168 = vmax.xlane.f32.xlu0 %v5167
        %v5169 = vpop.xlane.xlu0 %5168
        %v5170 = vmax.f32 %v4070, %v4072
        %5171 = vmax.xlane.f32.xlu0 %v5170
        %v5172 = vpop.xlane.xlu0 %5171
        %v5173 = vmax.f32 %v4076, %v4078
        %5174 = vmax.xlane.f32.xlu0 %v5173
        %v5175 = vpop.xlane.xlu0 %5174
        %v5176 = vmax.f32 %v4082, %v4084
        %5177 = vmax.xlane.f32.xlu0 %v5176
        %v5178 = vpop.xlane.xlu0 %5177
        %v5179 = vmax.f32 %v4088, %v4090
        %5180 = vmax.xlane.f32.xlu0 %v5179
        %v5181 = vpop.xlane.xlu0 %5180
        %v5182 = vmax.f32 %v4094, %v4096
        %5183 = vmax.xlane.f32.xlu0 %v5182
        %v5184 = vpop.xlane.xlu0 %5183
        %v5185 = vmax.f32 %v4100, %v4102
        %5186 = vmax.xlane.f32.xlu0 %v5185
        %v5187 = vpop.xlane.xlu0 %5186
        %v5188 = vmax.f32 %v4106, %v4108
        %5189 = vmax.xlane.f32.xlu0 %v5188
        %v5190 = vpop.xlane.xlu0 %5189
        %v5191 = vmax.f32 %v4112, %v4114
        %5192 = vmax.xlane.f32.xlu0 %v5191
        %v5193 = vpop.xlane.xlu0 %5192
        %v5194 = vmax.f32 %v4118, %v4120
        %5195 = vmax.xlane.f32.xlu0 %v5194
        %v5196 = vpop.xlane.xlu0 %5195
        %v5197 = vmax.f32 %v4124, %v4126
        %5198 = vmax.xlane.f32.xlu0 %v5197
        %v5199 = vpop.xlane.xlu0 %5198
        %v5200 = vmax.f32 %v4130, %v4132
        %5201 = vmax.xlane.f32.xlu0 %v5200
        %v5202 = vpop.xlane.xlu0 %5201
        %v5203 = vmax.f32 %v4136, %v4138
        %5204 = vmax.xlane.f32.xlu0 %v5203
        %v5205 = vpop.xlane.xlu0 %5204
        %v5206 = vmax.f32 %v4142, %v4144
        %5207 = vmax.xlane.f32.xlu0 %v5206
        %v5208 = vpop.xlane.xlu0 %5207
        %v5209 = vmax.f32 %v4148, %v4150
        %5210 = vmax.xlane.f32.xlu0 %v5209
        %v5211 = vpop.xlane.xlu0 %5210
        %v5212 = vmax.f32 %v4154, %v4156
        %5213 = vmax.xlane.f32.xlu0 %v5212
        %v5214 = vpop.xlane.xlu0 %5213
        %v5215 = vmax.f32 %v4160, %v4162
        %5216 = vmax.xlane.f32.xlu0 %v5215
        %v5217 = vpop.xlane.xlu0 %5216
        %v5218 = vmax.f32 %v4166, %v4168
        %5219 = vmax.xlane.f32.xlu0 %v5218
        %v5220 = vpop.xlane.xlu0 %5219
        %v5221 = vmax.f32 %v4172, %v4174
        %5222 = vmax.xlane.f32.xlu0 %v5221
        %v5223 = vpop.xlane.xlu0 %5222
        %v5224 = vmax.f32 %v4178, %v4180
        %5225 = vmax.xlane.f32.xlu0 %v5224
        %v5226 = vpop.xlane.xlu0 %5225
        %v5227 = vmax.f32 %v4184, %v4186
        %5228 = vmax.xlane.f32.xlu0 %v5227
        %v5229 = vpop.xlane.xlu0 %5228
        %v5230 = vmax.f32 %v4190, %v4192
        %5231 = vmax.xlane.f32.xlu0 %v5230
        %v5232 = vpop.xlane.xlu0 %5231
        %v5233 = vmax.f32 %v4196, %v4198
        %5234 = vmax.xlane.f32.xlu0 %v5233
        %v5235 = vpop.xlane.xlu0 %5234
        %v5236 = vmax.f32 %v4202, %v4204
        %5237 = vmax.xlane.f32.xlu0 %v5236
        %v5238 = vpop.xlane.xlu0 %5237
        %v5239 = vmax.f32 %v4208, %v4210
        %5240 = vmax.xlane.f32.xlu0 %v5239
        %v5241 = vpop.xlane.xlu0 %5240
        %v5242 = vmax.f32 %v4380, %v4382
        %5243 = vmax.xlane.f32.xlu0 %v5242
        %v5244 = vpop.xlane.xlu0 %5243
        %v5245 = vmax.f32 %v4386, %v4388
        %5246 = vmax.xlane.f32.xlu0 %v5245
        %v5247 = vpop.xlane.xlu0 %5246
        %v5248 = vmax.f32 %v4392, %v4394
        %5249 = vmax.xlane.f32.xlu0 %v5248
        %v5250 = vpop.xlane.xlu0 %5249
        %v5251 = vmax.f32 %v4398, %v4400
        %5252 = vmax.xlane.f32.xlu0 %v5251
        %v5253 = vpop.xlane.xlu0 %5252
        %v5254 = vmax.f32 %v4404, %v4406
        %5255 = vmax.xlane.f32.xlu0 %v5254
        %v5256 = vpop.xlane.xlu0 %5255
        %v5257 = vmax.f32 %v4410, %v4412
        %5258 = vmax.xlane.f32.xlu0 %v5257
        %v5259 = vpop.xlane.xlu0 %5258
        %v5260 = vmax.f32 %v4416, %v4418
        %5261 = vmax.xlane.f32.xlu0 %v5260
        %v5262 = vpop.xlane.xlu0 %5261
        %v5263 = vmax.f32 %v4422, %v4424
        %5264 = vmax.xlane.f32.xlu0 %v5263
        %v5265 = vpop.xlane.xlu0 %5264
        %v5266 = vmax.f32 %v4428, %v4430
        %5267 = vmax.xlane.f32.xlu0 %v5266
        %v5268 = vpop.xlane.xlu0 %5267
        %v5269 = vmax.f32 %v4434, %v4436
        %5270 = vmax.xlane.f32.xlu0 %v5269
        %v5271 = vpop.xlane.xlu0 %5270
        %v5272 = vmax.f32 %v4440, %v4442
        %5273 = vmax.xlane.f32.xlu0 %v5272
        %v5274 = vpop.xlane.xlu0 %5273
        %v5275 = vmax.f32 %v4446, %v4448
        %5276 = vmax.xlane.f32.xlu0 %v5275
        %v5277 = vpop.xlane.xlu0 %5276
        %v5278 = vmax.f32 %v4452, %v4454
        %5279 = vmax.xlane.f32.xlu0 %v5278
        %v5280 = vpop.xlane.xlu0 %5279
        %v5281 = vmax.f32 %v4458, %v4460
        %5282 = vmax.xlane.f32.xlu0 %v5281
        %v5283 = vpop.xlane.xlu0 %5282
        %v5284 = vmax.f32 %v4464, %v4466
        %5285 = vmax.xlane.f32.xlu0 %v5284
        %v5286 = vpop.xlane.xlu0 %5285
        %v5287 = vmax.f32 %v4470, %v4472
        %5288 = vmax.xlane.f32.xlu0 %v5287
        %v5289 = vpop.xlane.xlu0 %5288
        %v5290 = vmax.f32 %v4476, %v4478
        %5291 = vmax.xlane.f32.xlu0 %v5290
        %v5292 = vpop.xlane.xlu0 %5291
        %v5293 = vmax.f32 %v4482, %v4484
        %5294 = vmax.xlane.f32.xlu0 %v5293
        %v5295 = vpop.xlane.xlu0 %5294
        %v5296 = vmax.f32 %v4488, %v4490
        %5297 = vmax.xlane.f32.xlu0 %v5296
        %v5298 = vpop.xlane.xlu0 %5297
        %v5299 = vmax.f32 %v4494, %v4496
        %5300 = vmax.xlane.f32.xlu0 %v5299
        %v5301 = vpop.xlane.xlu0 %5300
        %v5302 = vmax.f32 %v4500, %v4502
        %5303 = vmax.xlane.f32.xlu0 %v5302
        %v5304 = vpop.xlane.xlu0 %5303
        %v5305 = vmax.f32 %v4506, %v4508
        %5306 = vmax.xlane.f32.xlu0 %v5305
        %v5307 = vpop.xlane.xlu0 %5306
        %v5308 = vmax.f32 %v4512, %v4514
        %5309 = vmax.xlane.f32.xlu0 %v5308
        %v5310 = vpop.xlane.xlu0 %5309
        %v5311 = vmax.f32 %v4518, %v4520
        %5312 = vmax.xlane.f32.xlu0 %v5311
        %v5313 = vpop.xlane.xlu0 %5312
        %v5314 = vmax.f32 %v4524, %v4526
        %5315 = vmax.xlane.f32.xlu0 %v5314
        %v5316 = vpop.xlane.xlu0 %5315
        %v5317 = vmax.f32 %v4530, %v4532
        %5318 = vmax.xlane.f32.xlu0 %v5317
        %v5319 = vpop.xlane.xlu0 %5318
        %v5320 = vmax.f32 %v4536, %v4538
        %5321 = vmax.xlane.f32.xlu0 %v5320
        %v5322 = vpop.xlane.xlu0 %5321
        %v5323 = vmax.f32 %v4542, %v4544
        %5324 = vmax.xlane.f32.xlu0 %v5323
        %v5325 = vpop.xlane.xlu0 %5324
        %v5326 = vmax.f32 %v4548, %v4550
        %5327 = vmax.xlane.f32.xlu0 %v5326
        %v5328 = vpop.xlane.xlu0 %5327
        %v5329 = vmax.f32 %v4554, %v4556
        %5330 = vmax.xlane.f32.xlu0 %v5329
        %v5331 = vpop.xlane.xlu0 %5330
        %v5332 = vmax.f32 %v4560, %v4562
        %5333 = vmax.xlane.f32.xlu0 %v5332
        %v5334 = vpop.xlane.xlu0 %5333
        %v5335 = vmax.f32 %v4566, %v4568
        %5336 = vmax.xlane.f32.xlu0 %v5335
        %v5337 = vpop.xlane.xlu0 %5336
        %v5338 = vsub.f32 %v1874, %v4572
        %v5339 = vsub.f32 %v1876, %v4572
        %v5340 = vsub.f32 %v1880, %v4575
        %v5341 = vsub.f32 %v1882, %v4575
        %v5342 = vsub.f32 %v1886, %v4578
        %v5343 = vsub.f32 %v1888, %v4578
        %v5344 = vsub.f32 %v1892, %v4581
        %v5345 = vsub.f32 %v1894, %v4581
        %v5346 = vsub.f32 %v1898, %v4584
        %v5347 = vsub.f32 %v1900, %v4584
        %v5348 = vsub.f32 %v1904, %v4587
        %v5349 = vsub.f32 %v1906, %v4587
        %v5350 = vsub.f32 %v1910, %v4590
        %v5351 = vsub.f32 %v1912, %v4590
        %v5352 = vsub.f32 %v1916, %v4593
        %v5353 = vsub.f32 %v1918, %v4593
        %v5354 = vsub.f32 %v1922, %v4596
        %v5355 = vsub.f32 %v1924, %v4596
        %v5356 = vsub.f32 %v1928, %v4599
        %v5357 = vsub.f32 %v1930, %v4599
        %v5358 = vsub.f32 %v1934, %v4602
        %v5359 = vsub.f32 %v1936, %v4602
        %v5360 = vsub.f32 %v1940, %v4605
        %v5361 = vsub.f32 %v1942, %v4605
        %v5362 = vsub.f32 %v1946, %v4608
        %v5363 = vsub.f32 %v1948, %v4608
        %v5364 = vsub.f32 %v1952, %v4611
        %v5365 = vsub.f32 %v1954, %v4611
        %v5366 = vsub.f32 %v1958, %v4614
        %v5367 = vsub.f32 %v1960, %v4614
        %v5368 = vsub.f32 %v1964, %v4617
        %v5369 = vsub.f32 %v1966, %v4617
        %v5370 = vsub.f32 %v1970, %v4620
        %v5371 = vsub.f32 %v1972, %v4620
        %v5372 = vsub.f32 %v1976, %v4623
        %v5373 = vsub.f32 %v1978, %v4623
        %v5374 = vsub.f32 %v1982, %v4626
        %v5375 = vsub.f32 %v1984, %v4626
        %v5376 = vsub.f32 %v1988, %v4629
        %v5377 = vsub.f32 %v1990, %v4629
        %v5378 = vsub.f32 %v1994, %v4632
        %v5379 = vsub.f32 %v1996, %v4632
        %v5380 = vsub.f32 %v2000, %v4635
        %v5381 = vsub.f32 %v2002, %v4635
        %v5382 = vsub.f32 %v2006, %v4638
        %v5383 = vsub.f32 %v2008, %v4638
        %v5384 = vsub.f32 %v2012, %v4641
        %v5385 = vsub.f32 %v2014, %v4641
        %v5386 = vsub.f32 %v2018, %v4644
        %v5387 = vsub.f32 %v2020, %v4644
        %v5388 = vsub.f32 %v2024, %v4647
        %v5389 = vsub.f32 %v2026, %v4647
        %v5390 = vsub.f32 %v2030, %v4650
        %v5391 = vsub.f32 %v2032, %v4650
        %v5392 = vsub.f32 %v2036, %v4653
        %v5393 = vsub.f32 %v2038, %v4653
        %v5394 = vsub.f32 %v2042, %v4656
        %v5395 = vsub.f32 %v2044, %v4656
        %v5396 = vsub.f32 %v2048, %v4659
        %v5397 = vsub.f32 %v2050, %v4659
        %v5398 = vsub.f32 %v2054, %v4662
        %v5399 = vsub.f32 %v2056, %v4662
        %v5400 = vsub.f32 %v2060, %v4665
        %v5401 = vsub.f32 %v2062, %v4665
        %v5402 = vsub.f32 %v2232, %v4668
        %v5403 = vsub.f32 %v2234, %v4668
        %v5404 = vsub.f32 %v2238, %v4671
        %v5405 = vsub.f32 %v2240, %v4671
        %v5406 = vsub.f32 %v2244, %v4674
        %v5407 = vsub.f32 %v2246, %v4674
        %v5408 = vsub.f32 %v2250, %v4677
        %v5409 = vsub.f32 %v2252, %v4677
        %v5410 = vsub.f32 %v2256, %v4680
        %v5411 = vsub.f32 %v2258, %v4680
        %v5412 = vsub.f32 %v2262, %v4683
        %v5413 = vsub.f32 %v2264, %v4683
        %v5414 = vsub.f32 %v2268, %v4686
        %v5415 = vsub.f32 %v2270, %v4686
        %v5416 = vsub.f32 %v2274, %v4689
        %v5417 = vsub.f32 %v2276, %v4689
        %v5418 = vsub.f32 %v2280, %v4692
        %v5419 = vsub.f32 %v2282, %v4692
        %v5420 = vsub.f32 %v2286, %v4695
        %v5421 = vsub.f32 %v2288, %v4695
        %v5422 = vsub.f32 %v2292, %v4698
        %v5423 = vsub.f32 %v2294, %v4698
        %v5424 = vsub.f32 %v2298, %v4701
        %v5425 = vsub.f32 %v2300, %v4701
        %v5426 = vsub.f32 %v2304, %v4704
        %v5427 = vsub.f32 %v2306, %v4704
        %v5428 = vsub.f32 %v2310, %v4707
        %v5429 = vsub.f32 %v2312, %v4707
        %v5430 = vsub.f32 %v2316, %v4710
        %v5431 = vsub.f32 %v2318, %v4710
        %v5432 = vsub.f32 %v2322, %v4713
        %v5433 = vsub.f32 %v2324, %v4713
        %v5434 = vsub.f32 %v2328, %v4716
        %v5435 = vsub.f32 %v2330, %v4716
        %v5436 = vsub.f32 %v2334, %v4719
        %v5437 = vsub.f32 %v2336, %v4719
        %v5438 = vsub.f32 %v2340, %v4722
        %v5439 = vsub.f32 %v2342, %v4722
        %v5440 = vsub.f32 %v2346, %v4725
        %v5441 = vsub.f32 %v2348, %v4725
        %v5442 = vsub.f32 %v2352, %v4728
        %v5443 = vsub.f32 %v2354, %v4728
        %v5444 = vsub.f32 %v2358, %v4731
        %v5445 = vsub.f32 %v2360, %v4731
        %v5446 = vsub.f32 %v2364, %v4734
        %v5447 = vsub.f32 %v2366, %v4734
        %v5448 = vsub.f32 %v2370, %v4737
        %v5449 = vsub.f32 %v2372, %v4737
        %v5450 = vsub.f32 %v2376, %v4740
        %v5451 = vsub.f32 %v2378, %v4740
        %v5452 = vsub.f32 %v2382, %v4743
        %v5453 = vsub.f32 %v2384, %v4743
        %v5454 = vsub.f32 %v2388, %v4746
        %v5455 = vsub.f32 %v2390, %v4746
        %v5456 = vsub.f32 %v2394, %v4749
        %v5457 = vsub.f32 %v2396, %v4749
        %v5458 = vsub.f32 %v2400, %v4752
        %v5459 = vsub.f32 %v2402, %v4752
        %v5460 = vsub.f32 %v2406, %v4755
        %v5461 = vsub.f32 %v2408, %v4755
        %v5462 = vsub.f32 %v2412, %v4758
        %v5463 = vsub.f32 %v2414, %v4758
        %v5464 = vsub.f32 %v2418, %v4761
        %v5465 = vsub.f32 %v2420, %v4761
        %v5466 = vsub.f32 %v2590, %v4764
        %v5467 = vsub.f32 %v2592, %v4764
        %v5468 = vsub.f32 %v2596, %v4767
        %v5469 = vsub.f32 %v2598, %v4767
        %v5470 = vsub.f32 %v2602, %v4770
        %v5471 = vsub.f32 %v2604, %v4770
        %v5472 = vsub.f32 %v2608, %v4773
        %v5473 = vsub.f32 %v2610, %v4773
        %v5474 = vsub.f32 %v2614, %v4776
        %v5475 = vsub.f32 %v2616, %v4776
        %v5476 = vsub.f32 %v2620, %v4779
        %v5477 = vsub.f32 %v2622, %v4779
        %v5478 = vsub.f32 %v2626, %v4782
        %v5479 = vsub.f32 %v2628, %v4782
        %v5480 = vsub.f32 %v2632, %v4785
        %v5481 = vsub.f32 %v2634, %v4785
        %v5482 = vsub.f32 %v2638, %v4788
        %v5483 = vsub.f32 %v2640, %v4788
        %v5484 = vsub.f32 %v2644, %v4791
        %v5485 = vsub.f32 %v2646, %v4791
        %v5486 = vsub.f32 %v2650, %v4794
        %v5487 = vsub.f32 %v2652, %v4794
        %v5488 = vsub.f32 %v2656, %v4797
        %v5489 = vsub.f32 %v2658, %v4797
        %v5490 = vsub.f32 %v2662, %v4800
        %v5491 = vsub.f32 %v2664, %v4800
        %v5492 = vsub.f32 %v2668, %v4803
        %v5493 = vsub.f32 %v2670, %v4803
        %v5494 = vsub.f32 %v2674, %v4806
        %v5495 = vsub.f32 %v2676, %v4806
        %v5496 = vsub.f32 %v2680, %v4809
        %v5497 = vsub.f32 %v2682, %v4809
        %v5498 = vsub.f32 %v2686, %v4812
        %v5499 = vsub.f32 %v2688, %v4812
        %v5500 = vsub.f32 %v2692, %v4815
        %v5501 = vsub.f32 %v2694, %v4815
        %v5502 = vsub.f32 %v2698, %v4818
        %v5503 = vsub.f32 %v2700, %v4818
        %v5504 = vsub.f32 %v2704, %v4821
        %v5505 = vsub.f32 %v2706, %v4821
        %v5506 = vsub.f32 %v2710, %v4824
        %v5507 = vsub.f32 %v2712, %v4824
        %v5508 = vsub.f32 %v2716, %v4827
        %v5509 = vsub.f32 %v2718, %v4827
        %v5510 = vsub.f32 %v2722, %v4830
        %v5511 = vsub.f32 %v2724, %v4830
        %v5512 = vsub.f32 %v2728, %v4833
        %v5513 = vsub.f32 %v2730, %v4833
        %v5514 = vsub.f32 %v2734, %v4836
        %v5515 = vsub.f32 %v2736, %v4836
        %v5516 = vsub.f32 %v2740, %v4839
        %v5517 = vsub.f32 %v2742, %v4839
        %v5518 = vsub.f32 %v2746, %v4842
        %v5519 = vsub.f32 %v2748, %v4842
        %v5520 = vsub.f32 %v2752, %v4845
        %v5521 = vsub.f32 %v2754, %v4845
        %v5522 = vsub.f32 %v2758, %v4848
        %v5523 = vsub.f32 %v2760, %v4848
        %v5524 = vsub.f32 %v2764, %v4851
        %v5525 = vsub.f32 %v2766, %v4851
        %v5526 = vsub.f32 %v2770, %v4854
        %v5527 = vsub.f32 %v2772, %v4854
        %v5528 = vsub.f32 %v2776, %v4857
        %v5529 = vsub.f32 %v2778, %v4857
        %v5530 = vsub.f32 %v2948, %v4860
        %v5531 = vsub.f32 %v2950, %v4860
        %v5532 = vsub.f32 %v2954, %v4863
        %v5533 = vsub.f32 %v2956, %v4863
        %v5534 = vsub.f32 %v2960, %v4866
        %v5535 = vsub.f32 %v2962, %v4866
        %v5536 = vsub.f32 %v2966, %v4869
        %v5537 = vsub.f32 %v2968, %v4869
        %v5538 = vsub.f32 %v2972, %v4872
        %v5539 = vsub.f32 %v2974, %v4872
        %v5540 = vsub.f32 %v2978, %v4875
        %v5541 = vsub.f32 %v2980, %v4875
        %v5542 = vsub.f32 %v2984, %v4878
        %v5543 = vsub.f32 %v2986, %v4878
        %v5544 = vsub.f32 %v2990, %v4881
        %v5545 = vsub.f32 %v2992, %v4881
        %v5546 = vsub.f32 %v2996, %v4884
        %v5547 = vsub.f32 %v2998, %v4884
        %v5548 = vsub.f32 %v3002, %v4887
        %v5549 = vsub.f32 %v3004, %v4887
        %v5550 = vsub.f32 %v3008, %v4890
        %v5551 = vsub.f32 %v3010, %v4890
        %v5552 = vsub.f32 %v3014, %v4893
        %v5553 = vsub.f32 %v3016, %v4893
        %v5554 = vsub.f32 %v3020, %v4896
        %v5555 = vsub.f32 %v3022, %v4896
        %v5556 = vsub.f32 %v3026, %v4899
        %v5557 = vsub.f32 %v3028, %v4899
        %v5558 = vsub.f32 %v3032, %v4902
        %v5559 = vsub.f32 %v3034, %v4902
        %v5560 = vsub.f32 %v3038, %v4905
        %v5561 = vsub.f32 %v3040, %v4905
        %v5562 = vsub.f32 %v3044, %v4908
        %v5563 = vsub.f32 %v3046, %v4908
        %v5564 = vsub.f32 %v3050, %v4911
        %v5565 = vsub.f32 %v3052, %v4911
        %v5566 = vsub.f32 %v3056, %v4914
        %v5567 = vsub.f32 %v3058, %v4914
        %v5568 = vsub.f32 %v3062, %v4917
        %v5569 = vsub.f32 %v3064, %v4917
        %v5570 = vsub.f32 %v3068, %v4920
        %v5571 = vsub.f32 %v3070, %v4920
        %v5572 = vsub.f32 %v3074, %v4923
        %v5573 = vsub.f32 %v3076, %v4923
        %v5574 = vsub.f32 %v3080, %v4926
        %v5575 = vsub.f32 %v3082, %v4926
        %v5576 = vsub.f32 %v3086, %v4929
        %v5577 = vsub.f32 %v3088, %v4929
        %v5578 = vsub.f32 %v3092, %v4932
        %v5579 = vsub.f32 %v3094, %v4932
        %v5580 = vsub.f32 %v3098, %v4935
        %v5581 = vsub.f32 %v3100, %v4935
        %v5582 = vsub.f32 %v3104, %v4938
        %v5583 = vsub.f32 %v3106, %v4938
        %v5584 = vsub.f32 %v3110, %v4941
        %v5585 = vsub.f32 %v3112, %v4941
        %v5586 = vsub.f32 %v3116, %v4944
        %v5587 = vsub.f32 %v3118, %v4944
        %v5588 = vsub.f32 %v3122, %v4947
        %v5589 = vsub.f32 %v3124, %v4947
        %v5590 = vsub.f32 %v3128, %v4950
        %v5591 = vsub.f32 %v3130, %v4950
        %v5592 = vsub.f32 %v3134, %v4953
        %v5593 = vsub.f32 %v3136, %v4953
        %v5594 = vsub.f32 %v3306, %v4956
        %v5595 = vsub.f32 %v3308, %v4956
        %v5596 = vsub.f32 %v3312, %v4959
        %v5597 = vsub.f32 %v3314, %v4959
        %v5598 = vsub.f32 %v3318, %v4962
        %v5599 = vsub.f32 %v3320, %v4962
        %v5600 = vsub.f32 %v3324, %v4965
        %v5601 = vsub.f32 %v3326, %v4965
        %v5602 = vsub.f32 %v3330, %v4968
        %v5603 = vsub.f32 %v3332, %v4968
        %v5604 = vsub.f32 %v3336, %v4971
        %v5605 = vsub.f32 %v3338, %v4971
        %v5606 = vsub.f32 %v3342, %v4974
        %v5607 = vsub.f32 %v3344, %v4974
        %v5608 = vsub.f32 %v3348, %v4977
        %v5609 = vsub.f32 %v3350, %v4977
        %v5610 = vsub.f32 %v3354, %v4980
        %v5611 = vsub.f32 %v3356, %v4980
        %v5612 = vsub.f32 %v3360, %v4983
        %v5613 = vsub.f32 %v3362, %v4983
        %v5614 = vsub.f32 %v3366, %v4986
        %v5615 = vsub.f32 %v3368, %v4986
        %v5616 = vsub.f32 %v3372, %v4989
        %v5617 = vsub.f32 %v3374, %v4989
        %v5618 = vsub.f32 %v3378, %v4992
        %v5619 = vsub.f32 %v3380, %v4992
        %v5620 = vsub.f32 %v3384, %v4995
        %v5621 = vsub.f32 %v3386, %v4995
        %v5622 = vsub.f32 %v3390, %v4998
        %v5623 = vsub.f32 %v3392, %v4998
        %v5624 = vsub.f32 %v3396, %v5001
        %v5625 = vsub.f32 %v3398, %v5001
        %v5626 = vsub.f32 %v3402, %v5004
        %v5627 = vsub.f32 %v3404, %v5004
        %v5628 = vsub.f32 %v3408, %v5007
        %v5629 = vsub.f32 %v3410, %v5007
        %v5630 = vsub.f32 %v3414, %v5010
        %v5631 = vsub.f32 %v3416, %v5010
        %v5632 = vsub.f32 %v3420, %v5013
        %v5633 = vsub.f32 %v3422, %v5013
        %v5634 = vsub.f32 %v3426, %v5016
        %v5635 = vsub.f32 %v3428, %v5016
        %v5636 = vsub.f32 %v3432, %v5019
        %v5637 = vsub.f32 %v3434, %v5019
        %v5638 = vsub.f32 %v3438, %v5022
        %v5639 = vsub.f32 %v3440, %v5022
        %v5640 = vsub.f32 %v3444, %v5025
        %v5641 = vsub.f32 %v3446, %v5025
        %v5642 = vsub.f32 %v3450, %v5028
        %v5643 = vsub.f32 %v3452, %v5028
        %v5644 = vsub.f32 %v3456, %v5031
        %v5645 = vsub.f32 %v3458, %v5031
        %v5646 = vsub.f32 %v3462, %v5034
        %v5647 = vsub.f32 %v3464, %v5034
        %v5648 = vsub.f32 %v3468, %v5037
        %v5649 = vsub.f32 %v3470, %v5037
        %v5650 = vsub.f32 %v3474, %v5040
        %v5651 = vsub.f32 %v3476, %v5040
        %v5652 = vsub.f32 %v3480, %v5043
        %v5653 = vsub.f32 %v3482, %v5043
        %v5654 = vsub.f32 %v3486, %v5046
        %v5655 = vsub.f32 %v3488, %v5046
        %v5656 = vsub.f32 %v3492, %v5049
        %v5657 = vsub.f32 %v3494, %v5049
        %v5658 = vsub.f32 %v3664, %v5052
        %v5659 = vsub.f32 %v3666, %v5052
        %v5660 = vsub.f32 %v3670, %v5055
        %v5661 = vsub.f32 %v3672, %v5055
        %v5662 = vsub.f32 %v3676, %v5058
        %v5663 = vsub.f32 %v3678, %v5058
        %v5664 = vsub.f32 %v3682, %v5061
        %v5665 = vsub.f32 %v3684, %v5061
        %v5666 = vsub.f32 %v3688, %v5064
        %v5667 = vsub.f32 %v3690, %v5064
        %v5668 = vsub.f32 %v3694, %v5067
        %v5669 = vsub.f32 %v3696, %v5067
        %v5670 = vsub.f32 %v3700, %v5070
        %v5671 = vsub.f32 %v3702, %v5070
        %v5672 = vsub.f32 %v3706, %v5073
        %v5673 = vsub.f32 %v3708, %v5073
        %v5674 = vsub.f32 %v3712, %v5076
        %v5675 = vsub.f32 %v3714, %v5076
        %v5676 = vsub.f32 %v3718, %v5079
        %v5677 = vsub.f32 %v3720, %v5079
        %v5678 = vsub.f32 %v3724, %v5082
        %v5679 = vsub.f32 %v3726, %v5082
        %v5680 = vsub.f32 %v3730, %v5085
        %v5681 = vsub.f32 %v3732, %v5085
        %v5682 = vsub.f32 %v3736, %v5088
        %v5683 = vsub.f32 %v3738, %v5088
        %v5684 = vsub.f32 %v3742, %v5091
        %v5685 = vsub.f32 %v3744, %v5091
        %v5686 = vsub.f32 %v3748, %v5094
        %v5687 = vsub.f32 %v3750, %v5094
        %v5688 = vsub.f32 %v3754, %v5097
        %v5689 = vsub.f32 %v3756, %v5097
        %v5690 = vsub.f32 %v3760, %v5100
        %v5691 = vsub.f32 %v3762, %v5100
        %v5692 = vsub.f32 %v3766, %v5103
        %v5693 = vsub.f32 %v3768, %v5103
        %v5694 = vsub.f32 %v3772, %v5106
        %v5695 = vsub.f32 %v3774, %v5106
        %v5696 = vsub.f32 %v3778, %v5109
        %v5697 = vsub.f32 %v3780, %v5109
        %v5698 = vsub.f32 %v3784, %v5112
        %v5699 = vsub.f32 %v3786, %v5112
        %v5700 = vsub.f32 %v3790, %v5115
        %v5701 = vsub.f32 %v3792, %v5115
        %v5702 = vsub.f32 %v3796, %v5118
        %v5703 = vsub.f32 %v3798, %v5118
        %v5704 = vsub.f32 %v3802, %v5121
        %v5705 = vsub.f32 %v3804, %v5121
        %v5706 = vsub.f32 %v3808, %v5124
        %v5707 = vsub.f32 %v3810, %v5124
        %v5708 = vsub.f32 %v3814, %v5127
        %v5709 = vsub.f32 %v3816, %v5127
        %v5710 = vsub.f32 %v3820, %v5130
        %v5711 = vsub.f32 %v3822, %v5130
        %v5712 = vsub.f32 %v3826, %v5133
        %v5713 = vsub.f32 %v3828, %v5133
        %v5714 = vsub.f32 %v3832, %v5136
        %v5715 = vsub.f32 %v3834, %v5136
        %v5716 = vsub.f32 %v3838, %v5139
        %v5717 = vsub.f32 %v3840, %v5139
        %v5718 = vsub.f32 %v3844, %v5142
        %v5719 = vsub.f32 %v3846, %v5142
        %v5720 = vsub.f32 %v3850, %v5145
        %v5721 = vsub.f32 %v3852, %v5145
        %v5722 = vsub.f32 %v4022, %v5148
        %v5723 = vsub.f32 %v4024, %v5148
        %v5724 = vsub.f32 %v4028, %v5151
        %v5725 = vsub.f32 %v4030, %v5151
        %v5726 = vsub.f32 %v4034, %v5154
        %v5727 = vsub.f32 %v4036, %v5154
        %v5728 = vsub.f32 %v4040, %v5157
        %v5729 = vsub.f32 %v4042, %v5157
        %v5730 = vsub.f32 %v4046, %v5160
        %v5731 = vsub.f32 %v4048, %v5160
        %v5732 = vsub.f32 %v4052, %v5163
        %v5733 = vsub.f32 %v4054, %v5163
        %v5734 = vsub.f32 %v4058, %v5166
        %v5735 = vsub.f32 %v4060, %v5166
        %v5736 = vsub.f32 %v4064, %v5169
        %v5737 = vsub.f32 %v4066, %v5169
        %v5738 = vsub.f32 %v4070, %v5172
        %v5739 = vsub.f32 %v4072, %v5172
        %v5740 = vsub.f32 %v4076, %v5175
        %v5741 = vsub.f32 %v4078, %v5175
        %v5742 = vsub.f32 %v4082, %v5178
        %v5743 = vsub.f32 %v4084, %v5178
        %v5744 = vsub.f32 %v4088, %v5181
        %v5745 = vsub.f32 %v4090, %v5181
        %v5746 = vsub.f32 %v4094, %v5184
        %v5747 = vsub.f32 %v4096, %v5184
        %v5748 = vsub.f32 %v4100, %v5187
        %v5749 = vsub.f32 %v4102, %v5187
        %v5750 = vsub.f32 %v4106, %v5190
        %v5751 = vsub.f32 %v4108, %v5190
        %v5752 = vsub.f32 %v4112, %v5193
        %v5753 = vsub.f32 %v4114, %v5193
        %v5754 = vsub.f32 %v4118, %v5196
        %v5755 = vsub.f32 %v4120, %v5196
        %v5756 = vsub.f32 %v4124, %v5199
        %v5757 = vsub.f32 %v4126, %v5199
        %v5758 = vsub.f32 %v4130, %v5202
        %v5759 = vsub.f32 %v4132, %v5202
        %v5760 = vsub.f32 %v4136, %v5205
        %v5761 = vsub.f32 %v4138, %v5205
        %v5762 = vsub.f32 %v4142, %v5208
        %v5763 = vsub.f32 %v4144, %v5208
        %v5764 = vsub.f32 %v4148, %v5211
        %v5765 = vsub.f32 %v4150, %v5211
        %v5766 = vsub.f32 %v4154, %v5214
        %v5767 = vsub.f32 %v4156, %v5214
        %v5768 = vsub.f32 %v4160, %v5217
        %v5769 = vsub.f32 %v4162, %v5217
        %v5770 = vsub.f32 %v4166, %v5220
        %v5771 = vsub.f32 %v4168, %v5220
        %v5772 = vsub.f32 %v4172, %v5223
        %v5773 = vsub.f32 %v4174, %v5223
        %v5774 = vsub.f32 %v4178, %v5226
        %v5775 = vsub.f32 %v4180, %v5226
        %v5776 = vsub.f32 %v4184, %v5229
        %v5777 = vsub.f32 %v4186, %v5229
        %v5778 = vsub.f32 %v4190, %v5232
        %v5779 = vsub.f32 %v4192, %v5232
        %v5780 = vsub.f32 %v4196, %v5235
        %v5781 = vsub.f32 %v4198, %v5235
        %v5782 = vsub.f32 %v4202, %v5238
        %v5783 = vsub.f32 %v4204, %v5238
        %v5784 = vsub.f32 %v4208, %v5241
        %v5785 = vsub.f32 %v4210, %v5241
        %v5786 = vsub.f32 %v4380, %v5244
        %v5787 = vsub.f32 %v4382, %v5244
        %v5788 = vsub.f32 %v4386, %v5247
        %v5789 = vsub.f32 %v4388, %v5247
        %v5790 = vsub.f32 %v4392, %v5250
        %v5791 = vsub.f32 %v4394, %v5250
        %v5792 = vsub.f32 %v4398, %v5253
        %v5793 = vsub.f32 %v4400, %v5253
        %v5794 = vsub.f32 %v4404, %v5256
        %v5795 = vsub.f32 %v4406, %v5256
        %v5796 = vsub.f32 %v4410, %v5259
        %v5797 = vsub.f32 %v4412, %v5259
        %v5798 = vsub.f32 %v4416, %v5262
        %v5799 = vsub.f32 %v4418, %v5262
        %v5800 = vsub.f32 %v4422, %v5265
        %v5801 = vsub.f32 %v4424, %v5265
        %v5802 = vsub.f32 %v4428, %v5268
        %v5803 = vsub.f32 %v4430, %v5268
        %v5804 = vsub.f32 %v4434, %v5271
        %v5805 = vsub.f32 %v4436, %v5271
        %v5806 = vsub.f32 %v4440, %v5274
        %v5807 = vsub.f32 %v4442, %v5274
        %v5808 = vsub.f32 %v4446, %v5277
        %v5809 = vsub.f32 %v4448, %v5277
        %v5810 = vsub.f32 %v4452, %v5280
        %v5811 = vsub.f32 %v4454, %v5280
        %v5812 = vsub.f32 %v4458, %v5283
        %v5813 = vsub.f32 %v4460, %v5283
        %v5814 = vsub.f32 %v4464, %v5286
        %v5815 = vsub.f32 %v4466, %v5286
        %v5816 = vsub.f32 %v4470, %v5289
        %v5817 = vsub.f32 %v4472, %v5289
        %v5818 = vsub.f32 %v4476, %v5292
        %v5819 = vsub.f32 %v4478, %v5292
        %v5820 = vsub.f32 %v4482, %v5295
        %v5821 = vsub.f32 %v4484, %v5295
        %v5822 = vsub.f32 %v4488, %v5298
        %v5823 = vsub.f32 %v4490, %v5298
        %v5824 = vsub.f32 %v4494, %v5301
        %v5825 = vsub.f32 %v4496, %v5301
        %v5826 = vsub.f32 %v4500, %v5304
        %v5827 = vsub.f32 %v4502, %v5304
        %v5828 = vsub.f32 %v4506, %v5307
        %v5829 = vsub.f32 %v4508, %v5307
        %v5830 = vsub.f32 %v4512, %v5310
        %v5831 = vsub.f32 %v4514, %v5310
        %v5832 = vsub.f32 %v4518, %v5313
        %v5833 = vsub.f32 %v4520, %v5313
        %v5834 = vsub.f32 %v4524, %v5316
        %v5835 = vsub.f32 %v4526, %v5316
        %v5836 = vsub.f32 %v4530, %v5319
        %v5837 = vsub.f32 %v4532, %v5319
        %v5838 = vsub.f32 %v4536, %v5322
        %v5839 = vsub.f32 %v4538, %v5322
        %v5840 = vsub.f32 %v4542, %v5325
        %v5841 = vsub.f32 %v4544, %v5325
        %v5842 = vsub.f32 %v4548, %v5328
        %v5843 = vsub.f32 %v4550, %v5328
        %v5844 = vsub.f32 %v4554, %v5331
        %v5845 = vsub.f32 %v4556, %v5331
        %v5846 = vsub.f32 %v4560, %v5334
        %v5847 = vsub.f32 %v4562, %v5334
        %v5848 = vsub.f32 %v4566, %v5337
        %v5849 = vsub.f32 %v4568, %v5337
        %v5850 = vmul.f32 %v5338, 1.442695
        %v5851 = vpow.pop %v5850
        %v5852 = vmul.f32 %v5339, 1.442695
        %v5853 = vpow.pop %v5852
        %v5854 = vmul.f32 %v5340, 1.442695
        %v5855 = vpow.pop %v5854
        %v5856 = vmul.f32 %v5341, 1.442695
        %v5857 = vpow.pop %v5856
        %v5858 = vmul.f32 %v5342, 1.442695
        %v5859 = vpow.pop %v5858
        %v5860 = vmul.f32 %v5343, 1.442695
        %v5861 = vpow.pop %v5860
        %v5862 = vmul.f32 %v5344, 1.442695
        %v5863 = vpow.pop %v5862
        %v5864 = vmul.f32 %v5345, 1.442695
        %v5865 = vpow.pop %v5864
        %v5866 = vmul.f32 %v5346, 1.442695
        %v5867 = vpow.pop %v5866
        %v5868 = vmul.f32 %v5347, 1.442695
        %v5869 = vpow.pop %v5868
        %v5870 = vmul.f32 %v5348, 1.442695
        %v5871 = vpow.pop %v5870
        %v5872 = vmul.f32 %v5349, 1.442695
        %v5873 = vpow.pop %v5872
        %v5874 = vmul.f32 %v5350, 1.442695
        %v5875 = vpow.pop %v5874
        %v5876 = vmul.f32 %v5351, 1.442695
        %v5877 = vpow.pop %v5876
        %v5878 = vmul.f32 %v5352, 1.442695
        %v5879 = vpow.pop %v5878
        %v5880 = vmul.f32 %v5353, 1.442695
        %v5881 = vpow.pop %v5880
        %v5882 = vmul.f32 %v5354, 1.442695
        %v5883 = vpow.pop %v5882
        %v5884 = vmul.f32 %v5355, 1.442695
        %v5885 = vpow.pop %v5884
        %v5886 = vmul.f32 %v5356, 1.442695
        %v5887 = vpow.pop %v5886
        %v5888 = vmul.f32 %v5357, 1.442695
        %v5889 = vpow.pop %v5888
        %v5890 = vmul.f32 %v5358, 1.442695
        %v5891 = vpow.pop %v5890
        %v5892 = vmul.f32 %v5359, 1.442695
        %v5893 = vpow.pop %v5892
        %v5894 = vmul.f32 %v5360, 1.442695
        %v5895 = vpow.pop %v5894
        %v5896 = vmul.f32 %v5361, 1.442695
        %v5897 = vpow.pop %v5896
        %v5898 = vmul.f32 %v5362, 1.442695
        %v5899 = vpow.pop %v5898
        %v5900 = vmul.f32 %v5363, 1.442695
        %v5901 = vpow.pop %v5900
        %v5902 = vmul.f32 %v5364, 1.442695
        %v5903 = vpow.pop %v5902
        %v5904 = vmul.f32 %v5365, 1.442695
        %v5905 = vpow.pop %v5904
        %v5906 = vmul.f32 %v5366, 1.442695
        %v5907 = vpow.pop %v5906
        %v5908 = vmul.f32 %v5367, 1.442695
        %v5909 = vpow.pop %v5908
        %v5910 = vmul.f32 %v5368, 1.442695
        %v5911 = vpow.pop %v5910
        %v5912 = vmul.f32 %v5369, 1.442695
        %v5913 = vpow.pop %v5912
        %v5914 = vmul.f32 %v5370, 1.442695
        %v5915 = vpow.pop %v5914
        %v5916 = vmul.f32 %v5371, 1.442695
        %v5917 = vpow.pop %v5916
        %v5918 = vmul.f32 %v5372, 1.442695
        %v5919 = vpow.pop %v5918
        %v5920 = vmul.f32 %v5373, 1.442695
        %v5921 = vpow.pop %v5920
        %v5922 = vmul.f32 %v5374, 1.442695
        %v5923 = vpow.pop %v5922
        %v5924 = vmul.f32 %v5375, 1.442695
        %v5925 = vpow.pop %v5924
        %v5926 = vmul.f32 %v5376, 1.442695
        %v5927 = vpow.pop %v5926
        %v5928 = vmul.f32 %v5377, 1.442695
        %v5929 = vpow.pop %v5928
        %v5930 = vmul.f32 %v5378, 1.442695
        %v5931 = vpow.pop %v5930
        %v5932 = vmul.f32 %v5379, 1.442695
        %v5933 = vpow.pop %v5932
        %v5934 = vmul.f32 %v5380, 1.442695
        %v5935 = vpow.pop %v5934
        %v5936 = vmul.f32 %v5381, 1.442695
        %v5937 = vpow.pop %v5936
        %v5938 = vmul.f32 %v5382, 1.442695
        %v5939 = vpow.pop %v5938
        %v5940 = vmul.f32 %v5383, 1.442695
        %v5941 = vpow.pop %v5940
        %v5942 = vmul.f32 %v5384, 1.442695
        %v5943 = vpow.pop %v5942
        %v5944 = vmul.f32 %v5385, 1.442695
        %v5945 = vpow.pop %v5944
        %v5946 = vmul.f32 %v5386, 1.442695
        %v5947 = vpow.pop %v5946
        %v5948 = vmul.f32 %v5387, 1.442695
        %v5949 = vpow.pop %v5948
        %v5950 = vmul.f32 %v5388, 1.442695
        %v5951 = vpow.pop %v5950
        %v5952 = vmul.f32 %v5389, 1.442695
        %v5953 = vpow.pop %v5952
        %v5954 = vmul.f32 %v5390, 1.442695
        %v5955 = vpow.pop %v5954
        %v5956 = vmul.f32 %v5391, 1.442695
        %v5957 = vpow.pop %v5956
        %v5958 = vmul.f32 %v5392, 1.442695
        %v5959 = vpow.pop %v5958
        %v5960 = vmul.f32 %v5393, 1.442695
        %v5961 = vpow.pop %v5960
        %v5962 = vmul.f32 %v5394, 1.442695
        %v5963 = vpow.pop %v5962
        %v5964 = vmul.f32 %v5395, 1.442695
        %v5965 = vpow.pop %v5964
        %v5966 = vmul.f32 %v5396, 1.442695
        %v5967 = vpow.pop %v5966
        %v5968 = vmul.f32 %v5397, 1.442695
        %v5969 = vpow.pop %v5968
        %v5970 = vmul.f32 %v5398, 1.442695
        %v5971 = vpow.pop %v5970
        %v5972 = vmul.f32 %v5399, 1.442695
        %v5973 = vpow.pop %v5972
        %v5974 = vmul.f32 %v5400, 1.442695
        %v5975 = vpow.pop %v5974
        %v5976 = vmul.f32 %v5401, 1.442695
        %v5977 = vpow.pop %v5976
        %v5978 = vmul.f32 %v5402, 1.442695
        %v5979 = vpow.pop %v5978
        %v5980 = vmul.f32 %v5403, 1.442695
        %v5981 = vpow.pop %v5980
        %v5982 = vmul.f32 %v5404, 1.442695
        %v5983 = vpow.pop %v5982
        %v5984 = vmul.f32 %v5405, 1.442695
        %v5985 = vpow.pop %v5984
        %v5986 = vmul.f32 %v5406, 1.442695
        %v5987 = vpow.pop %v5986
        %v5988 = vmul.f32 %v5407, 1.442695
        %v5989 = vpow.pop %v5988
        %v5990 = vmul.f32 %v5408, 1.442695
        %v5991 = vpow.pop %v5990
        %v5992 = vmul.f32 %v5409, 1.442695
        %v5993 = vpow.pop %v5992
        %v5994 = vmul.f32 %v5410, 1.442695
        %v5995 = vpow.pop %v5994
        %v5996 = vmul.f32 %v5411, 1.442695
        %v5997 = vpow.pop %v5996
        %v5998 = vmul.f32 %v5412, 1.442695
        %v5999 = vpow.pop %v5998
        %v6000 = vmul.f32 %v5413, 1.442695
        %v6001 = vpow.pop %v6000
        %v6002 = vmul.f32 %v5414, 1.442695
        %v6003 = vpow.pop %v6002
        %v6004 = vmul.f32 %v5415, 1.442695
        %v6005 = vpow.pop %v6004
        %v6006 = vmul.f32 %v5416, 1.442695
        %v6007 = vpow.pop %v6006
        %v6008 = vmul.f32 %v5417, 1.442695
        %v6009 = vpow.pop %v6008
        %v6010 = vmul.f32 %v5418, 1.442695
        %v6011 = vpow.pop %v6010
        %v6012 = vmul.f32 %v5419, 1.442695
        %v6013 = vpow.pop %v6012
        %v6014 = vmul.f32 %v5420, 1.442695
        %v6015 = vpow.pop %v6014
        %v6016 = vmul.f32 %v5421, 1.442695
        %v6017 = vpow.pop %v6016
        %v6018 = vmul.f32 %v5422, 1.442695
        %v6019 = vpow.pop %v6018
        %v6020 = vmul.f32 %v5423, 1.442695
        %v6021 = vpow.pop %v6020
        %v6022 = vmul.f32 %v5424, 1.442695
        %v6023 = vpow.pop %v6022
        %v6024 = vmul.f32 %v5425, 1.442695
        %v6025 = vpow.pop %v6024
        %v6026 = vmul.f32 %v5426, 1.442695
        %v6027 = vpow.pop %v6026
        %v6028 = vmul.f32 %v5427, 1.442695
        %v6029 = vpow.pop %v6028
        %v6030 = vmul.f32 %v5428, 1.442695
        %v6031 = vpow.pop %v6030
        %v6032 = vmul.f32 %v5429, 1.442695
        %v6033 = vpow.pop %v6032
        %v6034 = vmul.f32 %v5430, 1.442695
        %v6035 = vpow.pop %v6034
        %v6036 = vmul.f32 %v5431, 1.442695
        %v6037 = vpow.pop %v6036
        %v6038 = vmul.f32 %v5432, 1.442695
        %v6039 = vpow.pop %v6038
        %v6040 = vmul.f32 %v5433, 1.442695
        %v6041 = vpow.pop %v6040
        %v6042 = vmul.f32 %v5434, 1.442695
        %v6043 = vpow.pop %v6042
        %v6044 = vmul.f32 %v5435, 1.442695
        %v6045 = vpow.pop %v6044
        %v6046 = vmul.f32 %v5436, 1.442695
        %v6047 = vpow.pop %v6046
        %v6048 = vmul.f32 %v5437, 1.442695
        %v6049 = vpow.pop %v6048
        %v6050 = vmul.f32 %v5438, 1.442695
        %v6051 = vpow.pop %v6050
        %v6052 = vmul.f32 %v5439, 1.442695
        %v6053 = vpow.pop %v6052
        %v6054 = vmul.f32 %v5440, 1.442695
        %v6055 = vpow.pop %v6054
        %v6056 = vmul.f32 %v5441, 1.442695
        %v6057 = vpow.pop %v6056
        %v6058 = vmul.f32 %v5442, 1.442695
        %v6059 = vpow.pop %v6058
        %v6060 = vmul.f32 %v5443, 1.442695
        %v6061 = vpow.pop %v6060
        %v6062 = vmul.f32 %v5444, 1.442695
        %v6063 = vpow.pop %v6062
        %v6064 = vmul.f32 %v5445, 1.442695
        %v6065 = vpow.pop %v6064
        %v6066 = vmul.f32 %v5446, 1.442695
        %v6067 = vpow.pop %v6066
        %v6068 = vmul.f32 %v5447, 1.442695
        %v6069 = vpow.pop %v6068
        %v6070 = vmul.f32 %v5448, 1.442695
        %v6071 = vpow.pop %v6070
        %v6072 = vmul.f32 %v5449, 1.442695
        %v6073 = vpow.pop %v6072
        %v6074 = vmul.f32 %v5450, 1.442695
        %v6075 = vpow.pop %v6074
        %v6076 = vmul.f32 %v5451, 1.442695
        %v6077 = vpow.pop %v6076
        %v6078 = vmul.f32 %v5452, 1.442695
        %v6079 = vpow.pop %v6078
        %v6080 = vmul.f32 %v5453, 1.442695
        %v6081 = vpow.pop %v6080
        %v6082 = vmul.f32 %v5454, 1.442695
        %v6083 = vpow.pop %v6082
        %v6084 = vmul.f32 %v5455, 1.442695
        %v6085 = vpow.pop %v6084
        %v6086 = vmul.f32 %v5456, 1.442695
        %v6087 = vpow.pop %v6086
        %v6088 = vmul.f32 %v5457, 1.442695
        %v6089 = vpow.pop %v6088
        %v6090 = vmul.f32 %v5458, 1.442695
        %v6091 = vpow.pop %v6090
        %v6092 = vmul.f32 %v5459, 1.442695
        %v6093 = vpow.pop %v6092
        %v6094 = vmul.f32 %v5460, 1.442695
        %v6095 = vpow.pop %v6094
        %v6096 = vmul.f32 %v5461, 1.442695
        %v6097 = vpow.pop %v6096
        %v6098 = vmul.f32 %v5462, 1.442695
        %v6099 = vpow.pop %v6098
        %v6100 = vmul.f32 %v5463, 1.442695
        %v6101 = vpow.pop %v6100
        %v6102 = vmul.f32 %v5464, 1.442695
        %v6103 = vpow.pop %v6102
        %v6104 = vmul.f32 %v5465, 1.442695
        %v6105 = vpow.pop %v6104
        %v6106 = vmul.f32 %v5466, 1.442695
        %v6107 = vpow.pop %v6106
        %v6108 = vmul.f32 %v5467, 1.442695
        %v6109 = vpow.pop %v6108
        %v6110 = vmul.f32 %v5468, 1.442695
        %v6111 = vpow.pop %v6110
        %v6112 = vmul.f32 %v5469, 1.442695
        %v6113 = vpow.pop %v6112
        %v6114 = vmul.f32 %v5470, 1.442695
        %v6115 = vpow.pop %v6114
        %v6116 = vmul.f32 %v5471, 1.442695
        %v6117 = vpow.pop %v6116
        %v6118 = vmul.f32 %v5472, 1.442695
        %v6119 = vpow.pop %v6118
        %v6120 = vmul.f32 %v5473, 1.442695
        %v6121 = vpow.pop %v6120
        %v6122 = vmul.f32 %v5474, 1.442695
        %v6123 = vpow.pop %v6122
        %v6124 = vmul.f32 %v5475, 1.442695
        %v6125 = vpow.pop %v6124
        %v6126 = vmul.f32 %v5476, 1.442695
        %v6127 = vpow.pop %v6126
        %v6128 = vmul.f32 %v5477, 1.442695
        %v6129 = vpow.pop %v6128
        %v6130 = vmul.f32 %v5478, 1.442695
        %v6131 = vpow.pop %v6130
        %v6132 = vmul.f32 %v5479, 1.442695
        %v6133 = vpow.pop %v6132
        %v6134 = vmul.f32 %v5480, 1.442695
        %v6135 = vpow.pop %v6134
        %v6136 = vmul.f32 %v5481, 1.442695
        %v6137 = vpow.pop %v6136
        %v6138 = vmul.f32 %v5482, 1.442695
        %v6139 = vpow.pop %v6138
        %v6140 = vmul.f32 %v5483, 1.442695
        %v6141 = vpow.pop %v6140
        %v6142 = vmul.f32 %v5484, 1.442695
        %v6143 = vpow.pop %v6142
        %v6144 = vmul.f32 %v5485, 1.442695
        %v6145 = vpow.pop %v6144
        %v6146 = vmul.f32 %v5486, 1.442695
        %v6147 = vpow.pop %v6146
        %v6148 = vmul.f32 %v5487, 1.442695
        %v6149 = vpow.pop %v6148
        %v6150 = vmul.f32 %v5488, 1.442695
        %v6151 = vpow.pop %v6150
        %v6152 = vmul.f32 %v5489, 1.442695
        %v6153 = vpow.pop %v6152
        %v6154 = vmul.f32 %v5490, 1.442695
        %v6155 = vpow.pop %v6154
        %v6156 = vmul.f32 %v5491, 1.442695
        %v6157 = vpow.pop %v6156
        %v6158 = vmul.f32 %v5492, 1.442695
        %v6159 = vpow.pop %v6158
        %v6160 = vmul.f32 %v5493, 1.442695
        %v6161 = vpow.pop %v6160
        %v6162 = vmul.f32 %v5494, 1.442695
        %v6163 = vpow.pop %v6162
        %v6164 = vmul.f32 %v5495, 1.442695
        %v6165 = vpow.pop %v6164
        %v6166 = vmul.f32 %v5496, 1.442695
        %v6167 = vpow.pop %v6166
        %v6168 = vmul.f32 %v5497, 1.442695
        %v6169 = vpow.pop %v6168
        %v6170 = vmul.f32 %v5498, 1.442695
        %v6171 = vpow.pop %v6170
        %v6172 = vmul.f32 %v5499, 1.442695
        %v6173 = vpow.pop %v6172
        %v6174 = vmul.f32 %v5500, 1.442695
        %v6175 = vpow.pop %v6174
        %v6176 = vmul.f32 %v5501, 1.442695
        %v6177 = vpow.pop %v6176
        %v6178 = vmul.f32 %v5502, 1.442695
        %v6179 = vpow.pop %v6178
        %v6180 = vmul.f32 %v5503, 1.442695
        %v6181 = vpow.pop %v6180
        %v6182 = vmul.f32 %v5504, 1.442695
        %v6183 = vpow.pop %v6182
        %v6184 = vmul.f32 %v5505, 1.442695
        %v6185 = vpow.pop %v6184
        %v6186 = vmul.f32 %v5506, 1.442695
        %v6187 = vpow.pop %v6186
        %v6188 = vmul.f32 %v5507, 1.442695
        %v6189 = vpow.pop %v6188
        %v6190 = vmul.f32 %v5508, 1.442695
        %v6191 = vpow.pop %v6190
        %v6192 = vmul.f32 %v5509, 1.442695
        %v6193 = vpow.pop %v6192
        %v6194 = vmul.f32 %v5510, 1.442695
        %v6195 = vpow.pop %v6194
        %v6196 = vmul.f32 %v5511, 1.442695
        %v6197 = vpow.pop %v6196
        %v6198 = vmul.f32 %v5512, 1.442695
        %v6199 = vpow.pop %v6198
        %v6200 = vmul.f32 %v5513, 1.442695
        %v6201 = vpow.pop %v6200
        %v6202 = vmul.f32 %v5514, 1.442695
        %v6203 = vpow.pop %v6202
        %v6204 = vmul.f32 %v5515, 1.442695
        %v6205 = vpow.pop %v6204
        %v6206 = vmul.f32 %v5516, 1.442695
        %v6207 = vpow.pop %v6206
        %v6208 = vmul.f32 %v5517, 1.442695
        %v6209 = vpow.pop %v6208
        %v6210 = vmul.f32 %v5518, 1.442695
        %v6211 = vpow.pop %v6210
        %v6212 = vmul.f32 %v5519, 1.442695
        %v6213 = vpow.pop %v6212
        %v6214 = vmul.f32 %v5520, 1.442695
        %v6215 = vpow.pop %v6214
        %v6216 = vmul.f32 %v5521, 1.442695
        %v6217 = vpow.pop %v6216
        %v6218 = vmul.f32 %v5522, 1.442695
        %v6219 = vpow.pop %v6218
        %v6220 = vmul.f32 %v5523, 1.442695
        %v6221 = vpow.pop %v6220
        %v6222 = vmul.f32 %v5524, 1.442695
        %v6223 = vpow.pop %v6222
        %v6224 = vmul.f32 %v5525, 1.442695
        %v6225 = vpow.pop %v6224
        %v6226 = vmul.f32 %v5526, 1.442695
        %v6227 = vpow.pop %v6226
        %v6228 = vmul.f32 %v5527, 1.442695
        %v6229 = vpow.pop %v6228
        %v6230 = vmul.f32 %v5528, 1.442695
        %v6231 = vpow.pop %v6230
        %v6232 = vmul.f32 %v5529, 1.442695
        %v6233 = vpow.pop %v6232
        %v6234 = vmul.f32 %v5530, 1.442695
        %v6235 = vpow.pop %v6234
        %v6236 = vmul.f32 %v5531, 1.442695
        %v6237 = vpow.pop %v6236
        %v6238 = vmul.f32 %v5532, 1.442695
        %v6239 = vpow.pop %v6238
        %v6240 = vmul.f32 %v5533, 1.442695
        %v6241 = vpow.pop %v6240
        %v6242 = vmul.f32 %v5534, 1.442695
        %v6243 = vpow.pop %v6242
        %v6244 = vmul.f32 %v5535, 1.442695
        %v6245 = vpow.pop %v6244
        %v6246 = vmul.f32 %v5536, 1.442695
        %v6247 = vpow.pop %v6246
        %v6248 = vmul.f32 %v5537, 1.442695
        %v6249 = vpow.pop %v6248
        %v6250 = vmul.f32 %v5538, 1.442695
        %v6251 = vpow.pop %v6250
        %v6252 = vmul.f32 %v5539, 1.442695
        %v6253 = vpow.pop %v6252
        %v6254 = vmul.f32 %v5540, 1.442695
        %v6255 = vpow.pop %v6254
        %v6256 = vmul.f32 %v5541, 1.442695
        %v6257 = vpow.pop %v6256
        %v6258 = vmul.f32 %v5542, 1.442695
        %v6259 = vpow.pop %v6258
        %v6260 = vmul.f32 %v5543, 1.442695
        %v6261 = vpow.pop %v6260
        %v6262 = vmul.f32 %v5544, 1.442695
        %v6263 = vpow.pop %v6262
        %v6264 = vmul.f32 %v5545, 1.442695
        %v6265 = vpow.pop %v6264
        %v6266 = vmul.f32 %v5546, 1.442695
        %v6267 = vpow.pop %v6266
        %v6268 = vmul.f32 %v5547, 1.442695
        %v6269 = vpow.pop %v6268
        %v6270 = vmul.f32 %v5548, 1.442695
        %v6271 = vpow.pop %v6270
        %v6272 = vmul.f32 %v5549, 1.442695
        %v6273 = vpow.pop %v6272
        %v6274 = vmul.f32 %v5550, 1.442695
        %v6275 = vpow.pop %v6274
        %v6276 = vmul.f32 %v5551, 1.442695
        %v6277 = vpow.pop %v6276
        %v6278 = vmul.f32 %v5552, 1.442695
        %v6279 = vpow.pop %v6278
        %v6280 = vmul.f32 %v5553, 1.442695
        %v6281 = vpow.pop %v6280
        %v6282 = vmul.f32 %v5554, 1.442695
        %v6283 = vpow.pop %v6282
        %v6284 = vmul.f32 %v5555, 1.442695
        %v6285 = vpow.pop %v6284
        %v6286 = vmul.f32 %v5556, 1.442695
        %v6287 = vpow.pop %v6286
        %v6288 = vmul.f32 %v5557, 1.442695
        %v6289 = vpow.pop %v6288
        %v6290 = vmul.f32 %v5558, 1.442695
        %v6291 = vpow.pop %v6290
        %v6292 = vmul.f32 %v5559, 1.442695
        %v6293 = vpow.pop %v6292
        %v6294 = vmul.f32 %v5560, 1.442695
        %v6295 = vpow.pop %v6294
        %v6296 = vmul.f32 %v5561, 1.442695
        %v6297 = vpow.pop %v6296
        %v6298 = vmul.f32 %v5562, 1.442695
        %v6299 = vpow.pop %v6298
        %v6300 = vmul.f32 %v5563, 1.442695
        %v6301 = vpow.pop %v6300
        %v6302 = vmul.f32 %v5564, 1.442695
        %v6303 = vpow.pop %v6302
        %v6304 = vmul.f32 %v5565, 1.442695
        %v6305 = vpow.pop %v6304
        %v6306 = vmul.f32 %v5566, 1.442695
        %v6307 = vpow.pop %v6306
        %v6308 = vmul.f32 %v5567, 1.442695
        %v6309 = vpow.pop %v6308
        %v6310 = vmul.f32 %v5568, 1.442695
        %v6311 = vpow.pop %v6310
        %v6312 = vmul.f32 %v5569, 1.442695
        %v6313 = vpow.pop %v6312
        %v6314 = vmul.f32 %v5570, 1.442695
        %v6315 = vpow.pop %v6314
        %v6316 = vmul.f32 %v5571, 1.442695
        %v6317 = vpow.pop %v6316
        %v6318 = vmul.f32 %v5572, 1.442695
        %v6319 = vpow.pop %v6318
        %v6320 = vmul.f32 %v5573, 1.442695
        %v6321 = vpow.pop %v6320
        %v6322 = vmul.f32 %v5574, 1.442695
        %v6323 = vpow.pop %v6322
        %v6324 = vmul.f32 %v5575, 1.442695
        %v6325 = vpow.pop %v6324
        %v6326 = vmul.f32 %v5576, 1.442695
        %v6327 = vpow.pop %v6326
        %v6328 = vmul.f32 %v5577, 1.442695
        %v6329 = vpow.pop %v6328
        %v6330 = vmul.f32 %v5578, 1.442695
        %v6331 = vpow.pop %v6330
        %v6332 = vmul.f32 %v5579, 1.442695
        %v6333 = vpow.pop %v6332
        %v6334 = vmul.f32 %v5580, 1.442695
        %v6335 = vpow.pop %v6334
        %v6336 = vmul.f32 %v5581, 1.442695
        %v6337 = vpow.pop %v6336
        %v6338 = vmul.f32 %v5582, 1.442695
        %v6339 = vpow.pop %v6338
        %v6340 = vmul.f32 %v5583, 1.442695
        %v6341 = vpow.pop %v6340
        %v6342 = vmul.f32 %v5584, 1.442695
        %v6343 = vpow.pop %v6342
        %v6344 = vmul.f32 %v5585, 1.442695
        %v6345 = vpow.pop %v6344
        %v6346 = vmul.f32 %v5586, 1.442695
        %v6347 = vpow.pop %v6346
        %v6348 = vmul.f32 %v5587, 1.442695
        %v6349 = vpow.pop %v6348
        %v6350 = vmul.f32 %v5588, 1.442695
        %v6351 = vpow.pop %v6350
        %v6352 = vmul.f32 %v5589, 1.442695
        %v6353 = vpow.pop %v6352
        %v6354 = vmul.f32 %v5590, 1.442695
        %v6355 = vpow.pop %v6354
        %v6356 = vmul.f32 %v5591, 1.442695
        %v6357 = vpow.pop %v6356
        %v6358 = vmul.f32 %v5592, 1.442695
        %v6359 = vpow.pop %v6358
        %v6360 = vmul.f32 %v5593, 1.442695
        %v6361 = vpow.pop %v6360
        %v6362 = vmul.f32 %v5594, 1.442695
        %v6363 = vpow.pop %v6362
        %v6364 = vmul.f32 %v5595, 1.442695
        %v6365 = vpow.pop %v6364
        %v6366 = vmul.f32 %v5596, 1.442695
        %v6367 = vpow.pop %v6366
        %v6368 = vmul.f32 %v5597, 1.442695
        %v6369 = vpow.pop %v6368
        %v6370 = vmul.f32 %v5598, 1.442695
        %v6371 = vpow.pop %v6370
        %v6372 = vmul.f32 %v5599, 1.442695
        %v6373 = vpow.pop %v6372
        %v6374 = vmul.f32 %v5600, 1.442695
        %v6375 = vpow.pop %v6374
        %v6376 = vmul.f32 %v5601, 1.442695
        %v6377 = vpow.pop %v6376
        %v6378 = vmul.f32 %v5602, 1.442695
        %v6379 = vpow.pop %v6378
        %v6380 = vmul.f32 %v5603, 1.442695
        %v6381 = vpow.pop %v6380
        %v6382 = vmul.f32 %v5604, 1.442695
        %v6383 = vpow.pop %v6382
        %v6384 = vmul.f32 %v5605, 1.442695
        %v6385 = vpow.pop %v6384
        %v6386 = vmul.f32 %v5606, 1.442695
        %v6387 = vpow.pop %v6386
        %v6388 = vmul.f32 %v5607, 1.442695
        %v6389 = vpow.pop %v6388
        %v6390 = vmul.f32 %v5608, 1.442695
        %v6391 = vpow.pop %v6390
        %v6392 = vmul.f32 %v5609, 1.442695
        %v6393 = vpow.pop %v6392
        %v6394 = vmul.f32 %v5610, 1.442695
        %v6395 = vpow.pop %v6394
        %v6396 = vmul.f32 %v5611, 1.442695
        %v6397 = vpow.pop %v6396
        %v6398 = vmul.f32 %v5612, 1.442695
        %v6399 = vpow.pop %v6398
        %v6400 = vmul.f32 %v5613, 1.442695
        %v6401 = vpow.pop %v6400
        %v6402 = vmul.f32 %v5614, 1.442695
        %v6403 = vpow.pop %v6402
        %v6404 = vmul.f32 %v5615, 1.442695
        %v6405 = vpow.pop %v6404
        %v6406 = vmul.f32 %v5616, 1.442695
        %v6407 = vpow.pop %v6406
        %v6408 = vmul.f32 %v5617, 1.442695
        %v6409 = vpow.pop %v6408
        %v6410 = vmul.f32 %v5618, 1.442695
        %v6411 = vpow.pop %v6410
        %v6412 = vmul.f32 %v5619, 1.442695
        %v6413 = vpow.pop %v6412
        %v6414 = vmul.f32 %v5620, 1.442695
        %v6415 = vpow.pop %v6414
        %v6416 = vmul.f32 %v5621, 1.442695
        %v6417 = vpow.pop %v6416
        %v6418 = vmul.f32 %v5622, 1.442695
        %v6419 = vpow.pop %v6418
        %v6420 = vmul.f32 %v5623, 1.442695
        %v6421 = vpow.pop %v6420
        %v6422 = vmul.f32 %v5624, 1.442695
        %v6423 = vpow.pop %v6422
        %v6424 = vmul.f32 %v5625, 1.442695
        %v6425 = vpow.pop %v6424
        %v6426 = vmul.f32 %v5626, 1.442695
        %v6427 = vpow.pop %v6426
        %v6428 = vmul.f32 %v5627, 1.442695
        %v6429 = vpow.pop %v6428
        %v6430 = vmul.f32 %v5628, 1.442695
        %v6431 = vpow.pop %v6430
        %v6432 = vmul.f32 %v5629, 1.442695
        %v6433 = vpow.pop %v6432
        %v6434 = vmul.f32 %v5630, 1.442695
        %v6435 = vpow.pop %v6434
        %v6436 = vmul.f32 %v5631, 1.442695
        %v6437 = vpow.pop %v6436
        %v6438 = vmul.f32 %v5632, 1.442695
        %v6439 = vpow.pop %v6438
        %v6440 = vmul.f32 %v5633, 1.442695
        %v6441 = vpow.pop %v6440
        %v6442 = vmul.f32 %v5634, 1.442695
        %v6443 = vpow.pop %v6442
        %v6444 = vmul.f32 %v5635, 1.442695
        %v6445 = vpow.pop %v6444
        %v6446 = vmul.f32 %v5636, 1.442695
        %v6447 = vpow.pop %v6446
        %v6448 = vmul.f32 %v5637, 1.442695
        %v6449 = vpow.pop %v6448
        %v6450 = vmul.f32 %v5638, 1.442695
        %v6451 = vpow.pop %v6450
        %v6452 = vmul.f32 %v5639, 1.442695
        %v6453 = vpow.pop %v6452
        %v6454 = vmul.f32 %v5640, 1.442695
        %v6455 = vpow.pop %v6454
        %v6456 = vmul.f32 %v5641, 1.442695
        %v6457 = vpow.pop %v6456
        %v6458 = vmul.f32 %v5642, 1.442695
        %v6459 = vpow.pop %v6458
        %v6460 = vmul.f32 %v5643, 1.442695
        %v6461 = vpow.pop %v6460
        %v6462 = vmul.f32 %v5644, 1.442695
        %v6463 = vpow.pop %v6462
        %v6464 = vmul.f32 %v5645, 1.442695
        %v6465 = vpow.pop %v6464
        %v6466 = vmul.f32 %v5646, 1.442695
        %v6467 = vpow.pop %v6466
        %v6468 = vmul.f32 %v5647, 1.442695
        %v6469 = vpow.pop %v6468
        %v6470 = vmul.f32 %v5648, 1.442695
        %v6471 = vpow.pop %v6470
        %v6472 = vmul.f32 %v5649, 1.442695
        %v6473 = vpow.pop %v6472
        %v6474 = vmul.f32 %v5650, 1.442695
        %v6475 = vpow.pop %v6474
        %v6476 = vmul.f32 %v5651, 1.442695
        %v6477 = vpow.pop %v6476
        %v6478 = vmul.f32 %v5652, 1.442695
        %v6479 = vpow.pop %v6478
        %v6480 = vmul.f32 %v5653, 1.442695
        %v6481 = vpow.pop %v6480
        %v6482 = vmul.f32 %v5654, 1.442695
        %v6483 = vpow.pop %v6482
        %v6484 = vmul.f32 %v5655, 1.442695
        %v6485 = vpow.pop %v6484
        %v6486 = vmul.f32 %v5656, 1.442695
        %v6487 = vpow.pop %v6486
        %v6488 = vmul.f32 %v5657, 1.442695
        %v6489 = vpow.pop %v6488
        %v6490 = vmul.f32 %v5658, 1.442695
        %v6491 = vpow.pop %v6490
        %v6492 = vmul.f32 %v5659, 1.442695
        %v6493 = vpow.pop %v6492
        %v6494 = vmul.f32 %v5660, 1.442695
        %v6495 = vpow.pop %v6494
        %v6496 = vmul.f32 %v5661, 1.442695
        %v6497 = vpow.pop %v6496
        %v6498 = vmul.f32 %v5662, 1.442695
        %v6499 = vpow.pop %v6498
        %v6500 = vmul.f32 %v5663, 1.442695
        %v6501 = vpow.pop %v6500
        %v6502 = vmul.f32 %v5664, 1.442695
        %v6503 = vpow.pop %v6502
        %v6504 = vmul.f32 %v5665, 1.442695
        %v6505 = vpow.pop %v6504
        %v6506 = vmul.f32 %v5666, 1.442695
        %v6507 = vpow.pop %v6506
        %v6508 = vmul.f32 %v5667, 1.442695
        %v6509 = vpow.pop %v6508
        %v6510 = vmul.f32 %v5668, 1.442695
        %v6511 = vpow.pop %v6510
        %v6512 = vmul.f32 %v5669, 1.442695
        %v6513 = vpow.pop %v6512
        %v6514 = vmul.f32 %v5670, 1.442695
        %v6515 = vpow.pop %v6514
        %v6516 = vmul.f32 %v5671, 1.442695
        %v6517 = vpow.pop %v6516
        %v6518 = vmul.f32 %v5672, 1.442695
        %v6519 = vpow.pop %v6518
        %v6520 = vmul.f32 %v5673, 1.442695
        %v6521 = vpow.pop %v6520
        %v6522 = vmul.f32 %v5674, 1.442695
        %v6523 = vpow.pop %v6522
        %v6524 = vmul.f32 %v5675, 1.442695
        %v6525 = vpow.pop %v6524
        %v6526 = vmul.f32 %v5676, 1.442695
        %v6527 = vpow.pop %v6526
        %v6528 = vmul.f32 %v5677, 1.442695
        %v6529 = vpow.pop %v6528
        %v6530 = vmul.f32 %v5678, 1.442695
        %v6531 = vpow.pop %v6530
        %v6532 = vmul.f32 %v5679, 1.442695
        %v6533 = vpow.pop %v6532
        %v6534 = vmul.f32 %v5680, 1.442695
        %v6535 = vpow.pop %v6534
        %v6536 = vmul.f32 %v5681, 1.442695
        %v6537 = vpow.pop %v6536
        %v6538 = vmul.f32 %v5682, 1.442695
        %v6539 = vpow.pop %v6538
        %v6540 = vmul.f32 %v5683, 1.442695
        %v6541 = vpow.pop %v6540
        %v6542 = vmul.f32 %v5684, 1.442695
        %v6543 = vpow.pop %v6542
        %v6544 = vmul.f32 %v5685, 1.442695
        %v6545 = vpow.pop %v6544
        %v6546 = vmul.f32 %v5686, 1.442695
        %v6547 = vpow.pop %v6546
        %v6548 = vmul.f32 %v5687, 1.442695
        %v6549 = vpow.pop %v6548
        %v6550 = vmul.f32 %v5688, 1.442695
        %v6551 = vpow.pop %v6550
        %v6552 = vmul.f32 %v5689, 1.442695
        %v6553 = vpow.pop %v6552
        %v6554 = vmul.f32 %v5690, 1.442695
        %v6555 = vpow.pop %v6554
        %v6556 = vmul.f32 %v5691, 1.442695
        %v6557 = vpow.pop %v6556
        %v6558 = vmul.f32 %v5692, 1.442695
        %v6559 = vpow.pop %v6558
        %v6560 = vmul.f32 %v5693, 1.442695
        %v6561 = vpow.pop %v6560
        %v6562 = vmul.f32 %v5694, 1.442695
        %v6563 = vpow.pop %v6562
        %v6564 = vmul.f32 %v5695, 1.442695
        %v6565 = vpow.pop %v6564
        %v6566 = vmul.f32 %v5696, 1.442695
        %v6567 = vpow.pop %v6566
        %v6568 = vmul.f32 %v5697, 1.442695
        %v6569 = vpow.pop %v6568
        %v6570 = vmul.f32 %v5698, 1.442695
        %v6571 = vpow.pop %v6570
        %v6572 = vmul.f32 %v5699, 1.442695
        %v6573 = vpow.pop %v6572
        %v6574 = vmul.f32 %v5700, 1.442695
        %v6575 = vpow.pop %v6574
        %v6576 = vmul.f32 %v5701, 1.442695
        %v6577 = vpow.pop %v6576
        %v6578 = vmul.f32 %v5702, 1.442695
        %v6579 = vpow.pop %v6578
        %v6580 = vmul.f32 %v5703, 1.442695
        %v6581 = vpow.pop %v6580
        %v6582 = vmul.f32 %v5704, 1.442695
        %v6583 = vpow.pop %v6582
        %v6584 = vmul.f32 %v5705, 1.442695
        %v6585 = vpow.pop %v6584
        %v6586 = vmul.f32 %v5706, 1.442695
        %v6587 = vpow.pop %v6586
        %v6588 = vmul.f32 %v5707, 1.442695
        %v6589 = vpow.pop %v6588
        %v6590 = vmul.f32 %v5708, 1.442695
        %v6591 = vpow.pop %v6590
        %v6592 = vmul.f32 %v5709, 1.442695
        %v6593 = vpow.pop %v6592
        %v6594 = vmul.f32 %v5710, 1.442695
        %v6595 = vpow.pop %v6594
        %v6596 = vmul.f32 %v5711, 1.442695
        %v6597 = vpow.pop %v6596
        %v6598 = vmul.f32 %v5712, 1.442695
        %v6599 = vpow.pop %v6598
        %v6600 = vmul.f32 %v5713, 1.442695
        %v6601 = vpow.pop %v6600
        %v6602 = vmul.f32 %v5714, 1.442695
        %v6603 = vpow.pop %v6602
        %v6604 = vmul.f32 %v5715, 1.442695
        %v6605 = vpow.pop %v6604
        %v6606 = vmul.f32 %v5716, 1.442695
        %v6607 = vpow.pop %v6606
        %v6608 = vmul.f32 %v5717, 1.442695
        %v6609 = vpow.pop %v6608
        %v6610 = vmul.f32 %v5718, 1.442695
        %v6611 = vpow.pop %v6610
        %v6612 = vmul.f32 %v5719, 1.442695
        %v6613 = vpow.pop %v6612
        %v6614 = vmul.f32 %v5720, 1.442695
        %v6615 = vpow.pop %v6614
        %v6616 = vmul.f32 %v5721, 1.442695
        %v6617 = vpow.pop %v6616
        %v6618 = vmul.f32 %v5722, 1.442695
        %v6619 = vpow.pop %v6618
        %v6620 = vmul.f32 %v5723, 1.442695
        %v6621 = vpow.pop %v6620
        %v6622 = vmul.f32 %v5724, 1.442695
        %v6623 = vpow.pop %v6622
        %v6624 = vmul.f32 %v5725, 1.442695
        %v6625 = vpow.pop %v6624
        %v6626 = vmul.f32 %v5726, 1.442695
        %v6627 = vpow.pop %v6626
        %v6628 = vmul.f32 %v5727, 1.442695
        %v6629 = vpow.pop %v6628
        %v6630 = vmul.f32 %v5728, 1.442695
        %v6631 = vpow.pop %v6630
        %v6632 = vmul.f32 %v5729, 1.442695
        %v6633 = vpow.pop %v6632
        %v6634 = vmul.f32 %v5730, 1.442695
        %v6635 = vpow.pop %v6634
        %v6636 = vmul.f32 %v5731, 1.442695
        %v6637 = vpow.pop %v6636
        %v6638 = vmul.f32 %v5732, 1.442695
        %v6639 = vpow.pop %v6638
        %v6640 = vmul.f32 %v5733, 1.442695
        %v6641 = vpow.pop %v6640
        %v6642 = vmul.f32 %v5734, 1.442695
        %v6643 = vpow.pop %v6642
        %v6644 = vmul.f32 %v5735, 1.442695
        %v6645 = vpow.pop %v6644
        %v6646 = vmul.f32 %v5736, 1.442695
        %v6647 = vpow.pop %v6646
        %v6648 = vmul.f32 %v5737, 1.442695
        %v6649 = vpow.pop %v6648
        %v6650 = vmul.f32 %v5738, 1.442695
        %v6651 = vpow.pop %v6650
        %v6652 = vmul.f32 %v5739, 1.442695
        %v6653 = vpow.pop %v6652
        %v6654 = vmul.f32 %v5740, 1.442695
        %v6655 = vpow.pop %v6654
        %v6656 = vmul.f32 %v5741, 1.442695
        %v6657 = vpow.pop %v6656
        %v6658 = vmul.f32 %v5742, 1.442695
        %v6659 = vpow.pop %v6658
        %v6660 = vmul.f32 %v5743, 1.442695
        %v6661 = vpow.pop %v6660
        %v6662 = vmul.f32 %v5744, 1.442695
        %v6663 = vpow.pop %v6662
        %v6664 = vmul.f32 %v5745, 1.442695
        %v6665 = vpow.pop %v6664
        %v6666 = vmul.f32 %v5746, 1.442695
        %v6667 = vpow.pop %v6666
        %v6668 = vmul.f32 %v5747, 1.442695
        %v6669 = vpow.pop %v6668
        %v6670 = vmul.f32 %v5748, 1.442695
        %v6671 = vpow.pop %v6670
        %v6672 = vmul.f32 %v5749, 1.442695
        %v6673 = vpow.pop %v6672
        %v6674 = vmul.f32 %v5750, 1.442695
        %v6675 = vpow.pop %v6674
        %v6676 = vmul.f32 %v5751, 1.442695
        %v6677 = vpow.pop %v6676
        %v6678 = vmul.f32 %v5752, 1.442695
        %v6679 = vpow.pop %v6678
        %v6680 = vmul.f32 %v5753, 1.442695
        %v6681 = vpow.pop %v6680
        %v6682 = vmul.f32 %v5754, 1.442695
        %v6683 = vpow.pop %v6682
        %v6684 = vmul.f32 %v5755, 1.442695
        %v6685 = vpow.pop %v6684
        %v6686 = vmul.f32 %v5756, 1.442695
        %v6687 = vpow.pop %v6686
        %v6688 = vmul.f32 %v5757, 1.442695
        %v6689 = vpow.pop %v6688
        %v6690 = vmul.f32 %v5758, 1.442695
        %v6691 = vpow.pop %v6690
        %v6692 = vmul.f32 %v5759, 1.442695
        %v6693 = vpow.pop %v6692
        %v6694 = vmul.f32 %v5760, 1.442695
        %v6695 = vpow.pop %v6694
        %v6696 = vmul.f32 %v5761, 1.442695
        %v6697 = vpow.pop %v6696
        %v6698 = vmul.f32 %v5762, 1.442695
        %v6699 = vpow.pop %v6698
        %v6700 = vmul.f32 %v5763, 1.442695
        %v6701 = vpow.pop %v6700
        %v6702 = vmul.f32 %v5764, 1.442695
        %v6703 = vpow.pop %v6702
        %v6704 = vmul.f32 %v5765, 1.442695
        %v6705 = vpow.pop %v6704
        %v6706 = vmul.f32 %v5766, 1.442695
        %v6707 = vpow.pop %v6706
        %v6708 = vmul.f32 %v5767, 1.442695
        %v6709 = vpow.pop %v6708
        %v6710 = vmul.f32 %v5768, 1.442695
        %v6711 = vpow.pop %v6710
        %v6712 = vmul.f32 %v5769, 1.442695
        %v6713 = vpow.pop %v6712
        %v6714 = vmul.f32 %v5770, 1.442695
        %v6715 = vpow.pop %v6714
        %v6716 = vmul.f32 %v5771, 1.442695
        %v6717 = vpow.pop %v6716
        %v6718 = vmul.f32 %v5772, 1.442695
        %v6719 = vpow.pop %v6718
        %v6720 = vmul.f32 %v5773, 1.442695
        %v6721 = vpow.pop %v6720
        %v6722 = vmul.f32 %v5774, 1.442695
        %v6723 = vpow.pop %v6722
        %v6724 = vmul.f32 %v5775, 1.442695
        %v6725 = vpow.pop %v6724
        %v6726 = vmul.f32 %v5776, 1.442695
        %v6727 = vpow.pop %v6726
        %v6728 = vmul.f32 %v5777, 1.442695
        %v6729 = vpow.pop %v6728
        %v6730 = vmul.f32 %v5778, 1.442695
        %v6731 = vpow.pop %v6730
        %v6732 = vmul.f32 %v5779, 1.442695
        %v6733 = vpow.pop %v6732
        %v6734 = vmul.f32 %v5780, 1.442695
        %v6735 = vpow.pop %v6734
        %v6736 = vmul.f32 %v5781, 1.442695
        %v6737 = vpow.pop %v6736
        %v6738 = vmul.f32 %v5782, 1.442695
        %v6739 = vpow.pop %v6738
        %v6740 = vmul.f32 %v5783, 1.442695
        %v6741 = vpow.pop %v6740
        %v6742 = vmul.f32 %v5784, 1.442695
        %v6743 = vpow.pop %v6742
        %v6744 = vmul.f32 %v5785, 1.442695
        %v6745 = vpow.pop %v6744
        %v6746 = vmul.f32 %v5786, 1.442695
        %v6747 = vpow.pop %v6746
        %v6748 = vmul.f32 %v5787, 1.442695
        %v6749 = vpow.pop %v6748
        %v6750 = vmul.f32 %v5788, 1.442695
        %v6751 = vpow.pop %v6750
        %v6752 = vmul.f32 %v5789, 1.442695
        %v6753 = vpow.pop %v6752
        %v6754 = vmul.f32 %v5790, 1.442695
        %v6755 = vpow.pop %v6754
        %v6756 = vmul.f32 %v5791, 1.442695
        %v6757 = vpow.pop %v6756
        %v6758 = vmul.f32 %v5792, 1.442695
        %v6759 = vpow.pop %v6758
        %v6760 = vmul.f32 %v5793, 1.442695
        %v6761 = vpow.pop %v6760
        %v6762 = vmul.f32 %v5794, 1.442695
        %v6763 = vpow.pop %v6762
        %v6764 = vmul.f32 %v5795, 1.442695
        %v6765 = vpow.pop %v6764
        %v6766 = vmul.f32 %v5796, 1.442695
        %v6767 = vpow.pop %v6766
        %v6768 = vmul.f32 %v5797, 1.442695
        %v6769 = vpow.pop %v6768
        %v6770 = vmul.f32 %v5798, 1.442695
        %v6771 = vpow.pop %v6770
        %v6772 = vmul.f32 %v5799, 1.442695
        %v6773 = vpow.pop %v6772
        %v6774 = vmul.f32 %v5800, 1.442695
        %v6775 = vpow.pop %v6774
        %v6776 = vmul.f32 %v5801, 1.442695
        %v6777 = vpow.pop %v6776
        %v6778 = vmul.f32 %v5802, 1.442695
        %v6779 = vpow.pop %v6778
        %v6780 = vmul.f32 %v5803, 1.442695
        %v6781 = vpow.pop %v6780
        %v6782 = vmul.f32 %v5804, 1.442695
        %v6783 = vpow.pop %v6782
        %v6784 = vmul.f32 %v5805, 1.442695
        %v6785 = vpow.pop %v6784
        %v6786 = vmul.f32 %v5806, 1.442695
        %v6787 = vpow.pop %v6786
        %v6788 = vmul.f32 %v5807, 1.442695
        %v6789 = vpow.pop %v6788
        %v6790 = vmul.f32 %v5808, 1.442695
        %v6791 = vpow.pop %v6790
        %v6792 = vmul.f32 %v5809, 1.442695
        %v6793 = vpow.pop %v6792
        %v6794 = vmul.f32 %v5810, 1.442695
        %v6795 = vpow.pop %v6794
        %v6796 = vmul.f32 %v5811, 1.442695
        %v6797 = vpow.pop %v6796
        %v6798 = vmul.f32 %v5812, 1.442695
        %v6799 = vpow.pop %v6798
        %v6800 = vmul.f32 %v5813, 1.442695
        %v6801 = vpow.pop %v6800
        %v6802 = vmul.f32 %v5814, 1.442695
        %v6803 = vpow.pop %v6802
        %v6804 = vmul.f32 %v5815, 1.442695
        %v6805 = vpow.pop %v6804
        %v6806 = vmul.f32 %v5816, 1.442695
        %v6807 = vpow.pop %v6806
        %v6808 = vmul.f32 %v5817, 1.442695
        %v6809 = vpow.pop %v6808
        %v6810 = vmul.f32 %v5818, 1.442695
        %v6811 = vpow.pop %v6810
        %v6812 = vmul.f32 %v5819, 1.442695
        %v6813 = vpow.pop %v6812
        %v6814 = vmul.f32 %v5820, 1.442695
        %v6815 = vpow.pop %v6814
        %v6816 = vmul.f32 %v5821, 1.442695
        %v6817 = vpow.pop %v6816
        %v6818 = vmul.f32 %v5822, 1.442695
        %v6819 = vpow.pop %v6818
        %v6820 = vmul.f32 %v5823, 1.442695
        %v6821 = vpow.pop %v6820
        %v6822 = vmul.f32 %v5824, 1.442695
        %v6823 = vpow.pop %v6822
        %v6824 = vmul.f32 %v5825, 1.442695
        %v6825 = vpow.pop %v6824
        %v6826 = vmul.f32 %v5826, 1.442695
        %v6827 = vpow.pop %v6826
        %v6828 = vmul.f32 %v5827, 1.442695
        %v6829 = vpow.pop %v6828
        %v6830 = vmul.f32 %v5828, 1.442695
        %v6831 = vpow.pop %v6830
        %v6832 = vmul.f32 %v5829, 1.442695
        %v6833 = vpow.pop %v6832
        %v6834 = vmul.f32 %v5830, 1.442695
        %v6835 = vpow.pop %v6834
        %v6836 = vmul.f32 %v5831, 1.442695
        %v6837 = vpow.pop %v6836
        %v6838 = vmul.f32 %v5832, 1.442695
        %v6839 = vpow.pop %v6838
        %v6840 = vmul.f32 %v5833, 1.442695
        %v6841 = vpow.pop %v6840
        %v6842 = vmul.f32 %v5834, 1.442695
        %v6843 = vpow.pop %v6842
        %v6844 = vmul.f32 %v5835, 1.442695
        %v6845 = vpow.pop %v6844
        %v6846 = vmul.f32 %v5836, 1.442695
        %v6847 = vpow.pop %v6846
        %v6848 = vmul.f32 %v5837, 1.442695
        %v6849 = vpow.pop %v6848
        %v6850 = vmul.f32 %v5838, 1.442695
        %v6851 = vpow.pop %v6850
        %v6852 = vmul.f32 %v5839, 1.442695
        %v6853 = vpow.pop %v6852
        %v6854 = vmul.f32 %v5840, 1.442695
        %v6855 = vpow.pop %v6854
        %v6856 = vmul.f32 %v5841, 1.442695
        %v6857 = vpow.pop %v6856
        %v6858 = vmul.f32 %v5842, 1.442695
        %v6859 = vpow.pop %v6858
        %v6860 = vmul.f32 %v5843, 1.442695
        %v6861 = vpow.pop %v6860
        %v6862 = vmul.f32 %v5844, 1.442695
        %v6863 = vpow.pop %v6862
        %v6864 = vmul.f32 %v5845, 1.442695
        %v6865 = vpow.pop %v6864
        %v6866 = vmul.f32 %v5846, 1.442695
        %v6867 = vpow.pop %v6866
        %v6868 = vmul.f32 %v5847, 1.442695
        %v6869 = vpow.pop %v6868
        %v6870 = vmul.f32 %v5848, 1.442695
        %v6871 = vpow.pop %v6870
        %v6872 = vmul.f32 %v5849, 1.442695
        %v6873 = vpow.pop %v6872
        %v6874 = vadd.f32 %v5851, %v5853
        %6875 = vadd.xlane.f32.xlu0 %v6874
        %v6876 = vpop.xlane.xlu0 %6875
        %v6877 = vadd.f32 %v5855, %v5857
        %6878 = vadd.xlane.f32.xlu0 %v6877
        %v6879 = vpop.xlane.xlu0 %6878
        %v6880 = vadd.f32 %v5859, %v5861
        %6881 = vadd.xlane.f32.xlu0 %v6880
        %v6882 = vpop.xlane.xlu0 %6881
        %v6883 = vadd.f32 %v5863, %v5865
        %6884 = vadd.xlane.f32.xlu0 %v6883
        %v6885 = vpop.xlane.xlu0 %6884
        %v6886 = vadd.f32 %v5867, %v5869
        %6887 = vadd.xlane.f32.xlu0 %v6886
        %v6888 = vpop.xlane.xlu0 %6887
        %v6889 = vadd.f32 %v5871, %v5873
        %6890 = vadd.xlane.f32.xlu0 %v6889
        %v6891 = vpop.xlane.xlu0 %6890
        %v6892 = vadd.f32 %v5875, %v5877
        %6893 = vadd.xlane.f32.xlu0 %v6892
        %v6894 = vpop.xlane.xlu0 %6893
        %v6895 = vadd.f32 %v5879, %v5881
        %6896 = vadd.xlane.f32.xlu0 %v6895
        %v6897 = vpop.xlane.xlu0 %6896
        %v6898 = vadd.f32 %v5883, %v5885
        %6899 = vadd.xlane.f32.xlu0 %v6898
        %v6900 = vpop.xlane.xlu0 %6899
        %v6901 = vadd.f32 %v5887, %v5889
        %6902 = vadd.xlane.f32.xlu0 %v6901
        %v6903 = vpop.xlane.xlu0 %6902
        %v6904 = vadd.f32 %v5891, %v5893
        %6905 = vadd.xlane.f32.xlu0 %v6904
        %v6906 = vpop.xlane.xlu0 %6905
        %v6907 = vadd.f32 %v5895, %v5897
        %6908 = vadd.xlane.f32.xlu0 %v6907
        %v6909 = vpop.xlane.xlu0 %6908
        %v6910 = vadd.f32 %v5899, %v5901
        %6911 = vadd.xlane.f32.xlu0 %v6910
        %v6912 = vpop.xlane.xlu0 %6911
        %v6913 = vadd.f32 %v5903, %v5905
        %6914 = vadd.xlane.f32.xlu0 %v6913
        %v6915 = vpop.xlane.xlu0 %6914
        %v6916 = vadd.f32 %v5907, %v5909
        %6917 = vadd.xlane.f32.xlu0 %v6916
        %v6918 = vpop.xlane.xlu0 %6917
        %v6919 = vadd.f32 %v5911, %v5913
        %6920 = vadd.xlane.f32.xlu0 %v6919
        %v6921 = vpop.xlane.xlu0 %6920
        %v6922 = vadd.f32 %v5915, %v5917
        %6923 = vadd.xlane.f32.xlu0 %v6922
        %v6924 = vpop.xlane.xlu0 %6923
        %v6925 = vadd.f32 %v5919, %v5921
        %6926 = vadd.xlane.f32.xlu0 %v6925
        %v6927 = vpop.xlane.xlu0 %6926
        %v6928 = vadd.f32 %v5923, %v5925
        %6929 = vadd.xlane.f32.xlu0 %v6928
        %v6930 = vpop.xlane.xlu0 %6929
        %v6931 = vadd.f32 %v5927, %v5929
        %6932 = vadd.xlane.f32.xlu0 %v6931
        %v6933 = vpop.xlane.xlu0 %6932
        %v6934 = vadd.f32 %v5931, %v5933
        %6935 = vadd.xlane.f32.xlu0 %v6934
        %v6936 = vpop.xlane.xlu0 %6935
        %v6937 = vadd.f32 %v5935, %v5937
        %6938 = vadd.xlane.f32.xlu0 %v6937
        %v6939 = vpop.xlane.xlu0 %6938
        %v6940 = vadd.f32 %v5939, %v5941
        %6941 = vadd.xlane.f32.xlu0 %v6940
        %v6942 = vpop.xlane.xlu0 %6941
        %v6943 = vadd.f32 %v5943, %v5945
        %6944 = vadd.xlane.f32.xlu0 %v6943
        %v6945 = vpop.xlane.xlu0 %6944
        %v6946 = vadd.f32 %v5947, %v5949
        %6947 = vadd.xlane.f32.xlu0 %v6946
        %v6948 = vpop.xlane.xlu0 %6947
        %v6949 = vadd.f32 %v5951, %v5953
        %6950 = vadd.xlane.f32.xlu0 %v6949
        %v6951 = vpop.xlane.xlu0 %6950
        %v6952 = vadd.f32 %v5955, %v5957
        %6953 = vadd.xlane.f32.xlu0 %v6952
        %v6954 = vpop.xlane.xlu0 %6953
        %v6955 = vadd.f32 %v5959, %v5961
        %6956 = vadd.xlane.f32.xlu0 %v6955
        %v6957 = vpop.xlane.xlu0 %6956
        %v6958 = vadd.f32 %v5963, %v5965
        %6959 = vadd.xlane.f32.xlu0 %v6958
        %v6960 = vpop.xlane.xlu0 %6959
        %v6961 = vadd.f32 %v5967, %v5969
        %6962 = vadd.xlane.f32.xlu0 %v6961
        %v6963 = vpop.xlane.xlu0 %6962
        %v6964 = vadd.f32 %v5971, %v5973
        %6965 = vadd.xlane.f32.xlu0 %v6964
        %v6966 = vpop.xlane.xlu0 %6965
        %v6967 = vadd.f32 %v5975, %v5977
        %6968 = vadd.xlane.f32.xlu0 %v6967
        %v6969 = vpop.xlane.xlu0 %6968
        %v6970 = vadd.f32 %v5979, %v5981
        %6971 = vadd.xlane.f32.xlu0 %v6970
        %v6972 = vpop.xlane.xlu0 %6971
        %v6973 = vadd.f32 %v5983, %v5985
        %6974 = vadd.xlane.f32.xlu0 %v6973
        %v6975 = vpop.xlane.xlu0 %6974
        %v6976 = vadd.f32 %v5987, %v5989
        %6977 = vadd.xlane.f32.xlu0 %v6976
        %v6978 = vpop.xlane.xlu0 %6977
        %v6979 = vadd.f32 %v5991, %v5993
        %6980 = vadd.xlane.f32.xlu0 %v6979
        %v6981 = vpop.xlane.xlu0 %6980
        %v6982 = vadd.f32 %v5995, %v5997
        %6983 = vadd.xlane.f32.xlu0 %v6982
        %v6984 = vpop.xlane.xlu0 %6983
        %v6985 = vadd.f32 %v5999, %v6001
        %6986 = vadd.xlane.f32.xlu0 %v6985
        %v6987 = vpop.xlane.xlu0 %6986
        %v6988 = vadd.f32 %v6003, %v6005
        %6989 = vadd.xlane.f32.xlu0 %v6988
        %v6990 = vpop.xlane.xlu0 %6989
        %v6991 = vadd.f32 %v6007, %v6009
        %6992 = vadd.xlane.f32.xlu0 %v6991
        %v6993 = vpop.xlane.xlu0 %6992
        %v6994 = vadd.f32 %v6011, %v6013
        %6995 = vadd.xlane.f32.xlu0 %v6994
        %v6996 = vpop.xlane.xlu0 %6995
        %v6997 = vadd.f32 %v6015, %v6017
        %6998 = vadd.xlane.f32.xlu0 %v6997
        %v6999 = vpop.xlane.xlu0 %6998
        %v7000 = vadd.f32 %v6019, %v6021
        %7001 = vadd.xlane.f32.xlu0 %v7000
        %v7002 = vpop.xlane.xlu0 %7001
        %v7003 = vadd.f32 %v6023, %v6025
        %7004 = vadd.xlane.f32.xlu0 %v7003
        %v7005 = vpop.xlane.xlu0 %7004
        %v7006 = vadd.f32 %v6027, %v6029
        %7007 = vadd.xlane.f32.xlu0 %v7006
        %v7008 = vpop.xlane.xlu0 %7007
        %v7009 = vadd.f32 %v6031, %v6033
        %7010 = vadd.xlane.f32.xlu0 %v7009
        %v7011 = vpop.xlane.xlu0 %7010
        %v7012 = vadd.f32 %v6035, %v6037
        %7013 = vadd.xlane.f32.xlu0 %v7012
        %v7014 = vpop.xlane.xlu0 %7013
        %v7015 = vadd.f32 %v6039, %v6041
        %7016 = vadd.xlane.f32.xlu0 %v7015
        %v7017 = vpop.xlane.xlu0 %7016
        %v7018 = vadd.f32 %v6043, %v6045
        %7019 = vadd.xlane.f32.xlu0 %v7018
        %v7020 = vpop.xlane.xlu0 %7019
        %v7021 = vadd.f32 %v6047, %v6049
        %7022 = vadd.xlane.f32.xlu0 %v7021
        %v7023 = vpop.xlane.xlu0 %7022
        %v7024 = vadd.f32 %v6051, %v6053
        %7025 = vadd.xlane.f32.xlu0 %v7024
        %v7026 = vpop.xlane.xlu0 %7025
        %v7027 = vadd.f32 %v6055, %v6057
        %7028 = vadd.xlane.f32.xlu0 %v7027
        %v7029 = vpop.xlane.xlu0 %7028
        %v7030 = vadd.f32 %v6059, %v6061
        %7031 = vadd.xlane.f32.xlu0 %v7030
        %v7032 = vpop.xlane.xlu0 %7031
        %v7033 = vadd.f32 %v6063, %v6065
        %7034 = vadd.xlane.f32.xlu0 %v7033
        %v7035 = vpop.xlane.xlu0 %7034
        %v7036 = vadd.f32 %v6067, %v6069
        %7037 = vadd.xlane.f32.xlu0 %v7036
        %v7038 = vpop.xlane.xlu0 %7037
        %v7039 = vadd.f32 %v6071, %v6073
        %7040 = vadd.xlane.f32.xlu0 %v7039
        %v7041 = vpop.xlane.xlu0 %7040
        %v7042 = vadd.f32 %v6075, %v6077
        %7043 = vadd.xlane.f32.xlu0 %v7042
        %v7044 = vpop.xlane.xlu0 %7043
        %v7045 = vadd.f32 %v6079, %v6081
        %7046 = vadd.xlane.f32.xlu0 %v7045
        %v7047 = vpop.xlane.xlu0 %7046
        %v7048 = vadd.f32 %v6083, %v6085
        %7049 = vadd.xlane.f32.xlu0 %v7048
        %v7050 = vpop.xlane.xlu0 %7049
        %v7051 = vadd.f32 %v6087, %v6089
        %7052 = vadd.xlane.f32.xlu0 %v7051
        %v7053 = vpop.xlane.xlu0 %7052
        %v7054 = vadd.f32 %v6091, %v6093
        %7055 = vadd.xlane.f32.xlu0 %v7054
        %v7056 = vpop.xlane.xlu0 %7055
        %v7057 = vadd.f32 %v6095, %v6097
        %7058 = vadd.xlane.f32.xlu0 %v7057
        %v7059 = vpop.xlane.xlu0 %7058
        %v7060 = vadd.f32 %v6099, %v6101
        %7061 = vadd.xlane.f32.xlu0 %v7060
        %v7062 = vpop.xlane.xlu0 %7061
        %v7063 = vadd.f32 %v6103, %v6105
        %7064 = vadd.xlane.f32.xlu0 %v7063
        %v7065 = vpop.xlane.xlu0 %7064
        %v7066 = vadd.f32 %v6107, %v6109
        %7067 = vadd.xlane.f32.xlu0 %v7066
        %v7068 = vpop.xlane.xlu0 %7067
        %v7069 = vadd.f32 %v6111, %v6113
        %7070 = vadd.xlane.f32.xlu0 %v7069
        %v7071 = vpop.xlane.xlu0 %7070
        %v7072 = vadd.f32 %v6115, %v6117
        %7073 = vadd.xlane.f32.xlu0 %v7072
        %v7074 = vpop.xlane.xlu0 %7073
        %v7075 = vadd.f32 %v6119, %v6121
        %7076 = vadd.xlane.f32.xlu0 %v7075
        %v7077 = vpop.xlane.xlu0 %7076
        %v7078 = vadd.f32 %v6123, %v6125
        %7079 = vadd.xlane.f32.xlu0 %v7078
        %v7080 = vpop.xlane.xlu0 %7079
        %v7081 = vadd.f32 %v6127, %v6129
        %7082 = vadd.xlane.f32.xlu0 %v7081
        %v7083 = vpop.xlane.xlu0 %7082
        %v7084 = vadd.f32 %v6131, %v6133
        %7085 = vadd.xlane.f32.xlu0 %v7084
        %v7086 = vpop.xlane.xlu0 %7085
        %v7087 = vadd.f32 %v6135, %v6137
        %7088 = vadd.xlane.f32.xlu0 %v7087
        %v7089 = vpop.xlane.xlu0 %7088
        %v7090 = vadd.f32 %v6139, %v6141
        %7091 = vadd.xlane.f32.xlu0 %v7090
        %v7092 = vpop.xlane.xlu0 %7091
        %v7093 = vadd.f32 %v6143, %v6145
        %7094 = vadd.xlane.f32.xlu0 %v7093
        %v7095 = vpop.xlane.xlu0 %7094
        %v7096 = vadd.f32 %v6147, %v6149
        %7097 = vadd.xlane.f32.xlu0 %v7096
        %v7098 = vpop.xlane.xlu0 %7097
        %v7099 = vadd.f32 %v6151, %v6153
        %7100 = vadd.xlane.f32.xlu0 %v7099
        %v7101 = vpop.xlane.xlu0 %7100
        %v7102 = vadd.f32 %v6155, %v6157
        %7103 = vadd.xlane.f32.xlu0 %v7102
        %v7104 = vpop.xlane.xlu0 %7103
        %v7105 = vadd.f32 %v6159, %v6161
        %7106 = vadd.xlane.f32.xlu0 %v7105
        %v7107 = vpop.xlane.xlu0 %7106
        %v7108 = vadd.f32 %v6163, %v6165
        %7109 = vadd.xlane.f32.xlu0 %v7108
        %v7110 = vpop.xlane.xlu0 %7109
        %v7111 = vadd.f32 %v6167, %v6169
        %7112 = vadd.xlane.f32.xlu0 %v7111
        %v7113 = vpop.xlane.xlu0 %7112
        %v7114 = vadd.f32 %v6171, %v6173
        %7115 = vadd.xlane.f32.xlu0 %v7114
        %v7116 = vpop.xlane.xlu0 %7115
        %v7117 = vadd.f32 %v6175, %v6177
        %7118 = vadd.xlane.f32.xlu0 %v7117
        %v7119 = vpop.xlane.xlu0 %7118
        %v7120 = vadd.f32 %v6179, %v6181
        %7121 = vadd.xlane.f32.xlu0 %v7120
        %v7122 = vpop.xlane.xlu0 %7121
        %v7123 = vadd.f32 %v6183, %v6185
        %7124 = vadd.xlane.f32.xlu0 %v7123
        %v7125 = vpop.xlane.xlu0 %7124
        %v7126 = vadd.f32 %v6187, %v6189
        %7127 = vadd.xlane.f32.xlu0 %v7126
        %v7128 = vpop.xlane.xlu0 %7127
        %v7129 = vadd.f32 %v6191, %v6193
        %7130 = vadd.xlane.f32.xlu0 %v7129
        %v7131 = vpop.xlane.xlu0 %7130
        %v7132 = vadd.f32 %v6195, %v6197
        %7133 = vadd.xlane.f32.xlu0 %v7132
        %v7134 = vpop.xlane.xlu0 %7133
        %v7135 = vadd.f32 %v6199, %v6201
        %7136 = vadd.xlane.f32.xlu0 %v7135
        %v7137 = vpop.xlane.xlu0 %7136
        %v7138 = vadd.f32 %v6203, %v6205
        %7139 = vadd.xlane.f32.xlu0 %v7138
        %v7140 = vpop.xlane.xlu0 %7139
        %v7141 = vadd.f32 %v6207, %v6209
        %7142 = vadd.xlane.f32.xlu0 %v7141
        %v7143 = vpop.xlane.xlu0 %7142
        %v7144 = vadd.f32 %v6211, %v6213
        %7145 = vadd.xlane.f32.xlu0 %v7144
        %v7146 = vpop.xlane.xlu0 %7145
        %v7147 = vadd.f32 %v6215, %v6217
        %7148 = vadd.xlane.f32.xlu0 %v7147
        %v7149 = vpop.xlane.xlu0 %7148
        %v7150 = vadd.f32 %v6219, %v6221
        %7151 = vadd.xlane.f32.xlu0 %v7150
        %v7152 = vpop.xlane.xlu0 %7151
        %v7153 = vadd.f32 %v6223, %v6225
        %7154 = vadd.xlane.f32.xlu0 %v7153
        %v7155 = vpop.xlane.xlu0 %7154
        %v7156 = vadd.f32 %v6227, %v6229
        %7157 = vadd.xlane.f32.xlu0 %v7156
        %v7158 = vpop.xlane.xlu0 %7157
        %v7159 = vadd.f32 %v6231, %v6233
        %7160 = vadd.xlane.f32.xlu0 %v7159
        %v7161 = vpop.xlane.xlu0 %7160
        %v7162 = vadd.f32 %v6235, %v6237
        %7163 = vadd.xlane.f32.xlu0 %v7162
        %v7164 = vpop.xlane.xlu0 %7163
        %v7165 = vadd.f32 %v6239, %v6241
        %7166 = vadd.xlane.f32.xlu0 %v7165
        %v7167 = vpop.xlane.xlu0 %7166
        %v7168 = vadd.f32 %v6243, %v6245
        %7169 = vadd.xlane.f32.xlu0 %v7168
        %v7170 = vpop.xlane.xlu0 %7169
        %v7171 = vadd.f32 %v6247, %v6249
        %7172 = vadd.xlane.f32.xlu0 %v7171
        %v7173 = vpop.xlane.xlu0 %7172
        %v7174 = vadd.f32 %v6251, %v6253
        %7175 = vadd.xlane.f32.xlu0 %v7174
        %v7176 = vpop.xlane.xlu0 %7175
        %v7177 = vadd.f32 %v6255, %v6257
        %7178 = vadd.xlane.f32.xlu0 %v7177
        %v7179 = vpop.xlane.xlu0 %7178
        %v7180 = vadd.f32 %v6259, %v6261
        %7181 = vadd.xlane.f32.xlu0 %v7180
        %v7182 = vpop.xlane.xlu0 %7181
        %v7183 = vadd.f32 %v6263, %v6265
        %7184 = vadd.xlane.f32.xlu0 %v7183
        %v7185 = vpop.xlane.xlu0 %7184
        %v7186 = vadd.f32 %v6267, %v6269
        %7187 = vadd.xlane.f32.xlu0 %v7186
        %v7188 = vpop.xlane.xlu0 %7187
        %v7189 = vadd.f32 %v6271, %v6273
        %7190 = vadd.xlane.f32.xlu0 %v7189
        %v7191 = vpop.xlane.xlu0 %7190
        %v7192 = vadd.f32 %v6275, %v6277
        %7193 = vadd.xlane.f32.xlu0 %v7192
        %v7194 = vpop.xlane.xlu0 %7193
        %v7195 = vadd.f32 %v6279, %v6281
        %7196 = vadd.xlane.f32.xlu0 %v7195
        %v7197 = vpop.xlane.xlu0 %7196
        %v7198 = vadd.f32 %v6283, %v6285
        %7199 = vadd.xlane.f32.xlu0 %v7198
        %v7200 = vpop.xlane.xlu0 %7199
        %v7201 = vadd.f32 %v6287, %v6289
        %7202 = vadd.xlane.f32.xlu0 %v7201
        %v7203 = vpop.xlane.xlu0 %7202
        %v7204 = vadd.f32 %v6291, %v6293
        %7205 = vadd.xlane.f32.xlu0 %v7204
        %v7206 = vpop.xlane.xlu0 %7205
        %v7207 = vadd.f32 %v6295, %v6297
        %7208 = vadd.xlane.f32.xlu0 %v7207
        %v7209 = vpop.xlane.xlu0 %7208
        %v7210 = vadd.f32 %v6299, %v6301
        %7211 = vadd.xlane.f32.xlu0 %v7210
        %v7212 = vpop.xlane.xlu0 %7211
        %v7213 = vadd.f32 %v6303, %v6305
        %7214 = vadd.xlane.f32.xlu0 %v7213
        %v7215 = vpop.xlane.xlu0 %7214
        %v7216 = vadd.f32 %v6307, %v6309
        %7217 = vadd.xlane.f32.xlu0 %v7216
        %v7218 = vpop.xlane.xlu0 %7217
        %v7219 = vadd.f32 %v6311, %v6313
        %7220 = vadd.xlane.f32.xlu0 %v7219
        %v7221 = vpop.xlane.xlu0 %7220
        %v7222 = vadd.f32 %v6315, %v6317
        %7223 = vadd.xlane.f32.xlu0 %v7222
        %v7224 = vpop.xlane.xlu0 %7223
        %v7225 = vadd.f32 %v6319, %v6321
        %7226 = vadd.xlane.f32.xlu0 %v7225
        %v7227 = vpop.xlane.xlu0 %7226
        %v7228 = vadd.f32 %v6323, %v6325
        %7229 = vadd.xlane.f32.xlu0 %v7228
        %v7230 = vpop.xlane.xlu0 %7229
        %v7231 = vadd.f32 %v6327, %v6329
        %7232 = vadd.xlane.f32.xlu0 %v7231
        %v7233 = vpop.xlane.xlu0 %7232
        %v7234 = vadd.f32 %v6331, %v6333
        %7235 = vadd.xlane.f32.xlu0 %v7234
        %v7236 = vpop.xlane.xlu0 %7235
        %v7237 = vadd.f32 %v6335, %v6337
        %7238 = vadd.xlane.f32.xlu0 %v7237
        %v7239 = vpop.xlane.xlu0 %7238
        %v7240 = vadd.f32 %v6339, %v6341
        %7241 = vadd.xlane.f32.xlu0 %v7240
        %v7242 = vpop.xlane.xlu0 %7241
        %v7243 = vadd.f32 %v6343, %v6345
        %7244 = vadd.xlane.f32.xlu0 %v7243
        %v7245 = vpop.xlane.xlu0 %7244
        %v7246 = vadd.f32 %v6347, %v6349
        %7247 = vadd.xlane.f32.xlu0 %v7246
        %v7248 = vpop.xlane.xlu0 %7247
        %v7249 = vadd.f32 %v6351, %v6353
        %7250 = vadd.xlane.f32.xlu0 %v7249
        %v7251 = vpop.xlane.xlu0 %7250
        %v7252 = vadd.f32 %v6355, %v6357
        %7253 = vadd.xlane.f32.xlu0 %v7252
        %v7254 = vpop.xlane.xlu0 %7253
        %v7255 = vadd.f32 %v6359, %v6361
        %7256 = vadd.xlane.f32.xlu0 %v7255
        %v7257 = vpop.xlane.xlu0 %7256
        %v7258 = vadd.f32 %v6363, %v6365
        %7259 = vadd.xlane.f32.xlu0 %v7258
        %v7260 = vpop.xlane.xlu0 %7259
        %v7261 = vadd.f32 %v6367, %v6369
        %7262 = vadd.xlane.f32.xlu0 %v7261
        %v7263 = vpop.xlane.xlu0 %7262
        %v7264 = vadd.f32 %v6371, %v6373
        %7265 = vadd.xlane.f32.xlu0 %v7264
        %v7266 = vpop.xlane.xlu0 %7265
        %v7267 = vadd.f32 %v6375, %v6377
        %7268 = vadd.xlane.f32.xlu0 %v7267
        %v7269 = vpop.xlane.xlu0 %7268
        %v7270 = vadd.f32 %v6379, %v6381
        %7271 = vadd.xlane.f32.xlu0 %v7270
        %v7272 = vpop.xlane.xlu0 %7271
        %v7273 = vadd.f32 %v6383, %v6385
        %7274 = vadd.xlane.f32.xlu0 %v7273
        %v7275 = vpop.xlane.xlu0 %7274
        %v7276 = vadd.f32 %v6387, %v6389
        %7277 = vadd.xlane.f32.xlu0 %v7276
        %v7278 = vpop.xlane.xlu0 %7277
        %v7279 = vadd.f32 %v6391, %v6393
        %7280 = vadd.xlane.f32.xlu0 %v7279
        %v7281 = vpop.xlane.xlu0 %7280
        %v7282 = vadd.f32 %v6395, %v6397
        %7283 = vadd.xlane.f32.xlu0 %v7282
        %v7284 = vpop.xlane.xlu0 %7283
        %v7285 = vadd.f32 %v6399, %v6401
        %7286 = vadd.xlane.f32.xlu0 %v7285
        %v7287 = vpop.xlane.xlu0 %7286
        %v7288 = vadd.f32 %v6403, %v6405
        %7289 = vadd.xlane.f32.xlu0 %v7288
        %v7290 = vpop.xlane.xlu0 %7289
        %v7291 = vadd.f32 %v6407, %v6409
        %7292 = vadd.xlane.f32.xlu0 %v7291
        %v7293 = vpop.xlane.xlu0 %7292
        %v7294 = vadd.f32 %v6411, %v6413
        %7295 = vadd.xlane.f32.xlu0 %v7294
        %v7296 = vpop.xlane.xlu0 %7295
        %v7297 = vadd.f32 %v6415, %v6417
        %7298 = vadd.xlane.f32.xlu0 %v7297
        %v7299 = vpop.xlane.xlu0 %7298
        %v7300 = vadd.f32 %v6419, %v6421
        %7301 = vadd.xlane.f32.xlu0 %v7300
        %v7302 = vpop.xlane.xlu0 %7301
        %v7303 = vadd.f32 %v6423, %v6425
        %7304 = vadd.xlane.f32.xlu0 %v7303
        %v7305 = vpop.xlane.xlu0 %7304
        %v7306 = vadd.f32 %v6427, %v6429
        %7307 = vadd.xlane.f32.xlu0 %v7306
        %v7308 = vpop.xlane.xlu0 %7307
        %v7309 = vadd.f32 %v6431, %v6433
        %7310 = vadd.xlane.f32.xlu0 %v7309
        %v7311 = vpop.xlane.xlu0 %7310
        %v7312 = vadd.f32 %v6435, %v6437
        %7313 = vadd.xlane.f32.xlu0 %v7312
        %v7314 = vpop.xlane.xlu0 %7313
        %v7315 = vadd.f32 %v6439, %v6441
        %7316 = vadd.xlane.f32.xlu0 %v7315
        %v7317 = vpop.xlane.xlu0 %7316
        %v7318 = vadd.f32 %v6443, %v6445
        %7319 = vadd.xlane.f32.xlu0 %v7318
        %v7320 = vpop.xlane.xlu0 %7319
        %v7321 = vadd.f32 %v6447, %v6449
        %7322 = vadd.xlane.f32.xlu0 %v7321
        %v7323 = vpop.xlane.xlu0 %7322
        %v7324 = vadd.f32 %v6451, %v6453
        %7325 = vadd.xlane.f32.xlu0 %v7324
        %v7326 = vpop.xlane.xlu0 %7325
        %v7327 = vadd.f32 %v6455, %v6457
        %7328 = vadd.xlane.f32.xlu0 %v7327
        %v7329 = vpop.xlane.xlu0 %7328
        %v7330 = vadd.f32 %v6459, %v6461
        %7331 = vadd.xlane.f32.xlu0 %v7330
        %v7332 = vpop.xlane.xlu0 %7331
        %v7333 = vadd.f32 %v6463, %v6465
        %7334 = vadd.xlane.f32.xlu0 %v7333
        %v7335 = vpop.xlane.xlu0 %7334
        %v7336 = vadd.f32 %v6467, %v6469
        %7337 = vadd.xlane.f32.xlu0 %v7336
        %v7338 = vpop.xlane.xlu0 %7337
        %v7339 = vadd.f32 %v6471, %v6473
        %7340 = vadd.xlane.f32.xlu0 %v7339
        %v7341 = vpop.xlane.xlu0 %7340
        %v7342 = vadd.f32 %v6475, %v6477
        %7343 = vadd.xlane.f32.xlu0 %v7342
        %v7344 = vpop.xlane.xlu0 %7343
        %v7345 = vadd.f32 %v6479, %v6481
        %7346 = vadd.xlane.f32.xlu0 %v7345
        %v7347 = vpop.xlane.xlu0 %7346
        %v7348 = vadd.f32 %v6483, %v6485
        %7349 = vadd.xlane.f32.xlu0 %v7348
        %v7350 = vpop.xlane.xlu0 %7349
        %v7351 = vadd.f32 %v6487, %v6489
        %7352 = vadd.xlane.f32.xlu0 %v7351
        %v7353 = vpop.xlane.xlu0 %7352
        %v7354 = vadd.f32 %v6491, %v6493
        %7355 = vadd.xlane.f32.xlu0 %v7354
        %v7356 = vpop.xlane.xlu0 %7355
        %v7357 = vadd.f32 %v6495, %v6497
        %7358 = vadd.xlane.f32.xlu0 %v7357
        %v7359 = vpop.xlane.xlu0 %7358
        %v7360 = vadd.f32 %v6499, %v6501
        %7361 = vadd.xlane.f32.xlu0 %v7360
        %v7362 = vpop.xlane.xlu0 %7361
        %v7363 = vadd.f32 %v6503, %v6505
        %7364 = vadd.xlane.f32.xlu0 %v7363
        %v7365 = vpop.xlane.xlu0 %7364
        %v7366 = vadd.f32 %v6507, %v6509
        %7367 = vadd.xlane.f32.xlu0 %v7366
        %v7368 = vpop.xlane.xlu0 %7367
        %v7369 = vadd.f32 %v6511, %v6513
        %7370 = vadd.xlane.f32.xlu0 %v7369
        %v7371 = vpop.xlane.xlu0 %7370
        %v7372 = vadd.f32 %v6515, %v6517
        %7373 = vadd.xlane.f32.xlu0 %v7372
        %v7374 = vpop.xlane.xlu0 %7373
        %v7375 = vadd.f32 %v6519, %v6521
        %7376 = vadd.xlane.f32.xlu0 %v7375
        %v7377 = vpop.xlane.xlu0 %7376
        %v7378 = vadd.f32 %v6523, %v6525
        %7379 = vadd.xlane.f32.xlu0 %v7378
        %v7380 = vpop.xlane.xlu0 %7379
        %v7381 = vadd.f32 %v6527, %v6529
        %7382 = vadd.xlane.f32.xlu0 %v7381
        %v7383 = vpop.xlane.xlu0 %7382
        %v7384 = vadd.f32 %v6531, %v6533
        %7385 = vadd.xlane.f32.xlu0 %v7384
        %v7386 = vpop.xlane.xlu0 %7385
        %v7387 = vadd.f32 %v6535, %v6537
        %7388 = vadd.xlane.f32.xlu0 %v7387
        %v7389 = vpop.xlane.xlu0 %7388
        %v7390 = vadd.f32 %v6539, %v6541
        %7391 = vadd.xlane.f32.xlu0 %v7390
        %v7392 = vpop.xlane.xlu0 %7391
        %v7393 = vadd.f32 %v6543, %v6545
        %7394 = vadd.xlane.f32.xlu0 %v7393
        %v7395 = vpop.xlane.xlu0 %7394
        %v7396 = vadd.f32 %v6547, %v6549
        %7397 = vadd.xlane.f32.xlu0 %v7396
        %v7398 = vpop.xlane.xlu0 %7397
        %v7399 = vadd.f32 %v6551, %v6553
        %7400 = vadd.xlane.f32.xlu0 %v7399
        %v7401 = vpop.xlane.xlu0 %7400
        %v7402 = vadd.f32 %v6555, %v6557
        %7403 = vadd.xlane.f32.xlu0 %v7402
        %v7404 = vpop.xlane.xlu0 %7403
        %v7405 = vadd.f32 %v6559, %v6561
        %7406 = vadd.xlane.f32.xlu0 %v7405
        %v7407 = vpop.xlane.xlu0 %7406
        %v7408 = vadd.f32 %v6563, %v6565
        %7409 = vadd.xlane.f32.xlu0 %v7408
        %v7410 = vpop.xlane.xlu0 %7409
        %v7411 = vadd.f32 %v6567, %v6569
        %7412 = vadd.xlane.f32.xlu0 %v7411
        %v7413 = vpop.xlane.xlu0 %7412
        %v7414 = vadd.f32 %v6571, %v6573
        %7415 = vadd.xlane.f32.xlu0 %v7414
        %v7416 = vpop.xlane.xlu0 %7415
        %v7417 = vadd.f32 %v6575, %v6577
        %7418 = vadd.xlane.f32.xlu0 %v7417
        %v7419 = vpop.xlane.xlu0 %7418
        %v7420 = vadd.f32 %v6579, %v6581
        %7421 = vadd.xlane.f32.xlu0 %v7420
        %v7422 = vpop.xlane.xlu0 %7421
        %v7423 = vadd.f32 %v6583, %v6585
        %7424 = vadd.xlane.f32.xlu0 %v7423
        %v7425 = vpop.xlane.xlu0 %7424
        %v7426 = vadd.f32 %v6587, %v6589
        %7427 = vadd.xlane.f32.xlu0 %v7426
        %v7428 = vpop.xlane.xlu0 %7427
        %v7429 = vadd.f32 %v6591, %v6593
        %7430 = vadd.xlane.f32.xlu0 %v7429
        %v7431 = vpop.xlane.xlu0 %7430
        %v7432 = vadd.f32 %v6595, %v6597
        %7433 = vadd.xlane.f32.xlu0 %v7432
        %v7434 = vpop.xlane.xlu0 %7433
        %v7435 = vadd.f32 %v6599, %v6601
        %7436 = vadd.xlane.f32.xlu0 %v7435
        %v7437 = vpop.xlane.xlu0 %7436
        %v7438 = vadd.f32 %v6603, %v6605
        %7439 = vadd.xlane.f32.xlu0 %v7438
        %v7440 = vpop.xlane.xlu0 %7439
        %v7441 = vadd.f32 %v6607, %v6609
        %7442 = vadd.xlane.f32.xlu0 %v7441
        %v7443 = vpop.xlane.xlu0 %7442
        %v7444 = vadd.f32 %v6611, %v6613
        %7445 = vadd.xlane.f32.xlu0 %v7444
        %v7446 = vpop.xlane.xlu0 %7445
        %v7447 = vadd.f32 %v6615, %v6617
        %7448 = vadd.xlane.f32.xlu0 %v7447
        %v7449 = vpop.xlane.xlu0 %7448
        %v7450 = vadd.f32 %v6619, %v6621
        %7451 = vadd.xlane.f32.xlu0 %v7450
        %v7452 = vpop.xlane.xlu0 %7451
        %v7453 = vadd.f32 %v6623, %v6625
        %7454 = vadd.xlane.f32.xlu0 %v7453
        %v7455 = vpop.xlane.xlu0 %7454
        %v7456 = vadd.f32 %v6627, %v6629
        %7457 = vadd.xlane.f32.xlu0 %v7456
        %v7458 = vpop.xlane.xlu0 %7457
        %v7459 = vadd.f32 %v6631, %v6633
        %7460 = vadd.xlane.f32.xlu0 %v7459
        %v7461 = vpop.xlane.xlu0 %7460
        %v7462 = vadd.f32 %v6635, %v6637
        %7463 = vadd.xlane.f32.xlu0 %v7462
        %v7464 = vpop.xlane.xlu0 %7463
        %v7465 = vadd.f32 %v6639, %v6641
        %7466 = vadd.xlane.f32.xlu0 %v7465
        %v7467 = vpop.xlane.xlu0 %7466
        %v7468 = vadd.f32 %v6643, %v6645
        %7469 = vadd.xlane.f32.xlu0 %v7468
        %v7470 = vpop.xlane.xlu0 %7469
        %v7471 = vadd.f32 %v6647, %v6649
        %7472 = vadd.xlane.f32.xlu0 %v7471
        %v7473 = vpop.xlane.xlu0 %7472
        %v7474 = vadd.f32 %v6651, %v6653
        %7475 = vadd.xlane.f32.xlu0 %v7474
        %v7476 = vpop.xlane.xlu0 %7475
        %v7477 = vadd.f32 %v6655, %v6657
        %7478 = vadd.xlane.f32.xlu0 %v7477
        %v7479 = vpop.xlane.xlu0 %7478
        %v7480 = vadd.f32 %v6659, %v6661
        %7481 = vadd.xlane.f32.xlu0 %v7480
        %v7482 = vpop.xlane.xlu0 %7481
        %v7483 = vadd.f32 %v6663, %v6665
        %7484 = vadd.xlane.f32.xlu0 %v7483
        %v7485 = vpop.xlane.xlu0 %7484
        %v7486 = vadd.f32 %v6667, %v6669
        %7487 = vadd.xlane.f32.xlu0 %v7486
        %v7488 = vpop.xlane.xlu0 %7487
        %v7489 = vadd.f32 %v6671, %v6673
        %7490 = vadd.xlane.f32.xlu0 %v7489
        %v7491 = vpop.xlane.xlu0 %7490
        %v7492 = vadd.f32 %v6675, %v6677
        %7493 = vadd.xlane.f32.xlu0 %v7492
        %v7494 = vpop.xlane.xlu0 %7493
        %v7495 = vadd.f32 %v6679, %v6681
        %7496 = vadd.xlane.f32.xlu0 %v7495
        %v7497 = vpop.xlane.xlu0 %7496
        %v7498 = vadd.f32 %v6683, %v6685
        %7499 = vadd.xlane.f32.xlu0 %v7498
        %v7500 = vpop.xlane.xlu0 %7499
        %v7501 = vadd.f32 %v6687, %v6689
        %7502 = vadd.xlane.f32.xlu0 %v7501
        %v7503 = vpop.xlane.xlu0 %7502
        %v7504 = vadd.f32 %v6691, %v6693
        %7505 = vadd.xlane.f32.xlu0 %v7504
        %v7506 = vpop.xlane.xlu0 %7505
        %v7507 = vadd.f32 %v6695, %v6697
        %7508 = vadd.xlane.f32.xlu0 %v7507
        %v7509 = vpop.xlane.xlu0 %7508
        %v7510 = vadd.f32 %v6699, %v6701
        %7511 = vadd.xlane.f32.xlu0 %v7510
        %v7512 = vpop.xlane.xlu0 %7511
        %v7513 = vadd.f32 %v6703, %v6705
        %7514 = vadd.xlane.f32.xlu0 %v7513
        %v7515 = vpop.xlane.xlu0 %7514
        %v7516 = vadd.f32 %v6707, %v6709
        %7517 = vadd.xlane.f32.xlu0 %v7516
        %v7518 = vpop.xlane.xlu0 %7517
        %v7519 = vadd.f32 %v6711, %v6713
        %7520 = vadd.xlane.f32.xlu0 %v7519
        %v7521 = vpop.xlane.xlu0 %7520
        %v7522 = vadd.f32 %v6715, %v6717
        %7523 = vadd.xlane.f32.xlu0 %v7522
        %v7524 = vpop.xlane.xlu0 %7523
        %v7525 = vadd.f32 %v6719, %v6721
        %7526 = vadd.xlane.f32.xlu0 %v7525
        %v7527 = vpop.xlane.xlu0 %7526
        %v7528 = vadd.f32 %v6723, %v6725
        %7529 = vadd.xlane.f32.xlu0 %v7528
        %v7530 = vpop.xlane.xlu0 %7529
        %v7531 = vadd.f32 %v6727, %v6729
        %7532 = vadd.xlane.f32.xlu0 %v7531
        %v7533 = vpop.xlane.xlu0 %7532
        %v7534 = vadd.f32 %v6731, %v6733
        %7535 = vadd.xlane.f32.xlu0 %v7534
        %v7536 = vpop.xlane.xlu0 %7535
        %v7537 = vadd.f32 %v6735, %v6737
        %7538 = vadd.xlane.f32.xlu0 %v7537
        %v7539 = vpop.xlane.xlu0 %7538
        %v7540 = vadd.f32 %v6739, %v6741
        %7541 = vadd.xlane.f32.xlu0 %v7540
        %v7542 = vpop.xlane.xlu0 %7541
        %v7543 = vadd.f32 %v6743, %v6745
        %7544 = vadd.xlane.f32.xlu0 %v7543
        %v7545 = vpop.xlane.xlu0 %7544
        %v7546 = vadd.f32 %v6747, %v6749
        %7547 = vadd.xlane.f32.xlu0 %v7546
        %v7548 = vpop.xlane.xlu0 %7547
        %v7549 = vadd.f32 %v6751, %v6753
        %7550 = vadd.xlane.f32.xlu0 %v7549
        %v7551 = vpop.xlane.xlu0 %7550
        %v7552 = vadd.f32 %v6755, %v6757
        %7553 = vadd.xlane.f32.xlu0 %v7552
        %v7554 = vpop.xlane.xlu0 %7553
        %v7555 = vadd.f32 %v6759, %v6761
        %7556 = vadd.xlane.f32.xlu0 %v7555
        %v7557 = vpop.xlane.xlu0 %7556
        %v7558 = vadd.f32 %v6763, %v6765
        %7559 = vadd.xlane.f32.xlu0 %v7558
        %v7560 = vpop.xlane.xlu0 %7559
        %v7561 = vadd.f32 %v6767, %v6769
        %7562 = vadd.xlane.f32.xlu0 %v7561
        %v7563 = vpop.xlane.xlu0 %7562
        %v7564 = vadd.f32 %v6771, %v6773
        %7565 = vadd.xlane.f32.xlu0 %v7564
        %v7566 = vpop.xlane.xlu0 %7565
        %v7567 = vadd.f32 %v6775, %v6777
        %7568 = vadd.xlane.f32.xlu0 %v7567
        %v7569 = vpop.xlane.xlu0 %7568
        %v7570 = vadd.f32 %v6779, %v6781
        %7571 = vadd.xlane.f32.xlu0 %v7570
        %v7572 = vpop.xlane.xlu0 %7571
        %v7573 = vadd.f32 %v6783, %v6785
        %7574 = vadd.xlane.f32.xlu0 %v7573
        %v7575 = vpop.xlane.xlu0 %7574
        %v7576 = vadd.f32 %v6787, %v6789
        %7577 = vadd.xlane.f32.xlu0 %v7576
        %v7578 = vpop.xlane.xlu0 %7577
        %v7579 = vadd.f32 %v6791, %v6793
        %7580 = vadd.xlane.f32.xlu0 %v7579
        %v7581 = vpop.xlane.xlu0 %7580
        %v7582 = vadd.f32 %v6795, %v6797
        %7583 = vadd.xlane.f32.xlu0 %v7582
        %v7584 = vpop.xlane.xlu0 %7583
        %v7585 = vadd.f32 %v6799, %v6801
        %7586 = vadd.xlane.f32.xlu0 %v7585
        %v7587 = vpop.xlane.xlu0 %7586
        %v7588 = vadd.f32 %v6803, %v6805
        %7589 = vadd.xlane.f32.xlu0 %v7588
        %v7590 = vpop.xlane.xlu0 %7589
        %v7591 = vadd.f32 %v6807, %v6809
        %7592 = vadd.xlane.f32.xlu0 %v7591
        %v7593 = vpop.xlane.xlu0 %7592
        %v7594 = vadd.f32 %v6811, %v6813
        %7595 = vadd.xlane.f32.xlu0 %v7594
        %v7596 = vpop.xlane.xlu0 %7595
        %v7597 = vadd.f32 %v6815, %v6817
        %7598 = vadd.xlane.f32.xlu0 %v7597
        %v7599 = vpop.xlane.xlu0 %7598
        %v7600 = vadd.f32 %v6819, %v6821
        %7601 = vadd.xlane.f32.xlu0 %v7600
        %v7602 = vpop.xlane.xlu0 %7601
        %v7603 = vadd.f32 %v6823, %v6825
        %7604 = vadd.xlane.f32.xlu0 %v7603
        %v7605 = vpop.xlane.xlu0 %7604
        %v7606 = vadd.f32 %v6827, %v6829
        %7607 = vadd.xlane.f32.xlu0 %v7606
        %v7608 = vpop.xlane.xlu0 %7607
        %v7609 = vadd.f32 %v6831, %v6833
        %7610 = vadd.xlane.f32.xlu0 %v7609
        %v7611 = vpop.xlane.xlu0 %7610
        %v7612 = vadd.f32 %v6835, %v6837
        %7613 = vadd.xlane.f32.xlu0 %v7612
        %v7614 = vpop.xlane.xlu0 %7613
        %v7615 = vadd.f32 %v6839, %v6841
        %7616 = vadd.xlane.f32.xlu0 %v7615
        %v7617 = vpop.xlane.xlu0 %7616
        %v7618 = vadd.f32 %v6843, %v6845
        %7619 = vadd.xlane.f32.xlu0 %v7618
        %v7620 = vpop.xlane.xlu0 %7619
        %v7621 = vadd.f32 %v6847, %v6849
        %7622 = vadd.xlane.f32.xlu0 %v7621
        %v7623 = vpop.xlane.xlu0 %7622
        %v7624 = vadd.f32 %v6851, %v6853
        %7625 = vadd.xlane.f32.xlu0 %v7624
        %v7626 = vpop.xlane.xlu0 %7625
        %v7627 = vadd.f32 %v6855, %v6857
        %7628 = vadd.xlane.f32.xlu0 %v7627
        %v7629 = vpop.xlane.xlu0 %7628
        %v7630 = vadd.f32 %v6859, %v6861
        %7631 = vadd.xlane.f32.xlu0 %v7630
        %v7632 = vpop.xlane.xlu0 %7631
        %v7633 = vadd.f32 %v6863, %v6865
        %7634 = vadd.xlane.f32.xlu0 %v7633
        %v7635 = vpop.xlane.xlu0 %7634
        %v7636 = vadd.f32 %v6867, %v6869
        %7637 = vadd.xlane.f32.xlu0 %v7636
        %v7638 = vpop.xlane.xlu0 %7637
        %v7639 = vadd.f32 %v6871, %v6873
        %7640 = vadd.xlane.f32.xlu0 %v7639
        %v7641 = vpop.xlane.xlu0 %7640
        %v7642 = vcombine.high %v1688, %v1688
        %7644 = vmatprep.subr.mxu0 0.0
        %7645 = vmatpush1.xpose.msra.mxu0 0.0
        %7646 = vmatprep.subr.mxu0 0.0
        %7647 = vmatpush1.xpose.msra.mxu0 0.0
        %7648 = vmatprep.subr.mxu0 0.0
        %7649 = vmatpush1.xpose.msra.mxu0 0.0
        %7650 = vmatprep.subr.mxu0 0.0
        %7651 = vmatpush1.xpose.msra.mxu0 0.0
        %7652 = vmatprep.subr.mxu0 0.0
        %7653 = vmatpush1.xpose.msra.mxu0 0.0
        %7654 = vmatprep.subr.mxu0 0.0
        %7655 = vmatpush1.xpose.msra.mxu0 0.0
        %7656 = vmatprep.subr.mxu0 0.0
        %7657 = vmatpush1.xpose.msra.mxu0 0.0
        %7658 = vmatprep.subr.mxu0 0.0
        %7659 = vmatpush1.xpose.msra.mxu0 0.0
        %7660 = vmatprep.subr.mxu0 0.0
        %7661 = vmatpush1.xpose.msra.mxu0 0.0
        %7662 = vmatprep.subr.mxu0 0.0
        %7663 = vmatpush1.xpose.msra.mxu0 0.0
        %7664 = vmatprep.subr.mxu0 0.0
        %7665 = vmatpush1.xpose.msra.mxu0 0.0
        %7666 = vmatprep.subr.mxu0 0.0
        %7667 = vmatpush1.xpose.msra.mxu0 0.0
        %7668 = vmatprep.subr.mxu0 0.0
        %7669 = vmatpush1.xpose.msra.mxu0 0.0
        %7670 = vmatprep.subr.mxu0 0.0
        %7671 = vmatpush1.xpose.msra.mxu0 0.0
        %7672 = vmatprep.subr.mxu0 0.0
        %7673 = vmatpush1.xpose.msra.mxu0 0.0
        %7674 = vmatprep.subr.mxu0 %v7642
        %7675 = vmatpush1.xpose.msra.mxu0 %v1688
        %7676 = vmatprep.subr.mxu0 0.0
        %7677 = vmatpush2.xpose.msra.mxu0 0.0
        %7678 = vmatprep.subr.mxu0 0.0
        %7679 = vmatpush2.xpose.msra.mxu0 0.0
        %7680 = vmatprep.subr.mxu0 0.0
        %7681 = vmatpush2.xpose.msra.mxu0 0.0
        %7682 = vmatprep.subr.mxu0 0.0
        %7683 = vmatpush2.xpose.msra.mxu0 0.0
        %7684 = vmatprep.subr.mxu0 0.0
        %7685 = vmatpush2.xpose.msra.mxu0 0.0
        %7686 = vmatprep.subr.mxu0 0.0
        %7687 = vmatpush2.xpose.msra.mxu0 0.0
        %7688 = vmatprep.subr.mxu0 0.0
        %7689 = vmatpush2.xpose.msra.mxu0 0.0
        %7690 = vmatprep.subr.mxu0 0.0
        %7691 = vmatpush2.xpose.msra.mxu0 0.0
        %7692 = vmatprep.subr.mxu0 0.0
        %7693 = vmatpush2.xpose.msra.mxu0 0.0
        %7694 = vmatprep.subr.mxu0 0.0
        %7695 = vmatpush2.xpose.msra.mxu0 0.0
        %7696 = vmatprep.subr.mxu0 0.0
        %7697 = vmatpush2.xpose.msra.mxu0 0.0
        %7698 = vmatprep.subr.mxu0 0.0
        %7699 = vmatpush2.xpose.msra.mxu0 0.0
        %7700 = vmatprep.subr.mxu0 0.0
        %7701 = vmatpush2.xpose.msra.mxu0 0.0
        %7702 = vmatprep.subr.mxu0 0.0
        %7703 = vmatpush2.xpose.msra.mxu0 0.0
        %7704 = vmatprep.subr.mxu0 0.0
        %7705 = vmatpush2.xpose.msra.mxu0 0.0
        %7706 = vmatprep.subr.mxu0 0.0
        %7707 = vmatpush2.xpose.msra.mxu0 0.0
        %7708 = vmatprep.mubr.f32.mxu0 %v5853
        %7709 = vmatmul.mubr.f32.gmra.mxu0 %v5851
        %v7710 = vpop.f32.mrf.mxu0
        %v7711 = vadd.f32 0.0, %v7710
        %v7712 = vpop.f32.mrf.mxu0
        %7713 = vmatprep.mubr.f32.mxu0 %v5857
        %7714 = vmatmul.mubr.f32.gmra.mxu0 %v5855
        %v7715 = vpop.f32.mrf.mxu0
        %v7716 = vadd.f32 0.0, %v7715
        %v7717 = vpop.f32.mrf.mxu0
        %7718 = vmatprep.mubr.f32.mxu0 %v5861
        %7719 = vmatmul.mubr.f32.gmra.mxu0 %v5859
        %v7720 = vpop.f32.mrf.mxu0
        %v7721 = vadd.f32 0.0, %v7720
        %v7722 = vpop.f32.mrf.mxu0
        %7723 = vmatprep.mubr.f32.mxu0 %v5865
        %7724 = vmatmul.mubr.f32.gmra.mxu0 %v5863
        %v7725 = vpop.f32.mrf.mxu0
        %v7726 = vadd.f32 0.0, %v7725
        %v7727 = vpop.f32.mrf.mxu0
        %7728 = vmatprep.mubr.f32.mxu0 %v5869
        %7729 = vmatmul.mubr.f32.gmra.mxu0 %v5867
        %v7730 = vpop.f32.mrf.mxu0
        %v7731 = vadd.f32 0.0, %v7730
        %v7732 = vpop.f32.mrf.mxu0
        %7733 = vmatprep.mubr.f32.mxu0 %v5873
        %7734 = vmatmul.mubr.f32.gmra.mxu0 %v5871
        %v7735 = vpop.f32.mrf.mxu0
        %v7736 = vadd.f32 0.0, %v7735
        %v7737 = vpop.f32.mrf.mxu0
        %7738 = vmatprep.mubr.f32.mxu0 %v5877
        %7739 = vmatmul.mubr.f32.gmra.mxu0 %v5875
        %v7740 = vpop.f32.mrf.mxu0
        %v7741 = vadd.f32 0.0, %v7740
        %v7742 = vpop.f32.mrf.mxu0
        %7743 = vmatprep.mubr.f32.mxu0 %v5881
        %7744 = vmatmul.mubr.f32.gmra.mxu0 %v5879
        %v7745 = vpop.f32.mrf.mxu0
        %v7746 = vadd.f32 0.0, %v7745
        %v7747 = vpop.f32.mrf.mxu0
        %7748 = vmatprep.mubr.f32.mxu0 %v5885
        %7749 = vmatmul.mubr.f32.gmra.mxu0 %v5883
        %v7750 = vpop.f32.mrf.mxu0
        %v7751 = vadd.f32 0.0, %v7750
        %v7752 = vpop.f32.mrf.mxu0
        %7753 = vmatprep.mubr.f32.mxu0 %v5889
        %7754 = vmatmul.mubr.f32.gmra.mxu0 %v5887
        %v7755 = vpop.f32.mrf.mxu0
        %v7756 = vadd.f32 0.0, %v7755
        %v7757 = vpop.f32.mrf.mxu0
        %7758 = vmatprep.mubr.f32.mxu0 %v5893
        %7759 = vmatmul.mubr.f32.gmra.mxu0 %v5891
        %v7760 = vpop.f32.mrf.mxu0
        %v7761 = vadd.f32 0.0, %v7760
        %v7762 = vpop.f32.mrf.mxu0
        %7763 = vmatprep.mubr.f32.mxu0 %v5897
        %7764 = vmatmul.mubr.f32.gmra.mxu0 %v5895
        %v7765 = vpop.f32.mrf.mxu0
        %v7766 = vadd.f32 0.0, %v7765
        %v7767 = vpop.f32.mrf.mxu0
        %7768 = vmatprep.mubr.f32.mxu0 %v5901
        %7769 = vmatmul.mubr.f32.gmra.mxu0 %v5899
        %v7770 = vpop.f32.mrf.mxu0
        %v7771 = vadd.f32 0.0, %v7770
        %v7772 = vpop.f32.mrf.mxu0
        %7773 = vmatprep.mubr.f32.mxu0 %v5905
        %7774 = vmatmul.mubr.f32.gmra.mxu0 %v5903
        %v7775 = vpop.f32.mrf.mxu0
        %v7776 = vadd.f32 0.0, %v7775
        %v7777 = vpop.f32.mrf.mxu0
        %7778 = vmatprep.mubr.f32.mxu0 %v5909
        %7779 = vmatmul.mubr.f32.gmra.mxu0 %v5907
        %v7780 = vpop.f32.mrf.mxu0
        %v7781 = vadd.f32 0.0, %v7780
        %v7782 = vpop.f32.mrf.mxu0
        %7783 = vmatprep.mubr.f32.mxu0 %v5913
        %7784 = vmatmul.mubr.f32.gmra.mxu0 %v5911
        %v7785 = vpop.f32.mrf.mxu0
        %v7786 = vadd.f32 0.0, %v7785
        %v7787 = vpop.f32.mrf.mxu0
        %7788 = vmatprep.mubr.f32.mxu0 %v5917
        %7789 = vmatmul.mubr.f32.gmra.mxu0 %v5915
        %v7790 = vpop.f32.mrf.mxu0
        %v7791 = vadd.f32 0.0, %v7790
        %v7792 = vpop.f32.mrf.mxu0
        %7793 = vmatprep.mubr.f32.mxu0 %v5921
        %7794 = vmatmul.mubr.f32.gmra.mxu0 %v5919
        %v7795 = vpop.f32.mrf.mxu0
        %v7796 = vadd.f32 0.0, %v7795
        %v7797 = vpop.f32.mrf.mxu0
        %7798 = vmatprep.mubr.f32.mxu0 %v5925
        %7799 = vmatmul.mubr.f32.gmra.mxu0 %v5923
        %v7800 = vpop.f32.mrf.mxu0
        %v7801 = vadd.f32 0.0, %v7800
        %v7802 = vpop.f32.mrf.mxu0
        %7803 = vmatprep.mubr.f32.mxu0 %v5929
        %7804 = vmatmul.mubr.f32.gmra.mxu0 %v5927
        %v7805 = vpop.f32.mrf.mxu0
        %v7806 = vadd.f32 0.0, %v7805
        %v7807 = vpop.f32.mrf.mxu0
        %7808 = vmatprep.mubr.f32.mxu0 %v5933
        %7809 = vmatmul.mubr.f32.gmra.mxu0 %v5931
        %v7810 = vpop.f32.mrf.mxu0
        %v7811 = vadd.f32 0.0, %v7810
        %v7812 = vpop.f32.mrf.mxu0
        %7813 = vmatprep.mubr.f32.mxu0 %v5937
        %7814 = vmatmul.mubr.f32.gmra.mxu0 %v5935
        %v7815 = vpop.f32.mrf.mxu0
        %v7816 = vadd.f32 0.0, %v7815
        %v7817 = vpop.f32.mrf.mxu0
        %7818 = vmatprep.mubr.f32.mxu0 %v5941
        %7819 = vmatmul.mubr.f32.gmra.mxu0 %v5939
        %v7820 = vpop.f32.mrf.mxu0
        %v7821 = vadd.f32 0.0, %v7820
        %v7822 = vpop.f32.mrf.mxu0
        %7823 = vmatprep.mubr.f32.mxu0 %v5945
        %7824 = vmatmul.mubr.f32.gmra.mxu0 %v5943
        %v7825 = vpop.f32.mrf.mxu0
        %v7826 = vadd.f32 0.0, %v7825
        %v7827 = vpop.f32.mrf.mxu0
        %7828 = vmatprep.mubr.f32.mxu0 %v5949
        %7829 = vmatmul.mubr.f32.gmra.mxu0 %v5947
        %v7830 = vpop.f32.mrf.mxu0
        %v7831 = vadd.f32 0.0, %v7830
        %v7832 = vpop.f32.mrf.mxu0
        %7833 = vmatprep.mubr.f32.mxu0 %v5953
        %7834 = vmatmul.mubr.f32.gmra.mxu0 %v5951
        %v7835 = vpop.f32.mrf.mxu0
        %v7836 = vadd.f32 0.0, %v7835
        %v7837 = vpop.f32.mrf.mxu0
        %7838 = vmatprep.mubr.f32.mxu0 %v5957
        %7839 = vmatmul.mubr.f32.gmra.mxu0 %v5955
        %v7840 = vpop.f32.mrf.mxu0
        %v7841 = vadd.f32 0.0, %v7840
        %v7842 = vpop.f32.mrf.mxu0
        %7843 = vmatprep.mubr.f32.mxu0 %v5961
        %7844 = vmatmul.mubr.f32.gmra.mxu0 %v5959
        %v7845 = vpop.f32.mrf.mxu0
        %v7846 = vadd.f32 0.0, %v7845
        %v7847 = vpop.f32.mrf.mxu0
        %7848 = vmatprep.mubr.f32.mxu0 %v5965
        %7849 = vmatmul.mubr.f32.gmra.mxu0 %v5963
        %v7850 = vpop.f32.mrf.mxu0
        %v7851 = vadd.f32 0.0, %v7850
        %v7852 = vpop.f32.mrf.mxu0
        %7853 = vmatprep.mubr.f32.mxu0 %v5969
        %7854 = vmatmul.mubr.f32.gmra.mxu0 %v5967
        %v7855 = vpop.f32.mrf.mxu0
        %v7856 = vadd.f32 0.0, %v7855
        %v7857 = vpop.f32.mrf.mxu0
        %7858 = vmatprep.mubr.f32.mxu0 %v5973
        %7859 = vmatmul.mubr.f32.gmra.mxu0 %v5971
        %v7860 = vpop.f32.mrf.mxu0
        %v7861 = vadd.f32 0.0, %v7860
        %v7862 = vpop.f32.mrf.mxu0
        %7863 = vmatprep.mubr.f32.mxu0 %v5977
        %7864 = vmatmul.mubr.f32.gmra.mxu0 %v5975
        %v7865 = vpop.f32.mrf.mxu0
        %v7866 = vadd.f32 0.0, %v7865
        %v7867 = vpop.f32.mrf.mxu0
        %7868 = vdwg.mxu0
        %v7869 = vcombine.high %v1689, %v1689
        %7871 = vmatprep.subr.mxu0 0.0
        %7872 = vmatpush1.xpose.msra.mxu0 0.0
        %7873 = vmatprep.subr.mxu0 0.0
        %7874 = vmatpush1.xpose.msra.mxu0 0.0
        %7875 = vmatprep.subr.mxu0 0.0
        %7876 = vmatpush1.xpose.msra.mxu0 0.0
        %7877 = vmatprep.subr.mxu0 0.0
        %7878 = vmatpush1.xpose.msra.mxu0 0.0
        %7879 = vmatprep.subr.mxu0 0.0
        %7880 = vmatpush1.xpose.msra.mxu0 0.0
        %7881 = vmatprep.subr.mxu0 0.0
        %7882 = vmatpush1.xpose.msra.mxu0 0.0
        %7883 = vmatprep.subr.mxu0 0.0
        %7884 = vmatpush1.xpose.msra.mxu0 0.0
        %7885 = vmatprep.subr.mxu0 0.0
        %7886 = vmatpush1.xpose.msra.mxu0 0.0
        %7887 = vmatprep.subr.mxu0 0.0
        %7888 = vmatpush1.xpose.msra.mxu0 0.0
        %7889 = vmatprep.subr.mxu0 0.0
        %7890 = vmatpush1.xpose.msra.mxu0 0.0
        %7891 = vmatprep.subr.mxu0 0.0
        %7892 = vmatpush1.xpose.msra.mxu0 0.0
        %7893 = vmatprep.subr.mxu0 0.0
        %7894 = vmatpush1.xpose.msra.mxu0 0.0
        %7895 = vmatprep.subr.mxu0 0.0
        %7896 = vmatpush1.xpose.msra.mxu0 0.0
        %7897 = vmatprep.subr.mxu0 0.0
        %7898 = vmatpush1.xpose.msra.mxu0 0.0
        %7899 = vmatprep.subr.mxu0 0.0
        %7900 = vmatpush1.xpose.msra.mxu0 0.0
        %7901 = vmatprep.subr.mxu0 %v7869
        %7902 = vmatpush1.xpose.msra.mxu0 %v1689
        %7903 = vmatprep.subr.mxu0 0.0
        %7904 = vmatpush2.xpose.msra.mxu0 0.0
        %7905 = vmatprep.subr.mxu0 0.0
        %7906 = vmatpush2.xpose.msra.mxu0 0.0
        %7907 = vmatprep.subr.mxu0 0.0
        %7908 = vmatpush2.xpose.msra.mxu0 0.0
        %7909 = vmatprep.subr.mxu0 0.0
        %7910 = vmatpush2.xpose.msra.mxu0 0.0
        %7911 = vmatprep.subr.mxu0 0.0
        %7912 = vmatpush2.xpose.msra.mxu0 0.0
        %7913 = vmatprep.subr.mxu0 0.0
        %7914 = vmatpush2.xpose.msra.mxu0 0.0
        %7915 = vmatprep.subr.mxu0 0.0
        %7916 = vmatpush2.xpose.msra.mxu0 0.0
        %7917 = vmatprep.subr.mxu0 0.0
        %7918 = vmatpush2.xpose.msra.mxu0 0.0
        %7919 = vmatprep.subr.mxu0 0.0
        %7920 = vmatpush2.xpose.msra.mxu0 0.0
        %7921 = vmatprep.subr.mxu0 0.0
        %7922 = vmatpush2.xpose.msra.mxu0 0.0
        %7923 = vmatprep.subr.mxu0 0.0
        %7924 = vmatpush2.xpose.msra.mxu0 0.0
        %7925 = vmatprep.subr.mxu0 0.0
        %7926 = vmatpush2.xpose.msra.mxu0 0.0
        %7927 = vmatprep.subr.mxu0 0.0
        %7928 = vmatpush2.xpose.msra.mxu0 0.0
        %7929 = vmatprep.subr.mxu0 0.0
        %7930 = vmatpush2.xpose.msra.mxu0 0.0
        %7931 = vmatprep.subr.mxu0 0.0
        %7932 = vmatpush2.xpose.msra.mxu0 0.0
        %7933 = vmatprep.subr.mxu0 0.0
        %7934 = vmatpush2.xpose.msra.mxu0 0.0
        %7935 = vmatprep.mubr.f32.mxu0 %v5981
        %7936 = vmatmul.mubr.f32.gmra.mxu0 %v5979
        %v7937 = vpop.f32.mrf.mxu0
        %v7938 = vadd.f32 0.0, %v7937
        %v7939 = vpop.f32.mrf.mxu0
        %7940 = vmatprep.mubr.f32.mxu0 %v5985
        %7941 = vmatmul.mubr.f32.gmra.mxu0 %v5983
        %v7942 = vpop.f32.mrf.mxu0
        %v7943 = vadd.f32 0.0, %v7942
        %v7944 = vpop.f32.mrf.mxu0
        %7945 = vmatprep.mubr.f32.mxu0 %v5989
        %7946 = vmatmul.mubr.f32.gmra.mxu0 %v5987
        %v7947 = vpop.f32.mrf.mxu0
        %v7948 = vadd.f32 0.0, %v7947
        %v7949 = vpop.f32.mrf.mxu0
        %7950 = vmatprep.mubr.f32.mxu0 %v5993
        %7951 = vmatmul.mubr.f32.gmra.mxu0 %v5991
        %v7952 = vpop.f32.mrf.mxu0
        %v7953 = vadd.f32 0.0, %v7952
        %v7954 = vpop.f32.mrf.mxu0
        %7955 = vmatprep.mubr.f32.mxu0 %v5997
        %7956 = vmatmul.mubr.f32.gmra.mxu0 %v5995
        %v7957 = vpop.f32.mrf.mxu0
        %v7958 = vadd.f32 0.0, %v7957
        %v7959 = vpop.f32.mrf.mxu0
        %7960 = vmatprep.mubr.f32.mxu0 %v6001
        %7961 = vmatmul.mubr.f32.gmra.mxu0 %v5999
        %v7962 = vpop.f32.mrf.mxu0
        %v7963 = vadd.f32 0.0, %v7962
        %v7964 = vpop.f32.mrf.mxu0
        %7965 = vmatprep.mubr.f32.mxu0 %v6005
        %7966 = vmatmul.mubr.f32.gmra.mxu0 %v6003
        %v7967 = vpop.f32.mrf.mxu0
        %v7968 = vadd.f32 0.0, %v7967
        %v7969 = vpop.f32.mrf.mxu0
        %7970 = vmatprep.mubr.f32.mxu0 %v6009
        %7971 = vmatmul.mubr.f32.gmra.mxu0 %v6007
        %v7972 = vpop.f32.mrf.mxu0
        %v7973 = vadd.f32 0.0, %v7972
        %v7974 = vpop.f32.mrf.mxu0
        %7975 = vmatprep.mubr.f32.mxu0 %v6013
        %7976 = vmatmul.mubr.f32.gmra.mxu0 %v6011
        %v7977 = vpop.f32.mrf.mxu0
        %v7978 = vadd.f32 0.0, %v7977
        %v7979 = vpop.f32.mrf.mxu0
        %7980 = vmatprep.mubr.f32.mxu0 %v6017
        %7981 = vmatmul.mubr.f32.gmra.mxu0 %v6015
        %v7982 = vpop.f32.mrf.mxu0
        %v7983 = vadd.f32 0.0, %v7982
        %v7984 = vpop.f32.mrf.mxu0
        %7985 = vmatprep.mubr.f32.mxu0 %v6021
        %7986 = vmatmul.mubr.f32.gmra.mxu0 %v6019
        %v7987 = vpop.f32.mrf.mxu0
        %v7988 = vadd.f32 0.0, %v7987
        %v7989 = vpop.f32.mrf.mxu0
        %7990 = vmatprep.mubr.f32.mxu0 %v6025
        %7991 = vmatmul.mubr.f32.gmra.mxu0 %v6023
        %v7992 = vpop.f32.mrf.mxu0
        %v7993 = vadd.f32 0.0, %v7992
        %v7994 = vpop.f32.mrf.mxu0
        %7995 = vmatprep.mubr.f32.mxu0 %v6029
        %7996 = vmatmul.mubr.f32.gmra.mxu0 %v6027
        %v7997 = vpop.f32.mrf.mxu0
        %v7998 = vadd.f32 0.0, %v7997
        %v7999 = vpop.f32.mrf.mxu0
        %8000 = vmatprep.mubr.f32.mxu0 %v6033
        %8001 = vmatmul.mubr.f32.gmra.mxu0 %v6031
        %v8002 = vpop.f32.mrf.mxu0
        %v8003 = vadd.f32 0.0, %v8002
        %v8004 = vpop.f32.mrf.mxu0
        %8005 = vmatprep.mubr.f32.mxu0 %v6037
        %8006 = vmatmul.mubr.f32.gmra.mxu0 %v6035
        %v8007 = vpop.f32.mrf.mxu0
        %v8008 = vadd.f32 0.0, %v8007
        %v8009 = vpop.f32.mrf.mxu0
        %8010 = vmatprep.mubr.f32.mxu0 %v6041
        %8011 = vmatmul.mubr.f32.gmra.mxu0 %v6039
        %v8012 = vpop.f32.mrf.mxu0
        %v8013 = vadd.f32 0.0, %v8012
        %v8014 = vpop.f32.mrf.mxu0
        %8015 = vmatprep.mubr.f32.mxu0 %v6045
        %8016 = vmatmul.mubr.f32.gmra.mxu0 %v6043
        %v8017 = vpop.f32.mrf.mxu0
        %v8018 = vadd.f32 0.0, %v8017
        %v8019 = vpop.f32.mrf.mxu0
        %8020 = vmatprep.mubr.f32.mxu0 %v6049
        %8021 = vmatmul.mubr.f32.gmra.mxu0 %v6047
        %v8022 = vpop.f32.mrf.mxu0
        %v8023 = vadd.f32 0.0, %v8022
        %v8024 = vpop.f32.mrf.mxu0
        %8025 = vmatprep.mubr.f32.mxu0 %v6053
        %8026 = vmatmul.mubr.f32.gmra.mxu0 %v6051
        %v8027 = vpop.f32.mrf.mxu0
        %v8028 = vadd.f32 0.0, %v8027
        %v8029 = vpop.f32.mrf.mxu0
        %8030 = vmatprep.mubr.f32.mxu0 %v6057
        %8031 = vmatmul.mubr.f32.gmra.mxu0 %v6055
        %v8032 = vpop.f32.mrf.mxu0
        %v8033 = vadd.f32 0.0, %v8032
        %v8034 = vpop.f32.mrf.mxu0
        %8035 = vmatprep.mubr.f32.mxu0 %v6061
        %8036 = vmatmul.mubr.f32.gmra.mxu0 %v6059
        %v8037 = vpop.f32.mrf.mxu0
        %v8038 = vadd.f32 0.0, %v8037
        %v8039 = vpop.f32.mrf.mxu0
        %8040 = vmatprep.mubr.f32.mxu0 %v6065
        %8041 = vmatmul.mubr.f32.gmra.mxu0 %v6063
        %v8042 = vpop.f32.mrf.mxu0
        %v8043 = vadd.f32 0.0, %v8042
        %v8044 = vpop.f32.mrf.mxu0
        %8045 = vmatprep.mubr.f32.mxu0 %v6069
        %8046 = vmatmul.mubr.f32.gmra.mxu0 %v6067
        %v8047 = vpop.f32.mrf.mxu0
        %v8048 = vadd.f32 0.0, %v8047
        %v8049 = vpop.f32.mrf.mxu0
        %8050 = vmatprep.mubr.f32.mxu0 %v6073
        %8051 = vmatmul.mubr.f32.gmra.mxu0 %v6071
        %v8052 = vpop.f32.mrf.mxu0
        %v8053 = vadd.f32 0.0, %v8052
        %v8054 = vpop.f32.mrf.mxu0
        %8055 = vmatprep.mubr.f32.mxu0 %v6077
        %8056 = vmatmul.mubr.f32.gmra.mxu0 %v6075
        %v8057 = vpop.f32.mrf.mxu0
        %v8058 = vadd.f32 0.0, %v8057
        %v8059 = vpop.f32.mrf.mxu0
        %8060 = vmatprep.mubr.f32.mxu0 %v6081
        %8061 = vmatmul.mubr.f32.gmra.mxu0 %v6079
        %v8062 = vpop.f32.mrf.mxu0
        %v8063 = vadd.f32 0.0, %v8062
        %v8064 = vpop.f32.mrf.mxu0
        %8065 = vmatprep.mubr.f32.mxu0 %v6085
        %8066 = vmatmul.mubr.f32.gmra.mxu0 %v6083
        %v8067 = vpop.f32.mrf.mxu0
        %v8068 = vadd.f32 0.0, %v8067
        %v8069 = vpop.f32.mrf.mxu0
        %8070 = vmatprep.mubr.f32.mxu0 %v6089
        %8071 = vmatmul.mubr.f32.gmra.mxu0 %v6087
        %v8072 = vpop.f32.mrf.mxu0
        %v8073 = vadd.f32 0.0, %v8072
        %v8074 = vpop.f32.mrf.mxu0
        %8075 = vmatprep.mubr.f32.mxu0 %v6093
        %8076 = vmatmul.mubr.f32.gmra.mxu0 %v6091
        %v8077 = vpop.f32.mrf.mxu0
        %v8078 = vadd.f32 0.0, %v8077
        %v8079 = vpop.f32.mrf.mxu0
        %8080 = vmatprep.mubr.f32.mxu0 %v6097
        %8081 = vmatmul.mubr.f32.gmra.mxu0 %v6095
        %v8082 = vpop.f32.mrf.mxu0
        %v8083 = vadd.f32 0.0, %v8082
        %v8084 = vpop.f32.mrf.mxu0
        %8085 = vmatprep.mubr.f32.mxu0 %v6101
        %8086 = vmatmul.mubr.f32.gmra.mxu0 %v6099
        %v8087 = vpop.f32.mrf.mxu0
        %v8088 = vadd.f32 0.0, %v8087
        %v8089 = vpop.f32.mrf.mxu0
        %8090 = vmatprep.mubr.f32.mxu0 %v6105
        %8091 = vmatmul.mubr.f32.gmra.mxu0 %v6103
        %v8092 = vpop.f32.mrf.mxu0
        %v8093 = vadd.f32 0.0, %v8092
        %v8094 = vpop.f32.mrf.mxu0
        %8095 = vdwg.mxu0
        %v8096 = vcombine.high %v1690, %v1690
        %8098 = vmatprep.subr.mxu0 0.0
        %8099 = vmatpush1.xpose.msra.mxu0 0.0
        %8100 = vmatprep.subr.mxu0 0.0
        %8101 = vmatpush1.xpose.msra.mxu0 0.0
        %8102 = vmatprep.subr.mxu0 0.0
        %8103 = vmatpush1.xpose.msra.mxu0 0.0
        %8104 = vmatprep.subr.mxu0 0.0
        %8105 = vmatpush1.xpose.msra.mxu0 0.0
        %8106 = vmatprep.subr.mxu0 0.0
        %8107 = vmatpush1.xpose.msra.mxu0 0.0
        %8108 = vmatprep.subr.mxu0 0.0
        %8109 = vmatpush1.xpose.msra.mxu0 0.0
        %8110 = vmatprep.subr.mxu0 0.0
        %8111 = vmatpush1.xpose.msra.mxu0 0.0
        %8112 = vmatprep.subr.mxu0 0.0
        %8113 = vmatpush1.xpose.msra.mxu0 0.0
        %8114 = vmatprep.subr.mxu0 0.0
        %8115 = vmatpush1.xpose.msra.mxu0 0.0
        %8116 = vmatprep.subr.mxu0 0.0
        %8117 = vmatpush1.xpose.msra.mxu0 0.0
        %8118 = vmatprep.subr.mxu0 0.0
        %8119 = vmatpush1.xpose.msra.mxu0 0.0
        %8120 = vmatprep.subr.mxu0 0.0
        %8121 = vmatpush1.xpose.msra.mxu0 0.0
        %8122 = vmatprep.subr.mxu0 0.0
        %8123 = vmatpush1.xpose.msra.mxu0 0.0
        %8124 = vmatprep.subr.mxu0 0.0
        %8125 = vmatpush1.xpose.msra.mxu0 0.0
        %8126 = vmatprep.subr.mxu0 0.0
        %8127 = vmatpush1.xpose.msra.mxu0 0.0
        %8128 = vmatprep.subr.mxu0 %v8096
        %8129 = vmatpush1.xpose.msra.mxu0 %v1690
        %8130 = vmatprep.subr.mxu0 0.0
        %8131 = vmatpush2.xpose.msra.mxu0 0.0
        %8132 = vmatprep.subr.mxu0 0.0
        %8133 = vmatpush2.xpose.msra.mxu0 0.0
        %8134 = vmatprep.subr.mxu0 0.0
        %8135 = vmatpush2.xpose.msra.mxu0 0.0
        %8136 = vmatprep.subr.mxu0 0.0
        %8137 = vmatpush2.xpose.msra.mxu0 0.0
        %8138 = vmatprep.subr.mxu0 0.0
        %8139 = vmatpush2.xpose.msra.mxu0 0.0
        %8140 = vmatprep.subr.mxu0 0.0
        %8141 = vmatpush2.xpose.msra.mxu0 0.0
        %8142 = vmatprep.subr.mxu0 0.0
        %8143 = vmatpush2.xpose.msra.mxu0 0.0
        %8144 = vmatprep.subr.mxu0 0.0
        %8145 = vmatpush2.xpose.msra.mxu0 0.0
        %8146 = vmatprep.subr.mxu0 0.0
        %8147 = vmatpush2.xpose.msra.mxu0 0.0
        %8148 = vmatprep.subr.mxu0 0.0
        %8149 = vmatpush2.xpose.msra.mxu0 0.0
        %8150 = vmatprep.subr.mxu0 0.0
        %8151 = vmatpush2.xpose.msra.mxu0 0.0
        %8152 = vmatprep.subr.mxu0 0.0
        %8153 = vmatpush2.xpose.msra.mxu0 0.0
        %8154 = vmatprep.subr.mxu0 0.0
        %8155 = vmatpush2.xpose.msra.mxu0 0.0
        %8156 = vmatprep.subr.mxu0 0.0
        %8157 = vmatpush2.xpose.msra.mxu0 0.0
        %8158 = vmatprep.subr.mxu0 0.0
        %8159 = vmatpush2.xpose.msra.mxu0 0.0
        %8160 = vmatprep.subr.mxu0 0.0
        %8161 = vmatpush2.xpose.msra.mxu0 0.0
        %8162 = vmatprep.mubr.f32.mxu0 %v6109
        %8163 = vmatmul.mubr.f32.gmra.mxu0 %v6107
        %v8164 = vpop.f32.mrf.mxu0
        %v8165 = vadd.f32 0.0, %v8164
        %v8166 = vpop.f32.mrf.mxu0
        %8167 = vmatprep.mubr.f32.mxu0 %v6113
        %8168 = vmatmul.mubr.f32.gmra.mxu0 %v6111
        %v8169 = vpop.f32.mrf.mxu0
        %v8170 = vadd.f32 0.0, %v8169
        %v8171 = vpop.f32.mrf.mxu0
        %8172 = vmatprep.mubr.f32.mxu0 %v6117
        %8173 = vmatmul.mubr.f32.gmra.mxu0 %v6115
        %v8174 = vpop.f32.mrf.mxu0
        %v8175 = vadd.f32 0.0, %v8174
        %v8176 = vpop.f32.mrf.mxu0
        %8177 = vmatprep.mubr.f32.mxu0 %v6121
        %8178 = vmatmul.mubr.f32.gmra.mxu0 %v6119
        %v8179 = vpop.f32.mrf.mxu0
        %v8180 = vadd.f32 0.0, %v8179
        %v8181 = vpop.f32.mrf.mxu0
        %8182 = vmatprep.mubr.f32.mxu0 %v6125
        %8183 = vmatmul.mubr.f32.gmra.mxu0 %v6123
        %v8184 = vpop.f32.mrf.mxu0
        %v8185 = vadd.f32 0.0, %v8184
        %v8186 = vpop.f32.mrf.mxu0
        %8187 = vmatprep.mubr.f32.mxu0 %v6129
        %8188 = vmatmul.mubr.f32.gmra.mxu0 %v6127
        %v8189 = vpop.f32.mrf.mxu0
        %v8190 = vadd.f32 0.0, %v8189
        %v8191 = vpop.f32.mrf.mxu0
        %8192 = vmatprep.mubr.f32.mxu0 %v6133
        %8193 = vmatmul.mubr.f32.gmra.mxu0 %v6131
        %v8194 = vpop.f32.mrf.mxu0
        %v8195 = vadd.f32 0.0, %v8194
        %v8196 = vpop.f32.mrf.mxu0
        %8197 = vmatprep.mubr.f32.mxu0 %v6137
        %8198 = vmatmul.mubr.f32.gmra.mxu0 %v6135
        %v8199 = vpop.f32.mrf.mxu0
        %v8200 = vadd.f32 0.0, %v8199
        %v8201 = vpop.f32.mrf.mxu0
        %8202 = vmatprep.mubr.f32.mxu0 %v6141
        %8203 = vmatmul.mubr.f32.gmra.mxu0 %v6139
        %v8204 = vpop.f32.mrf.mxu0
        %v8205 = vadd.f32 0.0, %v8204
        %v8206 = vpop.f32.mrf.mxu0
        %8207 = vmatprep.mubr.f32.mxu0 %v6145
        %8208 = vmatmul.mubr.f32.gmra.mxu0 %v6143
        %v8209 = vpop.f32.mrf.mxu0
        %v8210 = vadd.f32 0.0, %v8209
        %v8211 = vpop.f32.mrf.mxu0
        %8212 = vmatprep.mubr.f32.mxu0 %v6149
        %8213 = vmatmul.mubr.f32.gmra.mxu0 %v6147
        %v8214 = vpop.f32.mrf.mxu0
        %v8215 = vadd.f32 0.0, %v8214
        %v8216 = vpop.f32.mrf.mxu0
        %8217 = vmatprep.mubr.f32.mxu0 %v6153
        %8218 = vmatmul.mubr.f32.gmra.mxu0 %v6151
        %v8219 = vpop.f32.mrf.mxu0
        %v8220 = vadd.f32 0.0, %v8219
        %v8221 = vpop.f32.mrf.mxu0
        %8222 = vmatprep.mubr.f32.mxu0 %v6157
        %8223 = vmatmul.mubr.f32.gmra.mxu0 %v6155
        %v8224 = vpop.f32.mrf.mxu0
        %v8225 = vadd.f32 0.0, %v8224
        %v8226 = vpop.f32.mrf.mxu0
        %8227 = vmatprep.mubr.f32.mxu0 %v6161
        %8228 = vmatmul.mubr.f32.gmra.mxu0 %v6159
        %v8229 = vpop.f32.mrf.mxu0
        %v8230 = vadd.f32 0.0, %v8229
        %v8231 = vpop.f32.mrf.mxu0
        %8232 = vmatprep.mubr.f32.mxu0 %v6165
        %8233 = vmatmul.mubr.f32.gmra.mxu0 %v6163
        %v8234 = vpop.f32.mrf.mxu0
        %v8235 = vadd.f32 0.0, %v8234
        %v8236 = vpop.f32.mrf.mxu0
        %8237 = vmatprep.mubr.f32.mxu0 %v6169
        %8238 = vmatmul.mubr.f32.gmra.mxu0 %v6167
        %v8239 = vpop.f32.mrf.mxu0
        %v8240 = vadd.f32 0.0, %v8239
        %v8241 = vpop.f32.mrf.mxu0
        %8242 = vmatprep.mubr.f32.mxu0 %v6173
        %8243 = vmatmul.mubr.f32.gmra.mxu0 %v6171
        %v8244 = vpop.f32.mrf.mxu0
        %v8245 = vadd.f32 0.0, %v8244
        %v8246 = vpop.f32.mrf.mxu0
        %8247 = vmatprep.mubr.f32.mxu0 %v6177
        %8248 = vmatmul.mubr.f32.gmra.mxu0 %v6175
        %v8249 = vpop.f32.mrf.mxu0
        %v8250 = vadd.f32 0.0, %v8249
        %v8251 = vpop.f32.mrf.mxu0
        %8252 = vmatprep.mubr.f32.mxu0 %v6181
        %8253 = vmatmul.mubr.f32.gmra.mxu0 %v6179
        %v8254 = vpop.f32.mrf.mxu0
        %v8255 = vadd.f32 0.0, %v8254
        %v8256 = vpop.f32.mrf.mxu0
        %8257 = vmatprep.mubr.f32.mxu0 %v6185
        %8258 = vmatmul.mubr.f32.gmra.mxu0 %v6183
        %v8259 = vpop.f32.mrf.mxu0
        %v8260 = vadd.f32 0.0, %v8259
        %v8261 = vpop.f32.mrf.mxu0
        %8262 = vmatprep.mubr.f32.mxu0 %v6189
        %8263 = vmatmul.mubr.f32.gmra.mxu0 %v6187
        %v8264 = vpop.f32.mrf.mxu0
        %v8265 = vadd.f32 0.0, %v8264
        %v8266 = vpop.f32.mrf.mxu0
        %8267 = vmatprep.mubr.f32.mxu0 %v6193
        %8268 = vmatmul.mubr.f32.gmra.mxu0 %v6191
        %v8269 = vpop.f32.mrf.mxu0
        %v8270 = vadd.f32 0.0, %v8269
        %v8271 = vpop.f32.mrf.mxu0
        %8272 = vmatprep.mubr.f32.mxu0 %v6197
        %8273 = vmatmul.mubr.f32.gmra.mxu0 %v6195
        %v8274 = vpop.f32.mrf.mxu0
        %v8275 = vadd.f32 0.0, %v8274
        %v8276 = vpop.f32.mrf.mxu0
        %8277 = vmatprep.mubr.f32.mxu0 %v6201
        %8278 = vmatmul.mubr.f32.gmra.mxu0 %v6199
        %v8279 = vpop.f32.mrf.mxu0
        %v8280 = vadd.f32 0.0, %v8279
        %v8281 = vpop.f32.mrf.mxu0
        %8282 = vmatprep.mubr.f32.mxu0 %v6205
        %8283 = vmatmul.mubr.f32.gmra.mxu0 %v6203
        %v8284 = vpop.f32.mrf.mxu0
        %v8285 = vadd.f32 0.0, %v8284
        %v8286 = vpop.f32.mrf.mxu0
        %8287 = vmatprep.mubr.f32.mxu0 %v6209
        %8288 = vmatmul.mubr.f32.gmra.mxu0 %v6207
        %v8289 = vpop.f32.mrf.mxu0
        %v8290 = vadd.f32 0.0, %v8289
        %v8291 = vpop.f32.mrf.mxu0
        %8292 = vmatprep.mubr.f32.mxu0 %v6213
        %8293 = vmatmul.mubr.f32.gmra.mxu0 %v6211
        %v8294 = vpop.f32.mrf.mxu0
        %v8295 = vadd.f32 0.0, %v8294
        %v8296 = vpop.f32.mrf.mxu0
        %8297 = vmatprep.mubr.f32.mxu0 %v6217
        %8298 = vmatmul.mubr.f32.gmra.mxu0 %v6215
        %v8299 = vpop.f32.mrf.mxu0
        %v8300 = vadd.f32 0.0, %v8299
        %v8301 = vpop.f32.mrf.mxu0
        %8302 = vmatprep.mubr.f32.mxu0 %v6221
        %8303 = vmatmul.mubr.f32.gmra.mxu0 %v6219
        %v8304 = vpop.f32.mrf.mxu0
        %v8305 = vadd.f32 0.0, %v8304
        %v8306 = vpop.f32.mrf.mxu0
        %8307 = vmatprep.mubr.f32.mxu0 %v6225
        %8308 = vmatmul.mubr.f32.gmra.mxu0 %v6223
        %v8309 = vpop.f32.mrf.mxu0
        %v8310 = vadd.f32 0.0, %v8309
        %v8311 = vpop.f32.mrf.mxu0
        %8312 = vmatprep.mubr.f32.mxu0 %v6229
        %8313 = vmatmul.mubr.f32.gmra.mxu0 %v6227
        %v8314 = vpop.f32.mrf.mxu0
        %v8315 = vadd.f32 0.0, %v8314
        %v8316 = vpop.f32.mrf.mxu0
        %8317 = vmatprep.mubr.f32.mxu0 %v6233
        %8318 = vmatmul.mubr.f32.gmra.mxu0 %v6231
        %v8319 = vpop.f32.mrf.mxu0
        %v8320 = vadd.f32 0.0, %v8319
        %v8321 = vpop.f32.mrf.mxu0
        %8322 = vdwg.mxu0
        %v8323 = vcombine.high %v1691, %v1691
        %8325 = vmatprep.subr.mxu0 0.0
        %8326 = vmatpush1.xpose.msra.mxu0 0.0
        %8327 = vmatprep.subr.mxu0 0.0
        %8328 = vmatpush1.xpose.msra.mxu0 0.0
        %8329 = vmatprep.subr.mxu0 0.0
        %8330 = vmatpush1.xpose.msra.mxu0 0.0
        %8331 = vmatprep.subr.mxu0 0.0
        %8332 = vmatpush1.xpose.msra.mxu0 0.0
        %8333 = vmatprep.subr.mxu0 0.0
        %8334 = vmatpush1.xpose.msra.mxu0 0.0
        %8335 = vmatprep.subr.mxu0 0.0
        %8336 = vmatpush1.xpose.msra.mxu0 0.0
        %8337 = vmatprep.subr.mxu0 0.0
        %8338 = vmatpush1.xpose.msra.mxu0 0.0
        %8339 = vmatprep.subr.mxu0 0.0
        %8340 = vmatpush1.xpose.msra.mxu0 0.0
        %8341 = vmatprep.subr.mxu0 0.0
        %8342 = vmatpush1.xpose.msra.mxu0 0.0
        %8343 = vmatprep.subr.mxu0 0.0
        %8344 = vmatpush1.xpose.msra.mxu0 0.0
        %8345 = vmatprep.subr.mxu0 0.0
        %8346 = vmatpush1.xpose.msra.mxu0 0.0
        %8347 = vmatprep.subr.mxu0 0.0
        %8348 = vmatpush1.xpose.msra.mxu0 0.0
        %8349 = vmatprep.subr.mxu0 0.0
        %8350 = vmatpush1.xpose.msra.mxu0 0.0
        %8351 = vmatprep.subr.mxu0 0.0
        %8352 = vmatpush1.xpose.msra.mxu0 0.0
        %8353 = vmatprep.subr.mxu0 0.0
        %8354 = vmatpush1.xpose.msra.mxu0 0.0
        %8355 = vmatprep.subr.mxu0 %v8323
        %8356 = vmatpush1.xpose.msra.mxu0 %v1691
        %8357 = vmatprep.subr.mxu0 0.0
        %8358 = vmatpush2.xpose.msra.mxu0 0.0
        %8359 = vmatprep.subr.mxu0 0.0
        %8360 = vmatpush2.xpose.msra.mxu0 0.0
        %8361 = vmatprep.subr.mxu0 0.0
        %8362 = vmatpush2.xpose.msra.mxu0 0.0
        %8363 = vmatprep.subr.mxu0 0.0
        %8364 = vmatpush2.xpose.msra.mxu0 0.0
        %8365 = vmatprep.subr.mxu0 0.0
        %8366 = vmatpush2.xpose.msra.mxu0 0.0
        %8367 = vmatprep.subr.mxu0 0.0
        %8368 = vmatpush2.xpose.msra.mxu0 0.0
        %8369 = vmatprep.subr.mxu0 0.0
        %8370 = vmatpush2.xpose.msra.mxu0 0.0
        %8371 = vmatprep.subr.mxu0 0.0
        %8372 = vmatpush2.xpose.msra.mxu0 0.0
        %8373 = vmatprep.subr.mxu0 0.0
        %8374 = vmatpush2.xpose.msra.mxu0 0.0
        %8375 = vmatprep.subr.mxu0 0.0
        %8376 = vmatpush2.xpose.msra.mxu0 0.0
        %8377 = vmatprep.subr.mxu0 0.0
        %8378 = vmatpush2.xpose.msra.mxu0 0.0
        %8379 = vmatprep.subr.mxu0 0.0
        %8380 = vmatpush2.xpose.msra.mxu0 0.0
        %8381 = vmatprep.subr.mxu0 0.0
        %8382 = vmatpush2.xpose.msra.mxu0 0.0
        %8383 = vmatprep.subr.mxu0 0.0
        %8384 = vmatpush2.xpose.msra.mxu0 0.0
        %8385 = vmatprep.subr.mxu0 0.0
        %8386 = vmatpush2.xpose.msra.mxu0 0.0
        %8387 = vmatprep.subr.mxu0 0.0
        %8388 = vmatpush2.xpose.msra.mxu0 0.0
        %8389 = vmatprep.mubr.f32.mxu0 %v6237
        %8390 = vmatmul.mubr.f32.gmra.mxu0 %v6235
        %v8391 = vpop.f32.mrf.mxu0
        %v8392 = vadd.f32 0.0, %v8391
        %v8393 = vpop.f32.mrf.mxu0
        %8394 = vmatprep.mubr.f32.mxu0 %v6241
        %8395 = vmatmul.mubr.f32.gmra.mxu0 %v6239
        %v8396 = vpop.f32.mrf.mxu0
        %v8397 = vadd.f32 0.0, %v8396
        %v8398 = vpop.f32.mrf.mxu0
        %8399 = vmatprep.mubr.f32.mxu0 %v6245
        %8400 = vmatmul.mubr.f32.gmra.mxu0 %v6243
        %v8401 = vpop.f32.mrf.mxu0
        %v8402 = vadd.f32 0.0, %v8401
        %v8403 = vpop.f32.mrf.mxu0
        %8404 = vmatprep.mubr.f32.mxu0 %v6249
        %8405 = vmatmul.mubr.f32.gmra.mxu0 %v6247
        %v8406 = vpop.f32.mrf.mxu0
        %v8407 = vadd.f32 0.0, %v8406
        %v8408 = vpop.f32.mrf.mxu0
        %8409 = vmatprep.mubr.f32.mxu0 %v6253
        %8410 = vmatmul.mubr.f32.gmra.mxu0 %v6251
        %v8411 = vpop.f32.mrf.mxu0
        %v8412 = vadd.f32 0.0, %v8411
        %v8413 = vpop.f32.mrf.mxu0
        %8414 = vmatprep.mubr.f32.mxu0 %v6257
        %8415 = vmatmul.mubr.f32.gmra.mxu0 %v6255
        %v8416 = vpop.f32.mrf.mxu0
        %v8417 = vadd.f32 0.0, %v8416
        %v8418 = vpop.f32.mrf.mxu0
        %8419 = vmatprep.mubr.f32.mxu0 %v6261
        %8420 = vmatmul.mubr.f32.gmra.mxu0 %v6259
        %v8421 = vpop.f32.mrf.mxu0
        %v8422 = vadd.f32 0.0, %v8421
        %v8423 = vpop.f32.mrf.mxu0
        %8424 = vmatprep.mubr.f32.mxu0 %v6265
        %8425 = vmatmul.mubr.f32.gmra.mxu0 %v6263
        %v8426 = vpop.f32.mrf.mxu0
        %v8427 = vadd.f32 0.0, %v8426
        %v8428 = vpop.f32.mrf.mxu0
        %8429 = vmatprep.mubr.f32.mxu0 %v6269
        %8430 = vmatmul.mubr.f32.gmra.mxu0 %v6267
        %v8431 = vpop.f32.mrf.mxu0
        %v8432 = vadd.f32 0.0, %v8431
        %v8433 = vpop.f32.mrf.mxu0
        %8434 = vmatprep.mubr.f32.mxu0 %v6273
        %8435 = vmatmul.mubr.f32.gmra.mxu0 %v6271
        %v8436 = vpop.f32.mrf.mxu0
        %v8437 = vadd.f32 0.0, %v8436
        %v8438 = vpop.f32.mrf.mxu0
        %8439 = vmatprep.mubr.f32.mxu0 %v6277
        %8440 = vmatmul.mubr.f32.gmra.mxu0 %v6275
        %v8441 = vpop.f32.mrf.mxu0
        %v8442 = vadd.f32 0.0, %v8441
        %v8443 = vpop.f32.mrf.mxu0
        %8444 = vmatprep.mubr.f32.mxu0 %v6281
        %8445 = vmatmul.mubr.f32.gmra.mxu0 %v6279
        %v8446 = vpop.f32.mrf.mxu0
        %v8447 = vadd.f32 0.0, %v8446
        %v8448 = vpop.f32.mrf.mxu0
        %8449 = vmatprep.mubr.f32.mxu0 %v6285
        %8450 = vmatmul.mubr.f32.gmra.mxu0 %v6283
        %v8451 = vpop.f32.mrf.mxu0
        %v8452 = vadd.f32 0.0, %v8451
        %v8453 = vpop.f32.mrf.mxu0
        %8454 = vmatprep.mubr.f32.mxu0 %v6289
        %8455 = vmatmul.mubr.f32.gmra.mxu0 %v6287
        %v8456 = vpop.f32.mrf.mxu0
        %v8457 = vadd.f32 0.0, %v8456
        %v8458 = vpop.f32.mrf.mxu0
        %8459 = vmatprep.mubr.f32.mxu0 %v6293
        %8460 = vmatmul.mubr.f32.gmra.mxu0 %v6291
        %v8461 = vpop.f32.mrf.mxu0
        %v8462 = vadd.f32 0.0, %v8461
        %v8463 = vpop.f32.mrf.mxu0
        %8464 = vmatprep.mubr.f32.mxu0 %v6297
        %8465 = vmatmul.mubr.f32.gmra.mxu0 %v6295
        %v8466 = vpop.f32.mrf.mxu0
        %v8467 = vadd.f32 0.0, %v8466
        %v8468 = vpop.f32.mrf.mxu0
        %8469 = vmatprep.mubr.f32.mxu0 %v6301
        %8470 = vmatmul.mubr.f32.gmra.mxu0 %v6299
        %v8471 = vpop.f32.mrf.mxu0
        %v8472 = vadd.f32 0.0, %v8471
        %v8473 = vpop.f32.mrf.mxu0
        %8474 = vmatprep.mubr.f32.mxu0 %v6305
        %8475 = vmatmul.mubr.f32.gmra.mxu0 %v6303
        %v8476 = vpop.f32.mrf.mxu0
        %v8477 = vadd.f32 0.0, %v8476
        %v8478 = vpop.f32.mrf.mxu0
        %8479 = vmatprep.mubr.f32.mxu0 %v6309
        %8480 = vmatmul.mubr.f32.gmra.mxu0 %v6307
        %v8481 = vpop.f32.mrf.mxu0
        %v8482 = vadd.f32 0.0, %v8481
        %v8483 = vpop.f32.mrf.mxu0
        %8484 = vmatprep.mubr.f32.mxu0 %v6313
        %8485 = vmatmul.mubr.f32.gmra.mxu0 %v6311
        %v8486 = vpop.f32.mrf.mxu0
        %v8487 = vadd.f32 0.0, %v8486
        %v8488 = vpop.f32.mrf.mxu0
        %8489 = vmatprep.mubr.f32.mxu0 %v6317
        %8490 = vmatmul.mubr.f32.gmra.mxu0 %v6315
        %v8491 = vpop.f32.mrf.mxu0
        %v8492 = vadd.f32 0.0, %v8491
        %v8493 = vpop.f32.mrf.mxu0
        %8494 = vmatprep.mubr.f32.mxu0 %v6321
        %8495 = vmatmul.mubr.f32.gmra.mxu0 %v6319
        %v8496 = vpop.f32.mrf.mxu0
        %v8497 = vadd.f32 0.0, %v8496
        %v8498 = vpop.f32.mrf.mxu0
        %8499 = vmatprep.mubr.f32.mxu0 %v6325
        %8500 = vmatmul.mubr.f32.gmra.mxu0 %v6323
        %v8501 = vpop.f32.mrf.mxu0
        %v8502 = vadd.f32 0.0, %v8501
        %v8503 = vpop.f32.mrf.mxu0
        %8504 = vmatprep.mubr.f32.mxu0 %v6329
        %8505 = vmatmul.mubr.f32.gmra.mxu0 %v6327
        %v8506 = vpop.f32.mrf.mxu0
        %v8507 = vadd.f32 0.0, %v8506
        %v8508 = vpop.f32.mrf.mxu0
        %8509 = vmatprep.mubr.f32.mxu0 %v6333
        %8510 = vmatmul.mubr.f32.gmra.mxu0 %v6331
        %v8511 = vpop.f32.mrf.mxu0
        %v8512 = vadd.f32 0.0, %v8511
        %v8513 = vpop.f32.mrf.mxu0
        %8514 = vmatprep.mubr.f32.mxu0 %v6337
        %8515 = vmatmul.mubr.f32.gmra.mxu0 %v6335
        %v8516 = vpop.f32.mrf.mxu0
        %v8517 = vadd.f32 0.0, %v8516
        %v8518 = vpop.f32.mrf.mxu0
        %8519 = vmatprep.mubr.f32.mxu0 %v6341
        %8520 = vmatmul.mubr.f32.gmra.mxu0 %v6339
        %v8521 = vpop.f32.mrf.mxu0
        %v8522 = vadd.f32 0.0, %v8521
        %v8523 = vpop.f32.mrf.mxu0
        %8524 = vmatprep.mubr.f32.mxu0 %v6345
        %8525 = vmatmul.mubr.f32.gmra.mxu0 %v6343
        %v8526 = vpop.f32.mrf.mxu0
        %v8527 = vadd.f32 0.0, %v8526
        %v8528 = vpop.f32.mrf.mxu0
        %8529 = vmatprep.mubr.f32.mxu0 %v6349
        %8530 = vmatmul.mubr.f32.gmra.mxu0 %v6347
        %v8531 = vpop.f32.mrf.mxu0
        %v8532 = vadd.f32 0.0, %v8531
        %v8533 = vpop.f32.mrf.mxu0
        %8534 = vmatprep.mubr.f32.mxu0 %v6353
        %8535 = vmatmul.mubr.f32.gmra.mxu0 %v6351
        %v8536 = vpop.f32.mrf.mxu0
        %v8537 = vadd.f32 0.0, %v8536
        %v8538 = vpop.f32.mrf.mxu0
        %8539 = vmatprep.mubr.f32.mxu0 %v6357
        %8540 = vmatmul.mubr.f32.gmra.mxu0 %v6355
        %v8541 = vpop.f32.mrf.mxu0
        %v8542 = vadd.f32 0.0, %v8541
        %v8543 = vpop.f32.mrf.mxu0
        %8544 = vmatprep.mubr.f32.mxu0 %v6361
        %8545 = vmatmul.mubr.f32.gmra.mxu0 %v6359
        %v8546 = vpop.f32.mrf.mxu0
        %v8547 = vadd.f32 0.0, %v8546
        %v8548 = vpop.f32.mrf.mxu0
        %8549 = vdwg.mxu0
        %v8550 = vcombine.high %v1692, %v1692
        %8552 = vmatprep.subr.mxu0 0.0
        %8553 = vmatpush1.xpose.msra.mxu0 0.0
        %8554 = vmatprep.subr.mxu0 0.0
        %8555 = vmatpush1.xpose.msra.mxu0 0.0
        %8556 = vmatprep.subr.mxu0 0.0
        %8557 = vmatpush1.xpose.msra.mxu0 0.0
        %8558 = vmatprep.subr.mxu0 0.0
        %8559 = vmatpush1.xpose.msra.mxu0 0.0
        %8560 = vmatprep.subr.mxu0 0.0
        %8561 = vmatpush1.xpose.msra.mxu0 0.0
        %8562 = vmatprep.subr.mxu0 0.0
        %8563 = vmatpush1.xpose.msra.mxu0 0.0
        %8564 = vmatprep.subr.mxu0 0.0
        %8565 = vmatpush1.xpose.msra.mxu0 0.0
        %8566 = vmatprep.subr.mxu0 0.0
        %8567 = vmatpush1.xpose.msra.mxu0 0.0
        %8568 = vmatprep.subr.mxu0 0.0
        %8569 = vmatpush1.xpose.msra.mxu0 0.0
        %8570 = vmatprep.subr.mxu0 0.0
        %8571 = vmatpush1.xpose.msra.mxu0 0.0
        %8572 = vmatprep.subr.mxu0 0.0
        %8573 = vmatpush1.xpose.msra.mxu0 0.0
        %8574 = vmatprep.subr.mxu0 0.0
        %8575 = vmatpush1.xpose.msra.mxu0 0.0
        %8576 = vmatprep.subr.mxu0 0.0
        %8577 = vmatpush1.xpose.msra.mxu0 0.0
        %8578 = vmatprep.subr.mxu0 0.0
        %8579 = vmatpush1.xpose.msra.mxu0 0.0
        %8580 = vmatprep.subr.mxu0 0.0
        %8581 = vmatpush1.xpose.msra.mxu0 0.0
        %8582 = vmatprep.subr.mxu0 %v8550
        %8583 = vmatpush1.xpose.msra.mxu0 %v1692
        %8584 = vmatprep.subr.mxu0 0.0
        %8585 = vmatpush2.xpose.msra.mxu0 0.0
        %8586 = vmatprep.subr.mxu0 0.0
        %8587 = vmatpush2.xpose.msra.mxu0 0.0
        %8588 = vmatprep.subr.mxu0 0.0
        %8589 = vmatpush2.xpose.msra.mxu0 0.0
        %8590 = vmatprep.subr.mxu0 0.0
        %8591 = vmatpush2.xpose.msra.mxu0 0.0
        %8592 = vmatprep.subr.mxu0 0.0
        %8593 = vmatpush2.xpose.msra.mxu0 0.0
        %8594 = vmatprep.subr.mxu0 0.0
        %8595 = vmatpush2.xpose.msra.mxu0 0.0
        %8596 = vmatprep.subr.mxu0 0.0
        %8597 = vmatpush2.xpose.msra.mxu0 0.0
        %8598 = vmatprep.subr.mxu0 0.0
        %8599 = vmatpush2.xpose.msra.mxu0 0.0
        %8600 = vmatprep.subr.mxu0 0.0
        %8601 = vmatpush2.xpose.msra.mxu0 0.0
        %8602 = vmatprep.subr.mxu0 0.0
        %8603 = vmatpush2.xpose.msra.mxu0 0.0
        %8604 = vmatprep.subr.mxu0 0.0
        %8605 = vmatpush2.xpose.msra.mxu0 0.0
        %8606 = vmatprep.subr.mxu0 0.0
        %8607 = vmatpush2.xpose.msra.mxu0 0.0
        %8608 = vmatprep.subr.mxu0 0.0
        %8609 = vmatpush2.xpose.msra.mxu0 0.0
        %8610 = vmatprep.subr.mxu0 0.0
        %8611 = vmatpush2.xpose.msra.mxu0 0.0
        %8612 = vmatprep.subr.mxu0 0.0
        %8613 = vmatpush2.xpose.msra.mxu0 0.0
        %8614 = vmatprep.subr.mxu0 0.0
        %8615 = vmatpush2.xpose.msra.mxu0 0.0
        %8616 = vmatprep.mubr.f32.mxu0 %v6365
        %8617 = vmatmul.mubr.f32.gmra.mxu0 %v6363
        %v8618 = vpop.f32.mrf.mxu0
        %v8619 = vadd.f32 0.0, %v8618
        %v8620 = vpop.f32.mrf.mxu0
        %8621 = vmatprep.mubr.f32.mxu0 %v6369
        %8622 = vmatmul.mubr.f32.gmra.mxu0 %v6367
        %v8623 = vpop.f32.mrf.mxu0
        %v8624 = vadd.f32 0.0, %v8623
        %v8625 = vpop.f32.mrf.mxu0
        %8626 = vmatprep.mubr.f32.mxu0 %v6373
        %8627 = vmatmul.mubr.f32.gmra.mxu0 %v6371
        %v8628 = vpop.f32.mrf.mxu0
        %v8629 = vadd.f32 0.0, %v8628
        %v8630 = vpop.f32.mrf.mxu0
        %8631 = vmatprep.mubr.f32.mxu0 %v6377
        %8632 = vmatmul.mubr.f32.gmra.mxu0 %v6375
        %v8633 = vpop.f32.mrf.mxu0
        %v8634 = vadd.f32 0.0, %v8633
        %v8635 = vpop.f32.mrf.mxu0
        %8636 = vmatprep.mubr.f32.mxu0 %v6381
        %8637 = vmatmul.mubr.f32.gmra.mxu0 %v6379
        %v8638 = vpop.f32.mrf.mxu0
        %v8639 = vadd.f32 0.0, %v8638
        %v8640 = vpop.f32.mrf.mxu0
        %8641 = vmatprep.mubr.f32.mxu0 %v6385
        %8642 = vmatmul.mubr.f32.gmra.mxu0 %v6383
        %v8643 = vpop.f32.mrf.mxu0
        %v8644 = vadd.f32 0.0, %v8643
        %v8645 = vpop.f32.mrf.mxu0
        %8646 = vmatprep.mubr.f32.mxu0 %v6389
        %8647 = vmatmul.mubr.f32.gmra.mxu0 %v6387
        %v8648 = vpop.f32.mrf.mxu0
        %v8649 = vadd.f32 0.0, %v8648
        %v8650 = vpop.f32.mrf.mxu0
        %8651 = vmatprep.mubr.f32.mxu0 %v6393
        %8652 = vmatmul.mubr.f32.gmra.mxu0 %v6391
        %v8653 = vpop.f32.mrf.mxu0
        %v8654 = vadd.f32 0.0, %v8653
        %v8655 = vpop.f32.mrf.mxu0
        %8656 = vmatprep.mubr.f32.mxu0 %v6397
        %8657 = vmatmul.mubr.f32.gmra.mxu0 %v6395
        %v8658 = vpop.f32.mrf.mxu0
        %v8659 = vadd.f32 0.0, %v8658
        %v8660 = vpop.f32.mrf.mxu0
        %8661 = vmatprep.mubr.f32.mxu0 %v6401
        %8662 = vmatmul.mubr.f32.gmra.mxu0 %v6399
        %v8663 = vpop.f32.mrf.mxu0
        %v8664 = vadd.f32 0.0, %v8663
        %v8665 = vpop.f32.mrf.mxu0
        %8666 = vmatprep.mubr.f32.mxu0 %v6405
        %8667 = vmatmul.mubr.f32.gmra.mxu0 %v6403
        %v8668 = vpop.f32.mrf.mxu0
        %v8669 = vadd.f32 0.0, %v8668
        %v8670 = vpop.f32.mrf.mxu0
        %8671 = vmatprep.mubr.f32.mxu0 %v6409
        %8672 = vmatmul.mubr.f32.gmra.mxu0 %v6407
        %v8673 = vpop.f32.mrf.mxu0
        %v8674 = vadd.f32 0.0, %v8673
        %v8675 = vpop.f32.mrf.mxu0
        %8676 = vmatprep.mubr.f32.mxu0 %v6413
        %8677 = vmatmul.mubr.f32.gmra.mxu0 %v6411
        %v8678 = vpop.f32.mrf.mxu0
        %v8679 = vadd.f32 0.0, %v8678
        %v8680 = vpop.f32.mrf.mxu0
        %8681 = vmatprep.mubr.f32.mxu0 %v6417
        %8682 = vmatmul.mubr.f32.gmra.mxu0 %v6415
        %v8683 = vpop.f32.mrf.mxu0
        %v8684 = vadd.f32 0.0, %v8683
        %v8685 = vpop.f32.mrf.mxu0
        %8686 = vmatprep.mubr.f32.mxu0 %v6421
        %8687 = vmatmul.mubr.f32.gmra.mxu0 %v6419
        %v8688 = vpop.f32.mrf.mxu0
        %v8689 = vadd.f32 0.0, %v8688
        %v8690 = vpop.f32.mrf.mxu0
        %8691 = vmatprep.mubr.f32.mxu0 %v6425
        %8692 = vmatmul.mubr.f32.gmra.mxu0 %v6423
        %v8693 = vpop.f32.mrf.mxu0
        %v8694 = vadd.f32 0.0, %v8693
        %v8695 = vpop.f32.mrf.mxu0
        %8696 = vmatprep.mubr.f32.mxu0 %v6429
        %8697 = vmatmul.mubr.f32.gmra.mxu0 %v6427
        %v8698 = vpop.f32.mrf.mxu0
        %v8699 = vadd.f32 0.0, %v8698
        %v8700 = vpop.f32.mrf.mxu0
        %8701 = vmatprep.mubr.f32.mxu0 %v6433
        %8702 = vmatmul.mubr.f32.gmra.mxu0 %v6431
        %v8703 = vpop.f32.mrf.mxu0
        %v8704 = vadd.f32 0.0, %v8703
        %v8705 = vpop.f32.mrf.mxu0
        %8706 = vmatprep.mubr.f32.mxu0 %v6437
        %8707 = vmatmul.mubr.f32.gmra.mxu0 %v6435
        %v8708 = vpop.f32.mrf.mxu0
        %v8709 = vadd.f32 0.0, %v8708
        %v8710 = vpop.f32.mrf.mxu0
        %8711 = vmatprep.mubr.f32.mxu0 %v6441
        %8712 = vmatmul.mubr.f32.gmra.mxu0 %v6439
        %v8713 = vpop.f32.mrf.mxu0
        %v8714 = vadd.f32 0.0, %v8713
        %v8715 = vpop.f32.mrf.mxu0
        %8716 = vmatprep.mubr.f32.mxu0 %v6445
        %8717 = vmatmul.mubr.f32.gmra.mxu0 %v6443
        %v8718 = vpop.f32.mrf.mxu0
        %v8719 = vadd.f32 0.0, %v8718
        %v8720 = vpop.f32.mrf.mxu0
        %8721 = vmatprep.mubr.f32.mxu0 %v6449
        %8722 = vmatmul.mubr.f32.gmra.mxu0 %v6447
        %v8723 = vpop.f32.mrf.mxu0
        %v8724 = vadd.f32 0.0, %v8723
        %v8725 = vpop.f32.mrf.mxu0
        %8726 = vmatprep.mubr.f32.mxu0 %v6453
        %8727 = vmatmul.mubr.f32.gmra.mxu0 %v6451
        %v8728 = vpop.f32.mrf.mxu0
        %v8729 = vadd.f32 0.0, %v8728
        %v8730 = vpop.f32.mrf.mxu0
        %8731 = vmatprep.mubr.f32.mxu0 %v6457
        %8732 = vmatmul.mubr.f32.gmra.mxu0 %v6455
        %v8733 = vpop.f32.mrf.mxu0
        %v8734 = vadd.f32 0.0, %v8733
        %v8735 = vpop.f32.mrf.mxu0
        %8736 = vmatprep.mubr.f32.mxu0 %v6461
        %8737 = vmatmul.mubr.f32.gmra.mxu0 %v6459
        %v8738 = vpop.f32.mrf.mxu0
        %v8739 = vadd.f32 0.0, %v8738
        %v8740 = vpop.f32.mrf.mxu0
        %8741 = vmatprep.mubr.f32.mxu0 %v6465
        %8742 = vmatmul.mubr.f32.gmra.mxu0 %v6463
        %v8743 = vpop.f32.mrf.mxu0
        %v8744 = vadd.f32 0.0, %v8743
        %v8745 = vpop.f32.mrf.mxu0
        %8746 = vmatprep.mubr.f32.mxu0 %v6469
        %8747 = vmatmul.mubr.f32.gmra.mxu0 %v6467
        %v8748 = vpop.f32.mrf.mxu0
        %v8749 = vadd.f32 0.0, %v8748
        %v8750 = vpop.f32.mrf.mxu0
        %8751 = vmatprep.mubr.f32.mxu0 %v6473
        %8752 = vmatmul.mubr.f32.gmra.mxu0 %v6471
        %v8753 = vpop.f32.mrf.mxu0
        %v8754 = vadd.f32 0.0, %v8753
        %v8755 = vpop.f32.mrf.mxu0
        %8756 = vmatprep.mubr.f32.mxu0 %v6477
        %8757 = vmatmul.mubr.f32.gmra.mxu0 %v6475
        %v8758 = vpop.f32.mrf.mxu0
        %v8759 = vadd.f32 0.0, %v8758
        %v8760 = vpop.f32.mrf.mxu0
        %8761 = vmatprep.mubr.f32.mxu0 %v6481
        %8762 = vmatmul.mubr.f32.gmra.mxu0 %v6479
        %v8763 = vpop.f32.mrf.mxu0
        %v8764 = vadd.f32 0.0, %v8763
        %v8765 = vpop.f32.mrf.mxu0
        %8766 = vmatprep.mubr.f32.mxu0 %v6485
        %8767 = vmatmul.mubr.f32.gmra.mxu0 %v6483
        %v8768 = vpop.f32.mrf.mxu0
        %v8769 = vadd.f32 0.0, %v8768
        %v8770 = vpop.f32.mrf.mxu0
        %8771 = vmatprep.mubr.f32.mxu0 %v6489
        %8772 = vmatmul.mubr.f32.gmra.mxu0 %v6487
        %v8773 = vpop.f32.mrf.mxu0
        %v8774 = vadd.f32 0.0, %v8773
        %v8775 = vpop.f32.mrf.mxu0
        %8776 = vdwg.mxu0
        %v8777 = vcombine.high %v1693, %v1693
        %8779 = vmatprep.subr.mxu0 0.0
        %8780 = vmatpush1.xpose.msra.mxu0 0.0
        %8781 = vmatprep.subr.mxu0 0.0
        %8782 = vmatpush1.xpose.msra.mxu0 0.0
        %8783 = vmatprep.subr.mxu0 0.0
        %8784 = vmatpush1.xpose.msra.mxu0 0.0
        %8785 = vmatprep.subr.mxu0 0.0
        %8786 = vmatpush1.xpose.msra.mxu0 0.0
        %8787 = vmatprep.subr.mxu0 0.0
        %8788 = vmatpush1.xpose.msra.mxu0 0.0
        %8789 = vmatprep.subr.mxu0 0.0
        %8790 = vmatpush1.xpose.msra.mxu0 0.0
        %8791 = vmatprep.subr.mxu0 0.0
        %8792 = vmatpush1.xpose.msra.mxu0 0.0
        %8793 = vmatprep.subr.mxu0 0.0
        %8794 = vmatpush1.xpose.msra.mxu0 0.0
        %8795 = vmatprep.subr.mxu0 0.0
        %8796 = vmatpush1.xpose.msra.mxu0 0.0
        %8797 = vmatprep.subr.mxu0 0.0
        %8798 = vmatpush1.xpose.msra.mxu0 0.0
        %8799 = vmatprep.subr.mxu0 0.0
        %8800 = vmatpush1.xpose.msra.mxu0 0.0
        %8801 = vmatprep.subr.mxu0 0.0
        %8802 = vmatpush1.xpose.msra.mxu0 0.0
        %8803 = vmatprep.subr.mxu0 0.0
        %8804 = vmatpush1.xpose.msra.mxu0 0.0
        %8805 = vmatprep.subr.mxu0 0.0
        %8806 = vmatpush1.xpose.msra.mxu0 0.0
        %8807 = vmatprep.subr.mxu0 0.0
        %8808 = vmatpush1.xpose.msra.mxu0 0.0
        %8809 = vmatprep.subr.mxu0 %v8777
        %8810 = vmatpush1.xpose.msra.mxu0 %v1693
        %8811 = vmatprep.subr.mxu0 0.0
        %8812 = vmatpush2.xpose.msra.mxu0 0.0
        %8813 = vmatprep.subr.mxu0 0.0
        %8814 = vmatpush2.xpose.msra.mxu0 0.0
        %8815 = vmatprep.subr.mxu0 0.0
        %8816 = vmatpush2.xpose.msra.mxu0 0.0
        %8817 = vmatprep.subr.mxu0 0.0
        %8818 = vmatpush2.xpose.msra.mxu0 0.0
        %8819 = vmatprep.subr.mxu0 0.0
        %8820 = vmatpush2.xpose.msra.mxu0 0.0
        %8821 = vmatprep.subr.mxu0 0.0
        %8822 = vmatpush2.xpose.msra.mxu0 0.0
        %8823 = vmatprep.subr.mxu0 0.0
        %8824 = vmatpush2.xpose.msra.mxu0 0.0
        %8825 = vmatprep.subr.mxu0 0.0
        %8826 = vmatpush2.xpose.msra.mxu0 0.0
        %8827 = vmatprep.subr.mxu0 0.0
        %8828 = vmatpush2.xpose.msra.mxu0 0.0
        %8829 = vmatprep.subr.mxu0 0.0
        %8830 = vmatpush2.xpose.msra.mxu0 0.0
        %8831 = vmatprep.subr.mxu0 0.0
        %8832 = vmatpush2.xpose.msra.mxu0 0.0
        %8833 = vmatprep.subr.mxu0 0.0
        %8834 = vmatpush2.xpose.msra.mxu0 0.0
        %8835 = vmatprep.subr.mxu0 0.0
        %8836 = vmatpush2.xpose.msra.mxu0 0.0
        %8837 = vmatprep.subr.mxu0 0.0
        %8838 = vmatpush2.xpose.msra.mxu0 0.0
        %8839 = vmatprep.subr.mxu0 0.0
        %8840 = vmatpush2.xpose.msra.mxu0 0.0
        %8841 = vmatprep.subr.mxu0 0.0
        %8842 = vmatpush2.xpose.msra.mxu0 0.0
        %8843 = vmatprep.mubr.f32.mxu0 %v6493
        %8844 = vmatmul.mubr.f32.gmra.mxu0 %v6491
        %v8845 = vpop.f32.mrf.mxu0
        %v8846 = vadd.f32 0.0, %v8845
        %v8847 = vpop.f32.mrf.mxu0
        %8848 = vmatprep.mubr.f32.mxu0 %v6497
        %8849 = vmatmul.mubr.f32.gmra.mxu0 %v6495
        %v8850 = vpop.f32.mrf.mxu0
        %v8851 = vadd.f32 0.0, %v8850
        %v8852 = vpop.f32.mrf.mxu0
        %8853 = vmatprep.mubr.f32.mxu0 %v6501
        %8854 = vmatmul.mubr.f32.gmra.mxu0 %v6499
        %v8855 = vpop.f32.mrf.mxu0
        %v8856 = vadd.f32 0.0, %v8855
        %v8857 = vpop.f32.mrf.mxu0
        %8858 = vmatprep.mubr.f32.mxu0 %v6505
        %8859 = vmatmul.mubr.f32.gmra.mxu0 %v6503
        %v8860 = vpop.f32.mrf.mxu0
        %v8861 = vadd.f32 0.0, %v8860
        %v8862 = vpop.f32.mrf.mxu0
        %8863 = vmatprep.mubr.f32.mxu0 %v6509
        %8864 = vmatmul.mubr.f32.gmra.mxu0 %v6507
        %v8865 = vpop.f32.mrf.mxu0
        %v8866 = vadd.f32 0.0, %v8865
        %v8867 = vpop.f32.mrf.mxu0
        %8868 = vmatprep.mubr.f32.mxu0 %v6513
        %8869 = vmatmul.mubr.f32.gmra.mxu0 %v6511
        %v8870 = vpop.f32.mrf.mxu0
        %v8871 = vadd.f32 0.0, %v8870
        %v8872 = vpop.f32.mrf.mxu0
        %8873 = vmatprep.mubr.f32.mxu0 %v6517
        %8874 = vmatmul.mubr.f32.gmra.mxu0 %v6515
        %v8875 = vpop.f32.mrf.mxu0
        %v8876 = vadd.f32 0.0, %v8875
        %v8877 = vpop.f32.mrf.mxu0
        %8878 = vmatprep.mubr.f32.mxu0 %v6521
        %8879 = vmatmul.mubr.f32.gmra.mxu0 %v6519
        %v8880 = vpop.f32.mrf.mxu0
        %v8881 = vadd.f32 0.0, %v8880
        %v8882 = vpop.f32.mrf.mxu0
        %8883 = vmatprep.mubr.f32.mxu0 %v6525
        %8884 = vmatmul.mubr.f32.gmra.mxu0 %v6523
        %v8885 = vpop.f32.mrf.mxu0
        %v8886 = vadd.f32 0.0, %v8885
        %v8887 = vpop.f32.mrf.mxu0
        %8888 = vmatprep.mubr.f32.mxu0 %v6529
        %8889 = vmatmul.mubr.f32.gmra.mxu0 %v6527
        %v8890 = vpop.f32.mrf.mxu0
        %v8891 = vadd.f32 0.0, %v8890
        %v8892 = vpop.f32.mrf.mxu0
        %8893 = vmatprep.mubr.f32.mxu0 %v6533
        %8894 = vmatmul.mubr.f32.gmra.mxu0 %v6531
        %v8895 = vpop.f32.mrf.mxu0
        %v8896 = vadd.f32 0.0, %v8895
        %v8897 = vpop.f32.mrf.mxu0
        %8898 = vmatprep.mubr.f32.mxu0 %v6537
        %8899 = vmatmul.mubr.f32.gmra.mxu0 %v6535
        %v8900 = vpop.f32.mrf.mxu0
        %v8901 = vadd.f32 0.0, %v8900
        %v8902 = vpop.f32.mrf.mxu0
        %8903 = vmatprep.mubr.f32.mxu0 %v6541
        %8904 = vmatmul.mubr.f32.gmra.mxu0 %v6539
        %v8905 = vpop.f32.mrf.mxu0
        %v8906 = vadd.f32 0.0, %v8905
        %v8907 = vpop.f32.mrf.mxu0
        %8908 = vmatprep.mubr.f32.mxu0 %v6545
        %8909 = vmatmul.mubr.f32.gmra.mxu0 %v6543
        %v8910 = vpop.f32.mrf.mxu0
        %v8911 = vadd.f32 0.0, %v8910
        %v8912 = vpop.f32.mrf.mxu0
        %8913 = vmatprep.mubr.f32.mxu0 %v6549
        %8914 = vmatmul.mubr.f32.gmra.mxu0 %v6547
        %v8915 = vpop.f32.mrf.mxu0
        %v8916 = vadd.f32 0.0, %v8915
        %v8917 = vpop.f32.mrf.mxu0
        %8918 = vmatprep.mubr.f32.mxu0 %v6553
        %8919 = vmatmul.mubr.f32.gmra.mxu0 %v6551
        %v8920 = vpop.f32.mrf.mxu0
        %v8921 = vadd.f32 0.0, %v8920
        %v8922 = vpop.f32.mrf.mxu0
        %8923 = vmatprep.mubr.f32.mxu0 %v6557
        %8924 = vmatmul.mubr.f32.gmra.mxu0 %v6555
        %v8925 = vpop.f32.mrf.mxu0
        %v8926 = vadd.f32 0.0, %v8925
        %v8927 = vpop.f32.mrf.mxu0
        %8928 = vmatprep.mubr.f32.mxu0 %v6561
        %8929 = vmatmul.mubr.f32.gmra.mxu0 %v6559
        %v8930 = vpop.f32.mrf.mxu0
        %v8931 = vadd.f32 0.0, %v8930
        %v8932 = vpop.f32.mrf.mxu0
        %8933 = vmatprep.mubr.f32.mxu0 %v6565
        %8934 = vmatmul.mubr.f32.gmra.mxu0 %v6563
        %v8935 = vpop.f32.mrf.mxu0
        %v8936 = vadd.f32 0.0, %v8935
        %v8937 = vpop.f32.mrf.mxu0
        %8938 = vmatprep.mubr.f32.mxu0 %v6569
        %8939 = vmatmul.mubr.f32.gmra.mxu0 %v6567
        %v8940 = vpop.f32.mrf.mxu0
        %v8941 = vadd.f32 0.0, %v8940
        %v8942 = vpop.f32.mrf.mxu0
        %8943 = vmatprep.mubr.f32.mxu0 %v6573
        %8944 = vmatmul.mubr.f32.gmra.mxu0 %v6571
        %v8945 = vpop.f32.mrf.mxu0
        %v8946 = vadd.f32 0.0, %v8945
        %v8947 = vpop.f32.mrf.mxu0
        %8948 = vmatprep.mubr.f32.mxu0 %v6577
        %8949 = vmatmul.mubr.f32.gmra.mxu0 %v6575
        %v8950 = vpop.f32.mrf.mxu0
        %v8951 = vadd.f32 0.0, %v8950
        %v8952 = vpop.f32.mrf.mxu0
        %8953 = vmatprep.mubr.f32.mxu0 %v6581
        %8954 = vmatmul.mubr.f32.gmra.mxu0 %v6579
        %v8955 = vpop.f32.mrf.mxu0
        %v8956 = vadd.f32 0.0, %v8955
        %v8957 = vpop.f32.mrf.mxu0
        %8958 = vmatprep.mubr.f32.mxu0 %v6585
        %8959 = vmatmul.mubr.f32.gmra.mxu0 %v6583
        %v8960 = vpop.f32.mrf.mxu0
        %v8961 = vadd.f32 0.0, %v8960
        %v8962 = vpop.f32.mrf.mxu0
        %8963 = vmatprep.mubr.f32.mxu0 %v6589
        %8964 = vmatmul.mubr.f32.gmra.mxu0 %v6587
        %v8965 = vpop.f32.mrf.mxu0
        %v8966 = vadd.f32 0.0, %v8965
        %v8967 = vpop.f32.mrf.mxu0
        %8968 = vmatprep.mubr.f32.mxu0 %v6593
        %8969 = vmatmul.mubr.f32.gmra.mxu0 %v6591
        %v8970 = vpop.f32.mrf.mxu0
        %v8971 = vadd.f32 0.0, %v8970
        %v8972 = vpop.f32.mrf.mxu0
        %8973 = vmatprep.mubr.f32.mxu0 %v6597
        %8974 = vmatmul.mubr.f32.gmra.mxu0 %v6595
        %v8975 = vpop.f32.mrf.mxu0
        %v8976 = vadd.f32 0.0, %v8975
        %v8977 = vpop.f32.mrf.mxu0
        %8978 = vmatprep.mubr.f32.mxu0 %v6601
        %8979 = vmatmul.mubr.f32.gmra.mxu0 %v6599
        %v8980 = vpop.f32.mrf.mxu0
        %v8981 = vadd.f32 0.0, %v8980
        %v8982 = vpop.f32.mrf.mxu0
        %8983 = vmatprep.mubr.f32.mxu0 %v6605
        %8984 = vmatmul.mubr.f32.gmra.mxu0 %v6603
        %v8985 = vpop.f32.mrf.mxu0
        %v8986 = vadd.f32 0.0, %v8985
        %v8987 = vpop.f32.mrf.mxu0
        %8988 = vmatprep.mubr.f32.mxu0 %v6609
        %8989 = vmatmul.mubr.f32.gmra.mxu0 %v6607
        %v8990 = vpop.f32.mrf.mxu0
        %v8991 = vadd.f32 0.0, %v8990
        %v8992 = vpop.f32.mrf.mxu0
        %8993 = vmatprep.mubr.f32.mxu0 %v6613
        %8994 = vmatmul.mubr.f32.gmra.mxu0 %v6611
        %v8995 = vpop.f32.mrf.mxu0
        %v8996 = vadd.f32 0.0, %v8995
        %v8997 = vpop.f32.mrf.mxu0
        %8998 = vmatprep.mubr.f32.mxu0 %v6617
        %8999 = vmatmul.mubr.f32.gmra.mxu0 %v6615
        %v9000 = vpop.f32.mrf.mxu0
        %v9001 = vadd.f32 0.0, %v9000
        %v9002 = vpop.f32.mrf.mxu0
        %9003 = vdwg.mxu0
        %v9004 = vcombine.high %v1694, %v1694
        %9006 = vmatprep.subr.mxu0 0.0
        %9007 = vmatpush1.xpose.msra.mxu0 0.0
        %9008 = vmatprep.subr.mxu0 0.0
        %9009 = vmatpush1.xpose.msra.mxu0 0.0
        %9010 = vmatprep.subr.mxu0 0.0
        %9011 = vmatpush1.xpose.msra.mxu0 0.0
        %9012 = vmatprep.subr.mxu0 0.0
        %9013 = vmatpush1.xpose.msra.mxu0 0.0
        %9014 = vmatprep.subr.mxu0 0.0
        %9015 = vmatpush1.xpose.msra.mxu0 0.0
        %9016 = vmatprep.subr.mxu0 0.0
        %9017 = vmatpush1.xpose.msra.mxu0 0.0
        %9018 = vmatprep.subr.mxu0 0.0
        %9019 = vmatpush1.xpose.msra.mxu0 0.0
        %9020 = vmatprep.subr.mxu0 0.0
        %9021 = vmatpush1.xpose.msra.mxu0 0.0
        %9022 = vmatprep.subr.mxu0 0.0
        %9023 = vmatpush1.xpose.msra.mxu0 0.0
        %9024 = vmatprep.subr.mxu0 0.0
        %9025 = vmatpush1.xpose.msra.mxu0 0.0
        %9026 = vmatprep.subr.mxu0 0.0
        %9027 = vmatpush1.xpose.msra.mxu0 0.0
        %9028 = vmatprep.subr.mxu0 0.0
        %9029 = vmatpush1.xpose.msra.mxu0 0.0
        %9030 = vmatprep.subr.mxu0 0.0
        %9031 = vmatpush1.xpose.msra.mxu0 0.0
        %9032 = vmatprep.subr.mxu0 0.0
        %9033 = vmatpush1.xpose.msra.mxu0 0.0
        %9034 = vmatprep.subr.mxu0 0.0
        %9035 = vmatpush1.xpose.msra.mxu0 0.0
        %9036 = vmatprep.subr.mxu0 %v9004
        %9037 = vmatpush1.xpose.msra.mxu0 %v1694
        %9038 = vmatprep.subr.mxu0 0.0
        %9039 = vmatpush2.xpose.msra.mxu0 0.0
        %9040 = vmatprep.subr.mxu0 0.0
        %9041 = vmatpush2.xpose.msra.mxu0 0.0
        %9042 = vmatprep.subr.mxu0 0.0
        %9043 = vmatpush2.xpose.msra.mxu0 0.0
        %9044 = vmatprep.subr.mxu0 0.0
        %9045 = vmatpush2.xpose.msra.mxu0 0.0
        %9046 = vmatprep.subr.mxu0 0.0
        %9047 = vmatpush2.xpose.msra.mxu0 0.0
        %9048 = vmatprep.subr.mxu0 0.0
        %9049 = vmatpush2.xpose.msra.mxu0 0.0
        %9050 = vmatprep.subr.mxu0 0.0
        %9051 = vmatpush2.xpose.msra.mxu0 0.0
        %9052 = vmatprep.subr.mxu0 0.0
        %9053 = vmatpush2.xpose.msra.mxu0 0.0
        %9054 = vmatprep.subr.mxu0 0.0
        %9055 = vmatpush2.xpose.msra.mxu0 0.0
        %9056 = vmatprep.subr.mxu0 0.0
        %9057 = vmatpush2.xpose.msra.mxu0 0.0
        %9058 = vmatprep.subr.mxu0 0.0
        %9059 = vmatpush2.xpose.msra.mxu0 0.0
        %9060 = vmatprep.subr.mxu0 0.0
        %9061 = vmatpush2.xpose.msra.mxu0 0.0
        %9062 = vmatprep.subr.mxu0 0.0
        %9063 = vmatpush2.xpose.msra.mxu0 0.0
        %9064 = vmatprep.subr.mxu0 0.0
        %9065 = vmatpush2.xpose.msra.mxu0 0.0
        %9066 = vmatprep.subr.mxu0 0.0
        %9067 = vmatpush2.xpose.msra.mxu0 0.0
        %9068 = vmatprep.subr.mxu0 0.0
        %9069 = vmatpush2.xpose.msra.mxu0 0.0
        %9070 = vmatprep.mubr.f32.mxu0 %v6621
        %9071 = vmatmul.mubr.f32.gmra.mxu0 %v6619
        %v9072 = vpop.f32.mrf.mxu0
        %v9073 = vadd.f32 0.0, %v9072
        %v9074 = vpop.f32.mrf.mxu0
        %9075 = vmatprep.mubr.f32.mxu0 %v6625
        %9076 = vmatmul.mubr.f32.gmra.mxu0 %v6623
        %v9077 = vpop.f32.mrf.mxu0
        %v9078 = vadd.f32 0.0, %v9077
        %v9079 = vpop.f32.mrf.mxu0
        %9080 = vmatprep.mubr.f32.mxu0 %v6629
        %9081 = vmatmul.mubr.f32.gmra.mxu0 %v6627
        %v9082 = vpop.f32.mrf.mxu0
        %v9083 = vadd.f32 0.0, %v9082
        %v9084 = vpop.f32.mrf.mxu0
        %9085 = vmatprep.mubr.f32.mxu0 %v6633
        %9086 = vmatmul.mubr.f32.gmra.mxu0 %v6631
        %v9087 = vpop.f32.mrf.mxu0
        %v9088 = vadd.f32 0.0, %v9087
        %v9089 = vpop.f32.mrf.mxu0
        %9090 = vmatprep.mubr.f32.mxu0 %v6637
        %9091 = vmatmul.mubr.f32.gmra.mxu0 %v6635
        %v9092 = vpop.f32.mrf.mxu0
        %v9093 = vadd.f32 0.0, %v9092
        %v9094 = vpop.f32.mrf.mxu0
        %9095 = vmatprep.mubr.f32.mxu0 %v6641
        %9096 = vmatmul.mubr.f32.gmra.mxu0 %v6639
        %v9097 = vpop.f32.mrf.mxu0
        %v9098 = vadd.f32 0.0, %v9097
        %v9099 = vpop.f32.mrf.mxu0
        %9100 = vmatprep.mubr.f32.mxu0 %v6645
        %9101 = vmatmul.mubr.f32.gmra.mxu0 %v6643
        %v9102 = vpop.f32.mrf.mxu0
        %v9103 = vadd.f32 0.0, %v9102
        %v9104 = vpop.f32.mrf.mxu0
        %9105 = vmatprep.mubr.f32.mxu0 %v6649
        %9106 = vmatmul.mubr.f32.gmra.mxu0 %v6647
        %v9107 = vpop.f32.mrf.mxu0
        %v9108 = vadd.f32 0.0, %v9107
        %v9109 = vpop.f32.mrf.mxu0
        %9110 = vmatprep.mubr.f32.mxu0 %v6653
        %9111 = vmatmul.mubr.f32.gmra.mxu0 %v6651
        %v9112 = vpop.f32.mrf.mxu0
        %v9113 = vadd.f32 0.0, %v9112
        %v9114 = vpop.f32.mrf.mxu0
        %9115 = vmatprep.mubr.f32.mxu0 %v6657
        %9116 = vmatmul.mubr.f32.gmra.mxu0 %v6655
        %v9117 = vpop.f32.mrf.mxu0
        %v9118 = vadd.f32 0.0, %v9117
        %v9119 = vpop.f32.mrf.mxu0
        %9120 = vmatprep.mubr.f32.mxu0 %v6661
        %9121 = vmatmul.mubr.f32.gmra.mxu0 %v6659
        %v9122 = vpop.f32.mrf.mxu0
        %v9123 = vadd.f32 0.0, %v9122
        %v9124 = vpop.f32.mrf.mxu0
        %9125 = vmatprep.mubr.f32.mxu0 %v6665
        %9126 = vmatmul.mubr.f32.gmra.mxu0 %v6663
        %v9127 = vpop.f32.mrf.mxu0
        %v9128 = vadd.f32 0.0, %v9127
        %v9129 = vpop.f32.mrf.mxu0
        %9130 = vmatprep.mubr.f32.mxu0 %v6669
        %9131 = vmatmul.mubr.f32.gmra.mxu0 %v6667
        %v9132 = vpop.f32.mrf.mxu0
        %v9133 = vadd.f32 0.0, %v9132
        %v9134 = vpop.f32.mrf.mxu0
        %9135 = vmatprep.mubr.f32.mxu0 %v6673
        %9136 = vmatmul.mubr.f32.gmra.mxu0 %v6671
        %v9137 = vpop.f32.mrf.mxu0
        %v9138 = vadd.f32 0.0, %v9137
        %v9139 = vpop.f32.mrf.mxu0
        %9140 = vmatprep.mubr.f32.mxu0 %v6677
        %9141 = vmatmul.mubr.f32.gmra.mxu0 %v6675
        %v9142 = vpop.f32.mrf.mxu0
        %v9143 = vadd.f32 0.0, %v9142
        %v9144 = vpop.f32.mrf.mxu0
        %9145 = vmatprep.mubr.f32.mxu0 %v6681
        %9146 = vmatmul.mubr.f32.gmra.mxu0 %v6679
        %v9147 = vpop.f32.mrf.mxu0
        %v9148 = vadd.f32 0.0, %v9147
        %v9149 = vpop.f32.mrf.mxu0
        %9150 = vmatprep.mubr.f32.mxu0 %v6685
        %9151 = vmatmul.mubr.f32.gmra.mxu0 %v6683
        %v9152 = vpop.f32.mrf.mxu0
        %v9153 = vadd.f32 0.0, %v9152
        %v9154 = vpop.f32.mrf.mxu0
        %9155 = vmatprep.mubr.f32.mxu0 %v6689
        %9156 = vmatmul.mubr.f32.gmra.mxu0 %v6687
        %v9157 = vpop.f32.mrf.mxu0
        %v9158 = vadd.f32 0.0, %v9157
        %v9159 = vpop.f32.mrf.mxu0
        %9160 = vmatprep.mubr.f32.mxu0 %v6693
        %9161 = vmatmul.mubr.f32.gmra.mxu0 %v6691
        %v9162 = vpop.f32.mrf.mxu0
        %v9163 = vadd.f32 0.0, %v9162
        %v9164 = vpop.f32.mrf.mxu0
        %9165 = vmatprep.mubr.f32.mxu0 %v6697
        %9166 = vmatmul.mubr.f32.gmra.mxu0 %v6695
        %v9167 = vpop.f32.mrf.mxu0
        %v9168 = vadd.f32 0.0, %v9167
        %v9169 = vpop.f32.mrf.mxu0
        %9170 = vmatprep.mubr.f32.mxu0 %v6701
        %9171 = vmatmul.mubr.f32.gmra.mxu0 %v6699
        %v9172 = vpop.f32.mrf.mxu0
        %v9173 = vadd.f32 0.0, %v9172
        %v9174 = vpop.f32.mrf.mxu0
        %9175 = vmatprep.mubr.f32.mxu0 %v6705
        %9176 = vmatmul.mubr.f32.gmra.mxu0 %v6703
        %v9177 = vpop.f32.mrf.mxu0
        %v9178 = vadd.f32 0.0, %v9177
        %v9179 = vpop.f32.mrf.mxu0
        %9180 = vmatprep.mubr.f32.mxu0 %v6709
        %9181 = vmatmul.mubr.f32.gmra.mxu0 %v6707
        %v9182 = vpop.f32.mrf.mxu0
        %v9183 = vadd.f32 0.0, %v9182
        %v9184 = vpop.f32.mrf.mxu0
        %9185 = vmatprep.mubr.f32.mxu0 %v6713
        %9186 = vmatmul.mubr.f32.gmra.mxu0 %v6711
        %v9187 = vpop.f32.mrf.mxu0
        %v9188 = vadd.f32 0.0, %v9187
        %v9189 = vpop.f32.mrf.mxu0
        %9190 = vmatprep.mubr.f32.mxu0 %v6717
        %9191 = vmatmul.mubr.f32.gmra.mxu0 %v6715
        %v9192 = vpop.f32.mrf.mxu0
        %v9193 = vadd.f32 0.0, %v9192
        %v9194 = vpop.f32.mrf.mxu0
        %9195 = vmatprep.mubr.f32.mxu0 %v6721
        %9196 = vmatmul.mubr.f32.gmra.mxu0 %v6719
        %v9197 = vpop.f32.mrf.mxu0
        %v9198 = vadd.f32 0.0, %v9197
        %v9199 = vpop.f32.mrf.mxu0
        %9200 = vmatprep.mubr.f32.mxu0 %v6725
        %9201 = vmatmul.mubr.f32.gmra.mxu0 %v6723
        %v9202 = vpop.f32.mrf.mxu0
        %v9203 = vadd.f32 0.0, %v9202
        %v9204 = vpop.f32.mrf.mxu0
        %9205 = vmatprep.mubr.f32.mxu0 %v6729
        %9206 = vmatmul.mubr.f32.gmra.mxu0 %v6727
        %v9207 = vpop.f32.mrf.mxu0
        %v9208 = vadd.f32 0.0, %v9207
        %v9209 = vpop.f32.mrf.mxu0
        %9210 = vmatprep.mubr.f32.mxu0 %v6733
        %9211 = vmatmul.mubr.f32.gmra.mxu0 %v6731
        %v9212 = vpop.f32.mrf.mxu0
        %v9213 = vadd.f32 0.0, %v9212
        %v9214 = vpop.f32.mrf.mxu0
        %9215 = vmatprep.mubr.f32.mxu0 %v6737
        %9216 = vmatmul.mubr.f32.gmra.mxu0 %v6735
        %v9217 = vpop.f32.mrf.mxu0
        %v9218 = vadd.f32 0.0, %v9217
        %v9219 = vpop.f32.mrf.mxu0
        %9220 = vmatprep.mubr.f32.mxu0 %v6741
        %9221 = vmatmul.mubr.f32.gmra.mxu0 %v6739
        %v9222 = vpop.f32.mrf.mxu0
        %v9223 = vadd.f32 0.0, %v9222
        %v9224 = vpop.f32.mrf.mxu0
        %9225 = vmatprep.mubr.f32.mxu0 %v6745
        %9226 = vmatmul.mubr.f32.gmra.mxu0 %v6743
        %v9227 = vpop.f32.mrf.mxu0
        %v9228 = vadd.f32 0.0, %v9227
        %v9229 = vpop.f32.mrf.mxu0
        %9230 = vdwg.mxu0
        %v9231 = vcombine.high %v1695, %v1695
        %9233 = vmatprep.subr.mxu0 0.0
        %9234 = vmatpush1.xpose.msra.mxu0 0.0
        %9235 = vmatprep.subr.mxu0 0.0
        %9236 = vmatpush1.xpose.msra.mxu0 0.0
        %9237 = vmatprep.subr.mxu0 0.0
        %9238 = vmatpush1.xpose.msra.mxu0 0.0
        %9239 = vmatprep.subr.mxu0 0.0
        %9240 = vmatpush1.xpose.msra.mxu0 0.0
        %9241 = vmatprep.subr.mxu0 0.0
        %9242 = vmatpush1.xpose.msra.mxu0 0.0
        %9243 = vmatprep.subr.mxu0 0.0
        %9244 = vmatpush1.xpose.msra.mxu0 0.0
        %9245 = vmatprep.subr.mxu0 0.0
        %9246 = vmatpush1.xpose.msra.mxu0 0.0
        %9247 = vmatprep.subr.mxu0 0.0
        %9248 = vmatpush1.xpose.msra.mxu0 0.0
        %9249 = vmatprep.subr.mxu0 0.0
        %9250 = vmatpush1.xpose.msra.mxu0 0.0
        %9251 = vmatprep.subr.mxu0 0.0
        %9252 = vmatpush1.xpose.msra.mxu0 0.0
        %9253 = vmatprep.subr.mxu0 0.0
        %9254 = vmatpush1.xpose.msra.mxu0 0.0
        %9255 = vmatprep.subr.mxu0 0.0
        %9256 = vmatpush1.xpose.msra.mxu0 0.0
        %9257 = vmatprep.subr.mxu0 0.0
        %9258 = vmatpush1.xpose.msra.mxu0 0.0
        %9259 = vmatprep.subr.mxu0 0.0
        %9260 = vmatpush1.xpose.msra.mxu0 0.0
        %9261 = vmatprep.subr.mxu0 0.0
        %9262 = vmatpush1.xpose.msra.mxu0 0.0
        %9263 = vmatprep.subr.mxu0 %v9231
        %9264 = vmatpush1.xpose.msra.mxu0 %v1695
        %9265 = vmatprep.subr.mxu0 0.0
        %9266 = vmatpush2.xpose.msra.mxu0 0.0
        %9267 = vmatprep.subr.mxu0 0.0
        %9268 = vmatpush2.xpose.msra.mxu0 0.0
        %9269 = vmatprep.subr.mxu0 0.0
        %9270 = vmatpush2.xpose.msra.mxu0 0.0
        %9271 = vmatprep.subr.mxu0 0.0
        %9272 = vmatpush2.xpose.msra.mxu0 0.0
        %9273 = vmatprep.subr.mxu0 0.0
        %9274 = vmatpush2.xpose.msra.mxu0 0.0
        %9275 = vmatprep.subr.mxu0 0.0
        %9276 = vmatpush2.xpose.msra.mxu0 0.0
        %9277 = vmatprep.subr.mxu0 0.0
        %9278 = vmatpush2.xpose.msra.mxu0 0.0
        %9279 = vmatprep.subr.mxu0 0.0
        %9280 = vmatpush2.xpose.msra.mxu0 0.0
        %9281 = vmatprep.subr.mxu0 0.0
        %9282 = vmatpush2.xpose.msra.mxu0 0.0
        %9283 = vmatprep.subr.mxu0 0.0
        %9284 = vmatpush2.xpose.msra.mxu0 0.0
        %9285 = vmatprep.subr.mxu0 0.0
        %9286 = vmatpush2.xpose.msra.mxu0 0.0
        %9287 = vmatprep.subr.mxu0 0.0
        %9288 = vmatpush2.xpose.msra.mxu0 0.0
        %9289 = vmatprep.subr.mxu0 0.0
        %9290 = vmatpush2.xpose.msra.mxu0 0.0
        %9291 = vmatprep.subr.mxu0 0.0
        %9292 = vmatpush2.xpose.msra.mxu0 0.0
        %9293 = vmatprep.subr.mxu0 0.0
        %9294 = vmatpush2.xpose.msra.mxu0 0.0
        %9295 = vmatprep.subr.mxu0 0.0
        %9296 = vmatpush2.xpose.msra.mxu0 0.0
        %9297 = vmatprep.mubr.f32.mxu0 %v6749
        %9298 = vmatmul.mubr.f32.gmra.mxu0 %v6747
        %v9299 = vpop.f32.mrf.mxu0
        %v9300 = vadd.f32 0.0, %v9299
        %v9301 = vpop.f32.mrf.mxu0
        %9302 = vmatprep.mubr.f32.mxu0 %v6753
        %9303 = vmatmul.mubr.f32.gmra.mxu0 %v6751
        %v9304 = vpop.f32.mrf.mxu0
        %v9305 = vadd.f32 0.0, %v9304
        %v9306 = vpop.f32.mrf.mxu0
        %9307 = vmatprep.mubr.f32.mxu0 %v6757
        %9308 = vmatmul.mubr.f32.gmra.mxu0 %v6755
        %v9309 = vpop.f32.mrf.mxu0
        %v9310 = vadd.f32 0.0, %v9309
        %v9311 = vpop.f32.mrf.mxu0
        %9312 = vmatprep.mubr.f32.mxu0 %v6761
        %9313 = vmatmul.mubr.f32.gmra.mxu0 %v6759
        %v9314 = vpop.f32.mrf.mxu0
        %v9315 = vadd.f32 0.0, %v9314
        %v9316 = vpop.f32.mrf.mxu0
        %9317 = vmatprep.mubr.f32.mxu0 %v6765
        %9318 = vmatmul.mubr.f32.gmra.mxu0 %v6763
        %v9319 = vpop.f32.mrf.mxu0
        %v9320 = vadd.f32 0.0, %v9319
        %v9321 = vpop.f32.mrf.mxu0
        %9322 = vmatprep.mubr.f32.mxu0 %v6769
        %9323 = vmatmul.mubr.f32.gmra.mxu0 %v6767
        %v9324 = vpop.f32.mrf.mxu0
        %v9325 = vadd.f32 0.0, %v9324
        %v9326 = vpop.f32.mrf.mxu0
        %9327 = vmatprep.mubr.f32.mxu0 %v6773
        %9328 = vmatmul.mubr.f32.gmra.mxu0 %v6771
        %v9329 = vpop.f32.mrf.mxu0
        %v9330 = vadd.f32 0.0, %v9329
        %v9331 = vpop.f32.mrf.mxu0
        %9332 = vmatprep.mubr.f32.mxu0 %v6777
        %9333 = vmatmul.mubr.f32.gmra.mxu0 %v6775
        %v9334 = vpop.f32.mrf.mxu0
        %v9335 = vadd.f32 0.0, %v9334
        %v9336 = vpop.f32.mrf.mxu0
        %9337 = vmatprep.mubr.f32.mxu0 %v6781
        %9338 = vmatmul.mubr.f32.gmra.mxu0 %v6779
        %v9339 = vpop.f32.mrf.mxu0
        %v9340 = vadd.f32 0.0, %v9339
        %v9341 = vpop.f32.mrf.mxu0
        %9342 = vmatprep.mubr.f32.mxu0 %v6785
        %9343 = vmatmul.mubr.f32.gmra.mxu0 %v6783
        %v9344 = vpop.f32.mrf.mxu0
        %v9345 = vadd.f32 0.0, %v9344
        %v9346 = vpop.f32.mrf.mxu0
        %9347 = vmatprep.mubr.f32.mxu0 %v6789
        %9348 = vmatmul.mubr.f32.gmra.mxu0 %v6787
        %v9349 = vpop.f32.mrf.mxu0
        %v9350 = vadd.f32 0.0, %v9349
        %v9351 = vpop.f32.mrf.mxu0
        %9352 = vmatprep.mubr.f32.mxu0 %v6793
        %9353 = vmatmul.mubr.f32.gmra.mxu0 %v6791
        %v9354 = vpop.f32.mrf.mxu0
        %v9355 = vadd.f32 0.0, %v9354
        %v9356 = vpop.f32.mrf.mxu0
        %9357 = vmatprep.mubr.f32.mxu0 %v6797
        %9358 = vmatmul.mubr.f32.gmra.mxu0 %v6795
        %v9359 = vpop.f32.mrf.mxu0
        %v9360 = vadd.f32 0.0, %v9359
        %v9361 = vpop.f32.mrf.mxu0
        %9362 = vmatprep.mubr.f32.mxu0 %v6801
        %9363 = vmatmul.mubr.f32.gmra.mxu0 %v6799
        %v9364 = vpop.f32.mrf.mxu0
        %v9365 = vadd.f32 0.0, %v9364
        %v9366 = vpop.f32.mrf.mxu0
        %9367 = vmatprep.mubr.f32.mxu0 %v6805
        %9368 = vmatmul.mubr.f32.gmra.mxu0 %v6803
        %v9369 = vpop.f32.mrf.mxu0
        %v9370 = vadd.f32 0.0, %v9369
        %v9371 = vpop.f32.mrf.mxu0
        %9372 = vmatprep.mubr.f32.mxu0 %v6809
        %9373 = vmatmul.mubr.f32.gmra.mxu0 %v6807
        %v9374 = vpop.f32.mrf.mxu0
        %v9375 = vadd.f32 0.0, %v9374
        %v9376 = vpop.f32.mrf.mxu0
        %9377 = vmatprep.mubr.f32.mxu0 %v6813
        %9378 = vmatmul.mubr.f32.gmra.mxu0 %v6811
        %v9379 = vpop.f32.mrf.mxu0
        %v9380 = vadd.f32 0.0, %v9379
        %v9381 = vpop.f32.mrf.mxu0
        %9382 = vmatprep.mubr.f32.mxu0 %v6817
        %9383 = vmatmul.mubr.f32.gmra.mxu0 %v6815
        %v9384 = vpop.f32.mrf.mxu0
        %v9385 = vadd.f32 0.0, %v9384
        %v9386 = vpop.f32.mrf.mxu0
        %9387 = vmatprep.mubr.f32.mxu0 %v6821
        %9388 = vmatmul.mubr.f32.gmra.mxu0 %v6819
        %v9389 = vpop.f32.mrf.mxu0
        %v9390 = vadd.f32 0.0, %v9389
        %v9391 = vpop.f32.mrf.mxu0
        %9392 = vmatprep.mubr.f32.mxu0 %v6825
        %9393 = vmatmul.mubr.f32.gmra.mxu0 %v6823
        %v9394 = vpop.f32.mrf.mxu0
        %v9395 = vadd.f32 0.0, %v9394
        %v9396 = vpop.f32.mrf.mxu0
        %9397 = vmatprep.mubr.f32.mxu0 %v6829
        %9398 = vmatmul.mubr.f32.gmra.mxu0 %v6827
        %v9399 = vpop.f32.mrf.mxu0
        %v9400 = vadd.f32 0.0, %v9399
        %v9401 = vpop.f32.mrf.mxu0
        %9402 = vmatprep.mubr.f32.mxu0 %v6833
        %9403 = vmatmul.mubr.f32.gmra.mxu0 %v6831
        %v9404 = vpop.f32.mrf.mxu0
        %v9405 = vadd.f32 0.0, %v9404
        %v9406 = vpop.f32.mrf.mxu0
        %9407 = vmatprep.mubr.f32.mxu0 %v6837
        %9408 = vmatmul.mubr.f32.gmra.mxu0 %v6835
        %v9409 = vpop.f32.mrf.mxu0
        %v9410 = vadd.f32 0.0, %v9409
        %v9411 = vpop.f32.mrf.mxu0
        %9412 = vmatprep.mubr.f32.mxu0 %v6841
        %9413 = vmatmul.mubr.f32.gmra.mxu0 %v6839
        %v9414 = vpop.f32.mrf.mxu0
        %v9415 = vadd.f32 0.0, %v9414
        %v9416 = vpop.f32.mrf.mxu0
        %9417 = vmatprep.mubr.f32.mxu0 %v6845
        %9418 = vmatmul.mubr.f32.gmra.mxu0 %v6843
        %v9419 = vpop.f32.mrf.mxu0
        %v9420 = vadd.f32 0.0, %v9419
        %v9421 = vpop.f32.mrf.mxu0
        %9422 = vmatprep.mubr.f32.mxu0 %v6849
        %9423 = vmatmul.mubr.f32.gmra.mxu0 %v6847
        %v9424 = vpop.f32.mrf.mxu0
        %v9425 = vadd.f32 0.0, %v9424
        %v9426 = vpop.f32.mrf.mxu0
        %9427 = vmatprep.mubr.f32.mxu0 %v6853
        %9428 = vmatmul.mubr.f32.gmra.mxu0 %v6851
        %v9429 = vpop.f32.mrf.mxu0
        %v9430 = vadd.f32 0.0, %v9429
        %v9431 = vpop.f32.mrf.mxu0
        %9432 = vmatprep.mubr.f32.mxu0 %v6857
        %9433 = vmatmul.mubr.f32.gmra.mxu0 %v6855
        %v9434 = vpop.f32.mrf.mxu0
        %v9435 = vadd.f32 0.0, %v9434
        %v9436 = vpop.f32.mrf.mxu0
        %9437 = vmatprep.mubr.f32.mxu0 %v6861
        %9438 = vmatmul.mubr.f32.gmra.mxu0 %v6859
        %v9439 = vpop.f32.mrf.mxu0
        %v9440 = vadd.f32 0.0, %v9439
        %v9441 = vpop.f32.mrf.mxu0
        %9442 = vmatprep.mubr.f32.mxu0 %v6865
        %9443 = vmatmul.mubr.f32.gmra.mxu0 %v6863
        %v9444 = vpop.f32.mrf.mxu0
        %v9445 = vadd.f32 0.0, %v9444
        %v9446 = vpop.f32.mrf.mxu0
        %9447 = vmatprep.mubr.f32.mxu0 %v6869
        %9448 = vmatmul.mubr.f32.gmra.mxu0 %v6867
        %v9449 = vpop.f32.mrf.mxu0
        %v9450 = vadd.f32 0.0, %v9449
        %v9451 = vpop.f32.mrf.mxu0
        %9452 = vmatprep.mubr.f32.mxu0 %v6873
        %9453 = vmatmul.mubr.f32.gmra.mxu0 %v6871
        %v9454 = vpop.f32.mrf.mxu0
        %v9455 = vadd.f32 0.0, %v9454
        %v9456 = vpop.f32.mrf.mxu0
        %9457 = vdwg.mxu0
        %v9458 = vrcp.pop %v6876
        %v9459 = vmul.f32 %v7711, %v9458
        %v9460 = vrcp.pop %v6879
        %v9461 = vmul.f32 %v7716, %v9460
        %v9462 = vrcp.pop %v6882
        %v9463 = vmul.f32 %v7721, %v9462
        %v9464 = vrcp.pop %v6885
        %v9465 = vmul.f32 %v7726, %v9464
        %v9466 = vrcp.pop %v6888
        %v9467 = vmul.f32 %v7731, %v9466
        %v9468 = vrcp.pop %v6891
        %v9469 = vmul.f32 %v7736, %v9468
        %v9470 = vrcp.pop %v6894
        %v9471 = vmul.f32 %v7741, %v9470
        %v9472 = vrcp.pop %v6897
        %v9473 = vmul.f32 %v7746, %v9472
        %v9474 = vrcp.pop %v6900
        %v9475 = vmul.f32 %v7751, %v9474
        %v9476 = vrcp.pop %v6903
        %v9477 = vmul.f32 %v7756, %v9476
        %v9478 = vrcp.pop %v6906
        %v9479 = vmul.f32 %v7761, %v9478
        %v9480 = vrcp.pop %v6909
        %v9481 = vmul.f32 %v7766, %v9480
        %v9482 = vrcp.pop %v6912
        %v9483 = vmul.f32 %v7771, %v9482
        %v9484 = vrcp.pop %v6915
        %v9485 = vmul.f32 %v7776, %v9484
        %v9486 = vrcp.pop %v6918
        %v9487 = vmul.f32 %v7781, %v9486
        %v9488 = vrcp.pop %v6921
        %v9489 = vmul.f32 %v7786, %v9488
        %v9490 = vrcp.pop %v6924
        %v9491 = vmul.f32 %v7791, %v9490
        %v9492 = vrcp.pop %v6927
        %v9493 = vmul.f32 %v7796, %v9492
        %v9494 = vrcp.pop %v6930
        %v9495 = vmul.f32 %v7801, %v9494
        %v9496 = vrcp.pop %v6933
        %v9497 = vmul.f32 %v7806, %v9496
        %v9498 = vrcp.pop %v6936
        %v9499 = vmul.f32 %v7811, %v9498
        %v9500 = vrcp.pop %v6939
        %v9501 = vmul.f32 %v7816, %v9500
        %v9502 = vrcp.pop %v6942
        %v9503 = vmul.f32 %v7821, %v9502
        %v9504 = vrcp.pop %v6945
        %v9505 = vmul.f32 %v7826, %v9504
        %v9506 = vrcp.pop %v6948
        %v9507 = vmul.f32 %v7831, %v9506
        %v9508 = vrcp.pop %v6951
        %v9509 = vmul.f32 %v7836, %v9508
        %v9510 = vrcp.pop %v6954
        %v9511 = vmul.f32 %v7841, %v9510
        %v9512 = vrcp.pop %v6957
        %v9513 = vmul.f32 %v7846, %v9512
        %v9514 = vrcp.pop %v6960
        %v9515 = vmul.f32 %v7851, %v9514
        %v9516 = vrcp.pop %v6963
        %v9517 = vmul.f32 %v7856, %v9516
        %v9518 = vrcp.pop %v6966
        %v9519 = vmul.f32 %v7861, %v9518
        %v9520 = vrcp.pop %v6969
        %v9521 = vmul.f32 %v7866, %v9520
        %v9522 = vrcp.pop %v6972
        %v9523 = vmul.f32 %v7938, %v9522
        %v9524 = vrcp.pop %v6975
        %v9525 = vmul.f32 %v7943, %v9524
        %v9526 = vrcp.pop %v6978
        %v9527 = vmul.f32 %v7948, %v9526
        %v9528 = vrcp.pop %v6981
        %v9529 = vmul.f32 %v7953, %v9528
        %v9530 = vrcp.pop %v6984
        %v9531 = vmul.f32 %v7958, %v9530
        %v9532 = vrcp.pop %v6987
        %v9533 = vmul.f32 %v7963, %v9532
        %v9534 = vrcp.pop %v6990
        %v9535 = vmul.f32 %v7968, %v9534
        %v9536 = vrcp.pop %v6993
        %v9537 = vmul.f32 %v7973, %v9536
        %v9538 = vrcp.pop %v6996
        %v9539 = vmul.f32 %v7978, %v9538
        %v9540 = vrcp.pop %v6999
        %v9541 = vmul.f32 %v7983, %v9540
        %v9542 = vrcp.pop %v7002
        %v9543 = vmul.f32 %v7988, %v9542
        %v9544 = vrcp.pop %v7005
        %v9545 = vmul.f32 %v7993, %v9544
        %v9546 = vrcp.pop %v7008
        %v9547 = vmul.f32 %v7998, %v9546
        %v9548 = vrcp.pop %v7011
        %v9549 = vmul.f32 %v8003, %v9548
        %v9550 = vrcp.pop %v7014
        %v9551 = vmul.f32 %v8008, %v9550
        %v9552 = vrcp.pop %v7017
        %v9553 = vmul.f32 %v8013, %v9552
        %v9554 = vrcp.pop %v7020
        %v9555 = vmul.f32 %v8018, %v9554
        %v9556 = vrcp.pop %v7023
        %v9557 = vmul.f32 %v8023, %v9556
        %v9558 = vrcp.pop %v7026
        %v9559 = vmul.f32 %v8028, %v9558
        %v9560 = vrcp.pop %v7029
        %v9561 = vmul.f32 %v8033, %v9560
        %v9562 = vrcp.pop %v7032
        %v9563 = vmul.f32 %v8038, %v9562
        %v9564 = vrcp.pop %v7035
        %v9565 = vmul.f32 %v8043, %v9564
        %v9566 = vrcp.pop %v7038
        %v9567 = vmul.f32 %v8048, %v9566
        %v9568 = vrcp.pop %v7041
        %v9569 = vmul.f32 %v8053, %v9568
        %v9570 = vrcp.pop %v7044
        %v9571 = vmul.f32 %v8058, %v9570
        %v9572 = vrcp.pop %v7047
        %v9573 = vmul.f32 %v8063, %v9572
        %v9574 = vrcp.pop %v7050
        %v9575 = vmul.f32 %v8068, %v9574
        %v9576 = vrcp.pop %v7053
        %v9577 = vmul.f32 %v8073, %v9576
        %v9578 = vrcp.pop %v7056
        %v9579 = vmul.f32 %v8078, %v9578
        %v9580 = vrcp.pop %v7059
        %v9581 = vmul.f32 %v8083, %v9580
        %v9582 = vrcp.pop %v7062
        %v9583 = vmul.f32 %v8088, %v9582
        %v9584 = vrcp.pop %v7065
        %v9585 = vmul.f32 %v8093, %v9584
        %v9586 = vrcp.pop %v7068
        %v9587 = vmul.f32 %v8165, %v9586
        %v9588 = vrcp.pop %v7071
        %v9589 = vmul.f32 %v8170, %v9588
        %v9590 = vrcp.pop %v7074
        %v9591 = vmul.f32 %v8175, %v9590
        %v9592 = vrcp.pop %v7077
        %v9593 = vmul.f32 %v8180, %v9592
        %v9594 = vrcp.pop %v7080
        %v9595 = vmul.f32 %v8185, %v9594
        %v9596 = vrcp.pop %v7083
        %v9597 = vmul.f32 %v8190, %v9596
        %v9598 = vrcp.pop %v7086
        %v9599 = vmul.f32 %v8195, %v9598
        %v9600 = vrcp.pop %v7089
        %v9601 = vmul.f32 %v8200, %v9600
        %v9602 = vrcp.pop %v7092
        %v9603 = vmul.f32 %v8205, %v9602
        %v9604 = vrcp.pop %v7095
        %v9605 = vmul.f32 %v8210, %v9604
        %v9606 = vrcp.pop %v7098
        %v9607 = vmul.f32 %v8215, %v9606
        %v9608 = vrcp.pop %v7101
        %v9609 = vmul.f32 %v8220, %v9608
        %v9610 = vrcp.pop %v7104
        %v9611 = vmul.f32 %v8225, %v9610
        %v9612 = vrcp.pop %v7107
        %v9613 = vmul.f32 %v8230, %v9612
        %v9614 = vrcp.pop %v7110
        %v9615 = vmul.f32 %v8235, %v9614
        %v9616 = vrcp.pop %v7113
        %v9617 = vmul.f32 %v8240, %v9616
        %v9618 = vrcp.pop %v7116
        %v9619 = vmul.f32 %v8245, %v9618
        %v9620 = vrcp.pop %v7119
        %v9621 = vmul.f32 %v8250, %v9620
        %v9622 = vrcp.pop %v7122
        %v9623 = vmul.f32 %v8255, %v9622
        %v9624 = vrcp.pop %v7125
        %v9625 = vmul.f32 %v8260, %v9624
        %v9626 = vrcp.pop %v7128
        %v9627 = vmul.f32 %v8265, %v9626
        %v9628 = vrcp.pop %v7131
        %v9629 = vmul.f32 %v8270, %v9628
        %v9630 = vrcp.pop %v7134
        %v9631 = vmul.f32 %v8275, %v9630
        %v9632 = vrcp.pop %v7137
        %v9633 = vmul.f32 %v8280, %v9632
        %v9634 = vrcp.pop %v7140
        %v9635 = vmul.f32 %v8285, %v9634
        %v9636 = vrcp.pop %v7143
        %v9637 = vmul.f32 %v8290, %v9636
        %v9638 = vrcp.pop %v7146
        %v9639 = vmul.f32 %v8295, %v9638
        %v9640 = vrcp.pop %v7149
        %v9641 = vmul.f32 %v8300, %v9640
        %v9642 = vrcp.pop %v7152
        %v9643 = vmul.f32 %v8305, %v9642
        %v9644 = vrcp.pop %v7155
        %v9645 = vmul.f32 %v8310, %v9644
        %v9646 = vrcp.pop %v7158
        %v9647 = vmul.f32 %v8315, %v9646
        %v9648 = vrcp.pop %v7161
        %v9649 = vmul.f32 %v8320, %v9648
        %v9650 = vrcp.pop %v7164
        %v9651 = vmul.f32 %v8392, %v9650
        %v9652 = vrcp.pop %v7167
        %v9653 = vmul.f32 %v8397, %v9652
        %v9654 = vrcp.pop %v7170
        %v9655 = vmul.f32 %v8402, %v9654
        %v9656 = vrcp.pop %v7173
        %v9657 = vmul.f32 %v8407, %v9656
        %v9658 = vrcp.pop %v7176
        %v9659 = vmul.f32 %v8412, %v9658
        %v9660 = vrcp.pop %v7179
        %v9661 = vmul.f32 %v8417, %v9660
        %v9662 = vrcp.pop %v7182
        %v9663 = vmul.f32 %v8422, %v9662
        %v9664 = vrcp.pop %v7185
        %v9665 = vmul.f32 %v8427, %v9664
        %v9666 = vrcp.pop %v7188
        %v9667 = vmul.f32 %v8432, %v9666
        %v9668 = vrcp.pop %v7191
        %v9669 = vmul.f32 %v8437, %v9668
        %v9670 = vrcp.pop %v7194
        %v9671 = vmul.f32 %v8442, %v9670
        %v9672 = vrcp.pop %v7197
        %v9673 = vmul.f32 %v8447, %v9672
        %v9674 = vrcp.pop %v7200
        %v9675 = vmul.f32 %v8452, %v9674
        %v9676 = vrcp.pop %v7203
        %v9677 = vmul.f32 %v8457, %v9676
        %v9678 = vrcp.pop %v7206
        %v9679 = vmul.f32 %v8462, %v9678
        %v9680 = vrcp.pop %v7209
        %v9681 = vmul.f32 %v8467, %v9680
        %v9682 = vrcp.pop %v7212
        %v9683 = vmul.f32 %v8472, %v9682
        %v9684 = vrcp.pop %v7215
        %v9685 = vmul.f32 %v8477, %v9684
        %v9686 = vrcp.pop %v7218
        %v9687 = vmul.f32 %v8482, %v9686
        %v9688 = vrcp.pop %v7221
        %v9689 = vmul.f32 %v8487, %v9688
        %v9690 = vrcp.pop %v7224
        %v9691 = vmul.f32 %v8492, %v9690
        %v9692 = vrcp.pop %v7227
        %v9693 = vmul.f32 %v8497, %v9692
        %v9694 = vrcp.pop %v7230
        %v9695 = vmul.f32 %v8502, %v9694
        %v9696 = vrcp.pop %v7233
        %v9697 = vmul.f32 %v8507, %v9696
        %v9698 = vrcp.pop %v7236
        %v9699 = vmul.f32 %v8512, %v9698
        %v9700 = vrcp.pop %v7239
        %v9701 = vmul.f32 %v8517, %v9700
        %v9702 = vrcp.pop %v7242
        %v9703 = vmul.f32 %v8522, %v9702
        %v9704 = vrcp.pop %v7245
        %v9705 = vmul.f32 %v8527, %v9704
        %v9706 = vrcp.pop %v7248
        %v9707 = vmul.f32 %v8532, %v9706
        %v9708 = vrcp.pop %v7251
        %v9709 = vmul.f32 %v8537, %v9708
        %v9710 = vrcp.pop %v7254
        %v9711 = vmul.f32 %v8542, %v9710
        %v9712 = vrcp.pop %v7257
        %v9713 = vmul.f32 %v8547, %v9712
        %v9714 = vrcp.pop %v7260
        %v9715 = vmul.f32 %v8619, %v9714
        %v9716 = vrcp.pop %v7263
        %v9717 = vmul.f32 %v8624, %v9716
        %v9718 = vrcp.pop %v7266
        %v9719 = vmul.f32 %v8629, %v9718
        %v9720 = vrcp.pop %v7269
        %v9721 = vmul.f32 %v8634, %v9720
        %v9722 = vrcp.pop %v7272
        %v9723 = vmul.f32 %v8639, %v9722
        %v9724 = vrcp.pop %v7275
        %v9725 = vmul.f32 %v8644, %v9724
        %v9726 = vrcp.pop %v7278
        %v9727 = vmul.f32 %v8649, %v9726
        %v9728 = vrcp.pop %v7281
        %v9729 = vmul.f32 %v8654, %v9728
        %v9730 = vrcp.pop %v7284
        %v9731 = vmul.f32 %v8659, %v9730
        %v9732 = vrcp.pop %v7287
        %v9733 = vmul.f32 %v8664, %v9732
        %v9734 = vrcp.pop %v7290
        %v9735 = vmul.f32 %v8669, %v9734
        %v9736 = vrcp.pop %v7293
        %v9737 = vmul.f32 %v8674, %v9736
        %v9738 = vrcp.pop %v7296
        %v9739 = vmul.f32 %v8679, %v9738
        %v9740 = vrcp.pop %v7299
        %v9741 = vmul.f32 %v8684, %v9740
        %v9742 = vrcp.pop %v7302
        %v9743 = vmul.f32 %v8689, %v9742
        %v9744 = vrcp.pop %v7305
        %v9745 = vmul.f32 %v8694, %v9744
        %v9746 = vrcp.pop %v7308
        %v9747 = vmul.f32 %v8699, %v9746
        %v9748 = vrcp.pop %v7311
        %v9749 = vmul.f32 %v8704, %v9748
        %v9750 = vrcp.pop %v7314
        %v9751 = vmul.f32 %v8709, %v9750
        %v9752 = vrcp.pop %v7317
        %v9753 = vmul.f32 %v8714, %v9752
        %v9754 = vrcp.pop %v7320
        %v9755 = vmul.f32 %v8719, %v9754
        %v9756 = vrcp.pop %v7323
        %v9757 = vmul.f32 %v8724, %v9756
        %v9758 = vrcp.pop %v7326
        %v9759 = vmul.f32 %v8729, %v9758
        %v9760 = vrcp.pop %v7329
        %v9761 = vmul.f32 %v8734, %v9760
        %v9762 = vrcp.pop %v7332
        %v9763 = vmul.f32 %v8739, %v9762
        %v9764 = vrcp.pop %v7335
        %v9765 = vmul.f32 %v8744, %v9764
        %v9766 = vrcp.pop %v7338
        %v9767 = vmul.f32 %v8749, %v9766
        %v9768 = vrcp.pop %v7341
        %v9769 = vmul.f32 %v8754, %v9768
        %v9770 = vrcp.pop %v7344
        %v9771 = vmul.f32 %v8759, %v9770
        %v9772 = vrcp.pop %v7347
        %v9773 = vmul.f32 %v8764, %v9772
        %v9774 = vrcp.pop %v7350
        %v9775 = vmul.f32 %v8769, %v9774
        %v9776 = vrcp.pop %v7353
        %v9777 = vmul.f32 %v8774, %v9776
        %v9778 = vrcp.pop %v7356
        %v9779 = vmul.f32 %v8846, %v9778
        %v9780 = vrcp.pop %v7359
        %v9781 = vmul.f32 %v8851, %v9780
        %v9782 = vrcp.pop %v7362
        %v9783 = vmul.f32 %v8856, %v9782
        %v9784 = vrcp.pop %v7365
        %v9785 = vmul.f32 %v8861, %v9784
        %v9786 = vrcp.pop %v7368
        %v9787 = vmul.f32 %v8866, %v9786
        %v9788 = vrcp.pop %v7371
        %v9789 = vmul.f32 %v8871, %v9788
        %v9790 = vrcp.pop %v7374
        %v9791 = vmul.f32 %v8876, %v9790
        %v9792 = vrcp.pop %v7377
        %v9793 = vmul.f32 %v8881, %v9792
        %v9794 = vrcp.pop %v7380
        %v9795 = vmul.f32 %v8886, %v9794
        %v9796 = vrcp.pop %v7383
        %v9797 = vmul.f32 %v8891, %v9796
        %v9798 = vrcp.pop %v7386
        %v9799 = vmul.f32 %v8896, %v9798
        %v9800 = vrcp.pop %v7389
        %v9801 = vmul.f32 %v8901, %v9800
        %v9802 = vrcp.pop %v7392
        %v9803 = vmul.f32 %v8906, %v9802
        %v9804 = vrcp.pop %v7395
        %v9805 = vmul.f32 %v8911, %v9804
        %v9806 = vrcp.pop %v7398
        %v9807 = vmul.f32 %v8916, %v9806
        %v9808 = vrcp.pop %v7401
        %v9809 = vmul.f32 %v8921, %v9808
        %v9810 = vrcp.pop %v7404
        %v9811 = vmul.f32 %v8926, %v9810
        %v9812 = vrcp.pop %v7407
        %v9813 = vmul.f32 %v8931, %v9812
        %v9814 = vrcp.pop %v7410
        %v9815 = vmul.f32 %v8936, %v9814
        %v9816 = vrcp.pop %v7413
        %v9817 = vmul.f32 %v8941, %v9816
        %v9818 = vrcp.pop %v7416
        %v9819 = vmul.f32 %v8946, %v9818
        %v9820 = vrcp.pop %v7419
        %v9821 = vmul.f32 %v8951, %v9820
        %v9822 = vrcp.pop %v7422
        %v9823 = vmul.f32 %v8956, %v9822
        %v9824 = vrcp.pop %v7425
        %v9825 = vmul.f32 %v8961, %v9824
        %v9826 = vrcp.pop %v7428
        %v9827 = vmul.f32 %v8966, %v9826
        %v9828 = vrcp.pop %v7431
        %v9829 = vmul.f32 %v8971, %v9828
        %v9830 = vrcp.pop %v7434
        %v9831 = vmul.f32 %v8976, %v9830
        %v9832 = vrcp.pop %v7437
        %v9833 = vmul.f32 %v8981, %v9832
        %v9834 = vrcp.pop %v7440
        %v9835 = vmul.f32 %v8986, %v9834
        %v9836 = vrcp.pop %v7443
        %v9837 = vmul.f32 %v8991, %v9836
        %v9838 = vrcp.pop %v7446
        %v9839 = vmul.f32 %v8996, %v9838
        %v9840 = vrcp.pop %v7449
        %v9841 = vmul.f32 %v9001, %v9840
        %v9842 = vrcp.pop %v7452
        %v9843 = vmul.f32 %v9073, %v9842
        %v9844 = vrcp.pop %v7455
        %v9845 = vmul.f32 %v9078, %v9844
        %v9846 = vrcp.pop %v7458
        %v9847 = vmul.f32 %v9083, %v9846
        %v9848 = vrcp.pop %v7461
        %v9849 = vmul.f32 %v9088, %v9848
        %v9850 = vrcp.pop %v7464
        %v9851 = vmul.f32 %v9093, %v9850
        %v9852 = vrcp.pop %v7467
        %v9853 = vmul.f32 %v9098, %v9852
        %v9854 = vrcp.pop %v7470
        %v9855 = vmul.f32 %v9103, %v9854
        %v9856 = vrcp.pop %v7473
        %v9857 = vmul.f32 %v9108, %v9856
        %v9858 = vrcp.pop %v7476
        %v9859 = vmul.f32 %v9113, %v9858
        %v9860 = vrcp.pop %v7479
        %v9861 = vmul.f32 %v9118, %v9860
        %v9862 = vrcp.pop %v7482
        %v9863 = vmul.f32 %v9123, %v9862
        %v9864 = vrcp.pop %v7485
        %v9865 = vmul.f32 %v9128, %v9864
        %v9866 = vrcp.pop %v7488
        %v9867 = vmul.f32 %v9133, %v9866
        %v9868 = vrcp.pop %v7491
        %v9869 = vmul.f32 %v9138, %v9868
        %v9870 = vrcp.pop %v7494
        %v9871 = vmul.f32 %v9143, %v9870
        %v9872 = vrcp.pop %v7497
        %v9873 = vmul.f32 %v9148, %v9872
        %v9874 = vrcp.pop %v7500
        %v9875 = vmul.f32 %v9153, %v9874
        %v9876 = vrcp.pop %v7503
        %v9877 = vmul.f32 %v9158, %v9876
        %v9878 = vrcp.pop %v7506
        %v9879 = vmul.f32 %v9163, %v9878
        %v9880 = vrcp.pop %v7509
        %v9881 = vmul.f32 %v9168, %v9880
        %v9882 = vrcp.pop %v7512
        %v9883 = vmul.f32 %v9173, %v9882
        %v9884 = vrcp.pop %v7515
        %v9885 = vmul.f32 %v9178, %v9884
        %v9886 = vrcp.pop %v7518
        %v9887 = vmul.f32 %v9183, %v9886
        %v9888 = vrcp.pop %v7521
        %v9889 = vmul.f32 %v9188, %v9888
        %v9890 = vrcp.pop %v7524
        %v9891 = vmul.f32 %v9193, %v9890
        %v9892 = vrcp.pop %v7527
        %v9893 = vmul.f32 %v9198, %v9892
        %v9894 = vrcp.pop %v7530
        %v9895 = vmul.f32 %v9203, %v9894
        %v9896 = vrcp.pop %v7533
        %v9897 = vmul.f32 %v9208, %v9896
        %v9898 = vrcp.pop %v7536
        %v9899 = vmul.f32 %v9213, %v9898
        %v9900 = vrcp.pop %v7539
        %v9901 = vmul.f32 %v9218, %v9900
        %v9902 = vrcp.pop %v7542
        %v9903 = vmul.f32 %v9223, %v9902
        %v9904 = vrcp.pop %v7545
        %v9905 = vmul.f32 %v9228, %v9904
        %v9906 = vrcp.pop %v7548
        %v9907 = vmul.f32 %v9300, %v9906
        %v9908 = vrcp.pop %v7551
        %v9909 = vmul.f32 %v9305, %v9908
        %v9910 = vrcp.pop %v7554
        %v9911 = vmul.f32 %v9310, %v9910
        %v9912 = vrcp.pop %v7557
        %v9913 = vmul.f32 %v9315, %v9912
        %v9914 = vrcp.pop %v7560
        %v9915 = vmul.f32 %v9320, %v9914
        %v9916 = vrcp.pop %v7563
        %v9917 = vmul.f32 %v9325, %v9916
        %v9918 = vrcp.pop %v7566
        %v9919 = vmul.f32 %v9330, %v9918
        %v9920 = vrcp.pop %v7569
        %v9921 = vmul.f32 %v9335, %v9920
        %v9922 = vrcp.pop %v7572
        %v9923 = vmul.f32 %v9340, %v9922
        %v9924 = vrcp.pop %v7575
        %v9925 = vmul.f32 %v9345, %v9924
        %v9926 = vrcp.pop %v7578
        %v9927 = vmul.f32 %v9350, %v9926
        %v9928 = vrcp.pop %v7581
        %v9929 = vmul.f32 %v9355, %v9928
        %v9930 = vrcp.pop %v7584
        %v9931 = vmul.f32 %v9360, %v9930
        %v9932 = vrcp.pop %v7587
        %v9933 = vmul.f32 %v9365, %v9932
        %v9934 = vrcp.pop %v7590
        %v9935 = vmul.f32 %v9370, %v9934
        %v9936 = vrcp.pop %v7593
        %v9937 = vmul.f32 %v9375, %v9936
        %v9938 = vrcp.pop %v7596
        %v9939 = vmul.f32 %v9380, %v9938
        %v9940 = vrcp.pop %v7599
        %v9941 = vmul.f32 %v9385, %v9940
        %v9942 = vrcp.pop %v7602
        %v9943 = vmul.f32 %v9390, %v9942
        %v9944 = vrcp.pop %v7605
        %v9945 = vmul.f32 %v9395, %v9944
        %v9946 = vrcp.pop %v7608
        %v9947 = vmul.f32 %v9400, %v9946
        %v9948 = vrcp.pop %v7611
        %v9949 = vmul.f32 %v9405, %v9948
        %v9950 = vrcp.pop %v7614
        %v9951 = vmul.f32 %v9410, %v9950
        %v9952 = vrcp.pop %v7617
        %v9953 = vmul.f32 %v9415, %v9952
        %v9954 = vrcp.pop %v7620
        %v9955 = vmul.f32 %v9420, %v9954
        %v9956 = vrcp.pop %v7623
        %v9957 = vmul.f32 %v9425, %v9956
        %v9958 = vrcp.pop %v7626
        %v9959 = vmul.f32 %v9430, %v9958
        %v9960 = vrcp.pop %v7629
        %v9961 = vmul.f32 %v9435, %v9960
        %v9962 = vrcp.pop %v7632
        %v9963 = vmul.f32 %v9440, %v9962
        %v9964 = vrcp.pop %v7635
        %v9965 = vmul.f32 %v9445, %v9964
        %v9966 = vrcp.pop %v7638
        %v9967 = vmul.f32 %v9450, %v9966
        %v9968 = vrcp.pop %v7641
        %v9969 = vmul.f32 %v9455, %v9968
        %9970 = vxpose.xlu0.b32.start [1/16] %v9459, 128
        %9971 = vxpose.xlu0.b32.cont [2/16] %v9461, 128
        %9972 = vxpose.xlu0.b32.cont [3/16] %v9463, 128
        %9973 = vxpose.xlu0.b32.cont [4/16] %v9465, 128
        %9974 = vxpose.xlu0.b32.cont [5/16] %v9467, 128
        %9975 = vxpose.xlu0.b32.cont [6/16] %v9469, 128
        %9976 = vxpose.xlu0.b32.cont [7/16] %v9471, 128
        %9977 = vxpose.xlu0.b32.cont [8/16] %v9473, 128
        %9978 = vxpose.xlu0.b32.cont [9/16] %v9475, 128
        %9979 = vxpose.xlu0.b32.cont [10/16] %v9477, 128
        %9980 = vxpose.xlu0.b32.cont [11/16] %v9479, 128
        %9981 = vxpose.xlu0.b32.cont [12/16] %v9481, 128
        %9982 = vxpose.xlu0.b32.cont [13/16] %v9483, 128
        %9983 = vxpose.xlu0.b32.cont [14/16] %v9485, 128
        %9984 = vxpose.xlu0.b32.cont [15/16] %v9487, 128
        %9985 = vxpose.xlu0.b32.end [16/16] %v9489, 128
        %v9986 = vpop.trf.xlu0
        %v9987 = vpop.trf.xlu0
        %v9988 = vpop.trf.xlu0
        %v9989 = vpop.trf.xlu0
        %v9990 = vpop.trf.xlu0
        %v9991 = vpop.trf.xlu0
        %v9992 = vpop.trf.xlu0
        %v9993 = vpop.trf.xlu0
        %v9994 = vpop.trf.xlu0
        %v9995 = vpop.trf.xlu0
        %v9996 = vpop.trf.xlu0
        %v9997 = vpop.trf.xlu0
        %v9998 = vpop.trf.xlu0
        %v9999 = vpop.trf.xlu0
        %v10000 = vpop.trf.xlu0
        %v10001 = vpop.trf.xlu0
        %10002 = vxpose.xlu0.b32.start [1/16] %v9491, 128
        %10003 = vxpose.xlu0.b32.cont [2/16] %v9493, 128
        %10004 = vxpose.xlu0.b32.cont [3/16] %v9495, 128
        %10005 = vxpose.xlu0.b32.cont [4/16] %v9497, 128
        %10006 = vxpose.xlu0.b32.cont [5/16] %v9499, 128
        %10007 = vxpose.xlu0.b32.cont [6/16] %v9501, 128
        %10008 = vxpose.xlu0.b32.cont [7/16] %v9503, 128
        %10009 = vxpose.xlu0.b32.cont [8/16] %v9505, 128
        %10010 = vxpose.xlu0.b32.cont [9/16] %v9507, 128
        %10011 = vxpose.xlu0.b32.cont [10/16] %v9509, 128
        %10012 = vxpose.xlu0.b32.cont [11/16] %v9511, 128
        %10013 = vxpose.xlu0.b32.cont [12/16] %v9513, 128
        %10014 = vxpose.xlu0.b32.cont [13/16] %v9515, 128
        %10015 = vxpose.xlu0.b32.cont [14/16] %v9517, 128
        %10016 = vxpose.xlu0.b32.cont [15/16] %v9519, 128
        %10017 = vxpose.xlu0.b32.end [16/16] %v9521, 128
        %v10018 = vpop.trf.xlu0
        %v10019 = vpop.trf.xlu0
        %v10020 = vpop.trf.xlu0
        %v10021 = vpop.trf.xlu0
        %v10022 = vpop.trf.xlu0
        %v10023 = vpop.trf.xlu0
        %v10024 = vpop.trf.xlu0
        %v10025 = vpop.trf.xlu0
        %v10026 = vpop.trf.xlu0
        %v10027 = vpop.trf.xlu0
        %v10028 = vpop.trf.xlu0
        %v10029 = vpop.trf.xlu0
        %v10030 = vpop.trf.xlu0
        %v10031 = vpop.trf.xlu0
        %v10032 = vpop.trf.xlu0
        %v10033 = vpop.trf.xlu0
        %10034 = vxpose.xlu0.b32.start [1/16] %v9523, 128
        %10035 = vxpose.xlu0.b32.cont [2/16] %v9525, 128
        %10036 = vxpose.xlu0.b32.cont [3/16] %v9527, 128
        %10037 = vxpose.xlu0.b32.cont [4/16] %v9529, 128
        %10038 = vxpose.xlu0.b32.cont [5/16] %v9531, 128
        %10039 = vxpose.xlu0.b32.cont [6/16] %v9533, 128
        %10040 = vxpose.xlu0.b32.cont [7/16] %v9535, 128
        %10041 = vxpose.xlu0.b32.cont [8/16] %v9537, 128
        %10042 = vxpose.xlu0.b32.cont [9/16] %v9539, 128
        %10043 = vxpose.xlu0.b32.cont [10/16] %v9541, 128
        %10044 = vxpose.xlu0.b32.cont [11/16] %v9543, 128
        %10045 = vxpose.xlu0.b32.cont [12/16] %v9545, 128
        %10046 = vxpose.xlu0.b32.cont [13/16] %v9547, 128
        %10047 = vxpose.xlu0.b32.cont [14/16] %v9549, 128
        %10048 = vxpose.xlu0.b32.cont [15/16] %v9551, 128
        %10049 = vxpose.xlu0.b32.end [16/16] %v9553, 128
        %v10050 = vpop.trf.xlu0
        %v10051 = vpop.trf.xlu0
        %v10052 = vpop.trf.xlu0
        %v10053 = vpop.trf.xlu0
        %v10054 = vpop.trf.xlu0
        %v10055 = vpop.trf.xlu0
        %v10056 = vpop.trf.xlu0
        %v10057 = vpop.trf.xlu0
        %v10058 = vpop.trf.xlu0
        %v10059 = vpop.trf.xlu0
        %v10060 = vpop.trf.xlu0
        %v10061 = vpop.trf.xlu0
        %v10062 = vpop.trf.xlu0
        %v10063 = vpop.trf.xlu0
        %v10064 = vpop.trf.xlu0
        %v10065 = vpop.trf.xlu0
        %10066 = vxpose.xlu0.b32.start [1/16] %v9555, 128
        %10067 = vxpose.xlu0.b32.cont [2/16] %v9557, 128
        %10068 = vxpose.xlu0.b32.cont [3/16] %v9559, 128
        %10069 = vxpose.xlu0.b32.cont [4/16] %v9561, 128
        %10070 = vxpose.xlu0.b32.cont [5/16] %v9563, 128
        %10071 = vxpose.xlu0.b32.cont [6/16] %v9565, 128
        %10072 = vxpose.xlu0.b32.cont [7/16] %v9567, 128
        %10073 = vxpose.xlu0.b32.cont [8/16] %v9569, 128
        %10074 = vxpose.xlu0.b32.cont [9/16] %v9571, 128
        %10075 = vxpose.xlu0.b32.cont [10/16] %v9573, 128
        %10076 = vxpose.xlu0.b32.cont [11/16] %v9575, 128
        %10077 = vxpose.xlu0.b32.cont [12/16] %v9577, 128
        %10078 = vxpose.xlu0.b32.cont [13/16] %v9579, 128
        %10079 = vxpose.xlu0.b32.cont [14/16] %v9581, 128
        %10080 = vxpose.xlu0.b32.cont [15/16] %v9583, 128
        %10081 = vxpose.xlu0.b32.end [16/16] %v9585, 128
        %v10082 = vpop.trf.xlu0
        %v10083 = vpop.trf.xlu0
        %v10084 = vpop.trf.xlu0
        %v10085 = vpop.trf.xlu0
        %v10086 = vpop.trf.xlu0
        %v10087 = vpop.trf.xlu0
        %v10088 = vpop.trf.xlu0
        %v10089 = vpop.trf.xlu0
        %v10090 = vpop.trf.xlu0
        %v10091 = vpop.trf.xlu0
        %v10092 = vpop.trf.xlu0
        %v10093 = vpop.trf.xlu0
        %v10094 = vpop.trf.xlu0
        %v10095 = vpop.trf.xlu0
        %v10096 = vpop.trf.xlu0
        %v10097 = vpop.trf.xlu0
        %10098 = vxpose.xlu0.b32.start [1/16] %v9587, 128
        %10099 = vxpose.xlu0.b32.cont [2/16] %v9589, 128
        %10100 = vxpose.xlu0.b32.cont [3/16] %v9591, 128
        %10101 = vxpose.xlu0.b32.cont [4/16] %v9593, 128
        %10102 = vxpose.xlu0.b32.cont [5/16] %v9595, 128
        %10103 = vxpose.xlu0.b32.cont [6/16] %v9597, 128
        %10104 = vxpose.xlu0.b32.cont [7/16] %v9599, 128
        %10105 = vxpose.xlu0.b32.cont [8/16] %v9601, 128
        %10106 = vxpose.xlu0.b32.cont [9/16] %v9603, 128
        %10107 = vxpose.xlu0.b32.cont [10/16] %v9605, 128
        %10108 = vxpose.xlu0.b32.cont [11/16] %v9607, 128
        %10109 = vxpose.xlu0.b32.cont [12/16] %v9609, 128
        %10110 = vxpose.xlu0.b32.cont [13/16] %v9611, 128
        %10111 = vxpose.xlu0.b32.cont [14/16] %v9613, 128
        %10112 = vxpose.xlu0.b32.cont [15/16] %v9615, 128
        %10113 = vxpose.xlu0.b32.end [16/16] %v9617, 128
        %v10114 = vpop.trf.xlu0
        %v10115 = vpop.trf.xlu0
        %v10116 = vpop.trf.xlu0
        %v10117 = vpop.trf.xlu0
        %v10118 = vpop.trf.xlu0
        %v10119 = vpop.trf.xlu0
        %v10120 = vpop.trf.xlu0
        %v10121 = vpop.trf.xlu0
        %v10122 = vpop.trf.xlu0
        %v10123 = vpop.trf.xlu0
        %v10124 = vpop.trf.xlu0
        %v10125 = vpop.trf.xlu0
        %v10126 = vpop.trf.xlu0
        %v10127 = vpop.trf.xlu0
        %v10128 = vpop.trf.xlu0
        %v10129 = vpop.trf.xlu0
        %10130 = vxpose.xlu0.b32.start [1/16] %v9619, 128
        %10131 = vxpose.xlu0.b32.cont [2/16] %v9621, 128
        %10132 = vxpose.xlu0.b32.cont [3/16] %v9623, 128
        %10133 = vxpose.xlu0.b32.cont [4/16] %v9625, 128
        %10134 = vxpose.xlu0.b32.cont [5/16] %v9627, 128
        %10135 = vxpose.xlu0.b32.cont [6/16] %v9629, 128
        %10136 = vxpose.xlu0.b32.cont [7/16] %v9631, 128
        %10137 = vxpose.xlu0.b32.cont [8/16] %v9633, 128
        %10138 = vxpose.xlu0.b32.cont [9/16] %v9635, 128
        %10139 = vxpose.xlu0.b32.cont [10/16] %v9637, 128
        %10140 = vxpose.xlu0.b32.cont [11/16] %v9639, 128
        %10141 = vxpose.xlu0.b32.cont [12/16] %v9641, 128
        %10142 = vxpose.xlu0.b32.cont [13/16] %v9643, 128
        %10143 = vxpose.xlu0.b32.cont [14/16] %v9645, 128
        %10144 = vxpose.xlu0.b32.cont [15/16] %v9647, 128
        %10145 = vxpose.xlu0.b32.end [16/16] %v9649, 128
        %v10146 = vpop.trf.xlu0
        %v10147 = vpop.trf.xlu0
        %v10148 = vpop.trf.xlu0
        %v10149 = vpop.trf.xlu0
        %v10150 = vpop.trf.xlu0
        %v10151 = vpop.trf.xlu0
        %v10152 = vpop.trf.xlu0
        %v10153 = vpop.trf.xlu0
        %v10154 = vpop.trf.xlu0
        %v10155 = vpop.trf.xlu0
        %v10156 = vpop.trf.xlu0
        %v10157 = vpop.trf.xlu0
        %v10158 = vpop.trf.xlu0
        %v10159 = vpop.trf.xlu0
        %v10160 = vpop.trf.xlu0
        %v10161 = vpop.trf.xlu0
        %10162 = vxpose.xlu0.b32.start [1/16] %v9651, 128
        %10163 = vxpose.xlu0.b32.cont [2/16] %v9653, 128
        %10164 = vxpose.xlu0.b32.cont [3/16] %v9655, 128
        %10165 = vxpose.xlu0.b32.cont [4/16] %v9657, 128
        %10166 = vxpose.xlu0.b32.cont [5/16] %v9659, 128
        %10167 = vxpose.xlu0.b32.cont [6/16] %v9661, 128
        %10168 = vxpose.xlu0.b32.cont [7/16] %v9663, 128
        %10169 = vxpose.xlu0.b32.cont [8/16] %v9665, 128
        %10170 = vxpose.xlu0.b32.cont [9/16] %v9667, 128
        %10171 = vxpose.xlu0.b32.cont [10/16] %v9669, 128
        %10172 = vxpose.xlu0.b32.cont [11/16] %v9671, 128
        %10173 = vxpose.xlu0.b32.cont [12/16] %v9673, 128
        %10174 = vxpose.xlu0.b32.cont [13/16] %v9675, 128
        %10175 = vxpose.xlu0.b32.cont [14/16] %v9677, 128
        %10176 = vxpose.xlu0.b32.cont [15/16] %v9679, 128
        %10177 = vxpose.xlu0.b32.end [16/16] %v9681, 128
        %v10178 = vpop.trf.xlu0
        %v10179 = vpop.trf.xlu0
        %v10180 = vpop.trf.xlu0
        %v10181 = vpop.trf.xlu0
        %v10182 = vpop.trf.xlu0
        %v10183 = vpop.trf.xlu0
        %v10184 = vpop.trf.xlu0
        %v10185 = vpop.trf.xlu0
        %v10186 = vpop.trf.xlu0
        %v10187 = vpop.trf.xlu0
        %v10188 = vpop.trf.xlu0
        %v10189 = vpop.trf.xlu0
        %v10190 = vpop.trf.xlu0
        %v10191 = vpop.trf.xlu0
        %v10192 = vpop.trf.xlu0
        %v10193 = vpop.trf.xlu0
        %10194 = vxpose.xlu0.b32.start [1/16] %v9683, 128
        %10195 = vxpose.xlu0.b32.cont [2/16] %v9685, 128
        %10196 = vxpose.xlu0.b32.cont [3/16] %v9687, 128
        %10197 = vxpose.xlu0.b32.cont [4/16] %v9689, 128
        %10198 = vxpose.xlu0.b32.cont [5/16] %v9691, 128
        %10199 = vxpose.xlu0.b32.cont [6/16] %v9693, 128
        %10200 = vxpose.xlu0.b32.cont [7/16] %v9695, 128
        %10201 = vxpose.xlu0.b32.cont [8/16] %v9697, 128
        %10202 = vxpose.xlu0.b32.cont [9/16] %v9699, 128
        %10203 = vxpose.xlu0.b32.cont [10/16] %v9701, 128
        %10204 = vxpose.xlu0.b32.cont [11/16] %v9703, 128
        %10205 = vxpose.xlu0.b32.cont [12/16] %v9705, 128
        %10206 = vxpose.xlu0.b32.cont [13/16] %v9707, 128
        %10207 = vxpose.xlu0.b32.cont [14/16] %v9709, 128
        %10208 = vxpose.xlu0.b32.cont [15/16] %v9711, 128
        %10209 = vxpose.xlu0.b32.end [16/16] %v9713, 128
        %v10210 = vpop.trf.xlu0
        %v10211 = vpop.trf.xlu0
        %v10212 = vpop.trf.xlu0
        %v10213 = vpop.trf.xlu0
        %v10214 = vpop.trf.xlu0
        %v10215 = vpop.trf.xlu0
        %v10216 = vpop.trf.xlu0
        %v10217 = vpop.trf.xlu0
        %v10218 = vpop.trf.xlu0
        %v10219 = vpop.trf.xlu0
        %v10220 = vpop.trf.xlu0
        %v10221 = vpop.trf.xlu0
        %v10222 = vpop.trf.xlu0
        %v10223 = vpop.trf.xlu0
        %v10224 = vpop.trf.xlu0
        %v10225 = vpop.trf.xlu0
        %10226 = vxpose.xlu0.b32.start [1/16] %v9715, 128
        %10227 = vxpose.xlu0.b32.cont [2/16] %v9717, 128
        %10228 = vxpose.xlu0.b32.cont [3/16] %v9719, 128
        %10229 = vxpose.xlu0.b32.cont [4/16] %v9721, 128
        %10230 = vxpose.xlu0.b32.cont [5/16] %v9723, 128
        %10231 = vxpose.xlu0.b32.cont [6/16] %v9725, 128
        %10232 = vxpose.xlu0.b32.cont [7/16] %v9727, 128
        %10233 = vxpose.xlu0.b32.cont [8/16] %v9729, 128
        %10234 = vxpose.xlu0.b32.cont [9/16] %v9731, 128
        %10235 = vxpose.xlu0.b32.cont [10/16] %v9733, 128
        %10236 = vxpose.xlu0.b32.cont [11/16] %v9735, 128
        %10237 = vxpose.xlu0.b32.cont [12/16] %v9737, 128
        %10238 = vxpose.xlu0.b32.cont [13/16] %v9739, 128
        %10239 = vxpose.xlu0.b32.cont [14/16] %v9741, 128
        %10240 = vxpose.xlu0.b32.cont [15/16] %v9743, 128
        %10241 = vxpose.xlu0.b32.end [16/16] %v9745, 128
        %v10242 = vpop.trf.xlu0
        %v10243 = vpop.trf.xlu0
        %v10244 = vpop.trf.xlu0
        %v10245 = vpop.trf.xlu0
        %v10246 = vpop.trf.xlu0
        %v10247 = vpop.trf.xlu0
        %v10248 = vpop.trf.xlu0
        %v10249 = vpop.trf.xlu0
        %v10250 = vpop.trf.xlu0
        %v10251 = vpop.trf.xlu0
        %v10252 = vpop.trf.xlu0
        %v10253 = vpop.trf.xlu0
        %v10254 = vpop.trf.xlu0
        %v10255 = vpop.trf.xlu0
        %v10256 = vpop.trf.xlu0
        %v10257 = vpop.trf.xlu0
        %10258 = vxpose.xlu0.b32.start [1/16] %v9747, 128
        %10259 = vxpose.xlu0.b32.cont [2/16] %v9749, 128
        %10260 = vxpose.xlu0.b32.cont [3/16] %v9751, 128
        %10261 = vxpose.xlu0.b32.cont [4/16] %v9753, 128
        %10262 = vxpose.xlu0.b32.cont [5/16] %v9755, 128
        %10263 = vxpose.xlu0.b32.cont [6/16] %v9757, 128
        %10264 = vxpose.xlu0.b32.cont [7/16] %v9759, 128
        %10265 = vxpose.xlu0.b32.cont [8/16] %v9761, 128
        %10266 = vxpose.xlu0.b32.cont [9/16] %v9763, 128
        %10267 = vxpose.xlu0.b32.cont [10/16] %v9765, 128
        %10268 = vxpose.xlu0.b32.cont [11/16] %v9767, 128
        %10269 = vxpose.xlu0.b32.cont [12/16] %v9769, 128
        %10270 = vxpose.xlu0.b32.cont [13/16] %v9771, 128
        %10271 = vxpose.xlu0.b32.cont [14/16] %v9773, 128
        %10272 = vxpose.xlu0.b32.cont [15/16] %v9775, 128
        %10273 = vxpose.xlu0.b32.end [16/16] %v9777, 128
        %v10274 = vpop.trf.xlu0
        %v10275 = vpop.trf.xlu0
        %v10276 = vpop.trf.xlu0
        %v10277 = vpop.trf.xlu0
        %v10278 = vpop.trf.xlu0
        %v10279 = vpop.trf.xlu0
        %v10280 = vpop.trf.xlu0
        %v10281 = vpop.trf.xlu0
        %v10282 = vpop.trf.xlu0
        %v10283 = vpop.trf.xlu0
        %v10284 = vpop.trf.xlu0
        %v10285 = vpop.trf.xlu0
        %v10286 = vpop.trf.xlu0
        %v10287 = vpop.trf.xlu0
        %v10288 = vpop.trf.xlu0
        %v10289 = vpop.trf.xlu0
        %10290 = vxpose.xlu0.b32.start [1/16] %v9779, 128
        %10291 = vxpose.xlu0.b32.cont [2/16] %v9781, 128
        %10292 = vxpose.xlu0.b32.cont [3/16] %v9783, 128
        %10293 = vxpose.xlu0.b32.cont [4/16] %v9785, 128
        %10294 = vxpose.xlu0.b32.cont [5/16] %v9787, 128
        %10295 = vxpose.xlu0.b32.cont [6/16] %v9789, 128
        %10296 = vxpose.xlu0.b32.cont [7/16] %v9791, 128
        %10297 = vxpose.xlu0.b32.cont [8/16] %v9793, 128
        %10298 = vxpose.xlu0.b32.cont [9/16] %v9795, 128
        %10299 = vxpose.xlu0.b32.cont [10/16] %v9797, 128
        %10300 = vxpose.xlu0.b32.cont [11/16] %v9799, 128
        %10301 = vxpose.xlu0.b32.cont [12/16] %v9801, 128
        %10302 = vxpose.xlu0.b32.cont [13/16] %v9803, 128
        %10303 = vxpose.xlu0.b32.cont [14/16] %v9805, 128
        %10304 = vxpose.xlu0.b32.cont [15/16] %v9807, 128
        %10305 = vxpose.xlu0.b32.end [16/16] %v9809, 128
        %v10306 = vpop.trf.xlu0
        %v10307 = vpop.trf.xlu0
        %v10308 = vpop.trf.xlu0
        %v10309 = vpop.trf.xlu0
        %v10310 = vpop.trf.xlu0
        %v10311 = vpop.trf.xlu0
        %v10312 = vpop.trf.xlu0
        %v10313 = vpop.trf.xlu0
        %v10314 = vpop.trf.xlu0
        %v10315 = vpop.trf.xlu0
        %v10316 = vpop.trf.xlu0
        %v10317 = vpop.trf.xlu0
        %v10318 = vpop.trf.xlu0
        %v10319 = vpop.trf.xlu0
        %v10320 = vpop.trf.xlu0
        %v10321 = vpop.trf.xlu0
        %10322 = vxpose.xlu0.b32.start [1/16] %v9811, 128
        %10323 = vxpose.xlu0.b32.cont [2/16] %v9813, 128
        %10324 = vxpose.xlu0.b32.cont [3/16] %v9815, 128
        %10325 = vxpose.xlu0.b32.cont [4/16] %v9817, 128
        %10326 = vxpose.xlu0.b32.cont [5/16] %v9819, 128
        %10327 = vxpose.xlu0.b32.cont [6/16] %v9821, 128
        %10328 = vxpose.xlu0.b32.cont [7/16] %v9823, 128
        %10329 = vxpose.xlu0.b32.cont [8/16] %v9825, 128
        %10330 = vxpose.xlu0.b32.cont [9/16] %v9827, 128
        %10331 = vxpose.xlu0.b32.cont [10/16] %v9829, 128
        %10332 = vxpose.xlu0.b32.cont [11/16] %v9831, 128
        %10333 = vxpose.xlu0.b32.cont [12/16] %v9833, 128
        %10334 = vxpose.xlu0.b32.cont [13/16] %v9835, 128
        %10335 = vxpose.xlu0.b32.cont [14/16] %v9837, 128
        %10336 = vxpose.xlu0.b32.cont [15/16] %v9839, 128
        %10337 = vxpose.xlu0.b32.end [16/16] %v9841, 128
        %v10338 = vpop.trf.xlu0
        %v10339 = vpop.trf.xlu0
        %v10340 = vpop.trf.xlu0
        %v10341 = vpop.trf.xlu0
        %v10342 = vpop.trf.xlu0
        %v10343 = vpop.trf.xlu0
        %v10344 = vpop.trf.xlu0
        %v10345 = vpop.trf.xlu0
        %v10346 = vpop.trf.xlu0
        %v10347 = vpop.trf.xlu0
        %v10348 = vpop.trf.xlu0
        %v10349 = vpop.trf.xlu0
        %v10350 = vpop.trf.xlu0
        %v10351 = vpop.trf.xlu0
        %v10352 = vpop.trf.xlu0
        %v10353 = vpop.trf.xlu0
        %10354 = vxpose.xlu0.b32.start [1/16] %v9843, 128
        %10355 = vxpose.xlu0.b32.cont [2/16] %v9845, 128
        %10356 = vxpose.xlu0.b32.cont [3/16] %v9847, 128
        %10357 = vxpose.xlu0.b32.cont [4/16] %v9849, 128
        %10358 = vxpose.xlu0.b32.cont [5/16] %v9851, 128
        %10359 = vxpose.xlu0.b32.cont [6/16] %v9853, 128
        %10360 = vxpose.xlu0.b32.cont [7/16] %v9855, 128
        %10361 = vxpose.xlu0.b32.cont [8/16] %v9857, 128
        %10362 = vxpose.xlu0.b32.cont [9/16] %v9859, 128
        %10363 = vxpose.xlu0.b32.cont [10/16] %v9861, 128
        %10364 = vxpose.xlu0.b32.cont [11/16] %v9863, 128
        %10365 = vxpose.xlu0.b32.cont [12/16] %v9865, 128
        %10366 = vxpose.xlu0.b32.cont [13/16] %v9867, 128
        %10367 = vxpose.xlu0.b32.cont [14/16] %v9869, 128
        %10368 = vxpose.xlu0.b32.cont [15/16] %v9871, 128
        %10369 = vxpose.xlu0.b32.end [16/16] %v9873, 128
        %v10370 = vpop.trf.xlu0
        %v10371 = vpop.trf.xlu0
        %v10372 = vpop.trf.xlu0
        %v10373 = vpop.trf.xlu0
        %v10374 = vpop.trf.xlu0
        %v10375 = vpop.trf.xlu0
        %v10376 = vpop.trf.xlu0
        %v10377 = vpop.trf.xlu0
        %v10378 = vpop.trf.xlu0
        %v10379 = vpop.trf.xlu0
        %v10380 = vpop.trf.xlu0
        %v10381 = vpop.trf.xlu0
        %v10382 = vpop.trf.xlu0
        %v10383 = vpop.trf.xlu0
        %v10384 = vpop.trf.xlu0
        %v10385 = vpop.trf.xlu0
        %10386 = vxpose.xlu0.b32.start [1/16] %v9875, 128
        %10387 = vxpose.xlu0.b32.cont [2/16] %v9877, 128
        %10388 = vxpose.xlu0.b32.cont [3/16] %v9879, 128
        %10389 = vxpose.xlu0.b32.cont [4/16] %v9881, 128
        %10390 = vxpose.xlu0.b32.cont [5/16] %v9883, 128
        %10391 = vxpose.xlu0.b32.cont [6/16] %v9885, 128
        %10392 = vxpose.xlu0.b32.cont [7/16] %v9887, 128
        %10393 = vxpose.xlu0.b32.cont [8/16] %v9889, 128
        %10394 = vxpose.xlu0.b32.cont [9/16] %v9891, 128
        %10395 = vxpose.xlu0.b32.cont [10/16] %v9893, 128
        %10396 = vxpose.xlu0.b32.cont [11/16] %v9895, 128
        %10397 = vxpose.xlu0.b32.cont [12/16] %v9897, 128
        %10398 = vxpose.xlu0.b32.cont [13/16] %v9899, 128
        %10399 = vxpose.xlu0.b32.cont [14/16] %v9901, 128
        %10400 = vxpose.xlu0.b32.cont [15/16] %v9903, 128
        %10401 = vxpose.xlu0.b32.end [16/16] %v9905, 128
        %v10402 = vpop.trf.xlu0
        %v10403 = vpop.trf.xlu0
        %v10404 = vpop.trf.xlu0
        %v10405 = vpop.trf.xlu0
        %v10406 = vpop.trf.xlu0
        %v10407 = vpop.trf.xlu0
        %v10408 = vpop.trf.xlu0
        %v10409 = vpop.trf.xlu0
        %v10410 = vpop.trf.xlu0
        %v10411 = vpop.trf.xlu0
        %v10412 = vpop.trf.xlu0
        %v10413 = vpop.trf.xlu0
        %v10414 = vpop.trf.xlu0
        %v10415 = vpop.trf.xlu0
        %v10416 = vpop.trf.xlu0
        %v10417 = vpop.trf.xlu0
        %10418 = vxpose.xlu0.b32.start [1/16] %v9907, 128
        %10419 = vxpose.xlu0.b32.cont [2/16] %v9909, 128
        %10420 = vxpose.xlu0.b32.cont [3/16] %v9911, 128
        %10421 = vxpose.xlu0.b32.cont [4/16] %v9913, 128
        %10422 = vxpose.xlu0.b32.cont [5/16] %v9915, 128
        %10423 = vxpose.xlu0.b32.cont [6/16] %v9917, 128
        %10424 = vxpose.xlu0.b32.cont [7/16] %v9919, 128
        %10425 = vxpose.xlu0.b32.cont [8/16] %v9921, 128
        %10426 = vxpose.xlu0.b32.cont [9/16] %v9923, 128
        %10427 = vxpose.xlu0.b32.cont [10/16] %v9925, 128
        %10428 = vxpose.xlu0.b32.cont [11/16] %v9927, 128
        %10429 = vxpose.xlu0.b32.cont [12/16] %v9929, 128
        %10430 = vxpose.xlu0.b32.cont [13/16] %v9931, 128
        %10431 = vxpose.xlu0.b32.cont [14/16] %v9933, 128
        %10432 = vxpose.xlu0.b32.cont [15/16] %v9935, 128
        %10433 = vxpose.xlu0.b32.end [16/16] %v9937, 128
        %v10434 = vpop.trf.xlu0
        %v10435 = vpop.trf.xlu0
        %v10436 = vpop.trf.xlu0
        %v10437 = vpop.trf.xlu0
        %v10438 = vpop.trf.xlu0
        %v10439 = vpop.trf.xlu0
        %v10440 = vpop.trf.xlu0
        %v10441 = vpop.trf.xlu0
        %v10442 = vpop.trf.xlu0
        %v10443 = vpop.trf.xlu0
        %v10444 = vpop.trf.xlu0
        %v10445 = vpop.trf.xlu0
        %v10446 = vpop.trf.xlu0
        %v10447 = vpop.trf.xlu0
        %v10448 = vpop.trf.xlu0
        %v10449 = vpop.trf.xlu0
        %10450 = vxpose.xlu0.b32.start [1/16] %v9939, 128
        %10451 = vxpose.xlu0.b32.cont [2/16] %v9941, 128
        %10452 = vxpose.xlu0.b32.cont [3/16] %v9943, 128
        %10453 = vxpose.xlu0.b32.cont [4/16] %v9945, 128
        %10454 = vxpose.xlu0.b32.cont [5/16] %v9947, 128
        %10455 = vxpose.xlu0.b32.cont [6/16] %v9949, 128
        %10456 = vxpose.xlu0.b32.cont [7/16] %v9951, 128
        %10457 = vxpose.xlu0.b32.cont [8/16] %v9953, 128
        %10458 = vxpose.xlu0.b32.cont [9/16] %v9955, 128
        %10459 = vxpose.xlu0.b32.cont [10/16] %v9957, 128
        %10460 = vxpose.xlu0.b32.cont [11/16] %v9959, 128
        %10461 = vxpose.xlu0.b32.cont [12/16] %v9961, 128
        %10462 = vxpose.xlu0.b32.cont [13/16] %v9963, 128
        %10463 = vxpose.xlu0.b32.cont [14/16] %v9965, 128
        %10464 = vxpose.xlu0.b32.cont [15/16] %v9967, 128
        %10465 = vxpose.xlu0.b32.end [16/16] %v9969, 128
        %v10466 = vpop.trf.xlu0
        %v10467 = vpop.trf.xlu0
        %v10468 = vpop.trf.xlu0
        %v10469 = vpop.trf.xlu0
        %v10470 = vpop.trf.xlu0
        %v10471 = vpop.trf.xlu0
        %v10472 = vpop.trf.xlu0
        %v10473 = vpop.trf.xlu0
        %v10474 = vpop.trf.xlu0
        %v10475 = vpop.trf.xlu0
        %v10476 = vpop.trf.xlu0
        %v10477 = vpop.trf.xlu0
        %v10478 = vpop.trf.xlu0
        %v10479 = vpop.trf.xlu0
        %v10480 = vpop.trf.xlu0
        %v10481 = vpop.trf.xlu0
        %v10498 = vcombine.low %v9986, %v10018
        %v10499 = vcombine.low %v10050, %v10082
        %v10500 = vcombine.low %v10114, %v10146
        %v10501 = vcombine.low %v10178, %v10210
        %v10502 = vcombine.low %v10242, %v10274
        %v10503 = vcombine.low %v10306, %v10338
        %v10504 = vcombine.low %v10370, %v10402
        %v10505 = vcombine.low %v10434, %v10466
        %v10506 = vcombine.low %v10498, %v10499
        %v10507 = vcombine.high %v10498, %v10499
        %v10508 = vcombine.low %v10500, %v10501
        %v10509 = vcombine.high %v10500, %v10501
        %v10510 = vcombine.low %v10502, %v10503
        %v10511 = vcombine.high %v10502, %v10503
        %v10512 = vcombine.low %v10504, %v10505
        %v10513 = vcombine.high %v10504, %v10505
        %10522 = vxpose.xlu0.b32.start [1/16] %v10506, 128
        %10523 = vxpose.xlu0.b32.cont [2/16] %v10508, 128
        %10524 = vxpose.xlu0.b32.cont [3/16] %v10510, 128
        %10525 = vxpose.xlu0.b32.cont [4/16] %v10512, 128
        %10526 = vxpose.xlu0.b32.cont [5/16] 0.0, 128
        %10527 = vxpose.xlu0.b32.cont [6/16] 0.0, 128
        %10528 = vxpose.xlu0.b32.cont [7/16] 0.0, 128
        %10529 = vxpose.xlu0.b32.cont [8/16] 0.0, 128
        %10530 = vxpose.xlu0.b32.cont [9/16] 0.0, 128
        %10531 = vxpose.xlu0.b32.cont [10/16] 0.0, 128
        %10532 = vxpose.xlu0.b32.cont [11/16] 0.0, 128
        %10533 = vxpose.xlu0.b32.cont [12/16] 0.0, 128
        %10534 = vxpose.xlu0.b32.cont [13/16] 0.0, 128
        %10535 = vxpose.xlu0.b32.cont [14/16] 0.0, 128
        %10536 = vxpose.xlu0.b32.cont [15/16] 0.0, 128
        %10537 = vxpose.xlu0.b32.end [16/16] 0.0, 128
        %v10538 = vpop.trf.xlu0
        %v10539 = vpop.trf.xlu0
        %v10540 = vpop.trf.xlu0
        %v10541 = vpop.trf.xlu0
        %v10542 = vpop.trf.xlu0
        %v10543 = vpop.trf.xlu0
        %v10544 = vpop.trf.xlu0
        %v10545 = vpop.trf.xlu0
        %v10546 = vpop.trf.xlu0
        %v10547 = vpop.trf.xlu0
        %v10548 = vpop.trf.xlu0
        %v10549 = vpop.trf.xlu0
        %v10550 = vpop.trf.xlu0
        %v10551 = vpop.trf.xlu0
        %v10552 = vpop.trf.xlu0
        %v10553 = vpop.trf.xlu0
        %10554 = vxpose.xlu0.b32.start [1/16] %v10507, 128
        %10555 = vxpose.xlu0.b32.cont [2/16] %v10509, 128
        %10556 = vxpose.xlu0.b32.cont [3/16] %v10511, 128
        %10557 = vxpose.xlu0.b32.cont [4/16] %v10513, 128
        %10558 = vxpose.xlu0.b32.cont [5/16] 0.0, 128
        %10559 = vxpose.xlu0.b32.cont [6/16] 0.0, 128
        %10560 = vxpose.xlu0.b32.cont [7/16] 0.0, 128
        %10561 = vxpose.xlu0.b32.cont [8/16] 0.0, 128
        %10562 = vxpose.xlu0.b32.cont [9/16] 0.0, 128
        %10563 = vxpose.xlu0.b32.cont [10/16] 0.0, 128
        %10564 = vxpose.xlu0.b32.cont [11/16] 0.0, 128
        %10565 = vxpose.xlu0.b32.cont [12/16] 0.0, 128
        %10566 = vxpose.xlu0.b32.cont [13/16] 0.0, 128
        %10567 = vxpose.xlu0.b32.cont [14/16] 0.0, 128
        %10568 = vxpose.xlu0.b32.cont [15/16] 0.0, 128
        %10569 = vxpose.xlu0.b32.end [16/16] 0.0, 128
        %v10570 = vpop.trf.xlu0
        %v10571 = vpop.trf.xlu0
        %v10572 = vpop.trf.xlu0
        %v10573 = vpop.trf.xlu0
        %v10574 = vpop.trf.xlu0
        %v10575 = vpop.trf.xlu0
        %v10576 = vpop.trf.xlu0
        %v10577 = vpop.trf.xlu0
        %v10578 = vpop.trf.xlu0
        %v10579 = vpop.trf.xlu0
        %v10580 = vpop.trf.xlu0
        %v10581 = vpop.trf.xlu0
        %v10582 = vpop.trf.xlu0
        %v10583 = vpop.trf.xlu0
        %v10584 = vpop.trf.xlu0
        %v10585 = vpop.trf.xlu0
        %v10586 = vld [vmem:[#allocation7] sm:$0xff]
        %v10587 = vld [vmem:[#allocation7 + $0x8] sm:$0xff]
        %v10588 = vld [vmem:[#allocation7 + $0x10] sm:$0xff]
        %v10589 = vld [vmem:[#allocation7 + $0x18] sm:$0xff]
        %v10590 = vlaneseq
        %v10591 = vshrl.u32 %v10590, 7
        %v10592 = vsub.s32 0, %v10591
        %v10593 = vrot.slane %v287, %v10592
        %v10595 = vsel %vm374, %v10538, 0
        %v10598 = vsel %vm374, %v10539, 0
        %v10601 = vsel %vm374, %v10540, 0
        %v10604 = vsel %vm374, %v10541, 0
        %v10607 = vsel %vm374, %v10542, 0
        %v10610 = vsel %vm374, %v10543, 0
        %v10613 = vsel %vm374, %v10544, 0
        %v10616 = vsel %vm374, %v10545, 0
        %v10619 = vsel %vm374, %v10546, 0
        %v10622 = vsel %vm374, %v10547, 0
        %v10625 = vsel %vm374, %v10548, 0
        %v10628 = vsel %vm374, %v10549, 0
        %v10631 = vsel %vm374, %v10550, 0
        %v10634 = vsel %vm374, %v10551, 0
        %v10637 = vsel %vm374, %v10552, 0
        %v10640 = vsel %vm374, %v10553, 0
        %v10643 = vsel %vm374, %v10570, 0
        %v10646 = vsel %vm374, %v10571, 0
        %v10649 = vsel %vm374, %v10572, 0
        %v10652 = vsel %vm374, %v10573, 0
        %v10655 = vsel %vm374, %v10574, 0
        %v10658 = vsel %vm374, %v10575, 0
        %v10661 = vsel %vm374, %v10576, 0
        %v10664 = vsel %vm374, %v10577, 0
        %v10667 = vsel %vm374, %v10578, 0
        %v10670 = vsel %vm374, %v10579, 0
        %v10673 = vsel %vm374, %v10580, 0
        %v10676 = vsel %vm374, %v10581, 0
        %v10679 = vsel %vm374, %v10582, 0
        %v10682 = vsel %vm374, %v10583, 0
        %v10685 = vsel %vm374, %v10584, 0
        %v10688 = vsel %vm374, %v10585, 0
        %10690 = vmatprep.subr.mxu0 0.0
        %10691 = vmatpush1.msra.mxu0 0.0
        %10692 = vmatprep.subr.mxu0 0.0
        %10693 = vmatpush1.msra.mxu0 0.0
        %10694 = vmatprep.subr.mxu0 0.0
        %10695 = vmatpush1.msra.mxu0 0.0
        %10696 = vmatprep.subr.mxu0 0.0
        %10697 = vmatpush1.msra.mxu0 0.0
        %10698 = vmatprep.subr.mxu0 0.0
        %10699 = vmatpush1.msra.mxu0 0.0
        %10700 = vmatprep.subr.mxu0 0.0
        %10701 = vmatpush1.msra.mxu0 0.0
        %10702 = vmatprep.subr.mxu0 0.0
        %10703 = vmatpush1.msra.mxu0 0.0
        %10704 = vmatprep.subr.mxu0 0.0
        %10705 = vmatpush1.msra.mxu0 0.0
        %10706 = vmatprep.subr.mxu0 0.0
        %10707 = vmatpush1.msra.mxu0 0.0
        %10708 = vmatprep.subr.mxu0 0.0
        %10709 = vmatpush1.msra.mxu0 0.0
        %10710 = vmatprep.subr.mxu0 0.0
        %10711 = vmatpush1.msra.mxu0 0.0
        %10712 = vmatprep.subr.mxu0 0.0
        %10713 = vmatpush1.msra.mxu0 0.0
        %10714 = vmatprep.subr.mxu0 0.0
        %10715 = vmatpush1.msra.mxu0 %v10589
        %10716 = vmatprep.subr.mxu0 0.0
        %10717 = vmatpush1.msra.mxu0 %v10588
        %10718 = vmatprep.subr.mxu0 0.0
        %10719 = vmatpush1.msra.mxu0 %v10587
        %10720 = vmatprep.subr.mxu0 0.0
        %10721 = vmatpush1.msra.mxu0 %v10586
        %10722 = vmatprep.subr.mxu0 0.0
        %10723 = vmatpush2.msra.mxu0 0.0
        %10724 = vmatprep.subr.mxu0 0.0
        %10725 = vmatpush2.msra.mxu0 0.0
        %10726 = vmatprep.subr.mxu0 0.0
        %10727 = vmatpush2.msra.mxu0 0.0
        %10728 = vmatprep.subr.mxu0 0.0
        %10729 = vmatpush2.msra.mxu0 0.0
        %10730 = vmatprep.subr.mxu0 0.0
        %10731 = vmatpush2.msra.mxu0 0.0
        %10732 = vmatprep.subr.mxu0 0.0
        %10733 = vmatpush2.msra.mxu0 0.0
        %10734 = vmatprep.subr.mxu0 0.0
        %10735 = vmatpush2.msra.mxu0 0.0
        %10736 = vmatprep.subr.mxu0 0.0
        %10737 = vmatpush2.msra.mxu0 0.0
        %10738 = vmatprep.subr.mxu0 0.0
        %10739 = vmatpush2.msra.mxu0 0.0
        %10740 = vmatprep.subr.mxu0 0.0
        %10741 = vmatpush2.msra.mxu0 0.0
        %10742 = vmatprep.subr.mxu0 0.0
        %10743 = vmatpush2.msra.mxu0 0.0
        %10744 = vmatprep.subr.mxu0 0.0
        %10745 = vmatpush2.msra.mxu0 0.0
        %10746 = vmatprep.subr.mxu0 0.0
        %10747 = vmatpush2.msra.mxu0 0.0
        %10748 = vmatprep.subr.mxu0 0.0
        %10749 = vmatpush2.msra.mxu0 0.0
        %10750 = vmatprep.subr.mxu0 0.0
        %10751 = vmatpush2.msra.mxu0 0.0
        %10752 = vmatprep.subr.mxu0 0.0
        %10753 = vmatpush2.msra.mxu0 0.0
        %10754 = vmatprep.mubr.f32.mxu0 0.0
        %10755 = vmatmul.mubr.f32.gmra.mxu0 %v10595
        %v10756 = vpop.f32.mrf.mxu0
        %v10757 = vadd.f32 %v10593, %v10756
        %v10758 = vpop.f32.mrf.mxu0
        %10759 = vmatprep.mubr.f32.mxu0 0.0
        %10760 = vmatmul.mubr.f32.gmra.mxu0 %v10598
        %v10761 = vpop.f32.mrf.mxu0
        %v10762 = vadd.f32 %v10593, %v10761
        %v10763 = vpop.f32.mrf.mxu0
        %10764 = vmatprep.mubr.f32.mxu0 0.0
        %10765 = vmatmul.mubr.f32.gmra.mxu0 %v10601
        %v10766 = vpop.f32.mrf.mxu0
        %v10767 = vadd.f32 %v10593, %v10766
        %v10768 = vpop.f32.mrf.mxu0
        %10769 = vmatprep.mubr.f32.mxu0 0.0
        %10770 = vmatmul.mubr.f32.gmra.mxu0 %v10604
        %v10771 = vpop.f32.mrf.mxu0
        %v10772 = vadd.f32 %v10593, %v10771
        %v10773 = vpop.f32.mrf.mxu0
        %10774 = vmatprep.mubr.f32.mxu0 0.0
        %10775 = vmatmul.mubr.f32.gmra.mxu0 %v10607
        %v10776 = vpop.f32.mrf.mxu0
        %v10777 = vadd.f32 %v10593, %v10776
        %v10778 = vpop.f32.mrf.mxu0
        %10779 = vmatprep.mubr.f32.mxu0 0.0
        %10780 = vmatmul.mubr.f32.gmra.mxu0 %v10610
        %v10781 = vpop.f32.mrf.mxu0
        %v10782 = vadd.f32 %v10593, %v10781
        %v10783 = vpop.f32.mrf.mxu0
        %10784 = vmatprep.mubr.f32.mxu0 0.0
        %10785 = vmatmul.mubr.f32.gmra.mxu0 %v10613
        %v10786 = vpop.f32.mrf.mxu0
        %v10787 = vadd.f32 %v10593, %v10786
        %v10788 = vpop.f32.mrf.mxu0
        %10789 = vmatprep.mubr.f32.mxu0 0.0
        %10790 = vmatmul.mubr.f32.gmra.mxu0 %v10616
        %v10791 = vpop.f32.mrf.mxu0
        %v10792 = vadd.f32 %v10593, %v10791
        %v10793 = vpop.f32.mrf.mxu0
        %10794 = vmatprep.mubr.f32.mxu0 0.0
        %10795 = vmatmul.mubr.f32.gmra.mxu0 %v10619
        %v10796 = vpop.f32.mrf.mxu0
        %v10797 = vadd.f32 %v10593, %v10796
        %v10798 = vpop.f32.mrf.mxu0
        %10799 = vmatprep.mubr.f32.mxu0 0.0
        %10800 = vmatmul.mubr.f32.gmra.mxu0 %v10622
        %v10801 = vpop.f32.mrf.mxu0
        %v10802 = vadd.f32 %v10593, %v10801
        %v10803 = vpop.f32.mrf.mxu0
        %10804 = vmatprep.mubr.f32.mxu0 0.0
        %10805 = vmatmul.mubr.f32.gmra.mxu0 %v10625
        %v10806 = vpop.f32.mrf.mxu0
        %v10807 = vadd.f32 %v10593, %v10806
        %v10808 = vpop.f32.mrf.mxu0
        %10809 = vmatprep.mubr.f32.mxu0 0.0
        %10810 = vmatmul.mubr.f32.gmra.mxu0 %v10628
        %v10811 = vpop.f32.mrf.mxu0
        %v10812 = vadd.f32 %v10593, %v10811
        %v10813 = vpop.f32.mrf.mxu0
        %10814 = vmatprep.mubr.f32.mxu0 0.0
        %10815 = vmatmul.mubr.f32.gmra.mxu0 %v10631
        %v10816 = vpop.f32.mrf.mxu0
        %v10817 = vadd.f32 %v10593, %v10816
        %v10818 = vpop.f32.mrf.mxu0
        %10819 = vmatprep.mubr.f32.mxu0 0.0
        %10820 = vmatmul.mubr.f32.gmra.mxu0 %v10634
        %v10821 = vpop.f32.mrf.mxu0
        %v10822 = vadd.f32 %v10593, %v10821
        %v10823 = vpop.f32.mrf.mxu0
        %10824 = vmatprep.mubr.f32.mxu0 0.0
        %10825 = vmatmul.mubr.f32.gmra.mxu0 %v10637
        %v10826 = vpop.f32.mrf.mxu0
        %v10827 = vadd.f32 %v10593, %v10826
        %v10828 = vpop.f32.mrf.mxu0
        %10829 = vmatprep.mubr.f32.mxu0 0.0
        %10830 = vmatmul.mubr.f32.gmra.mxu0 %v10640
        %v10831 = vpop.f32.mrf.mxu0
        %v10832 = vadd.f32 %v10593, %v10831
        %v10833 = vpop.f32.mrf.mxu0
        %10834 = vmatprep.mubr.f32.mxu0 0.0
        %10835 = vmatmul.mubr.f32.gmra.mxu0 %v10643
        %v10836 = vpop.f32.mrf.mxu0
        %v10837 = vadd.f32 %v10593, %v10836
        %v10838 = vpop.f32.mrf.mxu0
        %10839 = vmatprep.mubr.f32.mxu0 0.0
        %10840 = vmatmul.mubr.f32.gmra.mxu0 %v10646
        %v10841 = vpop.f32.mrf.mxu0
        %v10842 = vadd.f32 %v10593, %v10841
        %v10843 = vpop.f32.mrf.mxu0
        %10844 = vmatprep.mubr.f32.mxu0 0.0
        %10845 = vmatmul.mubr.f32.gmra.mxu0 %v10649
        %v10846 = vpop.f32.mrf.mxu0
        %v10847 = vadd.f32 %v10593, %v10846
        %v10848 = vpop.f32.mrf.mxu0
        %10849 = vmatprep.mubr.f32.mxu0 0.0
        %10850 = vmatmul.mubr.f32.gmra.mxu0 %v10652
        %v10851 = vpop.f32.mrf.mxu0
        %v10852 = vadd.f32 %v10593, %v10851
        %v10853 = vpop.f32.mrf.mxu0
        %10854 = vmatprep.mubr.f32.mxu0 0.0
        %10855 = vmatmul.mubr.f32.gmra.mxu0 %v10655
        %v10856 = vpop.f32.mrf.mxu0
        %v10857 = vadd.f32 %v10593, %v10856
        %v10858 = vpop.f32.mrf.mxu0
        %10859 = vmatprep.mubr.f32.mxu0 0.0
        %10860 = vmatmul.mubr.f32.gmra.mxu0 %v10658
        %v10861 = vpop.f32.mrf.mxu0
        %v10862 = vadd.f32 %v10593, %v10861
        %v10863 = vpop.f32.mrf.mxu0
        %10864 = vmatprep.mubr.f32.mxu0 0.0
        %10865 = vmatmul.mubr.f32.gmra.mxu0 %v10661
        %v10866 = vpop.f32.mrf.mxu0
        %v10867 = vadd.f32 %v10593, %v10866
        %v10868 = vpop.f32.mrf.mxu0
        %10869 = vmatprep.mubr.f32.mxu0 0.0
        %10870 = vmatmul.mubr.f32.gmra.mxu0 %v10664
        %v10871 = vpop.f32.mrf.mxu0
        %v10872 = vadd.f32 %v10593, %v10871
        %v10873 = vpop.f32.mrf.mxu0
        %10874 = vmatprep.mubr.f32.mxu0 0.0
        %10875 = vmatmul.mubr.f32.gmra.mxu0 %v10667
        %v10876 = vpop.f32.mrf.mxu0
        %v10877 = vadd.f32 %v10593, %v10876
        %v10878 = vpop.f32.mrf.mxu0
        %10879 = vmatprep.mubr.f32.mxu0 0.0
        %10880 = vmatmul.mubr.f32.gmra.mxu0 %v10670
        %v10881 = vpop.f32.mrf.mxu0
        %v10882 = vadd.f32 %v10593, %v10881
        %v10883 = vpop.f32.mrf.mxu0
        %10884 = vmatprep.mubr.f32.mxu0 0.0
        %10885 = vmatmul.mubr.f32.gmra.mxu0 %v10673
        %v10886 = vpop.f32.mrf.mxu0
        %v10887 = vadd.f32 %v10593, %v10886
        %v10888 = vpop.f32.mrf.mxu0
        %10889 = vmatprep.mubr.f32.mxu0 0.0
        %10890 = vmatmul.mubr.f32.gmra.mxu0 %v10676
        %v10891 = vpop.f32.mrf.mxu0
        %v10892 = vadd.f32 %v10593, %v10891
        %v10893 = vpop.f32.mrf.mxu0
        %10894 = vmatprep.mubr.f32.mxu0 0.0
        %10895 = vmatmul.mubr.f32.gmra.mxu0 %v10679
        %v10896 = vpop.f32.mrf.mxu0
        %v10897 = vadd.f32 %v10593, %v10896
        %v10898 = vpop.f32.mrf.mxu0
        %10899 = vmatprep.mubr.f32.mxu0 0.0
        %10900 = vmatmul.mubr.f32.gmra.mxu0 %v10682
        %v10901 = vpop.f32.mrf.mxu0
        %v10902 = vadd.f32 %v10593, %v10901
        %v10903 = vpop.f32.mrf.mxu0
        %10904 = vmatprep.mubr.f32.mxu0 0.0
        %10905 = vmatmul.mubr.f32.gmra.mxu0 %v10685
        %v10906 = vpop.f32.mrf.mxu0
        %v10907 = vadd.f32 %v10593, %v10906
        %v10908 = vpop.f32.mrf.mxu0
        %10909 = vmatprep.mubr.f32.mxu0 0.0
        %10910 = vmatmul.mubr.f32.gmra.mxu0 %v10688
        %v10911 = vpop.f32.mrf.mxu0
        %v10912 = vadd.f32 %v10593, %v10911
        %v10913 = vpop.f32.mrf.mxu0
        %10914 = vdwg.mxu0
        %v10915 = vsel %vm374, %v10757, 0.0
        %v10916 = vsel %vm374, %v10762, 0.0
        %v10917 = vadd.f32 %v10915, %v10916
        %v10918 = vsel %vm374, %v10767, 0.0
        %v10919 = vadd.f32 %v10917, %v10918
        %v10920 = vsel %vm374, %v10772, 0.0
        %v10921 = vadd.f32 %v10919, %v10920
        %v10922 = vsel %vm374, %v10777, 0.0
        %v10923 = vadd.f32 %v10921, %v10922
        %v10924 = vsel %vm374, %v10782, 0.0
        %v10925 = vadd.f32 %v10923, %v10924
        %v10926 = vsel %vm374, %v10787, 0.0
        %v10927 = vadd.f32 %v10925, %v10926
        %v10928 = vsel %vm374, %v10792, 0.0
        %v10929 = vadd.f32 %v10927, %v10928
        %v10930 = vsel %vm374, %v10797, 0.0
        %v10931 = vadd.f32 %v10929, %v10930
        %v10932 = vsel %vm374, %v10802, 0.0
        %v10933 = vadd.f32 %v10931, %v10932
        %v10934 = vsel %vm374, %v10807, 0.0
        %v10935 = vadd.f32 %v10933, %v10934
        %v10936 = vsel %vm374, %v10812, 0.0
        %v10937 = vadd.f32 %v10935, %v10936
        %v10938 = vsel %vm374, %v10817, 0.0
        %v10939 = vadd.f32 %v10937, %v10938
        %v10940 = vsel %vm374, %v10822, 0.0
        %v10941 = vadd.f32 %v10939, %v10940
        %v10942 = vsel %vm374, %v10827, 0.0
        %v10943 = vadd.f32 %v10941, %v10942
        %v10944 = vsel %vm374, %v10832, 0.0
        %v10945 = vadd.f32 %v10943, %v10944
        %v10946 = vsel %vm374, %v10837, 0.0
        %v10947 = vadd.f32 %v10945, %v10946
        %v10948 = vsel %vm374, %v10842, 0.0
        %v10949 = vadd.f32 %v10947, %v10948
        %v10950 = vsel %vm374, %v10847, 0.0
        %v10951 = vadd.f32 %v10949, %v10950
        %v10952 = vsel %vm374, %v10852, 0.0
        %v10953 = vadd.f32 %v10951, %v10952
        %v10954 = vsel %vm374, %v10857, 0.0
        %v10955 = vadd.f32 %v10953, %v10954
        %v10956 = vsel %vm374, %v10862, 0.0
        %v10957 = vadd.f32 %v10955, %v10956
        %v10958 = vsel %vm374, %v10867, 0.0
        %v10959 = vadd.f32 %v10957, %v10958
        %v10960 = vsel %vm374, %v10872, 0.0
        %v10961 = vadd.f32 %v10959, %v10960
        %v10962 = vsel %vm374, %v10877, 0.0
        %v10963 = vadd.f32 %v10961, %v10962
        %v10964 = vsel %vm374, %v10882, 0.0
        %v10965 = vadd.f32 %v10963, %v10964
        %v10966 = vsel %vm374, %v10887, 0.0
        %v10967 = vadd.f32 %v10965, %v10966
        %v10968 = vsel %vm374, %v10892, 0.0
        %v10969 = vadd.f32 %v10967, %v10968
        %v10970 = vsel %vm374, %v10897, 0.0
        %v10971 = vadd.f32 %v10969, %v10970
        %v10972 = vsel %vm374, %v10902, 0.0
        %v10973 = vadd.f32 %v10971, %v10972
        %v10974 = vsel %vm374, %v10907, 0.0
        %v10975 = vadd.f32 %v10973, %v10974
        %v10976 = vsel %vm374, %v10912, 0.0
        %v10977 = vadd.f32 %v10975, %v10976
        %v10978 = vrot.slane %v10977, 4
        %v10979 = vadd.f32 %v10977, %v10978
        %v10980 = vrot.slane %v10979, 2
        %v10981 = vadd.f32 %v10979, %v10980
        %v10982 = vrot.slane %v10981, 1
        %v10983 = vadd.f32 %v10981, %v10982
        %v10985 = vsel %vm374, %v10983, 0
        %v10988 = vsel %vm374, %v290, 0
        %10990 = vmatprep.subr.mxu0 0.0
        %10991 = vmatpush1.xpose.msra.mxu0 0.0
        %10992 = vmatprep.subr.mxu0 0.0
        %10993 = vmatpush1.xpose.msra.mxu0 0.0
        %10994 = vmatprep.subr.mxu0 0.0
        %10995 = vmatpush1.xpose.msra.mxu0 0.0
        %10996 = vmatprep.subr.mxu0 0.0
        %10997 = vmatpush1.xpose.msra.mxu0 0.0
        %10998 = vmatprep.subr.mxu0 0.0
        %10999 = vmatpush1.xpose.msra.mxu0 0.0
        %11000 = vmatprep.subr.mxu0 0.0
        %11001 = vmatpush1.xpose.msra.mxu0 0.0
        %11002 = vmatprep.subr.mxu0 0.0
        %11003 = vmatpush1.xpose.msra.mxu0 0.0
        %11004 = vmatprep.subr.mxu0 0.0
        %11005 = vmatpush1.xpose.msra.mxu0 0.0
        %11006 = vmatprep.subr.mxu0 0.0
        %11007 = vmatpush1.xpose.msra.mxu0 0.0
        %11008 = vmatprep.subr.mxu0 0.0
        %11009 = vmatpush1.xpose.msra.mxu0 0.0
        %11010 = vmatprep.subr.mxu0 0.0
        %11011 = vmatpush1.xpose.msra.mxu0 0.0
        %11012 = vmatprep.subr.mxu0 0.0
        %11013 = vmatpush1.xpose.msra.mxu0 0.0
        %11014 = vmatprep.subr.mxu0 0.0
        %11015 = vmatpush1.xpose.msra.mxu0 0.0
        %11016 = vmatprep.subr.mxu0 0.0
        %11017 = vmatpush1.xpose.msra.mxu0 0.0
        %11018 = vmatprep.subr.mxu0 0.0
        %11019 = vmatpush1.xpose.msra.mxu0 0.0
        %11020 = vmatprep.subr.mxu0 0.0
        %11021 = vmatpush1.xpose.msra.mxu0 %v10988
        %11022 = vmatprep.subr.mxu0 0.0
        %11023 = vmatpush2.xpose.msra.mxu0 0.0
        %11024 = vmatprep.subr.mxu0 0.0
        %11025 = vmatpush2.xpose.msra.mxu0 0.0
        %11026 = vmatprep.subr.mxu0 0.0
        %11027 = vmatpush2.xpose.msra.mxu0 0.0
        %11028 = vmatprep.subr.mxu0 0.0
        %11029 = vmatpush2.xpose.msra.mxu0 0.0
        %11030 = vmatprep.subr.mxu0 0.0
        %11031 = vmatpush2.xpose.msra.mxu0 0.0
        %11032 = vmatprep.subr.mxu0 0.0
        %11033 = vmatpush2.xpose.msra.mxu0 0.0
        %11034 = vmatprep.subr.mxu0 0.0
        %11035 = vmatpush2.xpose.msra.mxu0 0.0
        %11036 = vmatprep.subr.mxu0 0.0
        %11037 = vmatpush2.xpose.msra.mxu0 0.0
        %11038 = vmatprep.subr.mxu0 0.0
        %11039 = vmatpush2.xpose.msra.mxu0 0.0
        %11040 = vmatprep.subr.mxu0 0.0
        %11041 = vmatpush2.xpose.msra.mxu0 0.0
        %11042 = vmatprep.subr.mxu0 0.0
        %11043 = vmatpush2.xpose.msra.mxu0 0.0
        %11044 = vmatprep.subr.mxu0 0.0
        %11045 = vmatpush2.xpose.msra.mxu0 0.0
        %11046 = vmatprep.subr.mxu0 0.0
        %11047 = vmatpush2.xpose.msra.mxu0 0.0
        %11048 = vmatprep.subr.mxu0 0.0
        %11049 = vmatpush2.xpose.msra.mxu0 0.0
        %11050 = vmatprep.subr.mxu0 0.0
        %11051 = vmatpush2.xpose.msra.mxu0 0.0
        %11052 = vmatprep.subr.mxu0 0.0
        %11053 = vmatpush2.xpose.msra.mxu0 0.0
        %11054 = vmatprep.mubr.f32.mxu0 0.0
        %11055 = vmatmul.mubr.f32.gmra.mxu0 %v10985
        %v11056 = vpop.f32.mrf.mxu0
        %v11057 = vadd.f32 0.0, %v11056
        %v11058 = vpop.f32.mrf.mxu0
        %11059 = vdwg.mxu0
        %v11060 = vrcp.pop 1024.0
        %v11061 = vmul.f32 %v11057, %v11060
        %vm11062 = vcmask 64512
        %v11064 = vsel %vm11062, %v11061, 0
        %11066 = vmatprep.subr.mxu0 0.0
        %11067 = vmatpush1.msra.mxu0 0.0
        %11068 = vmatprep.subr.mxu0 0.0
        %11069 = vmatpush1.msra.mxu0 0.0
        %11070 = vmatprep.subr.mxu0 0.0
        %11071 = vmatpush1.msra.mxu0 0.0
        %11072 = vmatprep.subr.mxu0 0.0
        %11073 = vmatpush1.msra.mxu0 0.0
        %11074 = vmatprep.subr.mxu0 0.0
        %11075 = vmatpush1.msra.mxu0 0.0
        %11076 = vmatprep.subr.mxu0 0.0
        %11077 = vmatpush1.msra.mxu0 0.0
        %11078 = vmatprep.subr.mxu0 0.0
        %11079 = vmatpush1.msra.mxu0 0.0
        %11080 = vmatprep.subr.mxu0 0.0
        %11081 = vmatpush1.msra.mxu0 0.0
        %11082 = vmatprep.subr.mxu0 0.0
        %11083 = vmatpush1.msra.mxu0 0.0
        %11084 = vmatprep.subr.mxu0 0.0
        %11085 = vmatpush1.msra.mxu0 0.0
        %11086 = vmatprep.subr.mxu0 0.0
        %11087 = vmatpush1.msra.mxu0 0.0
        %11088 = vmatprep.subr.mxu0 0.0
        %11089 = vmatpush1.msra.mxu0 0.0
        %11090 = vmatprep.subr.mxu0 0.0
        %11091 = vmatpush1.msra.mxu0 0.0
        %11092 = vmatprep.subr.mxu0 0.0
        %11093 = vmatpush1.msra.mxu0 0.0
        %11094 = vmatprep.subr.mxu0 0.0
        %11095 = vmatpush1.msra.mxu0 0.0
        %11096 = vmatprep.subr.mxu0 0.0
        %11097 = vmatpush1.msra.mxu0 %v290
        %11098 = vmatprep.subr.mxu0 0.0
        %11099 = vmatpush2.msra.mxu0 0.0
        %11100 = vmatprep.subr.mxu0 0.0
        %11101 = vmatpush2.msra.mxu0 0.0
        %11102 = vmatprep.subr.mxu0 0.0
        %11103 = vmatpush2.msra.mxu0 0.0
        %11104 = vmatprep.subr.mxu0 0.0
        %11105 = vmatpush2.msra.mxu0 0.0
        %11106 = vmatprep.subr.mxu0 0.0
        %11107 = vmatpush2.msra.mxu0 0.0
        %11108 = vmatprep.subr.mxu0 0.0
        %11109 = vmatpush2.msra.mxu0 0.0
        %11110 = vmatprep.subr.mxu0 0.0
        %11111 = vmatpush2.msra.mxu0 0.0
        %11112 = vmatprep.subr.mxu0 0.0
        %11113 = vmatpush2.msra.mxu0 0.0
        %11114 = vmatprep.subr.mxu0 0.0
        %11115 = vmatpush2.msra.mxu0 0.0
        %11116 = vmatprep.subr.mxu0 0.0
        %11117 = vmatpush2.msra.mxu0 0.0
        %11118 = vmatprep.subr.mxu0 0.0
        %11119 = vmatpush2.msra.mxu0 0.0
        %11120 = vmatprep.subr.mxu0 0.0
        %11121 = vmatpush2.msra.mxu0 0.0
        %11122 = vmatprep.subr.mxu0 0.0
        %11123 = vmatpush2.msra.mxu0 0.0
        %11124 = vmatprep.subr.mxu0 0.0
        %11125 = vmatpush2.msra.mxu0 0.0
        %11126 = vmatprep.subr.mxu0 0.0
        %11127 = vmatpush2.msra.mxu0 0.0
        %11128 = vmatprep.subr.mxu0 0.0
        %11129 = vmatpush2.msra.mxu0 0.0
        %11130 = vmatprep.mubr.f32.mxu0 0.0
        %11131 = vmatmul.mubr.f32.gmra.mxu0 %v11064
        %v11132 = vpop.f32.mrf.mxu0
        %v11133 = vadd.f32 0.0, %v11132
        %v11134 = vpop.f32.mrf.mxu0
        %11135 = vdwg.mxu0
        %v11136 = vlaneseq
        %v11137 = vshrl.u32 %v11136, 7
        %v11138 = vsub.s32 0, %v11137
        %v11139 = vrot.slane %v11133, %v11138
        %v11140 = vsub.f32 %v10757, %v11139
        %v11141 = vsub.f32 %v10762, %v11139
        %v11142 = vsub.f32 %v10767, %v11139
        %v11143 = vsub.f32 %v10772, %v11139
        %v11144 = vsub.f32 %v10777, %v11139
        %v11145 = vsub.f32 %v10782, %v11139
        %v11146 = vsub.f32 %v10787, %v11139
        %v11147 = vsub.f32 %v10792, %v11139
        %v11148 = vsub.f32 %v10797, %v11139
        %v11149 = vsub.f32 %v10802, %v11139
        %v11150 = vsub.f32 %v10807, %v11139
        %v11151 = vsub.f32 %v10812, %v11139
        %v11152 = vsub.f32 %v10817, %v11139
        %v11153 = vsub.f32 %v10822, %v11139
        %v11154 = vsub.f32 %v10827, %v11139
        %v11155 = vsub.f32 %v10832, %v11139
        %v11156 = vsub.f32 %v10837, %v11139
        %v11157 = vsub.f32 %v10842, %v11139
        %v11158 = vsub.f32 %v10847, %v11139
        %v11159 = vsub.f32 %v10852, %v11139
        %v11160 = vsub.f32 %v10857, %v11139
        %v11161 = vsub.f32 %v10862, %v11139
        %v11162 = vsub.f32 %v10867, %v11139
        %v11163 = vsub.f32 %v10872, %v11139
        %v11164 = vsub.f32 %v10877, %v11139
        %v11165 = vsub.f32 %v10882, %v11139
        %v11166 = vsub.f32 %v10887, %v11139
        %v11167 = vsub.f32 %v10892, %v11139
        %v11168 = vsub.f32 %v10897, %v11139
        %v11169 = vsub.f32 %v10902, %v11139
        %v11170 = vsub.f32 %v10907, %v11139
        %v11171 = vsub.f32 %v10912, %v11139
        %v11172 = vmul.f32 %v11140, %v11140
        %v11173 = vmul.f32 %v11141, %v11141
        %v11174 = vmul.f32 %v11142, %v11142
        %v11175 = vmul.f32 %v11143, %v11143
        %v11176 = vmul.f32 %v11144, %v11144
        %v11177 = vmul.f32 %v11145, %v11145
        %v11178 = vmul.f32 %v11146, %v11146
        %v11179 = vmul.f32 %v11147, %v11147
        %v11180 = vmul.f32 %v11148, %v11148
        %v11181 = vmul.f32 %v11149, %v11149
        %v11182 = vmul.f32 %v11150, %v11150
        %v11183 = vmul.f32 %v11151, %v11151
        %v11184 = vmul.f32 %v11152, %v11152
        %v11185 = vmul.f32 %v11153, %v11153
        %v11186 = vmul.f32 %v11154, %v11154
        %v11187 = vmul.f32 %v11155, %v11155
        %v11188 = vmul.f32 %v11156, %v11156
        %v11189 = vmul.f32 %v11157, %v11157
        %v11190 = vmul.f32 %v11158, %v11158
        %v11191 = vmul.f32 %v11159, %v11159
        %v11192 = vmul.f32 %v11160, %v11160
        %v11193 = vmul.f32 %v11161, %v11161
        %v11194 = vmul.f32 %v11162, %v11162
        %v11195 = vmul.f32 %v11163, %v11163
        %v11196 = vmul.f32 %v11164, %v11164
        %v11197 = vmul.f32 %v11165, %v11165
        %v11198 = vmul.f32 %v11166, %v11166
        %v11199 = vmul.f32 %v11167, %v11167
        %v11200 = vmul.f32 %v11168, %v11168
        %v11201 = vmul.f32 %v11169, %v11169
        %v11202 = vmul.f32 %v11170, %v11170
        %v11203 = vmul.f32 %v11171, %v11171
        %v11204 = vsel %vm374, %v11172, 0.0
        %v11205 = vsel %vm374, %v11173, 0.0
        %v11206 = vadd.f32 %v11204, %v11205
        %v11207 = vsel %vm374, %v11174, 0.0
        %v11208 = vadd.f32 %v11206, %v11207
        %v11209 = vsel %vm374, %v11175, 0.0
        %v11210 = vadd.f32 %v11208, %v11209
        %v11211 = vsel %vm374, %v11176, 0.0
        %v11212 = vadd.f32 %v11210, %v11211
        %v11213 = vsel %vm374, %v11177, 0.0
        %v11214 = vadd.f32 %v11212, %v11213
        %v11215 = vsel %vm374, %v11178, 0.0
        %v11216 = vadd.f32 %v11214, %v11215
        %v11217 = vsel %vm374, %v11179, 0.0
        %v11218 = vadd.f32 %v11216, %v11217
        %v11219 = vsel %vm374, %v11180, 0.0
        %v11220 = vadd.f32 %v11218, %v11219
        %v11221 = vsel %vm374, %v11181, 0.0
        %v11222 = vadd.f32 %v11220, %v11221
        %v11223 = vsel %vm374, %v11182, 0.0
        %v11224 = vadd.f32 %v11222, %v11223
        %v11225 = vsel %vm374, %v11183, 0.0
        %v11226 = vadd.f32 %v11224, %v11225
        %v11227 = vsel %vm374, %v11184, 0.0
        %v11228 = vadd.f32 %v11226, %v11227
        %v11229 = vsel %vm374, %v11185, 0.0
        %v11230 = vadd.f32 %v11228, %v11229
        %v11231 = vsel %vm374, %v11186, 0.0
        %v11232 = vadd.f32 %v11230, %v11231
        %v11233 = vsel %vm374, %v11187, 0.0
        %v11234 = vadd.f32 %v11232, %v11233
        %v11235 = vsel %vm374, %v11188, 0.0
        %v11236 = vadd.f32 %v11234, %v11235
        %v11237 = vsel %vm374, %v11189, 0.0
        %v11238 = vadd.f32 %v11236, %v11237
        %v11239 = vsel %vm374, %v11190, 0.0
        %v11240 = vadd.f32 %v11238, %v11239
        %v11241 = vsel %vm374, %v11191, 0.0
        %v11242 = vadd.f32 %v11240, %v11241
        %v11243 = vsel %vm374, %v11192, 0.0
        %v11244 = vadd.f32 %v11242, %v11243
        %v11245 = vsel %vm374, %v11193, 0.0
        %v11246 = vadd.f32 %v11244, %v11245
        %v11247 = vsel %vm374, %v11194, 0.0
        %v11248 = vadd.f32 %v11246, %v11247
        %v11249 = vsel %vm374, %v11195, 0.0
        %v11250 = vadd.f32 %v11248, %v11249
        %v11251 = vsel %vm374, %v11196, 0.0
        %v11252 = vadd.f32 %v11250, %v11251
        %v11253 = vsel %vm374, %v11197, 0.0
        %v11254 = vadd.f32 %v11252, %v11253
        %v11255 = vsel %vm374, %v11198, 0.0
        %v11256 = vadd.f32 %v11254, %v11255
        %v11257 = vsel %vm374, %v11199, 0.0
        %v11258 = vadd.f32 %v11256, %v11257
        %v11259 = vsel %vm374, %v11200, 0.0
        %v11260 = vadd.f32 %v11258, %v11259
        %v11261 = vsel %vm374, %v11201, 0.0
        %v11262 = vadd.f32 %v11260, %v11261
        %v11263 = vsel %vm374, %v11202, 0.0
        %v11264 = vadd.f32 %v11262, %v11263
        %v11265 = vsel %vm374, %v11203, 0.0
        %v11266 = vadd.f32 %v11264, %v11265
        %v11267 = vrot.slane %v11266, 4
        %v11268 = vadd.f32 %v11266, %v11267
        %v11269 = vrot.slane %v11268, 2
        %v11270 = vadd.f32 %v11268, %v11269
        %v11271 = vrot.slane %v11270, 1
        %v11272 = vadd.f32 %v11270, %v11271
        %v11274 = vsel %vm374, %v11272, 0
        %11276 = vmatprep.subr.mxu0 0.0
        %11277 = vmatpush1.xpose.msra.mxu0 0.0
        %11278 = vmatprep.subr.mxu0 0.0
        %11279 = vmatpush1.xpose.msra.mxu0 0.0
        %11280 = vmatprep.subr.mxu0 0.0
        %11281 = vmatpush1.xpose.msra.mxu0 0.0
        %11282 = vmatprep.subr.mxu0 0.0
        %11283 = vmatpush1.xpose.msra.mxu0 0.0
        %11284 = vmatprep.subr.mxu0 0.0
        %11285 = vmatpush1.xpose.msra.mxu0 0.0
        %11286 = vmatprep.subr.mxu0 0.0
        %11287 = vmatpush1.xpose.msra.mxu0 0.0
        %11288 = vmatprep.subr.mxu0 0.0
        %11289 = vmatpush1.xpose.msra.mxu0 0.0
        %11290 = vmatprep.subr.mxu0 0.0
        %11291 = vmatpush1.xpose.msra.mxu0 0.0
        %11292 = vmatprep.subr.mxu0 0.0
        %11293 = vmatpush1.xpose.msra.mxu0 0.0
        %11294 = vmatprep.subr.mxu0 0.0
        %11295 = vmatpush1.xpose.msra.mxu0 0.0
        %11296 = vmatprep.subr.mxu0 0.0
        %11297 = vmatpush1.xpose.msra.mxu0 0.0
        %11298 = vmatprep.subr.mxu0 0.0
        %11299 = vmatpush1.xpose.msra.mxu0 0.0
        %11300 = vmatprep.subr.mxu0 0.0
        %11301 = vmatpush1.xpose.msra.mxu0 0.0
        %11302 = vmatprep.subr.mxu0 0.0
        %11303 = vmatpush1.xpose.msra.mxu0 0.0
        %11304 = vmatprep.subr.mxu0 0.0
        %11305 = vmatpush1.xpose.msra.mxu0 0.0
        %11306 = vmatprep.subr.mxu0 0.0
        %11307 = vmatpush1.xpose.msra.mxu0 %v10988
        %11308 = vmatprep.subr.mxu0 0.0
        %11309 = vmatpush2.xpose.msra.mxu0 0.0
        %11310 = vmatprep.subr.mxu0 0.0
        %11311 = vmatpush2.xpose.msra.mxu0 0.0
        %11312 = vmatprep.subr.mxu0 0.0
        %11313 = vmatpush2.xpose.msra.mxu0 0.0
        %11314 = vmatprep.subr.mxu0 0.0
        %11315 = vmatpush2.xpose.msra.mxu0 0.0
        %11316 = vmatprep.subr.mxu0 0.0
        %11317 = vmatpush2.xpose.msra.mxu0 0.0
        %11318 = vmatprep.subr.mxu0 0.0
        %11319 = vmatpush2.xpose.msra.mxu0 0.0
        %11320 = vmatprep.subr.mxu0 0.0
        %11321 = vmatpush2.xpose.msra.mxu0 0.0
        %11322 = vmatprep.subr.mxu0 0.0
        %11323 = vmatpush2.xpose.msra.mxu0 0.0
        %11324 = vmatprep.subr.mxu0 0.0
        %11325 = vmatpush2.xpose.msra.mxu0 0.0
        %11326 = vmatprep.subr.mxu0 0.0
        %11327 = vmatpush2.xpose.msra.mxu0 0.0
        %11328 = vmatprep.subr.mxu0 0.0
        %11329 = vmatpush2.xpose.msra.mxu0 0.0
        %11330 = vmatprep.subr.mxu0 0.0
        %11331 = vmatpush2.xpose.msra.mxu0 0.0
        %11332 = vmatprep.subr.mxu0 0.0
        %11333 = vmatpush2.xpose.msra.mxu0 0.0
        %11334 = vmatprep.subr.mxu0 0.0
        %11335 = vmatpush2.xpose.msra.mxu0 0.0
        %11336 = vmatprep.subr.mxu0 0.0
        %11337 = vmatpush2.xpose.msra.mxu0 0.0
        %11338 = vmatprep.subr.mxu0 0.0
        %11339 = vmatpush2.xpose.msra.mxu0 0.0
        %11340 = vmatprep.mubr.f32.mxu0 0.0
        %11341 = vmatmul.mubr.f32.gmra.mxu0 %v11274
        %v11342 = vpop.f32.mrf.mxu0
        %v11343 = vadd.f32 0.0, %v11342
        %v11344 = vpop.f32.mrf.mxu0
        %11345 = vdwg.mxu0
        %v11346 = vmul.f32 %v11343, %v11060
        %v11347 = vadd.f32 %v11346, 1e-05
        %v11348 = vrsqrt.pop %v11347
        %v11350 = vsel %vm11062, %v11348, 0
        %11352 = vmatprep.subr.mxu0 0.0
        %11353 = vmatpush1.msra.mxu0 0.0
        %11354 = vmatprep.subr.mxu0 0.0
        %11355 = vmatpush1.msra.mxu0 0.0
        %11356 = vmatprep.subr.mxu0 0.0
        %11357 = vmatpush1.msra.mxu0 0.0
        %11358 = vmatprep.subr.mxu0 0.0
        %11359 = vmatpush1.msra.mxu0 0.0
        %11360 = vmatprep.subr.mxu0 0.0
        %11361 = vmatpush1.msra.mxu0 0.0
        %11362 = vmatprep.subr.mxu0 0.0
        %11363 = vmatpush1.msra.mxu0 0.0
        %11364 = vmatprep.subr.mxu0 0.0
        %11365 = vmatpush1.msra.mxu0 0.0
        %11366 = vmatprep.subr.mxu0 0.0
        %11367 = vmatpush1.msra.mxu0 0.0
        %11368 = vmatprep.subr.mxu0 0.0
        %11369 = vmatpush1.msra.mxu0 0.0
        %11370 = vmatprep.subr.mxu0 0.0
        %11371 = vmatpush1.msra.mxu0 0.0
        %11372 = vmatprep.subr.mxu0 0.0
        %11373 = vmatpush1.msra.mxu0 0.0
        %11374 = vmatprep.subr.mxu0 0.0
        %11375 = vmatpush1.msra.mxu0 0.0
        %11376 = vmatprep.subr.mxu0 0.0
        %11377 = vmatpush1.msra.mxu0 0.0
        %11378 = vmatprep.subr.mxu0 0.0
        %11379 = vmatpush1.msra.mxu0 0.0
        %11380 = vmatprep.subr.mxu0 0.0
        %11381 = vmatpush1.msra.mxu0 0.0
        %11382 = vmatprep.subr.mxu0 0.0
        %11383 = vmatpush1.msra.mxu0 %v290
        %11384 = vmatprep.subr.mxu0 0.0
        %11385 = vmatpush2.msra.mxu0 0.0
        %11386 = vmatprep.subr.mxu0 0.0
        %11387 = vmatpush2.msra.mxu0 0.0
        %11388 = vmatprep.subr.mxu0 0.0
        %11389 = vmatpush2.msra.mxu0 0.0
        %11390 = vmatprep.subr.mxu0 0.0
        %11391 = vmatpush2.msra.mxu0 0.0
        %11392 = vmatprep.subr.mxu0 0.0
        %11393 = vmatpush2.msra.mxu0 0.0
        %11394 = vmatprep.subr.mxu0 0.0
        %11395 = vmatpush2.msra.mxu0 0.0
        %11396 = vmatprep.subr.mxu0 0.0
        %11397 = vmatpush2.msra.mxu0 0.0
        %11398 = vmatprep.subr.mxu0 0.0
        %11399 = vmatpush2.msra.mxu0 0.0
        %11400 = vmatprep.subr.mxu0 0.0
        %11401 = vmatpush2.msra.mxu0 0.0
        %11402 = vmatprep.subr.mxu0 0.0
        %11403 = vmatpush2.msra.mxu0 0.0
        %11404 = vmatprep.subr.mxu0 0.0
        %11405 = vmatpush2.msra.mxu0 0.0
        %11406 = vmatprep.subr.mxu0 0.0
        %11407 = vmatpush2.msra.mxu0 0.0
        %11408 = vmatprep.subr.mxu0 0.0
        %11409 = vmatpush2.msra.mxu0 0.0
        %11410 = vmatprep.subr.mxu0 0.0
        %11411 = vmatpush2.msra.mxu0 0.0
        %11412 = vmatprep.subr.mxu0 0.0
        %11413 = vmatpush2.msra.mxu0 0.0
        %11414 = vmatprep.subr.mxu0 0.0
        %11415 = vmatpush2.msra.mxu0 0.0
        %11416 = vmatprep.mubr.f32.mxu0 0.0
        %11417 = vmatmul.mubr.f32.gmra.mxu0 %v11350
        %v11418 = vpop.f32.mrf.mxu0
        %v11419 = vadd.f32 0.0, %v11418
        %v11420 = vpop.f32.mrf.mxu0
        %11421 = vdwg.mxu0
        %v11422 = vmul.f32 %v11419, %v288
        %v11423 = vlaneseq
        %v11424 = vshrl.u32 %v11423, 7
        %v11425 = vsub.s32 0, %v11424
        %v11426 = vrot.slane %v11422, %v11425
        %v11427 = vmul.f32 %v11140, %v11426
        %v11428 = vmul.f32 %v11141, %v11426
        %v11429 = vmul.f32 %v11142, %v11426
        %v11430 = vmul.f32 %v11143, %v11426
        %v11431 = vmul.f32 %v11144, %v11426
        %v11432 = vmul.f32 %v11145, %v11426
        %v11433 = vmul.f32 %v11146, %v11426
        %v11434 = vmul.f32 %v11147, %v11426
        %v11435 = vmul.f32 %v11148, %v11426
        %v11436 = vmul.f32 %v11149, %v11426
        %v11437 = vmul.f32 %v11150, %v11426
        %v11438 = vmul.f32 %v11151, %v11426
        %v11439 = vmul.f32 %v11152, %v11426
        %v11440 = vmul.f32 %v11153, %v11426
        %v11441 = vmul.f32 %v11154, %v11426
        %v11442 = vmul.f32 %v11155, %v11426
        %v11443 = vmul.f32 %v11156, %v11426
        %v11444 = vmul.f32 %v11157, %v11426
        %v11445 = vmul.f32 %v11158, %v11426
        %v11446 = vmul.f32 %v11159, %v11426
        %v11447 = vmul.f32 %v11160, %v11426
        %v11448 = vmul.f32 %v11161, %v11426
        %v11449 = vmul.f32 %v11162, %v11426
        %v11450 = vmul.f32 %v11163, %v11426
        %v11451 = vmul.f32 %v11164, %v11426
        %v11452 = vmul.f32 %v11165, %v11426
        %v11453 = vmul.f32 %v11166, %v11426
        %v11454 = vmul.f32 %v11167, %v11426
        %v11455 = vmul.f32 %v11168, %v11426
        %v11456 = vmul.f32 %v11169, %v11426
        %v11457 = vmul.f32 %v11170, %v11426
        %v11458 = vmul.f32 %v11171, %v11426
        %v11459 = vlaneseq
        %v11460 = vshrl.u32 %v11459, 7
        %v11461 = vsub.s32 0, %v11460
        %v11462 = vrot.slane %v289, %v11461
        %v11463 = vadd.f32 %v11427, %v11462
        %v11464 = vadd.f32 %v11428, %v11462
        %v11465 = vadd.f32 %v11429, %v11462
        %v11466 = vadd.f32 %v11430, %v11462
        %v11467 = vadd.f32 %v11431, %v11462
        %v11468 = vadd.f32 %v11432, %v11462
        %v11469 = vadd.f32 %v11433, %v11462
        %v11470 = vadd.f32 %v11434, %v11462
        %v11471 = vadd.f32 %v11435, %v11462
        %v11472 = vadd.f32 %v11436, %v11462
        %v11473 = vadd.f32 %v11437, %v11462
        %v11474 = vadd.f32 %v11438, %v11462
        %v11475 = vadd.f32 %v11439, %v11462
        %v11476 = vadd.f32 %v11440, %v11462
        %v11477 = vadd.f32 %v11441, %v11462
        %v11478 = vadd.f32 %v11442, %v11462
        %v11479 = vadd.f32 %v11443, %v11462
        %v11480 = vadd.f32 %v11444, %v11462
        %v11481 = vadd.f32 %v11445, %v11462
        %v11482 = vadd.f32 %v11446, %v11462
        %v11483 = vadd.f32 %v11447, %v11462
        %v11484 = vadd.f32 %v11448, %v11462
        %v11485 = vadd.f32 %v11449, %v11462
        %v11486 = vadd.f32 %v11450, %v11462
        %v11487 = vadd.f32 %v11451, %v11462
        %v11488 = vadd.f32 %v11452, %v11462
        %v11489 = vadd.f32 %v11453, %v11462
        %v11490 = vadd.f32 %v11454, %v11462
        %v11491 = vadd.f32 %v11455, %v11462
        %v11492 = vadd.f32 %v11456, %v11462
        %v11493 = vadd.f32 %v11457, %v11462
        %v11494 = vadd.f32 %v11458, %v11462
        %11495 = vxpose.xlu0.b32.start [1/16] %v11463, 128
        %11496 = vxpose.xlu0.b32.cont [2/16] %v11464, 128
        %11497 = vxpose.xlu0.b32.cont [3/16] %v11465, 128
        %11498 = vxpose.xlu0.b32.cont [4/16] %v11466, 128
        %11499 = vxpose.xlu0.b32.cont [5/16] %v11467, 128
        %11500 = vxpose.xlu0.b32.cont [6/16] %v11468, 128
        %11501 = vxpose.xlu0.b32.cont [7/16] %v11469, 128
        %11502 = vxpose.xlu0.b32.cont [8/16] %v11470, 128
        %11503 = vxpose.xlu0.b32.cont [9/16] %v11471, 128
        %11504 = vxpose.xlu0.b32.cont [10/16] %v11472, 128
        %11505 = vxpose.xlu0.b32.cont [11/16] %v11473, 128
        %11506 = vxpose.xlu0.b32.cont [12/16] %v11474, 128
        %11507 = vxpose.xlu0.b32.cont [13/16] %v11475, 128
        %11508 = vxpose.xlu0.b32.cont [14/16] %v11476, 128
        %11509 = vxpose.xlu0.b32.cont [15/16] %v11477, 128
        %11510 = vxpose.xlu0.b32.end [16/16] %v11478, 128
        %v11511 = vpop.trf.xlu0
        %v11512 = vpop.trf.xlu0
        %v11513 = vpop.trf.xlu0
        %v11514 = vpop.trf.xlu0
        %v11515 = vpop.trf.xlu0
        %v11516 = vpop.trf.xlu0
        %v11517 = vpop.trf.xlu0
        %v11518 = vpop.trf.xlu0
        %v11519 = vpop.trf.xlu0
        %v11520 = vpop.trf.xlu0
        %v11521 = vpop.trf.xlu0
        %v11522 = vpop.trf.xlu0
        %v11523 = vpop.trf.xlu0
        %v11524 = vpop.trf.xlu0
        %v11525 = vpop.trf.xlu0
        %v11526 = vpop.trf.xlu0
        %11527 = vxpose.xlu0.b32.start [1/16] %v11479, 128
        %11528 = vxpose.xlu0.b32.cont [2/16] %v11480, 128
        %11529 = vxpose.xlu0.b32.cont [3/16] %v11481, 128
        %11530 = vxpose.xlu0.b32.cont [4/16] %v11482, 128
        %11531 = vxpose.xlu0.b32.cont [5/16] %v11483, 128
        %11532 = vxpose.xlu0.b32.cont [6/16] %v11484, 128
        %11533 = vxpose.xlu0.b32.cont [7/16] %v11485, 128
        %11534 = vxpose.xlu0.b32.cont [8/16] %v11486, 128
        %11535 = vxpose.xlu0.b32.cont [9/16] %v11487, 128
        %11536 = vxpose.xlu0.b32.cont [10/16] %v11488, 128
        %11537 = vxpose.xlu0.b32.cont [11/16] %v11489, 128
        %11538 = vxpose.xlu0.b32.cont [12/16] %v11490, 128
        %11539 = vxpose.xlu0.b32.cont [13/16] %v11491, 128
        %11540 = vxpose.xlu0.b32.cont [14/16] %v11492, 128
        %11541 = vxpose.xlu0.b32.cont [15/16] %v11493, 128
        %11542 = vxpose.xlu0.b32.end [16/16] %v11494, 128
        %v11543 = vpop.trf.xlu0
        %v11544 = vpop.trf.xlu0
        %v11545 = vpop.trf.xlu0
        %v11546 = vpop.trf.xlu0
        %v11547 = vpop.trf.xlu0
        %v11548 = vpop.trf.xlu0
        %v11549 = vpop.trf.xlu0
        %v11550 = vpop.trf.xlu0
        %v11551 = vpop.trf.xlu0
        %v11552 = vpop.trf.xlu0
        %v11553 = vpop.trf.xlu0
        %v11554 = vpop.trf.xlu0
        %v11555 = vpop.trf.xlu0
        %v11556 = vpop.trf.xlu0
        %v11557 = vpop.trf.xlu0
        %v11558 = vpop.trf.xlu0
        %v11559 = vadd.f32 %v11511, %v291
        %v11560 = vadd.f32 %v11543, %v292
        %v11561 = vadd.f32 %v11512, %v293
        %v11562 = vadd.f32 %v11544, %v294
        %v11563 = vadd.f32 %v11513, %v295
        %v11564 = vadd.f32 %v11545, %v296
        %v11565 = vadd.f32 %v11514, %v297
        %v11566 = vadd.f32 %v11546, %v298
        %11567 = vst [vmem:[%s286] sm:$0xff] %v11559
        %11568 = vst [vmem:[%s286 + $0x8] sm:$0xff] %v11560
        %11569 = vst [vmem:[%s286 + $0x10] sm:$0xff] %v11561
        %11570 = vst [vmem:[%s286 + $0x18] sm:$0xff] %v11562
        %11571 = vst [vmem:[%s286 + $0x20] sm:$0xff] %v11563
        %11572 = vst [vmem:[%s286 + $0x28] sm:$0xff] %v11564
        %11573 = vst [vmem:[%s286 + $0x30] sm:$0xff] %v11565
        %11574 = vst [vmem:[%s286 + $0x38] sm:$0xff] %v11566
        %s11575 = sand.u32 %s142, 1
        %s11576 = scalar_lea.sflag [#allocation4], %s11575
        %s11577 = sand.u32 %s142, 1
        %s11578 = smul.addr %s11577, 64
        %s11579 = scalar_lea.vmem [#allocation10], %s11578
        // Predicated region
        $region57: #{tpu_custom_call.1} parent=39 // pred_check
          %p11580 = pneg %p152
        $region58: #{tpu_custom_call.1} parent=39 // pred_check_branch
          %11582 = sbr.rel (%p11580) target = $region60
        $region59: #{tpu_custom_call.1} parent=39 // pred_region
          %s11584 = ssub.s32 1024, 1024
          %11585 = vsyncadd %s11576, %s11584
          %s11586 = smul.addr %s24, 8
          %s11587 = smul.addr %s11586, 128
          %s11588 = scalar_lea.hbm %s5, %s11587
          %s11589 = sshll.u32 %s11579, 4
          %s11590 = int_to_ptr.vmem [resolvable:$true] %s11589
          %11595 = dma.vmem_to_hbm [thread:$0]  %s11590, 1024, %s11588, %s11576, 256, 256, 16
        $region60: #{tpu_custom_call.1} parent=39 // pred_fallthru
          _
      $region40: #{tpu_custom_call.1} parent=5 // pred_fallthru
        _
      %p11596 = scmp.le.s32.totalorder 2, %s19
      // Predicated region
      $region61: #{tpu_custom_call.1} parent=5 // pred_check
        %p11597 = pneg %p11596
      $region62: #{tpu_custom_call.1} parent=5 // pred_check_branch
        %11599 = sbr.rel (%p11597) target = $region64
      $region63: #{tpu_custom_call.1} parent=5 // pred_region
        %s11600 = ssub.s32 %s19, 2
        // Predicated region
        $region65: #{tpu_custom_call.1} parent=63 // pred_check
          %p11601 = pneg %p158
        $region66: #{tpu_custom_call.1} parent=63 // pred_check_branch
          %11603 = sbr.rel (%p11601) target = $region68
        $region67: #{tpu_custom_call.1} parent=63 // pred_region
          %s11604 = sand.u32 %s143, 1
          %s11605 = scalar_lea.sflag [#allocation4], %s11604
          %s11606 = sand.u32 %s143, 1
          %s11607 = smul.addr %s11606, 64
          %s11608 = scalar_lea.vmem [#allocation10], %s11607
          %11609 = dma.done %s11605, 1024
        $region68: #{tpu_custom_call.1} parent=63 // pred_fallthru
          _
      $region64: #{tpu_custom_call.1} parent=5 // pred_fallthru
        _
    $region6: #{tpu_custom_call.1} parent=1 // loop_footer
      %s23 = sadd.s32 1, %s19
    $region7: #{tpu_custom_call.1} parent=1 // loop_footer_branch
      %18 = sbr.rel target = $region3
    $region8: #{tpu_custom_call.1} parent=1 // loop_exit
      _
    %11610 = vsyncpa [#allocation3], 1
    %s11611 = scalar_lea.sflag [#allocation3], 1
    %11612 = vsyncpa %s11611, 1
    %11613 = vsyncpa [#allocation6], 1
    %11614 = vsyncpa [#allocation9], 1
    %11615 = vsyncpa [#allocation4], 1
    %s11616 = scalar_lea.sflag [#allocation4], 1
    %11617 = vsyncpa %s11616, 1

</llo_original>
